<compile_context>
chip_gen: v7x
topology: tpu7x:2x2x1
jax: 0.10.0
libtpu: 0.0.40
codegen_flags: <defaults>
</compile_context>

<pallas_src>
import functools

import numpy as np
import jax
import jax.numpy as jnp
from jax import lax
from jax.experimental import pallas as pl
from jax.experimental.pallas import tpu as pltpu  # noqa: F401  (kept for TPU-specific tuning hooks)


# --------------------------------------------------------------------------- #
#  helpers
# --------------------------------------------------------------------------- #
def get_mask(p_length, emb_dim=64):
    """Mirrors the reference get_mask (host-side numpy).

    Downstream only len(mask) (= number of visits) is ever used, so the forward
    pass does not need to materialize it on device.
    """
    m = np.zeros((len(p_length), 25, emb_dim), np.float32)
    for i, L in enumerate(p_length):
        m[i, int(L) - 1, :] = 1.0
    return m.astype(bool)


def full_spec(shape):
    """Whole-array block, single grid point (grid-less pallas_call)."""
    n = len(shape)
    return pl.BlockSpec(tuple(shape), lambda *_: (0,) * n)


# bias-pack row indices (host packs rows, kernel slices at these static offsets)
_B_DM, _B_ST1, _B_ST2, _B_GE = 0, 1, 2, 3
_B_AM1, _B_AM2, _B_AMU = 4, 5, 6
_B_AG1, _B_AG2, _B_AGU = 7, 8, 9
_B_M1O, _B_M2O = 10, 11
_B_H1, _B_H2 = 12, 13
_N_BIAS_ROWS = 14


# --------------------------------------------------------------------------- #
#  in-kernel building blocks (pure array functions)
# --------------------------------------------------------------------------- #
def _mxdot(x, w):
    """MXU matmul with bf16 operands and f32 accumulation."""
    return jnp.dot(x.astype(jnp.bfloat16), w.astype(jnp.bfloat16),
                   preferred_element_type=jnp.float32)


def _dot_nt(a, b):
    """a @ b.T without materializing a transpose (contract last dims)."""
    return lax.dot_general(a.astype(jnp.bfloat16), b.astype(jnp.bfloat16),
                           (((1,), (1,)), ((), ())),
                           preferred_element_type=jnp.float32)


def _softmax_lastdim(x):
    x = x - jnp.max(x, axis=-1, keepdims=True)
    p = jnp.exp(x)
    return p / jnp.sum(p, axis=-1, keepdims=True)       # exact division


def _attn_encoder(x, w1, b1, w2, b2, u_row):
    # TODO(synk): Attn_encoder class is not provided in the reference; implemented
    # as projection + softmax-over-time gating (output keeps the time axis).
    h = jnp.tanh(_mxdot(x, w1) + b1)                      # (T, d1)
    a = jnp.tanh(_mxdot(h, w2) + b2)                      # (T, d2)
    e = jnp.sum(a * u_row, axis=-1, keepdims=True)        # (T, 1) on the VPU (no N=1 matmul)
    e = e - jnp.max(e, axis=0, keepdims=True)
    p = jnp.exp(e)
    alpha = p / jnp.sum(p, axis=0, keepdims=True)
    return alpha * h


def _proj_heads(x, wqkv_ref, bqkv_ref, j):
    """Per-head projection j (0=q,1=k,2=v) as H rank-2 matmuls (no broadcast_to)."""
    H = wqkv_ref.shape[1]
    return [_mxdot(x, wqkv_ref[j, h]) + bqkv_ref[j, h] for h in range(H)]


def _mha_core(q_heads, kv_in, wqkv_ref, bqkv_ref, wo_ref, bo):
    # TODO(synk): MultiHeadAttention class not provided; interpreted as
    # forward(key, value, query) with key == value, returning (Tq, emb).
    k_heads = _proj_heads(kv_in, wqkv_ref, bqkv_ref, 1)
    v_heads = _proj_heads(kv_in, wqkv_ref, bqkv_ref, 2)
    acc = None
    for h, (qh, kh, vh) in enumerate(zip(q_heads, k_heads, v_heads)):
        s = _dot_nt(qh, kh)                               # (Tq, Tk); 1/sqrt(dh) folded into wq/bq
        p = _softmax_lastdim(s)
        ctx = _mxdot(p, vh)                               # (Tq, dh)
        o_h = _mxdot(ctx, wo_ref[h])                      # (Tq, emb)
        acc = o_h if acc is None else acc + o_h
    return acc + bo


# --------------------------------------------------------------------------- #
#  the fused kernel (whole batch, single grid point)
# --------------------------------------------------------------------------- #
def _merits_fused_kernel(
        lab_ref, glu_time_ref, med_ref,
        drug_in, dm_w,
        static_w1, static_w2p,
        ge_w,
        attmed_w1, attmed_w2,
        attglu_w1p, attglu_w2p,
        m1_wqkv, m1_bqkv, m1_wo,
        m2_wqkv, m2_bqkv, m2_wo,
        head_w1, head_w2,
        bias_ref,
        out_ref):
    B = lab_ref.shape[0]
    med_dim = out_ref.shape[1]
    emb = dm_w.shape[1]
    half, quarter = emb // 2, emb // 4
    glu_dim = ge_w.shape[1]
    hid8 = head_w1.shape[2]

    biases = bias_ref[...]                                # (14, 128) f32, one load

    def brow(i, w):
        return biases[i:i + 1, :w]                        # (1, w) static slice

    # ---- shared across all patients -------------------------------------- #
    # drug memory: three linlayers folded into one stacked matmul (host prep)
    drug_memory = _mxdot(drug_in[...], dm_w[...]) + brow(_B_DM, emb)          # (med, emb)

    # static_ll for the whole batch; static_w2p is zero-padded host-side so
    # the result already lives in the upper lane half of a full-emb tile.
    hs = jnp.maximum(_mxdot(lab_ref[...], static_w1[...]) + brow(_B_ST1, emb), 0.0)
    static_fea = jnp.maximum(_mxdot(hs, static_w2p[...]) + brow(_B_ST2, emb), 0.0)  # (B, emb)

    # m2 query projection of the shared drug memory -- once, not per patient
    m2_q_heads = _proj_heads(drug_memory, m2_wqkv, m2_bqkv, 0)

    outs = []
    for b in range(B):                                    # B is tiny -> unrolled
        # TODO(synk): glu_encoder is an externally supplied module (not defined in
        # the reference); approximated by a tanh linear over concat(glucose, time).
        glu_feat = jnp.tanh(_mxdot(glu_time_ref[b], ge_w[...]) + brow(_B_GE, glu_dim))

        # att_glu weights are zero-padded host-side so glu_rep lands in lanes
        # [0, emb//2) of a full-width tile -> patient_rep is an add, not a concat.
        glu_rep = _attn_encoder(glu_feat, attglu_w1p[...], brow(_B_AG1, emb),
                                attglu_w2p[...], brow(_B_AG2, quarter),
                                brow(_B_AGU, quarter))                        # (T, emb)
        med_rep = _attn_encoder(med_ref[b], attmed_w1[...], brow(_B_AM1, emb),
                                attmed_w2[...], brow(_B_AM2, half),
                                brow(_B_AMU, half))                           # (Tm-1, emb)

        patient_rep = glu_rep + static_fea[b:b + 1, :]                        # (T, emb)

        # `h` (summed historical meds) is computed in the reference but never used.

        # m1: query = med_rep, key = value = patient_rep
        q1_heads = _proj_heads(med_rep, m1_wqkv, m1_bqkv, 0)
        E_en = _mha_core(q1_heads, patient_rep, m1_wqkv, m1_bqkv, m1_wo,
                         brow(_B_M1O, emb))                                   # (Tm-1, emb)
        # m2: query = drug_memory (shared Q), key = value = E_en
        E_de = _mha_core(m2_q_heads, E_en, m2_wqkv, m2_bqkv, m2_wo,
                         brow(_B_M2O, emb))                                   # (med, emb)

        # ---- fused output head: ReLU -> Linear -> ReLU -> Linear ----------- #
        x = jnp.maximum(E_de, 0.0)                                            # (med, emb)
        h1 = brow(_B_H1, hid8)                                                # (1, hid8)
        for m in range(med_dim):                                              # flatten-free contraction
            h1 = h1 + _mxdot(x[m:m + 1, :], head_w1[m])
        h1 = jnp.maximum(h1, 0.0)
        outs.append(_mxdot(h1, head_w2[...]) + brow(_B_H2, med_dim))          # (1, med)

    out_ref[...] = jnp.concatenate(outs, axis=0)                              # (B, med)


# --------------------------------------------------------------------------- #
#  parameter init (deterministic, synthetic)
# --------------------------------------------------------------------------- #
def init_params(key, lab_dim, med_dim, glu_dim, emb_dim, glu_in_dim):
    ks = iter(jax.random.split(key, 64))

    def lin(fan_in, fan_out):
        kw, kb = next(ks), next(ks)
        w = jax.random.normal(kw, (fan_in, fan_out), jnp.float32) / jnp.sqrt(float(fan_in))
        b = jax.random.normal(kb, (fan_out,), jnp.float32) * 0.01
        return w, b

    p = {}
    # static_ll: Linear(lab,emb)+ReLU, Linear(emb,emb//2)+ReLU
    p["static_w1"], p["static_b1"] = lin(lab_dim, emb_dim)
    p["static_w2"], p["static_b2"] = lin(emb_dim, emb_dim // 2)
    # linlayer1/2/3: Linear(med_dim, emb_dim)
    p["lin1_w"], p["lin1_b"] = lin(med_dim, emb_dim)
    p["lin2_w"], p["lin2_b"] = lin(med_dim, emb_dim)
    p["lin3_w"], p["lin3_b"] = lin(med_dim, emb_dim)
    # Attn_encoder(med_dim, emb_dim, emb_dim//2)
    p["attmed_w1"], p["attmed_b1"] = lin(med_dim, emb_dim)
    p["attmed_w2"], p["attmed_b2"] = lin(emb_dim, emb_dim // 2)
    p["attmed_u"] = jax.random.normal(next(ks), (emb_dim // 2, 1), jnp.float32)
    # Attn_encoder(glu_dim, emb_dim//2, emb_dim//4)
    p["attglu_w1"], p["attglu_b1"] = lin(glu_dim, emb_dim // 2)
    p["attglu_w2"], p["attglu_b2"] = lin(emb_dim // 2, emb_dim // 4)
    p["attglu_u"] = jax.random.normal(next(ks), (emb_dim // 4, 1), jnp.float32)
    # glu_encoder proxy (external module in the reference)
    p["gluenc_w"], p["gluenc_b"] = lin(glu_in_dim, glu_dim)
    # MultiHeadAttention m1 / m2
    for name in ("m1", "m2"):
        for proj in ("q", "k", "v", "o"):
            p[f"{name}_w{proj}"], p[f"{name}_b{proj}"] = lin(emb_dim, emb_dim)
    # output head: ReLU, Linear(emb*med, emb*med//8), ReLU, Linear(emb*med//8, med)
    hid = emb_dim * med_dim
    p["out_w1"], p["out_b1"] = lin(hid, hid // 8)
    p["out_w2"], p["out_b2"] = lin(hid // 8, med_dim)
    return p


# --------------------------------------------------------------------------- #
#  forward (eval mode)
# --------------------------------------------------------------------------- #
@functools.partial(jax.jit, static_argnums=(8, 9))
def _forward_impl(params, lab, glu, time_feat, med, ehr_adj, time_adj, ddi_adj,
                  emb_dim, num_heads):
    B = lab.shape[0]
    med_dim = ehr_adj.shape[0]
    dh = emb_dim // num_heads
    scale = 1.0 / float(dh) ** 0.5
    half, quarter = emb_dim // 2, emb_dim // 4
    glu_feat_dim = params["gluenc_w"].shape[1]
    hid8 = params["out_w1"].shape[1]
    bf16 = jnp.bfloat16

    # ---- host-side (free) prep: fold / stack / pad / head-split weights ---- #
    drug_in = jnp.concatenate([ehr_adj, time_adj, ddi_adj], axis=-1).astype(bf16)     # (med, 3*med)
    dm_w = jnp.concatenate([params["lin1_w"], params["lin2_w"], -params["lin3_w"]],
                           axis=0).astype(bf16)                                       # (3*med, emb)
    dm_b = params["lin1_b"] + params["lin2_b"] - params["lin3_b"]

    # static_ll layer-2 padded into the upper lane half (concat -> add trick)
    static_w2p = jnp.concatenate(
        [jnp.zeros((emb_dim, half), jnp.float32), params["static_w2"]], axis=1).astype(bf16)
    static_b2p = jnp.concatenate([jnp.zeros((half,), jnp.float32), params["static_b2"]])

    # att_glu padded into the lower lane half of a full-emb tile
    attglu_w1p = jnp.concatenate(
        [params["attglu_w1"], jnp.zeros((glu_feat_dim, half), jnp.float32)], axis=1).astype(bf16)
    attglu_b1p = jnp.concatenate([params["attglu_b1"], jnp.zeros((half,), jnp.float32)])
    attglu_w2p = jnp.concatenate(
        [params["attglu_w2"], jnp.zeros((half, quarter), jnp.float32)], axis=0).astype(bf16)

    def hw(w):   # (emb, emb) -> (H, emb, dh): per-head column blocks
        return jnp.transpose(w.reshape(emb_dim, num_heads, dh), (1, 0, 2))

    def hb(b):   # (emb,) -> (H, 1, dh)
        return b.reshape(num_heads, 1, dh)

    def how(w):  # (emb, emb) -> (H, dh, emb): per-head row blocks of output proj
        return w.reshape(num_heads, dh, emb_dim)

    def mha_pack(name):
        wq, wk, wv = params[f"{name}_wq"], params[f"{name}_wk"], params[f"{name}_wv"]
        bq, bk, bv = params[f"{name}_bq"], params[f"{name}_bk"], params[f"{name}_bv"]
        # 1/sqrt(dh) folded into the q projection (weights AND bias)
        wqkv = jnp.stack([hw(wq * scale), hw(wk), hw(wv)], axis=0).astype(bf16)   # (3,H,emb,dh)
        bqkv = jnp.stack([hb(bq * scale), hb(bk), hb(bv)], axis=0)                # (3,H,1,dh) f32
        wo = how(params[f"{name}_wo"]).astype(bf16)                               # (H,dh,emb)
        return wqkv, bqkv, wo

    m1_wqkv, m1_bqkv, m1_wo = mha_pack("m1")
    m2_wqkv, m2_bqkv, m2_wo = mha_pack("m2")

    head_w1 = params["out_w1"].reshape(med_dim, emb_dim, hid8).astype(bf16)       # (med, emb, hid8)
    head_w2 = params["out_w2"].astype(bf16)                                       # (hid8, med)

    # pack all small bias / u rows into one resident array
    pack_w = max(128, emb_dim, hid8, med_dim, glu_feat_dim)

    def prow(v):
        v = jnp.asarray(v, jnp.float32).reshape(1, -1)
        return jnp.pad(v, ((0, 0), (0, pack_w - v.shape[1])))

    bias_pack = jnp.concatenate([
        prow(dm_b),                    # _B_DM
        prow(params["static_b1"]),     # _B_ST1
        prow(static_b2p),              # _B_ST2
        prow(params["gluenc_b"]),      # _B_GE
        prow(params["attmed_b1"]),     # _B_AM1
        prow(params["attmed_b2"]),     # _B_AM2
        prow(params["attmed_u"]),      # _B_AMU
        prow(attglu_b1p),              # _B_AG1
        prow(params["attglu_b2"]),     # _B_AG2
        prow(params["attglu_u"]),      # _B_AGU
        prow(params["m1_bo"]),         # _B_M1O
        prow(params["m2_bo"]),         # _B_M2O
        prow(params["out_b1"]),        # _B_H1
        prow(params["out_b2"]),        # _B_H2
    ], axis=0)                                                                    # (14, 128)

    glu_time = jnp.concatenate([glu, time_feat], axis=-1)                         # (B, T, 2*glu_len)
    med_hist = med[:, :-1, :]                                                     # (B, Tm-1, med)

    args = [lab, glu_time, med_hist,
            drug_in, dm_w,
            params["static_w1"].astype(bf16), static_w2p,
            params["gluenc_w"].astype(bf16),
            params["attmed_w1"].astype(bf16), params["attmed_w2"].astype(bf16),
            attglu_w1p, attglu_w2p,
            m1_wqkv, m1_bqkv, m1_wo,
            m2_wqkv, m2_bqkv, m2_wo,
            head_w1, head_w2,
            bias_pack]

    # Single launch, single block containing the whole batch; everything
    # (activations + <1 MB of weights) is resident in VMEM for the call.
    out = pl.pallas_call(
        _merits_fused_kernel,
        out_shape=jax.ShapeDtypeStruct((B, med_dim), jnp.float32),
        in_specs=[full_spec(a.shape) for a in args],
        out_specs=full_spec((B, med_dim)),
    )(*args)
    return out


def merits_lin_forward(params, lab, glu, time_feat, med, length,
                       ehr_adj, time_adj, ddi_adj, emb_dim=64, num_heads=4):
    # `length` only contributes len(length[i]) == number of visits == glu.shape[1]
    # (get_mask is built in the reference but only its length is consumed).
    del length
    return _forward_impl(params, lab, glu, time_feat, med,
                         ehr_adj, time_adj, ddi_adj, emb_dim, num_heads)


# --------------------------------------------------------------------------- #
#  main
# --------------------------------------------------------------------------- #
if __name__ == "__main__":
    LAB_DIM, MED_DIM, GLU_DIM, EMB_DIM = 8, 16, 16, 64
    T_VISITS, T_MED, GLU_LEN, N_PATIENTS = 6, 6, 25, 2
    GLU_IN_DIM = 2 * GLU_LEN

    # deterministic inputs
    key = jax.random.PRNGKey(0)
    k_lab, k_glu, k_time, k_med, k_len, k_adj = jax.random.split(key, 6)
    lab = jax.random.normal(k_lab, (N_PATIENTS, LAB_DIM), jnp.float32)
    glu = jax.random.normal(k_glu, (N_PATIENTS, T_VISITS, GLU_LEN), jnp.float32)
    time_feat = jax.random.normal(k_time, (N_PATIENTS, T_VISITS, GLU_LEN), jnp.float32)
    med = (jax.random.uniform(k_med, (N_PATIENTS, T_MED, MED_DIM)) > 0.5).astype(jnp.float32)
    length_arr = jax.random.randint(k_len, (N_PATIENTS, T_VISITS), 1, GLU_LEN + 1)
    length = [[int(x) for x in row] for row in np.asarray(length_arr)]

    ka1, ka2, ka3 = jax.random.split(k_adj, 3)
    ehr_adj = (jax.random.uniform(ka1, (MED_DIM, MED_DIM)) > 0.5).astype(jnp.float32)
    ddi_adj = (jax.random.uniform(ka2, (MED_DIM, MED_DIM)) > 0.7).astype(jnp.float32)
    time_adj = jax.random.uniform(ka3, (MED_DIM, MED_DIM), jnp.float32)

    # deterministic parameters
    params = init_params(jax.random.PRNGKey(42), LAB_DIM, MED_DIM, GLU_DIM, EMB_DIM, GLU_IN_DIM)

    out = merits_lin_forward(params, lab, glu, time_feat, med, length,
                             ehr_adj, time_adj, ddi_adj, emb_dim=EMB_DIM)
    out = jax.block_until_ready(out)
    assert out.shape == (N_PATIENTS, MED_DIM), out.shape
    assert jnp.all(jnp.isfinite(out))
    print("KERNEL_OK")
</pallas_src>

<mosaic_0001>
module attributes {stable_mosaic.version = 11 : i64} {
  func.func @_merits_fused_kernel(%arg0: memref<2x8xf32, #tpu.memory_space<vmem>>, %arg1: memref<2x6x50xf32, #tpu.memory_space<vmem>>, %arg2: memref<2x5x16xf32, #tpu.memory_space<vmem>>, %arg3: memref<16x48xbf16, #tpu.memory_space<vmem>>, %arg4: memref<48x64xbf16, #tpu.memory_space<vmem>>, %arg5: memref<8x64xbf16, #tpu.memory_space<vmem>>, %arg6: memref<64x64xbf16, #tpu.memory_space<vmem>>, %arg7: memref<50x16xbf16, #tpu.memory_space<vmem>>, %arg8: memref<16x64xbf16, #tpu.memory_space<vmem>>, %arg9: memref<64x32xbf16, #tpu.memory_space<vmem>>, %arg10: memref<16x64xbf16, #tpu.memory_space<vmem>>, %arg11: memref<64x16xbf16, #tpu.memory_space<vmem>>, %arg12: memref<3x4x64x16xbf16, #tpu.memory_space<vmem>>, %arg13: memref<3x4x1x16xf32, #tpu.memory_space<vmem>>, %arg14: memref<4x16x64xbf16, #tpu.memory_space<vmem>>, %arg15: memref<3x4x64x16xbf16, #tpu.memory_space<vmem>>, %arg16: memref<3x4x1x16xf32, #tpu.memory_space<vmem>>, %arg17: memref<4x16x64xbf16, #tpu.memory_space<vmem>>, %arg18: memref<16x64x128xbf16, #tpu.memory_space<vmem>>, %arg19: memref<128x16xbf16, #tpu.memory_space<vmem>>, %arg20: memref<14x128xf32, #tpu.memory_space<vmem>>, %arg21: memref<2x16xf32, #tpu.memory_space<vmem>>) attributes {dimension_semantics = [], scalar_prefetch = 0 : i64, scratch_operands = 0 : i64, tpu.core_type = #tpu.core_type<tc>} {
    %c0 = arith.constant 0 : index
    %c0_0 = arith.constant 0 : index
    %0 = vector.load %arg20[%c0, %c0_0] : memref<14x128xf32, #tpu.memory_space<vmem>>, vector<14x128xf32>
    %c0_1 = arith.constant 0 : index
    %c0_2 = arith.constant 0 : index
    %1 = vector.load %arg3[%c0_1, %c0_2] : memref<16x48xbf16, #tpu.memory_space<vmem>>, vector<16x48xbf16>
    %c0_3 = arith.constant 0 : index
    %c0_4 = arith.constant 0 : index
    %2 = vector.load %arg4[%c0_3, %c0_4] : memref<48x64xbf16, #tpu.memory_space<vmem>>, vector<48x64xbf16>
    %cst = arith.constant dense<0.000000e+00> : vector<16x64xf32>
    %3 = tpu.matmul %1, %2, %cst {dimension_numbers = #tpu.dot_dimension_numbers<[1], [0], [0], [1], [0, 0, 1, 1], [], []>} : vector<16x48xbf16>, vector<48x64xbf16>, vector<16x64xf32> -> vector<16x64xf32>
    %4 = vector.extract_strided_slice %0 {offsets = [0, 0], sizes = [1, 64], strides = [1, 1]} : vector<14x128xf32> to vector<1x64xf32>
    %5 = vector.broadcast %4 : vector<1x64xf32> to vector<16x64xf32>
    %6 = arith.addf %3, %5 : vector<16x64xf32>
    %c0_5 = arith.constant 0 : index
    %c0_6 = arith.constant 0 : index
    %7 = vector.load %arg0[%c0_5, %c0_6] : memref<2x8xf32, #tpu.memory_space<vmem>>, vector<2x8xf32>
    %c0_7 = arith.constant 0 : index
    %c0_8 = arith.constant 0 : index
    %8 = vector.load %arg5[%c0_7, %c0_8] : memref<8x64xbf16, #tpu.memory_space<vmem>>, vector<8x64xbf16>
    %9 = arith.truncf %7 : vector<2x8xf32> to vector<2x8xbf16>
    %cst_9 = arith.constant dense<0.000000e+00> : vector<2x64xf32>
    %10 = tpu.matmul %9, %8, %cst_9 {dimension_numbers = #tpu.dot_dimension_numbers<[1], [0], [0], [1], [0, 0, 1, 1], [], []>} : vector<2x8xbf16>, vector<8x64xbf16>, vector<2x64xf32> -> vector<2x64xf32>
    %11 = vector.extract_strided_slice %0 {offsets = [1, 0], sizes = [1, 64], strides = [1, 1]} : vector<14x128xf32> to vector<1x64xf32>
    %12 = vector.broadcast %11 : vector<1x64xf32> to vector<2x64xf32>
    %13 = arith.addf %10, %12 : vector<2x64xf32>
    %cst_10 = arith.constant 0.000000e+00 : f32
    %14 = vector.broadcast %cst_10 : f32 to vector<2x64xf32>
    %15 = arith.maximumf %13, %14 : vector<2x64xf32>
    %c0_11 = arith.constant 0 : index
    %c0_12 = arith.constant 0 : index
    %16 = vector.load %arg6[%c0_11, %c0_12] : memref<64x64xbf16, #tpu.memory_space<vmem>>, vector<64x64xbf16>
    %17 = arith.truncf %15 : vector<2x64xf32> to vector<2x64xbf16>
    %cst_13 = arith.constant dense<0.000000e+00> : vector<2x64xf32>
    %18 = tpu.matmul %17, %16, %cst_13 {dimension_numbers = #tpu.dot_dimension_numbers<[1], [0], [0], [1], [0, 0, 1, 1], [], []>} : vector<2x64xbf16>, vector<64x64xbf16>, vector<2x64xf32> -> vector<2x64xf32>
    %19 = vector.extract_strided_slice %0 {offsets = [2, 0], sizes = [1, 64], strides = [1, 1]} : vector<14x128xf32> to vector<1x64xf32>
    %20 = vector.broadcast %19 : vector<1x64xf32> to vector<2x64xf32>
    %21 = arith.addf %18, %20 : vector<2x64xf32>
    %cst_14 = arith.constant 0.000000e+00 : f32
    %22 = vector.broadcast %cst_14 : f32 to vector<2x64xf32>
    %23 = arith.maximumf %21, %22 : vector<2x64xf32>
    %c0_15 = arith.constant 0 : index
    %c0_16 = arith.constant 0 : index
    %c0_17 = arith.constant 0 : index
    %c0_18 = arith.constant 0 : index
    %24 = vector.load %arg15[%c0_15, %c0_16, %c0_17, %c0_18] : memref<3x4x64x16xbf16, #tpu.memory_space<vmem>>, vector<1x1x64x16xbf16>
    %25 = vector.shape_cast %24 : vector<1x1x64x16xbf16> to vector<64x16xbf16>
    %26 = arith.truncf %6 : vector<16x64xf32> to vector<16x64xbf16>
    %cst_19 = arith.constant dense<0.000000e+00> : vector<16x16xf32>
    %27 = tpu.matmul %26, %25, %cst_19 {dimension_numbers = #tpu.dot_dimension_numbers<[1], [0], [0], [1], [0, 0, 1, 1], [], []>} : vector<16x64xbf16>, vector<64x16xbf16>, vector<16x16xf32> -> vector<16x16xf32>
    %c0_20 = arith.constant 0 : index
    %c0_21 = arith.constant 0 : index
    %c0_22 = arith.constant 0 : index
    %c0_23 = arith.constant 0 : index
    %28 = vector.load %arg16[%c0_20, %c0_21, %c0_22, %c0_23] : memref<3x4x1x16xf32, #tpu.memory_space<vmem>>, vector<1x1x1x16xf32>
    %29 = vector.shape_cast %28 : vector<1x1x1x16xf32> to vector<1x16xf32>
    %30 = vector.broadcast %29 : vector<1x16xf32> to vector<16x16xf32>
    %31 = arith.addf %27, %30 : vector<16x16xf32>
    %c0_24 = arith.constant 0 : index
    %c1 = arith.constant 1 : index
    %c0_25 = arith.constant 0 : index
    %c0_26 = arith.constant 0 : index
    %32 = vector.load %arg15[%c0_24, %c1, %c0_25, %c0_26] : memref<3x4x64x16xbf16, #tpu.memory_space<vmem>>, vector<1x1x64x16xbf16>
    %33 = vector.shape_cast %32 : vector<1x1x64x16xbf16> to vector<64x16xbf16>
    %34 = arith.truncf %6 : vector<16x64xf32> to vector<16x64xbf16>
    %cst_27 = arith.constant dense<0.000000e+00> : vector<16x16xf32>
    %35 = tpu.matmul %34, %33, %cst_27 {dimension_numbers = #tpu.dot_dimension_numbers<[1], [0], [0], [1], [0, 0, 1, 1], [], []>} : vector<16x64xbf16>, vector<64x16xbf16>, vector<16x16xf32> -> vector<16x16xf32>
    %c0_28 = arith.constant 0 : index
    %c1_29 = arith.constant 1 : index
    %c0_30 = arith.constant 0 : index
    %c0_31 = arith.constant 0 : index
    %36 = vector.load %arg16[%c0_28, %c1_29, %c0_30, %c0_31] : memref<3x4x1x16xf32, #tpu.memory_space<vmem>>, vector<1x1x1x16xf32>
    %37 = vector.shape_cast %36 : vector<1x1x1x16xf32> to vector<1x16xf32>
    %38 = vector.broadcast %37 : vector<1x16xf32> to vector<16x16xf32>
    %39 = arith.addf %35, %38 : vector<16x16xf32>
    %c0_32 = arith.constant 0 : index
    %c2 = arith.constant 2 : index
    %c0_33 = arith.constant 0 : index
    %c0_34 = arith.constant 0 : index
    %40 = vector.load %arg15[%c0_32, %c2, %c0_33, %c0_34] : memref<3x4x64x16xbf16, #tpu.memory_space<vmem>>, vector<1x1x64x16xbf16>
    %41 = vector.shape_cast %40 : vector<1x1x64x16xbf16> to vector<64x16xbf16>
    %42 = arith.truncf %6 : vector<16x64xf32> to vector<16x64xbf16>
    %cst_35 = arith.constant dense<0.000000e+00> : vector<16x16xf32>
    %43 = tpu.matmul %42, %41, %cst_35 {dimension_numbers = #tpu.dot_dimension_numbers<[1], [0], [0], [1], [0, 0, 1, 1], [], []>} : vector<16x64xbf16>, vector<64x16xbf16>, vector<16x16xf32> -> vector<16x16xf32>
    %c0_36 = arith.constant 0 : index
    %c2_37 = arith.constant 2 : index
    %c0_38 = arith.constant 0 : index
    %c0_39 = arith.constant 0 : index
    %44 = vector.load %arg16[%c0_36, %c2_37, %c0_38, %c0_39] : memref<3x4x1x16xf32, #tpu.memory_space<vmem>>, vector<1x1x1x16xf32>
    %45 = vector.shape_cast %44 : vector<1x1x1x16xf32> to vector<1x16xf32>
    %46 = vector.broadcast %45 : vector<1x16xf32> to vector<16x16xf32>
    %47 = arith.addf %43, %46 : vector<16x16xf32>
    %c0_40 = arith.constant 0 : index
    %c3 = arith.constant 3 : index
    %c0_41 = arith.constant 0 : index
    %c0_42 = arith.constant 0 : index
    %48 = vector.load %arg15[%c0_40, %c3, %c0_41, %c0_42] : memref<3x4x64x16xbf16, #tpu.memory_space<vmem>>, vector<1x1x64x16xbf16>
    %49 = vector.shape_cast %48 : vector<1x1x64x16xbf16> to vector<64x16xbf16>
    %50 = arith.truncf %6 : vector<16x64xf32> to vector<16x64xbf16>
    %cst_43 = arith.constant dense<0.000000e+00> : vector<16x16xf32>
    %51 = tpu.matmul %50, %49, %cst_43 {dimension_numbers = #tpu.dot_dimension_numbers<[1], [0], [0], [1], [0, 0, 1, 1], [], []>} : vector<16x64xbf16>, vector<64x16xbf16>, vector<16x16xf32> -> vector<16x16xf32>
    %c0_44 = arith.constant 0 : index
    %c3_45 = arith.constant 3 : index
    %c0_46 = arith.constant 0 : index
    %c0_47 = arith.constant 0 : index
    %52 = vector.load %arg16[%c0_44, %c3_45, %c0_46, %c0_47] : memref<3x4x1x16xf32, #tpu.memory_space<vmem>>, vector<1x1x1x16xf32>
    %53 = vector.shape_cast %52 : vector<1x1x1x16xf32> to vector<1x16xf32>
    %54 = vector.broadcast %53 : vector<1x16xf32> to vector<16x16xf32>
    %55 = arith.addf %51, %54 : vector<16x16xf32>
    %c0_48 = arith.constant 0 : index
    %c0_49 = arith.constant 0 : index
    %c0_50 = arith.constant 0 : index
    %56 = vector.load %arg1[%c0_48, %c0_49, %c0_50] : memref<2x6x50xf32, #tpu.memory_space<vmem>>, vector<1x6x50xf32>
    %57 = vector.shape_cast %56 : vector<1x6x50xf32> to vector<6x50xf32>
    %c0_51 = arith.constant 0 : index
    %c0_52 = arith.constant 0 : index
    %58 = vector.load %arg7[%c0_51, %c0_52] : memref<50x16xbf16, #tpu.memory_space<vmem>>, vector<50x16xbf16>
    %59 = arith.truncf %57 : vector<6x50xf32> to vector<6x50xbf16>
    %cst_53 = arith.constant dense<0.000000e+00> : vector<6x16xf32>
    %60 = tpu.matmul %59, %58, %cst_53 {dimension_numbers = #tpu.dot_dimension_numbers<[1], [0], [0], [1], [0, 0, 1, 1], [], []>} : vector<6x50xbf16>, vector<50x16xbf16>, vector<6x16xf32> -> vector<6x16xf32>
    %61 = vector.extract_strided_slice %0 {offsets = [3, 0], sizes = [1, 16], strides = [1, 1]} : vector<14x128xf32> to vector<1x16xf32>
    %62 = vector.broadcast %61 : vector<1x16xf32> to vector<6x16xf32>
    %63 = arith.addf %60, %62 : vector<6x16xf32>
    %64 = math.tanh %63 : vector<6x16xf32>
    %c0_54 = arith.constant 0 : index
    %c0_55 = arith.constant 0 : index
    %65 = vector.load %arg10[%c0_54, %c0_55] : memref<16x64xbf16, #tpu.memory_space<vmem>>, vector<16x64xbf16>
    %66 = vector.extract_strided_slice %0 {offsets = [7, 0], sizes = [1, 64], strides = [1, 1]} : vector<14x128xf32> to vector<1x64xf32>
    %c0_56 = arith.constant 0 : index
    %c0_57 = arith.constant 0 : index
    %67 = vector.load %arg11[%c0_56, %c0_57] : memref<64x16xbf16, #tpu.memory_space<vmem>>, vector<64x16xbf16>
    %68 = vector.extract_strided_slice %0 {offsets = [8, 0], sizes = [1, 16], strides = [1, 1]} : vector<14x128xf32> to vector<1x16xf32>
    %69 = vector.extract_strided_slice %0 {offsets = [9, 0], sizes = [1, 16], strides = [1, 1]} : vector<14x128xf32> to vector<1x16xf32>
    %70 = arith.truncf %64 : vector<6x16xf32> to vector<6x16xbf16>
    %cst_58 = arith.constant dense<0.000000e+00> : vector<6x64xf32>
    %71 = tpu.matmul %70, %65, %cst_58 {dimension_numbers = #tpu.dot_dimension_numbers<[1], [0], [0], [1], [0, 0, 1, 1], [], []>} : vector<6x16xbf16>, vector<16x64xbf16>, vector<6x64xf32> -> vector<6x64xf32>
    %72 = vector.broadcast %66 : vector<1x64xf32> to vector<6x64xf32>
    %73 = arith.addf %71, %72 : vector<6x64xf32>
    %74 = math.tanh %73 : vector<6x64xf32>
    %75 = arith.truncf %74 : vector<6x64xf32> to vector<6x64xbf16>
    %cst_59 = arith.constant dense<0.000000e+00> : vector<6x16xf32>
    %76 = tpu.matmul %75, %67, %cst_59 {dimension_numbers = #tpu.dot_dimension_numbers<[1], [0], [0], [1], [0, 0, 1, 1], [], []>} : vector<6x64xbf16>, vector<64x16xbf16>, vector<6x16xf32> -> vector<6x16xf32>
    %77 = vector.broadcast %68 : vector<1x16xf32> to vector<6x16xf32>
    %78 = arith.addf %76, %77 : vector<6x16xf32>
    %79 = math.tanh %78 : vector<6x16xf32>
    %80 = vector.broadcast %69 : vector<1x16xf32> to vector<6x16xf32>
    %81 = arith.mulf %79, %80 : vector<6x16xf32>
    %cst_60 = arith.constant dense<0.000000e+00> : vector<6xf32>
    %82 = vector.multi_reduction <add>, %81, %cst_60 [1] : vector<6x16xf32> to vector<6xf32>
    %83 = vector.shape_cast %82 : vector<6xf32> to vector<6x1xf32>
    %cst_61 = arith.constant dense<0xFF800000> : vector<1xf32>
    %84 = vector.multi_reduction <maximumf>, %83, %cst_61 [0] : vector<6x1xf32> to vector<1xf32>
    %85 = vector.shape_cast %84 : vector<1xf32> to vector<1x1xf32>
    %86 = vector.broadcast %85 : vector<1x1xf32> to vector<6x1xf32>
    %87 = arith.subf %83, %86 : vector<6x1xf32>
    %88 = math.exp %87 : vector<6x1xf32>
    %cst_62 = arith.constant dense<0.000000e+00> : vector<1xf32>
    %89 = vector.multi_reduction <add>, %88, %cst_62 [0] : vector<6x1xf32> to vector<1xf32>
    %90 = vector.shape_cast %89 : vector<1xf32> to vector<1x1xf32>
    %91 = vector.broadcast %90 : vector<1x1xf32> to vector<6x1xf32>
    %92 = arith.divf %88, %91 : vector<6x1xf32>
    %93 = vector.broadcast %92 : vector<6x1xf32> to vector<6x64xf32>
    %94 = arith.mulf %93, %74 : vector<6x64xf32>
    %c0_63 = arith.constant 0 : index
    %c0_64 = arith.constant 0 : index
    %c0_65 = arith.constant 0 : index
    %95 = vector.load %arg2[%c0_63, %c0_64, %c0_65] : memref<2x5x16xf32, #tpu.memory_space<vmem>>, vector<1x5x16xf32>
    %96 = vector.shape_cast %95 : vector<1x5x16xf32> to vector<5x16xf32>
    %c0_66 = arith.constant 0 : index
    %c0_67 = arith.constant 0 : index
    %97 = vector.load %arg8[%c0_66, %c0_67] : memref<16x64xbf16, #tpu.memory_space<vmem>>, vector<16x64xbf16>
    %98 = vector.extract_strided_slice %0 {offsets = [4, 0], sizes = [1, 64], strides = [1, 1]} : vector<14x128xf32> to vector<1x64xf32>
    %c0_68 = arith.constant 0 : index
    %c0_69 = arith.constant 0 : index
    %99 = vector.load %arg9[%c0_68, %c0_69] : memref<64x32xbf16, #tpu.memory_space<vmem>>, vector<64x32xbf16>
    %100 = vector.extract_strided_slice %0 {offsets = [5, 0], sizes = [1, 32], strides = [1, 1]} : vector<14x128xf32> to vector<1x32xf32>
    %101 = vector.extract_strided_slice %0 {offsets = [6, 0], sizes = [1, 32], strides = [1, 1]} : vector<14x128xf32> to vector<1x32xf32>
    %102 = arith.truncf %96 : vector<5x16xf32> to vector<5x16xbf16>
    %cst_70 = arith.constant dense<0.000000e+00> : vector<5x64xf32>
    %103 = tpu.matmul %102, %97, %cst_70 {dimension_numbers = #tpu.dot_dimension_numbers<[1], [0], [0], [1], [0, 0, 1, 1], [], []>} : vector<5x16xbf16>, vector<16x64xbf16>, vector<5x64xf32> -> vector<5x64xf32>
    %104 = vector.broadcast %98 : vector<1x64xf32> to vector<5x64xf32>
    %105 = arith.addf %103, %104 : vector<5x64xf32>
    %106 = math.tanh %105 : vector<5x64xf32>
    %107 = arith.truncf %106 : vector<5x64xf32> to vector<5x64xbf16>
    %cst_71 = arith.constant dense<0.000000e+00> : vector<5x32xf32>
    %108 = tpu.matmul %107, %99, %cst_71 {dimension_numbers = #tpu.dot_dimension_numbers<[1], [0], [0], [1], [0, 0, 1, 1], [], []>} : vector<5x64xbf16>, vector<64x32xbf16>, vector<5x32xf32> -> vector<5x32xf32>
    %109 = vector.broadcast %100 : vector<1x32xf32> to vector<5x32xf32>
    %110 = arith.addf %108, %109 : vector<5x32xf32>
    %111 = math.tanh %110 : vector<5x32xf32>
    %112 = vector.broadcast %101 : vector<1x32xf32> to vector<5x32xf32>
    %113 = arith.mulf %111, %112 : vector<5x32xf32>
    %cst_72 = arith.constant dense<0.000000e+00> : vector<5xf32>
    %114 = vector.multi_reduction <add>, %113, %cst_72 [1] : vector<5x32xf32> to vector<5xf32>
    %115 = vector.shape_cast %114 : vector<5xf32> to vector<5x1xf32>
    %cst_73 = arith.constant dense<0xFF800000> : vector<1xf32>
    %116 = vector.multi_reduction <maximumf>, %115, %cst_73 [0] : vector<5x1xf32> to vector<1xf32>
    %117 = vector.shape_cast %116 : vector<1xf32> to vector<1x1xf32>
    %118 = vector.broadcast %117 : vector<1x1xf32> to vector<5x1xf32>
    %119 = arith.subf %115, %118 : vector<5x1xf32>
    %120 = math.exp %119 : vector<5x1xf32>
    %cst_74 = arith.constant dense<0.000000e+00> : vector<1xf32>
    %121 = vector.multi_reduction <add>, %120, %cst_74 [0] : vector<5x1xf32> to vector<1xf32>
    %122 = vector.shape_cast %121 : vector<1xf32> to vector<1x1xf32>
    %123 = vector.broadcast %122 : vector<1x1xf32> to vector<5x1xf32>
    %124 = arith.divf %120, %123 : vector<5x1xf32>
    %125 = vector.broadcast %124 : vector<5x1xf32> to vector<5x64xf32>
    %126 = arith.mulf %125, %106 : vector<5x64xf32>
    %127 = vector.extract_strided_slice %23 {offsets = [0, 0], sizes = [1, 64], strides = [1, 1]} : vector<2x64xf32> to vector<1x64xf32>
    %128 = vector.broadcast %127 : vector<1x64xf32> to vector<6x64xf32>
    %129 = arith.addf %94, %128 : vector<6x64xf32>
    %c0_75 = arith.constant 0 : index
    %c0_76 = arith.constant 0 : index
    %c0_77 = arith.constant 0 : index
    %c0_78 = arith.constant 0 : index
    %130 = vector.load %arg12[%c0_75, %c0_76, %c0_77, %c0_78] : memref<3x4x64x16xbf16, #tpu.memory_space<vmem>>, vector<1x1x64x16xbf16>
    %131 = vector.shape_cast %130 : vector<1x1x64x16xbf16> to vector<64x16xbf16>
    %132 = arith.truncf %126 : vector<5x64xf32> to vector<5x64xbf16>
    %cst_79 = arith.constant dense<0.000000e+00> : vector<5x16xf32>
    %133 = tpu.matmul %132, %131, %cst_79 {dimension_numbers = #tpu.dot_dimension_numbers<[1], [0], [0], [1], [0, 0, 1, 1], [], []>} : vector<5x64xbf16>, vector<64x16xbf16>, vector<5x16xf32> -> vector<5x16xf32>
    %c0_80 = arith.constant 0 : index
    %c0_81 = arith.constant 0 : index
    %c0_82 = arith.constant 0 : index
    %c0_83 = arith.constant 0 : index
    %134 = vector.load %arg13[%c0_80, %c0_81, %c0_82, %c0_83] : memref<3x4x1x16xf32, #tpu.memory_space<vmem>>, vector<1x1x1x16xf32>
    %135 = vector.shape_cast %134 : vector<1x1x1x16xf32> to vector<1x16xf32>
    %136 = vector.broadcast %135 : vector<1x16xf32> to vector<5x16xf32>
    %137 = arith.addf %133, %136 : vector<5x16xf32>
    %c0_84 = arith.constant 0 : index
    %c1_85 = arith.constant 1 : index
    %c0_86 = arith.constant 0 : index
    %c0_87 = arith.constant 0 : index
    %138 = vector.load %arg12[%c0_84, %c1_85, %c0_86, %c0_87] : memref<3x4x64x16xbf16, #tpu.memory_space<vmem>>, vector<1x1x64x16xbf16>
    %139 = vector.shape_cast %138 : vector<1x1x64x16xbf16> to vector<64x16xbf16>
    %140 = arith.truncf %126 : vector<5x64xf32> to vector<5x64xbf16>
    %cst_88 = arith.constant dense<0.000000e+00> : vector<5x16xf32>
    %141 = tpu.matmul %140, %139, %cst_88 {dimension_numbers = #tpu.dot_dimension_numbers<[1], [0], [0], [1], [0, 0, 1, 1], [], []>} : vector<5x64xbf16>, vector<64x16xbf16>, vector<5x16xf32> -> vector<5x16xf32>
    %c0_89 = arith.constant 0 : index
    %c1_90 = arith.constant 1 : index
    %c0_91 = arith.constant 0 : index
    %c0_92 = arith.constant 0 : index
    %142 = vector.load %arg13[%c0_89, %c1_90, %c0_91, %c0_92] : memref<3x4x1x16xf32, #tpu.memory_space<vmem>>, vector<1x1x1x16xf32>
    %143 = vector.shape_cast %142 : vector<1x1x1x16xf32> to vector<1x16xf32>
    %144 = vector.broadcast %143 : vector<1x16xf32> to vector<5x16xf32>
    %145 = arith.addf %141, %144 : vector<5x16xf32>
    %c0_93 = arith.constant 0 : index
    %c2_94 = arith.constant 2 : index
    %c0_95 = arith.constant 0 : index
    %c0_96 = arith.constant 0 : index
    %146 = vector.load %arg12[%c0_93, %c2_94, %c0_95, %c0_96] : memref<3x4x64x16xbf16, #tpu.memory_space<vmem>>, vector<1x1x64x16xbf16>
    %147 = vector.shape_cast %146 : vector<1x1x64x16xbf16> to vector<64x16xbf16>
    %148 = arith.truncf %126 : vector<5x64xf32> to vector<5x64xbf16>
    %cst_97 = arith.constant dense<0.000000e+00> : vector<5x16xf32>
    %149 = tpu.matmul %148, %147, %cst_97 {dimension_numbers = #tpu.dot_dimension_numbers<[1], [0], [0], [1], [0, 0, 1, 1], [], []>} : vector<5x64xbf16>, vector<64x16xbf16>, vector<5x16xf32> -> vector<5x16xf32>
    %c0_98 = arith.constant 0 : index
    %c2_99 = arith.constant 2 : index
    %c0_100 = arith.constant 0 : index
    %c0_101 = arith.constant 0 : index
    %150 = vector.load %arg13[%c0_98, %c2_99, %c0_100, %c0_101] : memref<3x4x1x16xf32, #tpu.memory_space<vmem>>, vector<1x1x1x16xf32>
    %151 = vector.shape_cast %150 : vector<1x1x1x16xf32> to vector<1x16xf32>
    %152 = vector.broadcast %151 : vector<1x16xf32> to vector<5x16xf32>
    %153 = arith.addf %149, %152 : vector<5x16xf32>
    %c0_102 = arith.constant 0 : index
    %c3_103 = arith.constant 3 : index
    %c0_104 = arith.constant 0 : index
    %c0_105 = arith.constant 0 : index
    %154 = vector.load %arg12[%c0_102, %c3_103, %c0_104, %c0_105] : memref<3x4x64x16xbf16, #tpu.memory_space<vmem>>, vector<1x1x64x16xbf16>
    %155 = vector.shape_cast %154 : vector<1x1x64x16xbf16> to vector<64x16xbf16>
    %156 = arith.truncf %126 : vector<5x64xf32> to vector<5x64xbf16>
    %cst_106 = arith.constant dense<0.000000e+00> : vector<5x16xf32>
    %157 = tpu.matmul %156, %155, %cst_106 {dimension_numbers = #tpu.dot_dimension_numbers<[1], [0], [0], [1], [0, 0, 1, 1], [], []>} : vector<5x64xbf16>, vector<64x16xbf16>, vector<5x16xf32> -> vector<5x16xf32>
    %c0_107 = arith.constant 0 : index
    %c3_108 = arith.constant 3 : index
    %c0_109 = arith.constant 0 : index
    %c0_110 = arith.constant 0 : index
    %158 = vector.load %arg13[%c0_107, %c3_108, %c0_109, %c0_110] : memref<3x4x1x16xf32, #tpu.memory_space<vmem>>, vector<1x1x1x16xf32>
    %159 = vector.shape_cast %158 : vector<1x1x1x16xf32> to vector<1x16xf32>
    %160 = vector.broadcast %159 : vector<1x16xf32> to vector<5x16xf32>
    %161 = arith.addf %157, %160 : vector<5x16xf32>
    %162 = vector.extract_strided_slice %0 {offsets = [10, 0], sizes = [1, 64], strides = [1, 1]} : vector<14x128xf32> to vector<1x64xf32>
    %c1_111 = arith.constant 1 : index
    %c0_112 = arith.constant 0 : index
    %c0_113 = arith.constant 0 : index
    %c0_114 = arith.constant 0 : index
    %163 = vector.load %arg12[%c1_111, %c0_112, %c0_113, %c0_114] : memref<3x4x64x16xbf16, #tpu.memory_space<vmem>>, vector<1x1x64x16xbf16>
    %164 = vector.shape_cast %163 : vector<1x1x64x16xbf16> to vector<64x16xbf16>
    %165 = arith.truncf %129 : vector<6x64xf32> to vector<6x64xbf16>
    %cst_115 = arith.constant dense<0.000000e+00> : vector<6x16xf32>
    %166 = tpu.matmul %165, %164, %cst_115 {dimension_numbers = #tpu.dot_dimension_numbers<[1], [0], [0], [1], [0, 0, 1, 1], [], []>} : vector<6x64xbf16>, vector<64x16xbf16>, vector<6x16xf32> -> vector<6x16xf32>
    %c1_116 = arith.constant 1 : index
    %c0_117 = arith.constant 0 : index
    %c0_118 = arith.constant 0 : index
    %c0_119 = arith.constant 0 : index
    %167 = vector.load %arg13[%c1_116, %c0_117, %c0_118, %c0_119] : memref<3x4x1x16xf32, #tpu.memory_space<vmem>>, vector<1x1x1x16xf32>
    %168 = vector.shape_cast %167 : vector<1x1x1x16xf32> to vector<1x16xf32>
    %169 = vector.broadcast %168 : vector<1x16xf32> to vector<6x16xf32>
    %170 = arith.addf %166, %169 : vector<6x16xf32>
    %c1_120 = arith.constant 1 : index
    %c1_121 = arith.constant 1 : index
    %c0_122 = arith.constant 0 : index
    %c0_123 = arith.constant 0 : index
    %171 = vector.load %arg12[%c1_120, %c1_121, %c0_122, %c0_123] : memref<3x4x64x16xbf16, #tpu.memory_space<vmem>>, vector<1x1x64x16xbf16>
    %172 = vector.shape_cast %171 : vector<1x1x64x16xbf16> to vector<64x16xbf16>
    %173 = arith.truncf %129 : vector<6x64xf32> to vector<6x64xbf16>
    %cst_124 = arith.constant dense<0.000000e+00> : vector<6x16xf32>
    %174 = tpu.matmul %173, %172, %cst_124 {dimension_numbers = #tpu.dot_dimension_numbers<[1], [0], [0], [1], [0, 0, 1, 1], [], []>} : vector<6x64xbf16>, vector<64x16xbf16>, vector<6x16xf32> -> vector<6x16xf32>
    %c1_125 = arith.constant 1 : index
    %c1_126 = arith.constant 1 : index
    %c0_127 = arith.constant 0 : index
    %c0_128 = arith.constant 0 : index
    %175 = vector.load %arg13[%c1_125, %c1_126, %c0_127, %c0_128] : memref<3x4x1x16xf32, #tpu.memory_space<vmem>>, vector<1x1x1x16xf32>
    %176 = vector.shape_cast %175 : vector<1x1x1x16xf32> to vector<1x16xf32>
    %177 = vector.broadcast %176 : vector<1x16xf32> to vector<6x16xf32>
    %178 = arith.addf %174, %177 : vector<6x16xf32>
    %c1_129 = arith.constant 1 : index
    %c2_130 = arith.constant 2 : index
    %c0_131 = arith.constant 0 : index
    %c0_132 = arith.constant 0 : index
    %179 = vector.load %arg12[%c1_129, %c2_130, %c0_131, %c0_132] : memref<3x4x64x16xbf16, #tpu.memory_space<vmem>>, vector<1x1x64x16xbf16>
    %180 = vector.shape_cast %179 : vector<1x1x64x16xbf16> to vector<64x16xbf16>
    %181 = arith.truncf %129 : vector<6x64xf32> to vector<6x64xbf16>
    %cst_133 = arith.constant dense<0.000000e+00> : vector<6x16xf32>
    %182 = tpu.matmul %181, %180, %cst_133 {dimension_numbers = #tpu.dot_dimension_numbers<[1], [0], [0], [1], [0, 0, 1, 1], [], []>} : vector<6x64xbf16>, vector<64x16xbf16>, vector<6x16xf32> -> vector<6x16xf32>
    %c1_134 = arith.constant 1 : index
    %c2_135 = arith.constant 2 : index
    %c0_136 = arith.constant 0 : index
    %c0_137 = arith.constant 0 : index
    %183 = vector.load %arg13[%c1_134, %c2_135, %c0_136, %c0_137] : memref<3x4x1x16xf32, #tpu.memory_space<vmem>>, vector<1x1x1x16xf32>
    %184 = vector.shape_cast %183 : vector<1x1x1x16xf32> to vector<1x16xf32>
    %185 = vector.broadcast %184 : vector<1x16xf32> to vector<6x16xf32>
    %186 = arith.addf %182, %185 : vector<6x16xf32>
    %c1_138 = arith.constant 1 : index
    %c3_139 = arith.constant 3 : index
    %c0_140 = arith.constant 0 : index
    %c0_141 = arith.constant 0 : index
    %187 = vector.load %arg12[%c1_138, %c3_139, %c0_140, %c0_141] : memref<3x4x64x16xbf16, #tpu.memory_space<vmem>>, vector<1x1x64x16xbf16>
    %188 = vector.shape_cast %187 : vector<1x1x64x16xbf16> to vector<64x16xbf16>
    %189 = arith.truncf %129 : vector<6x64xf32> to vector<6x64xbf16>
    %cst_142 = arith.constant dense<0.000000e+00> : vector<6x16xf32>
    %190 = tpu.matmul %189, %188, %cst_142 {dimension_numbers = #tpu.dot_dimension_numbers<[1], [0], [0], [1], [0, 0, 1, 1], [], []>} : vector<6x64xbf16>, vector<64x16xbf16>, vector<6x16xf32> -> vector<6x16xf32>
    %c1_143 = arith.constant 1 : index
    %c3_144 = arith.constant 3 : index
    %c0_145 = arith.constant 0 : index
    %c0_146 = arith.constant 0 : index
    %191 = vector.load %arg13[%c1_143, %c3_144, %c0_145, %c0_146] : memref<3x4x1x16xf32, #tpu.memory_space<vmem>>, vector<1x1x1x16xf32>
    %192 = vector.shape_cast %191 : vector<1x1x1x16xf32> to vector<1x16xf32>
    %193 = vector.broadcast %192 : vector<1x16xf32> to vector<6x16xf32>
    %194 = arith.addf %190, %193 : vector<6x16xf32>
    %c2_147 = arith.constant 2 : index
    %c0_148 = arith.constant 0 : index
    %c0_149 = arith.constant 0 : index
    %c0_150 = arith.constant 0 : index
    %195 = vector.load %arg12[%c2_147, %c0_148, %c0_149, %c0_150] : memref<3x4x64x16xbf16, #tpu.memory_space<vmem>>, vector<1x1x64x16xbf16>
    %196 = vector.shape_cast %195 : vector<1x1x64x16xbf16> to vector<64x16xbf16>
    %197 = arith.truncf %129 : vector<6x64xf32> to vector<6x64xbf16>
    %cst_151 = arith.constant dense<0.000000e+00> : vector<6x16xf32>
    %198 = tpu.matmul %197, %196, %cst_151 {dimension_numbers = #tpu.dot_dimension_numbers<[1], [0], [0], [1], [0, 0, 1, 1], [], []>} : vector<6x64xbf16>, vector<64x16xbf16>, vector<6x16xf32> -> vector<6x16xf32>
    %c2_152 = arith.constant 2 : index
    %c0_153 = arith.constant 0 : index
    %c0_154 = arith.constant 0 : index
    %c0_155 = arith.constant 0 : index
    %199 = vector.load %arg13[%c2_152, %c0_153, %c0_154, %c0_155] : memref<3x4x1x16xf32, #tpu.memory_space<vmem>>, vector<1x1x1x16xf32>
    %200 = vector.shape_cast %199 : vector<1x1x1x16xf32> to vector<1x16xf32>
    %201 = vector.broadcast %200 : vector<1x16xf32> to vector<6x16xf32>
    %202 = arith.addf %198, %201 : vector<6x16xf32>
    %c2_156 = arith.constant 2 : index
    %c1_157 = arith.constant 1 : index
    %c0_158 = arith.constant 0 : index
    %c0_159 = arith.constant 0 : index
    %203 = vector.load %arg12[%c2_156, %c1_157, %c0_158, %c0_159] : memref<3x4x64x16xbf16, #tpu.memory_space<vmem>>, vector<1x1x64x16xbf16>
    %204 = vector.shape_cast %203 : vector<1x1x64x16xbf16> to vector<64x16xbf16>
    %205 = arith.truncf %129 : vector<6x64xf32> to vector<6x64xbf16>
    %cst_160 = arith.constant dense<0.000000e+00> : vector<6x16xf32>
    %206 = tpu.matmul %205, %204, %cst_160 {dimension_numbers = #tpu.dot_dimension_numbers<[1], [0], [0], [1], [0, 0, 1, 1], [], []>} : vector<6x64xbf16>, vector<64x16xbf16>, vector<6x16xf32> -> vector<6x16xf32>
    %c2_161 = arith.constant 2 : index
    %c1_162 = arith.constant 1 : index
    %c0_163 = arith.constant 0 : index
    %c0_164 = arith.constant 0 : index
    %207 = vector.load %arg13[%c2_161, %c1_162, %c0_163, %c0_164] : memref<3x4x1x16xf32, #tpu.memory_space<vmem>>, vector<1x1x1x16xf32>
    %208 = vector.shape_cast %207 : vector<1x1x1x16xf32> to vector<1x16xf32>
    %209 = vector.broadcast %208 : vector<1x16xf32> to vector<6x16xf32>
    %210 = arith.addf %206, %209 : vector<6x16xf32>
    %c2_165 = arith.constant 2 : index
    %c2_166 = arith.constant 2 : index
    %c0_167 = arith.constant 0 : index
    %c0_168 = arith.constant 0 : index
    %211 = vector.load %arg12[%c2_165, %c2_166, %c0_167, %c0_168] : memref<3x4x64x16xbf16, #tpu.memory_space<vmem>>, vector<1x1x64x16xbf16>
    %212 = vector.shape_cast %211 : vector<1x1x64x16xbf16> to vector<64x16xbf16>
    %213 = arith.truncf %129 : vector<6x64xf32> to vector<6x64xbf16>
    %cst_169 = arith.constant dense<0.000000e+00> : vector<6x16xf32>
    %214 = tpu.matmul %213, %212, %cst_169 {dimension_numbers = #tpu.dot_dimension_numbers<[1], [0], [0], [1], [0, 0, 1, 1], [], []>} : vector<6x64xbf16>, vector<64x16xbf16>, vector<6x16xf32> -> vector<6x16xf32>
    %c2_170 = arith.constant 2 : index
    %c2_171 = arith.constant 2 : index
    %c0_172 = arith.constant 0 : index
    %c0_173 = arith.constant 0 : index
    %215 = vector.load %arg13[%c2_170, %c2_171, %c0_172, %c0_173] : memref<3x4x1x16xf32, #tpu.memory_space<vmem>>, vector<1x1x1x16xf32>
    %216 = vector.shape_cast %215 : vector<1x1x1x16xf32> to vector<1x16xf32>
    %217 = vector.broadcast %216 : vector<1x16xf32> to vector<6x16xf32>
    %218 = arith.addf %214, %217 : vector<6x16xf32>
    %c2_174 = arith.constant 2 : index
    %c3_175 = arith.constant 3 : index
    %c0_176 = arith.constant 0 : index
    %c0_177 = arith.constant 0 : index
    %219 = vector.load %arg12[%c2_174, %c3_175, %c0_176, %c0_177] : memref<3x4x64x16xbf16, #tpu.memory_space<vmem>>, vector<1x1x64x16xbf16>
    %220 = vector.shape_cast %219 : vector<1x1x64x16xbf16> to vector<64x16xbf16>
    %221 = arith.truncf %129 : vector<6x64xf32> to vector<6x64xbf16>
    %cst_178 = arith.constant dense<0.000000e+00> : vector<6x16xf32>
    %222 = tpu.matmul %221, %220, %cst_178 {dimension_numbers = #tpu.dot_dimension_numbers<[1], [0], [0], [1], [0, 0, 1, 1], [], []>} : vector<6x64xbf16>, vector<64x16xbf16>, vector<6x16xf32> -> vector<6x16xf32>
    %c2_179 = arith.constant 2 : index
    %c3_180 = arith.constant 3 : index
    %c0_181 = arith.constant 0 : index
    %c0_182 = arith.constant 0 : index
    %223 = vector.load %arg13[%c2_179, %c3_180, %c0_181, %c0_182] : memref<3x4x1x16xf32, #tpu.memory_space<vmem>>, vector<1x1x1x16xf32>
    %224 = vector.shape_cast %223 : vector<1x1x1x16xf32> to vector<1x16xf32>
    %225 = vector.broadcast %224 : vector<1x16xf32> to vector<6x16xf32>
    %226 = arith.addf %222, %225 : vector<6x16xf32>
    %227 = arith.truncf %137 : vector<5x16xf32> to vector<5x16xbf16>
    %228 = arith.truncf %170 : vector<6x16xf32> to vector<6x16xbf16>
    %cst_183 = arith.constant dense<0.000000e+00> : vector<5x6xf32>
    %229 = tpu.matmul %227, %228, %cst_183 {dimension_numbers = #tpu.dot_dimension_numbers<[1], [1], [0], [0], [0, 0, 1, 0], [], []>} : vector<5x16xbf16>, vector<6x16xbf16>, vector<5x6xf32> -> vector<5x6xf32>
    %cst_184 = arith.constant dense<0xFF800000> : vector<5xf32>
    %230 = vector.multi_reduction <maximumf>, %229, %cst_184 [1] : vector<5x6xf32> to vector<5xf32>
    %231 = vector.shape_cast %230 : vector<5xf32> to vector<5x1xf32>
    %232 = vector.broadcast %231 : vector<5x1xf32> to vector<5x6xf32>
    %233 = arith.subf %229, %232 : vector<5x6xf32>
    %234 = math.exp %233 : vector<5x6xf32>
    %cst_185 = arith.constant dense<0.000000e+00> : vector<5xf32>
    %235 = vector.multi_reduction <add>, %234, %cst_185 [1] : vector<5x6xf32> to vector<5xf32>
    %236 = vector.shape_cast %235 : vector<5xf32> to vector<5x1xf32>
    %237 = vector.broadcast %236 : vector<5x1xf32> to vector<5x6xf32>
    %238 = arith.divf %234, %237 : vector<5x6xf32>
    %239 = arith.truncf %238 : vector<5x6xf32> to vector<5x6xbf16>
    %240 = arith.truncf %202 : vector<6x16xf32> to vector<6x16xbf16>
    %cst_186 = arith.constant dense<0.000000e+00> : vector<5x16xf32>
    %241 = tpu.matmul %239, %240, %cst_186 {dimension_numbers = #tpu.dot_dimension_numbers<[1], [0], [0], [1], [0, 0, 1, 1], [], []>} : vector<5x6xbf16>, vector<6x16xbf16>, vector<5x16xf32> -> vector<5x16xf32>
    %c0_187 = arith.constant 0 : index
    %c0_188 = arith.constant 0 : index
    %c0_189 = arith.constant 0 : index
    %242 = vector.load %arg14[%c0_187, %c0_188, %c0_189] : memref<4x16x64xbf16, #tpu.memory_space<vmem>>, vector<1x16x64xbf16>
    %243 = vector.shape_cast %242 : vector<1x16x64xbf16> to vector<16x64xbf16>
    %244 = arith.truncf %241 : vector<5x16xf32> to vector<5x16xbf16>
    %cst_190 = arith.constant dense<0.000000e+00> : vector<5x64xf32>
    %245 = tpu.matmul %244, %243, %cst_190 {dimension_numbers = #tpu.dot_dimension_numbers<[1], [0], [0], [1], [0, 0, 1, 1], [], []>} : vector<5x16xbf16>, vector<16x64xbf16>, vector<5x64xf32> -> vector<5x64xf32>
    %246 = arith.truncf %145 : vector<5x16xf32> to vector<5x16xbf16>
    %247 = arith.truncf %178 : vector<6x16xf32> to vector<6x16xbf16>
    %cst_191 = arith.constant dense<0.000000e+00> : vector<5x6xf32>
    %248 = tpu.matmul %246, %247, %cst_191 {dimension_numbers = #tpu.dot_dimension_numbers<[1], [1], [0], [0], [0, 0, 1, 0], [], []>} : vector<5x16xbf16>, vector<6x16xbf16>, vector<5x6xf32> -> vector<5x6xf32>
    %cst_192 = arith.constant dense<0xFF800000> : vector<5xf32>
    %249 = vector.multi_reduction <maximumf>, %248, %cst_192 [1] : vector<5x6xf32> to vector<5xf32>
    %250 = vector.shape_cast %249 : vector<5xf32> to vector<5x1xf32>
    %251 = vector.broadcast %250 : vector<5x1xf32> to vector<5x6xf32>
    %252 = arith.subf %248, %251 : vector<5x6xf32>
    %253 = math.exp %252 : vector<5x6xf32>
    %cst_193 = arith.constant dense<0.000000e+00> : vector<5xf32>
    %254 = vector.multi_reduction <add>, %253, %cst_193 [1] : vector<5x6xf32> to vector<5xf32>
    %255 = vector.shape_cast %254 : vector<5xf32> to vector<5x1xf32>
    %256 = vector.broadcast %255 : vector<5x1xf32> to vector<5x6xf32>
    %257 = arith.divf %253, %256 : vector<5x6xf32>
    %258 = arith.truncf %257 : vector<5x6xf32> to vector<5x6xbf16>
    %259 = arith.truncf %210 : vector<6x16xf32> to vector<6x16xbf16>
    %cst_194 = arith.constant dense<0.000000e+00> : vector<5x16xf32>
    %260 = tpu.matmul %258, %259, %cst_194 {dimension_numbers = #tpu.dot_dimension_numbers<[1], [0], [0], [1], [0, 0, 1, 1], [], []>} : vector<5x6xbf16>, vector<6x16xbf16>, vector<5x16xf32> -> vector<5x16xf32>
    %c1_195 = arith.constant 1 : index
    %c0_196 = arith.constant 0 : index
    %c0_197 = arith.constant 0 : index
    %261 = vector.load %arg14[%c1_195, %c0_196, %c0_197] : memref<4x16x64xbf16, #tpu.memory_space<vmem>>, vector<1x16x64xbf16>
    %262 = vector.shape_cast %261 : vector<1x16x64xbf16> to vector<16x64xbf16>
    %263 = arith.truncf %260 : vector<5x16xf32> to vector<5x16xbf16>
    %cst_198 = arith.constant dense<0.000000e+00> : vector<5x64xf32>
    %264 = tpu.matmul %263, %262, %cst_198 {dimension_numbers = #tpu.dot_dimension_numbers<[1], [0], [0], [1], [0, 0, 1, 1], [], []>} : vector<5x16xbf16>, vector<16x64xbf16>, vector<5x64xf32> -> vector<5x64xf32>
    %265 = arith.addf %245, %264 : vector<5x64xf32>
    %266 = arith.truncf %153 : vector<5x16xf32> to vector<5x16xbf16>
    %267 = arith.truncf %186 : vector<6x16xf32> to vector<6x16xbf16>
    %cst_199 = arith.constant dense<0.000000e+00> : vector<5x6xf32>
    %268 = tpu.matmul %266, %267, %cst_199 {dimension_numbers = #tpu.dot_dimension_numbers<[1], [1], [0], [0], [0, 0, 1, 0], [], []>} : vector<5x16xbf16>, vector<6x16xbf16>, vector<5x6xf32> -> vector<5x6xf32>
    %cst_200 = arith.constant dense<0xFF800000> : vector<5xf32>
    %269 = vector.multi_reduction <maximumf>, %268, %cst_200 [1] : vector<5x6xf32> to vector<5xf32>
    %270 = vector.shape_cast %269 : vector<5xf32> to vector<5x1xf32>
    %271 = vector.broadcast %270 : vector<5x1xf32> to vector<5x6xf32>
    %272 = arith.subf %268, %271 : vector<5x6xf32>
    %273 = math.exp %272 : vector<5x6xf32>
    %cst_201 = arith.constant dense<0.000000e+00> : vector<5xf32>
    %274 = vector.multi_reduction <add>, %273, %cst_201 [1] : vector<5x6xf32> to vector<5xf32>
    %275 = vector.shape_cast %274 : vector<5xf32> to vector<5x1xf32>
    %276 = vector.broadcast %275 : vector<5x1xf32> to vector<5x6xf32>
    %277 = arith.divf %273, %276 : vector<5x6xf32>
    %278 = arith.truncf %277 : vector<5x6xf32> to vector<5x6xbf16>
    %279 = arith.truncf %218 : vector<6x16xf32> to vector<6x16xbf16>
    %cst_202 = arith.constant dense<0.000000e+00> : vector<5x16xf32>
    %280 = tpu.matmul %278, %279, %cst_202 {dimension_numbers = #tpu.dot_dimension_numbers<[1], [0], [0], [1], [0, 0, 1, 1], [], []>} : vector<5x6xbf16>, vector<6x16xbf16>, vector<5x16xf32> -> vector<5x16xf32>
    %c2_203 = arith.constant 2 : index
    %c0_204 = arith.constant 0 : index
    %c0_205 = arith.constant 0 : index
    %281 = vector.load %arg14[%c2_203, %c0_204, %c0_205] : memref<4x16x64xbf16, #tpu.memory_space<vmem>>, vector<1x16x64xbf16>
    %282 = vector.shape_cast %281 : vector<1x16x64xbf16> to vector<16x64xbf16>
    %283 = arith.truncf %280 : vector<5x16xf32> to vector<5x16xbf16>
    %cst_206 = arith.constant dense<0.000000e+00> : vector<5x64xf32>
    %284 = tpu.matmul %283, %282, %cst_206 {dimension_numbers = #tpu.dot_dimension_numbers<[1], [0], [0], [1], [0, 0, 1, 1], [], []>} : vector<5x16xbf16>, vector<16x64xbf16>, vector<5x64xf32> -> vector<5x64xf32>
    %285 = arith.addf %265, %284 : vector<5x64xf32>
    %286 = arith.truncf %161 : vector<5x16xf32> to vector<5x16xbf16>
    %287 = arith.truncf %194 : vector<6x16xf32> to vector<6x16xbf16>
    %cst_207 = arith.constant dense<0.000000e+00> : vector<5x6xf32>
    %288 = tpu.matmul %286, %287, %cst_207 {dimension_numbers = #tpu.dot_dimension_numbers<[1], [1], [0], [0], [0, 0, 1, 0], [], []>} : vector<5x16xbf16>, vector<6x16xbf16>, vector<5x6xf32> -> vector<5x6xf32>
    %cst_208 = arith.constant dense<0xFF800000> : vector<5xf32>
    %289 = vector.multi_reduction <maximumf>, %288, %cst_208 [1] : vector<5x6xf32> to vector<5xf32>
    %290 = vector.shape_cast %289 : vector<5xf32> to vector<5x1xf32>
    %291 = vector.broadcast %290 : vector<5x1xf32> to vector<5x6xf32>
    %292 = arith.subf %288, %291 : vector<5x6xf32>
    %293 = math.exp %292 : vector<5x6xf32>
    %cst_209 = arith.constant dense<0.000000e+00> : vector<5xf32>
    %294 = vector.multi_reduction <add>, %293, %cst_209 [1] : vector<5x6xf32> to vector<5xf32>
    %295 = vector.shape_cast %294 : vector<5xf32> to vector<5x1xf32>
    %296 = vector.broadcast %295 : vector<5x1xf32> to vector<5x6xf32>
    %297 = arith.divf %293, %296 : vector<5x6xf32>
    %298 = arith.truncf %297 : vector<5x6xf32> to vector<5x6xbf16>
    %299 = arith.truncf %226 : vector<6x16xf32> to vector<6x16xbf16>
    %cst_210 = arith.constant dense<0.000000e+00> : vector<5x16xf32>
    %300 = tpu.matmul %298, %299, %cst_210 {dimension_numbers = #tpu.dot_dimension_numbers<[1], [0], [0], [1], [0, 0, 1, 1], [], []>} : vector<5x6xbf16>, vector<6x16xbf16>, vector<5x16xf32> -> vector<5x16xf32>
    %c3_211 = arith.constant 3 : index
    %c0_212 = arith.constant 0 : index
    %c0_213 = arith.constant 0 : index
    %301 = vector.load %arg14[%c3_211, %c0_212, %c0_213] : memref<4x16x64xbf16, #tpu.memory_space<vmem>>, vector<1x16x64xbf16>
    %302 = vector.shape_cast %301 : vector<1x16x64xbf16> to vector<16x64xbf16>
    %303 = arith.truncf %300 : vector<5x16xf32> to vector<5x16xbf16>
    %cst_214 = arith.constant dense<0.000000e+00> : vector<5x64xf32>
    %304 = tpu.matmul %303, %302, %cst_214 {dimension_numbers = #tpu.dot_dimension_numbers<[1], [0], [0], [1], [0, 0, 1, 1], [], []>} : vector<5x16xbf16>, vector<16x64xbf16>, vector<5x64xf32> -> vector<5x64xf32>
    %305 = arith.addf %285, %304 : vector<5x64xf32>
    %306 = vector.broadcast %162 : vector<1x64xf32> to vector<5x64xf32>
    %307 = arith.addf %305, %306 : vector<5x64xf32>
    %308 = vector.extract_strided_slice %0 {offsets = [11, 0], sizes = [1, 64], strides = [1, 1]} : vector<14x128xf32> to vector<1x64xf32>
    %c1_215 = arith.constant 1 : index
    %c0_216 = arith.constant 0 : index
    %c0_217 = arith.constant 0 : index
    %c0_218 = arith.constant 0 : index
    %309 = vector.load %arg15[%c1_215, %c0_216, %c0_217, %c0_218] : memref<3x4x64x16xbf16, #tpu.memory_space<vmem>>, vector<1x1x64x16xbf16>
    %310 = vector.shape_cast %309 : vector<1x1x64x16xbf16> to vector<64x16xbf16>
    %311 = arith.truncf %307 : vector<5x64xf32> to vector<5x64xbf16>
    %cst_219 = arith.constant dense<0.000000e+00> : vector<5x16xf32>
    %312 = tpu.matmul %311, %310, %cst_219 {dimension_numbers = #tpu.dot_dimension_numbers<[1], [0], [0], [1], [0, 0, 1, 1], [], []>} : vector<5x64xbf16>, vector<64x16xbf16>, vector<5x16xf32> -> vector<5x16xf32>
    %c1_220 = arith.constant 1 : index
    %c0_221 = arith.constant 0 : index
    %c0_222 = arith.constant 0 : index
    %c0_223 = arith.constant 0 : index
    %313 = vector.load %arg16[%c1_220, %c0_221, %c0_222, %c0_223] : memref<3x4x1x16xf32, #tpu.memory_space<vmem>>, vector<1x1x1x16xf32>
    %314 = vector.shape_cast %313 : vector<1x1x1x16xf32> to vector<1x16xf32>
    %315 = vector.broadcast %314 : vector<1x16xf32> to vector<5x16xf32>
    %316 = arith.addf %312, %315 : vector<5x16xf32>
    %c1_224 = arith.constant 1 : index
    %c1_225 = arith.constant 1 : index
    %c0_226 = arith.constant 0 : index
    %c0_227 = arith.constant 0 : index
    %317 = vector.load %arg15[%c1_224, %c1_225, %c0_226, %c0_227] : memref<3x4x64x16xbf16, #tpu.memory_space<vmem>>, vector<1x1x64x16xbf16>
    %318 = vector.shape_cast %317 : vector<1x1x64x16xbf16> to vector<64x16xbf16>
    %319 = arith.truncf %307 : vector<5x64xf32> to vector<5x64xbf16>
    %cst_228 = arith.constant dense<0.000000e+00> : vector<5x16xf32>
    %320 = tpu.matmul %319, %318, %cst_228 {dimension_numbers = #tpu.dot_dimension_numbers<[1], [0], [0], [1], [0, 0, 1, 1], [], []>} : vector<5x64xbf16>, vector<64x16xbf16>, vector<5x16xf32> -> vector<5x16xf32>
    %c1_229 = arith.constant 1 : index
    %c1_230 = arith.constant 1 : index
    %c0_231 = arith.constant 0 : index
    %c0_232 = arith.constant 0 : index
    %321 = vector.load %arg16[%c1_229, %c1_230, %c0_231, %c0_232] : memref<3x4x1x16xf32, #tpu.memory_space<vmem>>, vector<1x1x1x16xf32>
    %322 = vector.shape_cast %321 : vector<1x1x1x16xf32> to vector<1x16xf32>
    %323 = vector.broadcast %322 : vector<1x16xf32> to vector<5x16xf32>
    %324 = arith.addf %320, %323 : vector<5x16xf32>
    %c1_233 = arith.constant 1 : index
    %c2_234 = arith.constant 2 : index
    %c0_235 = arith.constant 0 : index
    %c0_236 = arith.constant 0 : index
    %325 = vector.load %arg15[%c1_233, %c2_234, %c0_235, %c0_236] : memref<3x4x64x16xbf16, #tpu.memory_space<vmem>>, vector<1x1x64x16xbf16>
    %326 = vector.shape_cast %325 : vector<1x1x64x16xbf16> to vector<64x16xbf16>
    %327 = arith.truncf %307 : vector<5x64xf32> to vector<5x64xbf16>
    %cst_237 = arith.constant dense<0.000000e+00> : vector<5x16xf32>
    %328 = tpu.matmul %327, %326, %cst_237 {dimension_numbers = #tpu.dot_dimension_numbers<[1], [0], [0], [1], [0, 0, 1, 1], [], []>} : vector<5x64xbf16>, vector<64x16xbf16>, vector<5x16xf32> -> vector<5x16xf32>
    %c1_238 = arith.constant 1 : index
    %c2_239 = arith.constant 2 : index
    %c0_240 = arith.constant 0 : index
    %c0_241 = arith.constant 0 : index
    %329 = vector.load %arg16[%c1_238, %c2_239, %c0_240, %c0_241] : memref<3x4x1x16xf32, #tpu.memory_space<vmem>>, vector<1x1x1x16xf32>
    %330 = vector.shape_cast %329 : vector<1x1x1x16xf32> to vector<1x16xf32>
    %331 = vector.broadcast %330 : vector<1x16xf32> to vector<5x16xf32>
    %332 = arith.addf %328, %331 : vector<5x16xf32>
    %c1_242 = arith.constant 1 : index
    %c3_243 = arith.constant 3 : index
    %c0_244 = arith.constant 0 : index
    %c0_245 = arith.constant 0 : index
    %333 = vector.load %arg15[%c1_242, %c3_243, %c0_244, %c0_245] : memref<3x4x64x16xbf16, #tpu.memory_space<vmem>>, vector<1x1x64x16xbf16>
    %334 = vector.shape_cast %333 : vector<1x1x64x16xbf16> to vector<64x16xbf16>
    %335 = arith.truncf %307 : vector<5x64xf32> to vector<5x64xbf16>
    %cst_246 = arith.constant dense<0.000000e+00> : vector<5x16xf32>
    %336 = tpu.matmul %335, %334, %cst_246 {dimension_numbers = #tpu.dot_dimension_numbers<[1], [0], [0], [1], [0, 0, 1, 1], [], []>} : vector<5x64xbf16>, vector<64x16xbf16>, vector<5x16xf32> -> vector<5x16xf32>
    %c1_247 = arith.constant 1 : index
    %c3_248 = arith.constant 3 : index
    %c0_249 = arith.constant 0 : index
    %c0_250 = arith.constant 0 : index
    %337 = vector.load %arg16[%c1_247, %c3_248, %c0_249, %c0_250] : memref<3x4x1x16xf32, #tpu.memory_space<vmem>>, vector<1x1x1x16xf32>
    %338 = vector.shape_cast %337 : vector<1x1x1x16xf32> to vector<1x16xf32>
    %339 = vector.broadcast %338 : vector<1x16xf32> to vector<5x16xf32>
    %340 = arith.addf %336, %339 : vector<5x16xf32>
    %c2_251 = arith.constant 2 : index
    %c0_252 = arith.constant 0 : index
    %c0_253 = arith.constant 0 : index
    %c0_254 = arith.constant 0 : index
    %341 = vector.load %arg15[%c2_251, %c0_252, %c0_253, %c0_254] : memref<3x4x64x16xbf16, #tpu.memory_space<vmem>>, vector<1x1x64x16xbf16>
    %342 = vector.shape_cast %341 : vector<1x1x64x16xbf16> to vector<64x16xbf16>
    %343 = arith.truncf %307 : vector<5x64xf32> to vector<5x64xbf16>
    %cst_255 = arith.constant dense<0.000000e+00> : vector<5x16xf32>
    %344 = tpu.matmul %343, %342, %cst_255 {dimension_numbers = #tpu.dot_dimension_numbers<[1], [0], [0], [1], [0, 0, 1, 1], [], []>} : vector<5x64xbf16>, vector<64x16xbf16>, vector<5x16xf32> -> vector<5x16xf32>
    %c2_256 = arith.constant 2 : index
    %c0_257 = arith.constant 0 : index
    %c0_258 = arith.constant 0 : index
    %c0_259 = arith.constant 0 : index
    %345 = vector.load %arg16[%c2_256, %c0_257, %c0_258, %c0_259] : memref<3x4x1x16xf32, #tpu.memory_space<vmem>>, vector<1x1x1x16xf32>
    %346 = vector.shape_cast %345 : vector<1x1x1x16xf32> to vector<1x16xf32>
    %347 = vector.broadcast %346 : vector<1x16xf32> to vector<5x16xf32>
    %348 = arith.addf %344, %347 : vector<5x16xf32>
    %c2_260 = arith.constant 2 : index
    %c1_261 = arith.constant 1 : index
    %c0_262 = arith.constant 0 : index
    %c0_263 = arith.constant 0 : index
    %349 = vector.load %arg15[%c2_260, %c1_261, %c0_262, %c0_263] : memref<3x4x64x16xbf16, #tpu.memory_space<vmem>>, vector<1x1x64x16xbf16>
    %350 = vector.shape_cast %349 : vector<1x1x64x16xbf16> to vector<64x16xbf16>
    %351 = arith.truncf %307 : vector<5x64xf32> to vector<5x64xbf16>
    %cst_264 = arith.constant dense<0.000000e+00> : vector<5x16xf32>
    %352 = tpu.matmul %351, %350, %cst_264 {dimension_numbers = #tpu.dot_dimension_numbers<[1], [0], [0], [1], [0, 0, 1, 1], [], []>} : vector<5x64xbf16>, vector<64x16xbf16>, vector<5x16xf32> -> vector<5x16xf32>
    %c2_265 = arith.constant 2 : index
    %c1_266 = arith.constant 1 : index
    %c0_267 = arith.constant 0 : index
    %c0_268 = arith.constant 0 : index
    %353 = vector.load %arg16[%c2_265, %c1_266, %c0_267, %c0_268] : memref<3x4x1x16xf32, #tpu.memory_space<vmem>>, vector<1x1x1x16xf32>
    %354 = vector.shape_cast %353 : vector<1x1x1x16xf32> to vector<1x16xf32>
    %355 = vector.broadcast %354 : vector<1x16xf32> to vector<5x16xf32>
    %356 = arith.addf %352, %355 : vector<5x16xf32>
    %c2_269 = arith.constant 2 : index
    %c2_270 = arith.constant 2 : index
    %c0_271 = arith.constant 0 : index
    %c0_272 = arith.constant 0 : index
    %357 = vector.load %arg15[%c2_269, %c2_270, %c0_271, %c0_272] : memref<3x4x64x16xbf16, #tpu.memory_space<vmem>>, vector<1x1x64x16xbf16>
    %358 = vector.shape_cast %357 : vector<1x1x64x16xbf16> to vector<64x16xbf16>
    %359 = arith.truncf %307 : vector<5x64xf32> to vector<5x64xbf16>
    %cst_273 = arith.constant dense<0.000000e+00> : vector<5x16xf32>
    %360 = tpu.matmul %359, %358, %cst_273 {dimension_numbers = #tpu.dot_dimension_numbers<[1], [0], [0], [1], [0, 0, 1, 1], [], []>} : vector<5x64xbf16>, vector<64x16xbf16>, vector<5x16xf32> -> vector<5x16xf32>
    %c2_274 = arith.constant 2 : index
    %c2_275 = arith.constant 2 : index
    %c0_276 = arith.constant 0 : index
    %c0_277 = arith.constant 0 : index
    %361 = vector.load %arg16[%c2_274, %c2_275, %c0_276, %c0_277] : memref<3x4x1x16xf32, #tpu.memory_space<vmem>>, vector<1x1x1x16xf32>
    %362 = vector.shape_cast %361 : vector<1x1x1x16xf32> to vector<1x16xf32>
    %363 = vector.broadcast %362 : vector<1x16xf32> to vector<5x16xf32>
    %364 = arith.addf %360, %363 : vector<5x16xf32>
    %c2_278 = arith.constant 2 : index
    %c3_279 = arith.constant 3 : index
    %c0_280 = arith.constant 0 : index
    %c0_281 = arith.constant 0 : index
    %365 = vector.load %arg15[%c2_278, %c3_279, %c0_280, %c0_281] : memref<3x4x64x16xbf16, #tpu.memory_space<vmem>>, vector<1x1x64x16xbf16>
    %366 = vector.shape_cast %365 : vector<1x1x64x16xbf16> to vector<64x16xbf16>
    %367 = arith.truncf %307 : vector<5x64xf32> to vector<5x64xbf16>
    %cst_282 = arith.constant dense<0.000000e+00> : vector<5x16xf32>
    %368 = tpu.matmul %367, %366, %cst_282 {dimension_numbers = #tpu.dot_dimension_numbers<[1], [0], [0], [1], [0, 0, 1, 1], [], []>} : vector<5x64xbf16>, vector<64x16xbf16>, vector<5x16xf32> -> vector<5x16xf32>
    %c2_283 = arith.constant 2 : index
    %c3_284 = arith.constant 3 : index
    %c0_285 = arith.constant 0 : index
    %c0_286 = arith.constant 0 : index
    %369 = vector.load %arg16[%c2_283, %c3_284, %c0_285, %c0_286] : memref<3x4x1x16xf32, #tpu.memory_space<vmem>>, vector<1x1x1x16xf32>
    %370 = vector.shape_cast %369 : vector<1x1x1x16xf32> to vector<1x16xf32>
    %371 = vector.broadcast %370 : vector<1x16xf32> to vector<5x16xf32>
    %372 = arith.addf %368, %371 : vector<5x16xf32>
    %373 = arith.truncf %31 : vector<16x16xf32> to vector<16x16xbf16>
    %374 = arith.truncf %316 : vector<5x16xf32> to vector<5x16xbf16>
    %cst_287 = arith.constant dense<0.000000e+00> : vector<16x5xf32>
    %375 = tpu.matmul %373, %374, %cst_287 {dimension_numbers = #tpu.dot_dimension_numbers<[1], [1], [0], [0], [0, 0, 1, 0], [], []>} : vector<16x16xbf16>, vector<5x16xbf16>, vector<16x5xf32> -> vector<16x5xf32>
    %cst_288 = arith.constant dense<0xFF800000> : vector<16xf32>
    %376 = vector.multi_reduction <maximumf>, %375, %cst_288 [1] : vector<16x5xf32> to vector<16xf32>
    %377 = vector.shape_cast %376 : vector<16xf32> to vector<16x1xf32>
    %378 = vector.broadcast %377 : vector<16x1xf32> to vector<16x5xf32>
    %379 = arith.subf %375, %378 : vector<16x5xf32>
    %380 = math.exp %379 : vector<16x5xf32>
    %cst_289 = arith.constant dense<0.000000e+00> : vector<16xf32>
    %381 = vector.multi_reduction <add>, %380, %cst_289 [1] : vector<16x5xf32> to vector<16xf32>
    %382 = vector.shape_cast %381 : vector<16xf32> to vector<16x1xf32>
    %383 = vector.broadcast %382 : vector<16x1xf32> to vector<16x5xf32>
    %384 = arith.divf %380, %383 : vector<16x5xf32>
    %385 = arith.truncf %384 : vector<16x5xf32> to vector<16x5xbf16>
    %386 = arith.truncf %348 : vector<5x16xf32> to vector<5x16xbf16>
    %cst_290 = arith.constant dense<0.000000e+00> : vector<16x16xf32>
    %387 = tpu.matmul %385, %386, %cst_290 {dimension_numbers = #tpu.dot_dimension_numbers<[1], [0], [0], [1], [0, 0, 1, 1], [], []>} : vector<16x5xbf16>, vector<5x16xbf16>, vector<16x16xf32> -> vector<16x16xf32>
    %c0_291 = arith.constant 0 : index
    %c0_292 = arith.constant 0 : index
    %c0_293 = arith.constant 0 : index
    %388 = vector.load %arg17[%c0_291, %c0_292, %c0_293] : memref<4x16x64xbf16, #tpu.memory_space<vmem>>, vector<1x16x64xbf16>
    %389 = vector.shape_cast %388 : vector<1x16x64xbf16> to vector<16x64xbf16>
    %390 = arith.truncf %387 : vector<16x16xf32> to vector<16x16xbf16>
    %cst_294 = arith.constant dense<0.000000e+00> : vector<16x64xf32>
    %391 = tpu.matmul %390, %389, %cst_294 {dimension_numbers = #tpu.dot_dimension_numbers<[1], [0], [0], [1], [0, 0, 1, 1], [], []>} : vector<16x16xbf16>, vector<16x64xbf16>, vector<16x64xf32> -> vector<16x64xf32>
    %392 = arith.truncf %39 : vector<16x16xf32> to vector<16x16xbf16>
    %393 = arith.truncf %324 : vector<5x16xf32> to vector<5x16xbf16>
    %cst_295 = arith.constant dense<0.000000e+00> : vector<16x5xf32>
    %394 = tpu.matmul %392, %393, %cst_295 {dimension_numbers = #tpu.dot_dimension_numbers<[1], [1], [0], [0], [0, 0, 1, 0], [], []>} : vector<16x16xbf16>, vector<5x16xbf16>, vector<16x5xf32> -> vector<16x5xf32>
    %cst_296 = arith.constant dense<0xFF800000> : vector<16xf32>
    %395 = vector.multi_reduction <maximumf>, %394, %cst_296 [1] : vector<16x5xf32> to vector<16xf32>
    %396 = vector.shape_cast %395 : vector<16xf32> to vector<16x1xf32>
    %397 = vector.broadcast %396 : vector<16x1xf32> to vector<16x5xf32>
    %398 = arith.subf %394, %397 : vector<16x5xf32>
    %399 = math.exp %398 : vector<16x5xf32>
    %cst_297 = arith.constant dense<0.000000e+00> : vector<16xf32>
    %400 = vector.multi_reduction <add>, %399, %cst_297 [1] : vector<16x5xf32> to vector<16xf32>
    %401 = vector.shape_cast %400 : vector<16xf32> to vector<16x1xf32>
    %402 = vector.broadcast %401 : vector<16x1xf32> to vector<16x5xf32>
    %403 = arith.divf %399, %402 : vector<16x5xf32>
    %404 = arith.truncf %403 : vector<16x5xf32> to vector<16x5xbf16>
    %405 = arith.truncf %356 : vector<5x16xf32> to vector<5x16xbf16>
    %cst_298 = arith.constant dense<0.000000e+00> : vector<16x16xf32>
    %406 = tpu.matmul %404, %405, %cst_298 {dimension_numbers = #tpu.dot_dimension_numbers<[1], [0], [0], [1], [0, 0, 1, 1], [], []>} : vector<16x5xbf16>, vector<5x16xbf16>, vector<16x16xf32> -> vector<16x16xf32>
    %c1_299 = arith.constant 1 : index
    %c0_300 = arith.constant 0 : index
    %c0_301 = arith.constant 0 : index
    %407 = vector.load %arg17[%c1_299, %c0_300, %c0_301] : memref<4x16x64xbf16, #tpu.memory_space<vmem>>, vector<1x16x64xbf16>
    %408 = vector.shape_cast %407 : vector<1x16x64xbf16> to vector<16x64xbf16>
    %409 = arith.truncf %406 : vector<16x16xf32> to vector<16x16xbf16>
    %cst_302 = arith.constant dense<0.000000e+00> : vector<16x64xf32>
    %410 = tpu.matmul %409, %408, %cst_302 {dimension_numbers = #tpu.dot_dimension_numbers<[1], [0], [0], [1], [0, 0, 1, 1], [], []>} : vector<16x16xbf16>, vector<16x64xbf16>, vector<16x64xf32> -> vector<16x64xf32>
    %411 = arith.addf %391, %410 : vector<16x64xf32>
    %412 = arith.truncf %47 : vector<16x16xf32> to vector<16x16xbf16>
    %413 = arith.truncf %332 : vector<5x16xf32> to vector<5x16xbf16>
    %cst_303 = arith.constant dense<0.000000e+00> : vector<16x5xf32>
    %414 = tpu.matmul %412, %413, %cst_303 {dimension_numbers = #tpu.dot_dimension_numbers<[1], [1], [0], [0], [0, 0, 1, 0], [], []>} : vector<16x16xbf16>, vector<5x16xbf16>, vector<16x5xf32> -> vector<16x5xf32>
    %cst_304 = arith.constant dense<0xFF800000> : vector<16xf32>
    %415 = vector.multi_reduction <maximumf>, %414, %cst_304 [1] : vector<16x5xf32> to vector<16xf32>
    %416 = vector.shape_cast %415 : vector<16xf32> to vector<16x1xf32>
    %417 = vector.broadcast %416 : vector<16x1xf32> to vector<16x5xf32>
    %418 = arith.subf %414, %417 : vector<16x5xf32>
    %419 = math.exp %418 : vector<16x5xf32>
    %cst_305 = arith.constant dense<0.000000e+00> : vector<16xf32>
    %420 = vector.multi_reduction <add>, %419, %cst_305 [1] : vector<16x5xf32> to vector<16xf32>
    %421 = vector.shape_cast %420 : vector<16xf32> to vector<16x1xf32>
    %422 = vector.broadcast %421 : vector<16x1xf32> to vector<16x5xf32>
    %423 = arith.divf %419, %422 : vector<16x5xf32>
    %424 = arith.truncf %423 : vector<16x5xf32> to vector<16x5xbf16>
    %425 = arith.truncf %364 : vector<5x16xf32> to vector<5x16xbf16>
    %cst_306 = arith.constant dense<0.000000e+00> : vector<16x16xf32>
    %426 = tpu.matmul %424, %425, %cst_306 {dimension_numbers = #tpu.dot_dimension_numbers<[1], [0], [0], [1], [0, 0, 1, 1], [], []>} : vector<16x5xbf16>, vector<5x16xbf16>, vector<16x16xf32> -> vector<16x16xf32>
    %c2_307 = arith.constant 2 : index
    %c0_308 = arith.constant 0 : index
    %c0_309 = arith.constant 0 : index
    %427 = vector.load %arg17[%c2_307, %c0_308, %c0_309] : memref<4x16x64xbf16, #tpu.memory_space<vmem>>, vector<1x16x64xbf16>
    %428 = vector.shape_cast %427 : vector<1x16x64xbf16> to vector<16x64xbf16>
    %429 = arith.truncf %426 : vector<16x16xf32> to vector<16x16xbf16>
    %cst_310 = arith.constant dense<0.000000e+00> : vector<16x64xf32>
    %430 = tpu.matmul %429, %428, %cst_310 {dimension_numbers = #tpu.dot_dimension_numbers<[1], [0], [0], [1], [0, 0, 1, 1], [], []>} : vector<16x16xbf16>, vector<16x64xbf16>, vector<16x64xf32> -> vector<16x64xf32>
    %431 = arith.addf %411, %430 : vector<16x64xf32>
    %432 = arith.truncf %55 : vector<16x16xf32> to vector<16x16xbf16>
    %433 = arith.truncf %340 : vector<5x16xf32> to vector<5x16xbf16>
    %cst_311 = arith.constant dense<0.000000e+00> : vector<16x5xf32>
    %434 = tpu.matmul %432, %433, %cst_311 {dimension_numbers = #tpu.dot_dimension_numbers<[1], [1], [0], [0], [0, 0, 1, 0], [], []>} : vector<16x16xbf16>, vector<5x16xbf16>, vector<16x5xf32> -> vector<16x5xf32>
    %cst_312 = arith.constant dense<0xFF800000> : vector<16xf32>
    %435 = vector.multi_reduction <maximumf>, %434, %cst_312 [1] : vector<16x5xf32> to vector<16xf32>
    %436 = vector.shape_cast %435 : vector<16xf32> to vector<16x1xf32>
    %437 = vector.broadcast %436 : vector<16x1xf32> to vector<16x5xf32>
    %438 = arith.subf %434, %437 : vector<16x5xf32>
    %439 = math.exp %438 : vector<16x5xf32>
    %cst_313 = arith.constant dense<0.000000e+00> : vector<16xf32>
    %440 = vector.multi_reduction <add>, %439, %cst_313 [1] : vector<16x5xf32> to vector<16xf32>
    %441 = vector.shape_cast %440 : vector<16xf32> to vector<16x1xf32>
    %442 = vector.broadcast %441 : vector<16x1xf32> to vector<16x5xf32>
    %443 = arith.divf %439, %442 : vector<16x5xf32>
    %444 = arith.truncf %443 : vector<16x5xf32> to vector<16x5xbf16>
    %445 = arith.truncf %372 : vector<5x16xf32> to vector<5x16xbf16>
    %cst_314 = arith.constant dense<0.000000e+00> : vector<16x16xf32>
    %446 = tpu.matmul %444, %445, %cst_314 {dimension_numbers = #tpu.dot_dimension_numbers<[1], [0], [0], [1], [0, 0, 1, 1], [], []>} : vector<16x5xbf16>, vector<5x16xbf16>, vector<16x16xf32> -> vector<16x16xf32>
    %c3_315 = arith.constant 3 : index
    %c0_316 = arith.constant 0 : index
    %c0_317 = arith.constant 0 : index
    %447 = vector.load %arg17[%c3_315, %c0_316, %c0_317] : memref<4x16x64xbf16, #tpu.memory_space<vmem>>, vector<1x16x64xbf16>
    %448 = vector.shape_cast %447 : vector<1x16x64xbf16> to vector<16x64xbf16>
    %449 = arith.truncf %446 : vector<16x16xf32> to vector<16x16xbf16>
    %cst_318 = arith.constant dense<0.000000e+00> : vector<16x64xf32>
    %450 = tpu.matmul %449, %448, %cst_318 {dimension_numbers = #tpu.dot_dimension_numbers<[1], [0], [0], [1], [0, 0, 1, 1], [], []>} : vector<16x16xbf16>, vector<16x64xbf16>, vector<16x64xf32> -> vector<16x64xf32>
    %451 = arith.addf %431, %450 : vector<16x64xf32>
    %452 = vector.broadcast %308 : vector<1x64xf32> to vector<16x64xf32>
    %453 = arith.addf %451, %452 : vector<16x64xf32>
    %cst_319 = arith.constant 0.000000e+00 : f32
    %454 = vector.broadcast %cst_319 : f32 to vector<16x64xf32>
    %455 = arith.maximumf %453, %454 : vector<16x64xf32>
    %456 = vector.extract_strided_slice %0 {offsets = [12, 0], sizes = [1, 128], strides = [1, 1]} : vector<14x128xf32> to vector<1x128xf32>
    %457 = vector.extract_strided_slice %455 {offsets = [0, 0], sizes = [1, 64], strides = [1, 1]} : vector<16x64xf32> to vector<1x64xf32>
    %c0_320 = arith.constant 0 : index
    %c0_321 = arith.constant 0 : index
    %c0_322 = arith.constant 0 : index
    %458 = vector.load %arg18[%c0_320, %c0_321, %c0_322] : memref<16x64x128xbf16, #tpu.memory_space<vmem>>, vector<1x64x128xbf16>
    %459 = vector.shape_cast %458 : vector<1x64x128xbf16> to vector<64x128xbf16>
    %460 = arith.truncf %457 : vector<1x64xf32> to vector<1x64xbf16>
    %cst_323 = arith.constant dense<0.000000e+00> : vector<1x128xf32>
    %461 = tpu.matmul %460, %459, %cst_323 {dimension_numbers = #tpu.dot_dimension_numbers<[1], [0], [0], [1], [0, 0, 1, 1], [], []>} : vector<1x64xbf16>, vector<64x128xbf16>, vector<1x128xf32> -> vector<1x128xf32>
    %462 = arith.addf %456, %461 : vector<1x128xf32>
    %463 = vector.extract_strided_slice %455 {offsets = [1, 0], sizes = [1, 64], strides = [1, 1]} : vector<16x64xf32> to vector<1x64xf32>
    %c1_324 = arith.constant 1 : index
    %c0_325 = arith.constant 0 : index
    %c0_326 = arith.constant 0 : index
    %464 = vector.load %arg18[%c1_324, %c0_325, %c0_326] : memref<16x64x128xbf16, #tpu.memory_space<vmem>>, vector<1x64x128xbf16>
    %465 = vector.shape_cast %464 : vector<1x64x128xbf16> to vector<64x128xbf16>
    %466 = arith.truncf %463 : vector<1x64xf32> to vector<1x64xbf16>
    %cst_327 = arith.constant dense<0.000000e+00> : vector<1x128xf32>
    %467 = tpu.matmul %466, %465, %cst_327 {dimension_numbers = #tpu.dot_dimension_numbers<[1], [0], [0], [1], [0, 0, 1, 1], [], []>} : vector<1x64xbf16>, vector<64x128xbf16>, vector<1x128xf32> -> vector<1x128xf32>
    %468 = arith.addf %462, %467 : vector<1x128xf32>
    %469 = vector.extract_strided_slice %455 {offsets = [2, 0], sizes = [1, 64], strides = [1, 1]} : vector<16x64xf32> to vector<1x64xf32>
    %c2_328 = arith.constant 2 : index
    %c0_329 = arith.constant 0 : index
    %c0_330 = arith.constant 0 : index
    %470 = vector.load %arg18[%c2_328, %c0_329, %c0_330] : memref<16x64x128xbf16, #tpu.memory_space<vmem>>, vector<1x64x128xbf16>
    %471 = vector.shape_cast %470 : vector<1x64x128xbf16> to vector<64x128xbf16>
    %472 = arith.truncf %469 : vector<1x64xf32> to vector<1x64xbf16>
    %cst_331 = arith.constant dense<0.000000e+00> : vector<1x128xf32>
    %473 = tpu.matmul %472, %471, %cst_331 {dimension_numbers = #tpu.dot_dimension_numbers<[1], [0], [0], [1], [0, 0, 1, 1], [], []>} : vector<1x64xbf16>, vector<64x128xbf16>, vector<1x128xf32> -> vector<1x128xf32>
    %474 = arith.addf %468, %473 : vector<1x128xf32>
    %475 = vector.extract_strided_slice %455 {offsets = [3, 0], sizes = [1, 64], strides = [1, 1]} : vector<16x64xf32> to vector<1x64xf32>
    %c3_332 = arith.constant 3 : index
    %c0_333 = arith.constant 0 : index
    %c0_334 = arith.constant 0 : index
    %476 = vector.load %arg18[%c3_332, %c0_333, %c0_334] : memref<16x64x128xbf16, #tpu.memory_space<vmem>>, vector<1x64x128xbf16>
    %477 = vector.shape_cast %476 : vector<1x64x128xbf16> to vector<64x128xbf16>
    %478 = arith.truncf %475 : vector<1x64xf32> to vector<1x64xbf16>
    %cst_335 = arith.constant dense<0.000000e+00> : vector<1x128xf32>
    %479 = tpu.matmul %478, %477, %cst_335 {dimension_numbers = #tpu.dot_dimension_numbers<[1], [0], [0], [1], [0, 0, 1, 1], [], []>} : vector<1x64xbf16>, vector<64x128xbf16>, vector<1x128xf32> -> vector<1x128xf32>
    %480 = arith.addf %474, %479 : vector<1x128xf32>
    %481 = vector.extract_strided_slice %455 {offsets = [4, 0], sizes = [1, 64], strides = [1, 1]} : vector<16x64xf32> to vector<1x64xf32>
    %c4 = arith.constant 4 : index
    %c0_336 = arith.constant 0 : index
    %c0_337 = arith.constant 0 : index
    %482 = vector.load %arg18[%c4, %c0_336, %c0_337] : memref<16x64x128xbf16, #tpu.memory_space<vmem>>, vector<1x64x128xbf16>
    %483 = vector.shape_cast %482 : vector<1x64x128xbf16> to vector<64x128xbf16>
    %484 = arith.truncf %481 : vector<1x64xf32> to vector<1x64xbf16>
    %cst_338 = arith.constant dense<0.000000e+00> : vector<1x128xf32>
    %485 = tpu.matmul %484, %483, %cst_338 {dimension_numbers = #tpu.dot_dimension_numbers<[1], [0], [0], [1], [0, 0, 1, 1], [], []>} : vector<1x64xbf16>, vector<64x128xbf16>, vector<1x128xf32> -> vector<1x128xf32>
    %486 = arith.addf %480, %485 : vector<1x128xf32>
    %487 = vector.extract_strided_slice %455 {offsets = [5, 0], sizes = [1, 64], strides = [1, 1]} : vector<16x64xf32> to vector<1x64xf32>
    %c5 = arith.constant 5 : index
    %c0_339 = arith.constant 0 : index
    %c0_340 = arith.constant 0 : index
    %488 = vector.load %arg18[%c5, %c0_339, %c0_340] : memref<16x64x128xbf16, #tpu.memory_space<vmem>>, vector<1x64x128xbf16>
    %489 = vector.shape_cast %488 : vector<1x64x128xbf16> to vector<64x128xbf16>
    %490 = arith.truncf %487 : vector<1x64xf32> to vector<1x64xbf16>
    %cst_341 = arith.constant dense<0.000000e+00> : vector<1x128xf32>
    %491 = tpu.matmul %490, %489, %cst_341 {dimension_numbers = #tpu.dot_dimension_numbers<[1], [0], [0], [1], [0, 0, 1, 1], [], []>} : vector<1x64xbf16>, vector<64x128xbf16>, vector<1x128xf32> -> vector<1x128xf32>
    %492 = arith.addf %486, %491 : vector<1x128xf32>
    %493 = vector.extract_strided_slice %455 {offsets = [6, 0], sizes = [1, 64], strides = [1, 1]} : vector<16x64xf32> to vector<1x64xf32>
    %c6 = arith.constant 6 : index
    %c0_342 = arith.constant 0 : index
    %c0_343 = arith.constant 0 : index
    %494 = vector.load %arg18[%c6, %c0_342, %c0_343] : memref<16x64x128xbf16, #tpu.memory_space<vmem>>, vector<1x64x128xbf16>
    %495 = vector.shape_cast %494 : vector<1x64x128xbf16> to vector<64x128xbf16>
    %496 = arith.truncf %493 : vector<1x64xf32> to vector<1x64xbf16>
    %cst_344 = arith.constant dense<0.000000e+00> : vector<1x128xf32>
    %497 = tpu.matmul %496, %495, %cst_344 {dimension_numbers = #tpu.dot_dimension_numbers<[1], [0], [0], [1], [0, 0, 1, 1], [], []>} : vector<1x64xbf16>, vector<64x128xbf16>, vector<1x128xf32> -> vector<1x128xf32>
    %498 = arith.addf %492, %497 : vector<1x128xf32>
    %499 = vector.extract_strided_slice %455 {offsets = [7, 0], sizes = [1, 64], strides = [1, 1]} : vector<16x64xf32> to vector<1x64xf32>
    %c7 = arith.constant 7 : index
    %c0_345 = arith.constant 0 : index
    %c0_346 = arith.constant 0 : index
    %500 = vector.load %arg18[%c7, %c0_345, %c0_346] : memref<16x64x128xbf16, #tpu.memory_space<vmem>>, vector<1x64x128xbf16>
    %501 = vector.shape_cast %500 : vector<1x64x128xbf16> to vector<64x128xbf16>
    %502 = arith.truncf %499 : vector<1x64xf32> to vector<1x64xbf16>
    %cst_347 = arith.constant dense<0.000000e+00> : vector<1x128xf32>
    %503 = tpu.matmul %502, %501, %cst_347 {dimension_numbers = #tpu.dot_dimension_numbers<[1], [0], [0], [1], [0, 0, 1, 1], [], []>} : vector<1x64xbf16>, vector<64x128xbf16>, vector<1x128xf32> -> vector<1x128xf32>
    %504 = arith.addf %498, %503 : vector<1x128xf32>
    %505 = vector.extract_strided_slice %455 {offsets = [8, 0], sizes = [1, 64], strides = [1, 1]} : vector<16x64xf32> to vector<1x64xf32>
    %c8 = arith.constant 8 : index
    %c0_348 = arith.constant 0 : index
    %c0_349 = arith.constant 0 : index
    %506 = vector.load %arg18[%c8, %c0_348, %c0_349] : memref<16x64x128xbf16, #tpu.memory_space<vmem>>, vector<1x64x128xbf16>
    %507 = vector.shape_cast %506 : vector<1x64x128xbf16> to vector<64x128xbf16>
    %508 = arith.truncf %505 : vector<1x64xf32> to vector<1x64xbf16>
    %cst_350 = arith.constant dense<0.000000e+00> : vector<1x128xf32>
    %509 = tpu.matmul %508, %507, %cst_350 {dimension_numbers = #tpu.dot_dimension_numbers<[1], [0], [0], [1], [0, 0, 1, 1], [], []>} : vector<1x64xbf16>, vector<64x128xbf16>, vector<1x128xf32> -> vector<1x128xf32>
    %510 = arith.addf %504, %509 : vector<1x128xf32>
    %511 = vector.extract_strided_slice %455 {offsets = [9, 0], sizes = [1, 64], strides = [1, 1]} : vector<16x64xf32> to vector<1x64xf32>
    %c9 = arith.constant 9 : index
    %c0_351 = arith.constant 0 : index
    %c0_352 = arith.constant 0 : index
    %512 = vector.load %arg18[%c9, %c0_351, %c0_352] : memref<16x64x128xbf16, #tpu.memory_space<vmem>>, vector<1x64x128xbf16>
    %513 = vector.shape_cast %512 : vector<1x64x128xbf16> to vector<64x128xbf16>
    %514 = arith.truncf %511 : vector<1x64xf32> to vector<1x64xbf16>
    %cst_353 = arith.constant dense<0.000000e+00> : vector<1x128xf32>
    %515 = tpu.matmul %514, %513, %cst_353 {dimension_numbers = #tpu.dot_dimension_numbers<[1], [0], [0], [1], [0, 0, 1, 1], [], []>} : vector<1x64xbf16>, vector<64x128xbf16>, vector<1x128xf32> -> vector<1x128xf32>
    %516 = arith.addf %510, %515 : vector<1x128xf32>
    %517 = vector.extract_strided_slice %455 {offsets = [10, 0], sizes = [1, 64], strides = [1, 1]} : vector<16x64xf32> to vector<1x64xf32>
    %c10 = arith.constant 10 : index
    %c0_354 = arith.constant 0 : index
    %c0_355 = arith.constant 0 : index
    %518 = vector.load %arg18[%c10, %c0_354, %c0_355] : memref<16x64x128xbf16, #tpu.memory_space<vmem>>, vector<1x64x128xbf16>
    %519 = vector.shape_cast %518 : vector<1x64x128xbf16> to vector<64x128xbf16>
    %520 = arith.truncf %517 : vector<1x64xf32> to vector<1x64xbf16>
    %cst_356 = arith.constant dense<0.000000e+00> : vector<1x128xf32>
    %521 = tpu.matmul %520, %519, %cst_356 {dimension_numbers = #tpu.dot_dimension_numbers<[1], [0], [0], [1], [0, 0, 1, 1], [], []>} : vector<1x64xbf16>, vector<64x128xbf16>, vector<1x128xf32> -> vector<1x128xf32>
    %522 = arith.addf %516, %521 : vector<1x128xf32>
    %523 = vector.extract_strided_slice %455 {offsets = [11, 0], sizes = [1, 64], strides = [1, 1]} : vector<16x64xf32> to vector<1x64xf32>
    %c11 = arith.constant 11 : index
    %c0_357 = arith.constant 0 : index
    %c0_358 = arith.constant 0 : index
    %524 = vector.load %arg18[%c11, %c0_357, %c0_358] : memref<16x64x128xbf16, #tpu.memory_space<vmem>>, vector<1x64x128xbf16>
    %525 = vector.shape_cast %524 : vector<1x64x128xbf16> to vector<64x128xbf16>
    %526 = arith.truncf %523 : vector<1x64xf32> to vector<1x64xbf16>
    %cst_359 = arith.constant dense<0.000000e+00> : vector<1x128xf32>
    %527 = tpu.matmul %526, %525, %cst_359 {dimension_numbers = #tpu.dot_dimension_numbers<[1], [0], [0], [1], [0, 0, 1, 1], [], []>} : vector<1x64xbf16>, vector<64x128xbf16>, vector<1x128xf32> -> vector<1x128xf32>
    %528 = arith.addf %522, %527 : vector<1x128xf32>
    %529 = vector.extract_strided_slice %455 {offsets = [12, 0], sizes = [1, 64], strides = [1, 1]} : vector<16x64xf32> to vector<1x64xf32>
    %c12 = arith.constant 12 : index
    %c0_360 = arith.constant 0 : index
    %c0_361 = arith.constant 0 : index
    %530 = vector.load %arg18[%c12, %c0_360, %c0_361] : memref<16x64x128xbf16, #tpu.memory_space<vmem>>, vector<1x64x128xbf16>
    %531 = vector.shape_cast %530 : vector<1x64x128xbf16> to vector<64x128xbf16>
    %532 = arith.truncf %529 : vector<1x64xf32> to vector<1x64xbf16>
    %cst_362 = arith.constant dense<0.000000e+00> : vector<1x128xf32>
    %533 = tpu.matmul %532, %531, %cst_362 {dimension_numbers = #tpu.dot_dimension_numbers<[1], [0], [0], [1], [0, 0, 1, 1], [], []>} : vector<1x64xbf16>, vector<64x128xbf16>, vector<1x128xf32> -> vector<1x128xf32>
    %534 = arith.addf %528, %533 : vector<1x128xf32>
    %535 = vector.extract_strided_slice %455 {offsets = [13, 0], sizes = [1, 64], strides = [1, 1]} : vector<16x64xf32> to vector<1x64xf32>
    %c13 = arith.constant 13 : index
    %c0_363 = arith.constant 0 : index
    %c0_364 = arith.constant 0 : index
    %536 = vector.load %arg18[%c13, %c0_363, %c0_364] : memref<16x64x128xbf16, #tpu.memory_space<vmem>>, vector<1x64x128xbf16>
    %537 = vector.shape_cast %536 : vector<1x64x128xbf16> to vector<64x128xbf16>
    %538 = arith.truncf %535 : vector<1x64xf32> to vector<1x64xbf16>
    %cst_365 = arith.constant dense<0.000000e+00> : vector<1x128xf32>
    %539 = tpu.matmul %538, %537, %cst_365 {dimension_numbers = #tpu.dot_dimension_numbers<[1], [0], [0], [1], [0, 0, 1, 1], [], []>} : vector<1x64xbf16>, vector<64x128xbf16>, vector<1x128xf32> -> vector<1x128xf32>
    %540 = arith.addf %534, %539 : vector<1x128xf32>
    %541 = vector.extract_strided_slice %455 {offsets = [14, 0], sizes = [1, 64], strides = [1, 1]} : vector<16x64xf32> to vector<1x64xf32>
    %c14 = arith.constant 14 : index
    %c0_366 = arith.constant 0 : index
    %c0_367 = arith.constant 0 : index
    %542 = vector.load %arg18[%c14, %c0_366, %c0_367] : memref<16x64x128xbf16, #tpu.memory_space<vmem>>, vector<1x64x128xbf16>
    %543 = vector.shape_cast %542 : vector<1x64x128xbf16> to vector<64x128xbf16>
    %544 = arith.truncf %541 : vector<1x64xf32> to vector<1x64xbf16>
    %cst_368 = arith.constant dense<0.000000e+00> : vector<1x128xf32>
    %545 = tpu.matmul %544, %543, %cst_368 {dimension_numbers = #tpu.dot_dimension_numbers<[1], [0], [0], [1], [0, 0, 1, 1], [], []>} : vector<1x64xbf16>, vector<64x128xbf16>, vector<1x128xf32> -> vector<1x128xf32>
    %546 = arith.addf %540, %545 : vector<1x128xf32>
    %547 = vector.extract_strided_slice %455 {offsets = [15, 0], sizes = [1, 64], strides = [1, 1]} : vector<16x64xf32> to vector<1x64xf32>
    %c15 = arith.constant 15 : index
    %c0_369 = arith.constant 0 : index
    %c0_370 = arith.constant 0 : index
    %548 = vector.load %arg18[%c15, %c0_369, %c0_370] : memref<16x64x128xbf16, #tpu.memory_space<vmem>>, vector<1x64x128xbf16>
    %549 = vector.shape_cast %548 : vector<1x64x128xbf16> to vector<64x128xbf16>
    %550 = arith.truncf %547 : vector<1x64xf32> to vector<1x64xbf16>
    %cst_371 = arith.constant dense<0.000000e+00> : vector<1x128xf32>
    %551 = tpu.matmul %550, %549, %cst_371 {dimension_numbers = #tpu.dot_dimension_numbers<[1], [0], [0], [1], [0, 0, 1, 1], [], []>} : vector<1x64xbf16>, vector<64x128xbf16>, vector<1x128xf32> -> vector<1x128xf32>
    %552 = arith.addf %546, %551 : vector<1x128xf32>
    %cst_372 = arith.constant 0.000000e+00 : f32
    %553 = vector.broadcast %cst_372 : f32 to vector<1x128xf32>
    %554 = arith.maximumf %552, %553 : vector<1x128xf32>
    %c0_373 = arith.constant 0 : index
    %c0_374 = arith.constant 0 : index
    %555 = vector.load %arg19[%c0_373, %c0_374] : memref<128x16xbf16, #tpu.memory_space<vmem>>, vector<128x16xbf16>
    %556 = arith.truncf %554 : vector<1x128xf32> to vector<1x128xbf16>
    %cst_375 = arith.constant dense<0.000000e+00> : vector<1x16xf32>
    %557 = tpu.matmul %556, %555, %cst_375 {dimension_numbers = #tpu.dot_dimension_numbers<[1], [0], [0], [1], [0, 0, 1, 1], [], []>} : vector<1x128xbf16>, vector<128x16xbf16>, vector<1x16xf32> -> vector<1x16xf32>
    %558 = vector.extract_strided_slice %0 {offsets = [13, 0], sizes = [1, 16], strides = [1, 1]} : vector<14x128xf32> to vector<1x16xf32>
    %559 = arith.addf %557, %558 : vector<1x16xf32>
    %c1_376 = arith.constant 1 : index
    %c0_377 = arith.constant 0 : index
    %c0_378 = arith.constant 0 : index
    %560 = vector.load %arg1[%c1_376, %c0_377, %c0_378] : memref<2x6x50xf32, #tpu.memory_space<vmem>>, vector<1x6x50xf32>
    %561 = vector.shape_cast %560 : vector<1x6x50xf32> to vector<6x50xf32>
    %c0_379 = arith.constant 0 : index
    %c0_380 = arith.constant 0 : index
    %562 = vector.load %arg7[%c0_379, %c0_380] : memref<50x16xbf16, #tpu.memory_space<vmem>>, vector<50x16xbf16>
    %563 = arith.truncf %561 : vector<6x50xf32> to vector<6x50xbf16>
    %cst_381 = arith.constant dense<0.000000e+00> : vector<6x16xf32>
    %564 = tpu.matmul %563, %562, %cst_381 {dimension_numbers = #tpu.dot_dimension_numbers<[1], [0], [0], [1], [0, 0, 1, 1], [], []>} : vector<6x50xbf16>, vector<50x16xbf16>, vector<6x16xf32> -> vector<6x16xf32>
    %565 = vector.extract_strided_slice %0 {offsets = [3, 0], sizes = [1, 16], strides = [1, 1]} : vector<14x128xf32> to vector<1x16xf32>
    %566 = vector.broadcast %565 : vector<1x16xf32> to vector<6x16xf32>
    %567 = arith.addf %564, %566 : vector<6x16xf32>
    %568 = math.tanh %567 : vector<6x16xf32>
    %c0_382 = arith.constant 0 : index
    %c0_383 = arith.constant 0 : index
    %569 = vector.load %arg10[%c0_382, %c0_383] : memref<16x64xbf16, #tpu.memory_space<vmem>>, vector<16x64xbf16>
    %570 = vector.extract_strided_slice %0 {offsets = [7, 0], sizes = [1, 64], strides = [1, 1]} : vector<14x128xf32> to vector<1x64xf32>
    %c0_384 = arith.constant 0 : index
    %c0_385 = arith.constant 0 : index
    %571 = vector.load %arg11[%c0_384, %c0_385] : memref<64x16xbf16, #tpu.memory_space<vmem>>, vector<64x16xbf16>
    %572 = vector.extract_strided_slice %0 {offsets = [8, 0], sizes = [1, 16], strides = [1, 1]} : vector<14x128xf32> to vector<1x16xf32>
    %573 = vector.extract_strided_slice %0 {offsets = [9, 0], sizes = [1, 16], strides = [1, 1]} : vector<14x128xf32> to vector<1x16xf32>
    %574 = arith.truncf %568 : vector<6x16xf32> to vector<6x16xbf16>
    %cst_386 = arith.constant dense<0.000000e+00> : vector<6x64xf32>
    %575 = tpu.matmul %574, %569, %cst_386 {dimension_numbers = #tpu.dot_dimension_numbers<[1], [0], [0], [1], [0, 0, 1, 1], [], []>} : vector<6x16xbf16>, vector<16x64xbf16>, vector<6x64xf32> -> vector<6x64xf32>
    %576 = vector.broadcast %570 : vector<1x64xf32> to vector<6x64xf32>
    %577 = arith.addf %575, %576 : vector<6x64xf32>
    %578 = math.tanh %577 : vector<6x64xf32>
    %579 = arith.truncf %578 : vector<6x64xf32> to vector<6x64xbf16>
    %cst_387 = arith.constant dense<0.000000e+00> : vector<6x16xf32>
    %580 = tpu.matmul %579, %571, %cst_387 {dimension_numbers = #tpu.dot_dimension_numbers<[1], [0], [0], [1], [0, 0, 1, 1], [], []>} : vector<6x64xbf16>, vector<64x16xbf16>, vector<6x16xf32> -> vector<6x16xf32>
    %581 = vector.broadcast %572 : vector<1x16xf32> to vector<6x16xf32>
    %582 = arith.addf %580, %581 : vector<6x16xf32>
    %583 = math.tanh %582 : vector<6x16xf32>
    %584 = vector.broadcast %573 : vector<1x16xf32> to vector<6x16xf32>
    %585 = arith.mulf %583, %584 : vector<6x16xf32>
    %cst_388 = arith.constant dense<0.000000e+00> : vector<6xf32>
    %586 = vector.multi_reduction <add>, %585, %cst_388 [1] : vector<6x16xf32> to vector<6xf32>
    %587 = vector.shape_cast %586 : vector<6xf32> to vector<6x1xf32>
    %cst_389 = arith.constant dense<0xFF800000> : vector<1xf32>
    %588 = vector.multi_reduction <maximumf>, %587, %cst_389 [0] : vector<6x1xf32> to vector<1xf32>
    %589 = vector.shape_cast %588 : vector<1xf32> to vector<1x1xf32>
    %590 = vector.broadcast %589 : vector<1x1xf32> to vector<6x1xf32>
    %591 = arith.subf %587, %590 : vector<6x1xf32>
    %592 = math.exp %591 : vector<6x1xf32>
    %cst_390 = arith.constant dense<0.000000e+00> : vector<1xf32>
    %593 = vector.multi_reduction <add>, %592, %cst_390 [0] : vector<6x1xf32> to vector<1xf32>
    %594 = vector.shape_cast %593 : vector<1xf32> to vector<1x1xf32>
    %595 = vector.broadcast %594 : vector<1x1xf32> to vector<6x1xf32>
    %596 = arith.divf %592, %595 : vector<6x1xf32>
    %597 = vector.broadcast %596 : vector<6x1xf32> to vector<6x64xf32>
    %598 = arith.mulf %597, %578 : vector<6x64xf32>
    %c1_391 = arith.constant 1 : index
    %c0_392 = arith.constant 0 : index
    %c0_393 = arith.constant 0 : index
    %599 = vector.load %arg2[%c1_391, %c0_392, %c0_393] : memref<2x5x16xf32, #tpu.memory_space<vmem>>, vector<1x5x16xf32>
    %600 = vector.shape_cast %599 : vector<1x5x16xf32> to vector<5x16xf32>
    %c0_394 = arith.constant 0 : index
    %c0_395 = arith.constant 0 : index
    %601 = vector.load %arg8[%c0_394, %c0_395] : memref<16x64xbf16, #tpu.memory_space<vmem>>, vector<16x64xbf16>
    %602 = vector.extract_strided_slice %0 {offsets = [4, 0], sizes = [1, 64], strides = [1, 1]} : vector<14x128xf32> to vector<1x64xf32>
    %c0_396 = arith.constant 0 : index
    %c0_397 = arith.constant 0 : index
    %603 = vector.load %arg9[%c0_396, %c0_397] : memref<64x32xbf16, #tpu.memory_space<vmem>>, vector<64x32xbf16>
    %604 = vector.extract_strided_slice %0 {offsets = [5, 0], sizes = [1, 32], strides = [1, 1]} : vector<14x128xf32> to vector<1x32xf32>
    %605 = vector.extract_strided_slice %0 {offsets = [6, 0], sizes = [1, 32], strides = [1, 1]} : vector<14x128xf32> to vector<1x32xf32>
    %606 = arith.truncf %600 : vector<5x16xf32> to vector<5x16xbf16>
    %cst_398 = arith.constant dense<0.000000e+00> : vector<5x64xf32>
    %607 = tpu.matmul %606, %601, %cst_398 {dimension_numbers = #tpu.dot_dimension_numbers<[1], [0], [0], [1], [0, 0, 1, 1], [], []>} : vector<5x16xbf16>, vector<16x64xbf16>, vector<5x64xf32> -> vector<5x64xf32>
    %608 = vector.broadcast %602 : vector<1x64xf32> to vector<5x64xf32>
    %609 = arith.addf %607, %608 : vector<5x64xf32>
    %610 = math.tanh %609 : vector<5x64xf32>
    %611 = arith.truncf %610 : vector<5x64xf32> to vector<5x64xbf16>
    %cst_399 = arith.constant dense<0.000000e+00> : vector<5x32xf32>
    %612 = tpu.matmul %611, %603, %cst_399 {dimension_numbers = #tpu.dot_dimension_numbers<[1], [0], [0], [1], [0, 0, 1, 1], [], []>} : vector<5x64xbf16>, vector<64x32xbf16>, vector<5x32xf32> -> vector<5x32xf32>
    %613 = vector.broadcast %604 : vector<1x32xf32> to vector<5x32xf32>
    %614 = arith.addf %612, %613 : vector<5x32xf32>
    %615 = math.tanh %614 : vector<5x32xf32>
    %616 = vector.broadcast %605 : vector<1x32xf32> to vector<5x32xf32>
    %617 = arith.mulf %615, %616 : vector<5x32xf32>
    %cst_400 = arith.constant dense<0.000000e+00> : vector<5xf32>
    %618 = vector.multi_reduction <add>, %617, %cst_400 [1] : vector<5x32xf32> to vector<5xf32>
    %619 = vector.shape_cast %618 : vector<5xf32> to vector<5x1xf32>
    %cst_401 = arith.constant dense<0xFF800000> : vector<1xf32>
    %620 = vector.multi_reduction <maximumf>, %619, %cst_401 [0] : vector<5x1xf32> to vector<1xf32>
    %621 = vector.shape_cast %620 : vector<1xf32> to vector<1x1xf32>
    %622 = vector.broadcast %621 : vector<1x1xf32> to vector<5x1xf32>
    %623 = arith.subf %619, %622 : vector<5x1xf32>
    %624 = math.exp %623 : vector<5x1xf32>
    %cst_402 = arith.constant dense<0.000000e+00> : vector<1xf32>
    %625 = vector.multi_reduction <add>, %624, %cst_402 [0] : vector<5x1xf32> to vector<1xf32>
    %626 = vector.shape_cast %625 : vector<1xf32> to vector<1x1xf32>
    %627 = vector.broadcast %626 : vector<1x1xf32> to vector<5x1xf32>
    %628 = arith.divf %624, %627 : vector<5x1xf32>
    %629 = vector.broadcast %628 : vector<5x1xf32> to vector<5x64xf32>
    %630 = arith.mulf %629, %610 : vector<5x64xf32>
    %631 = vector.extract_strided_slice %23 {offsets = [1, 0], sizes = [1, 64], strides = [1, 1]} : vector<2x64xf32> to vector<1x64xf32>
    %632 = vector.broadcast %631 : vector<1x64xf32> to vector<6x64xf32>
    %633 = arith.addf %598, %632 : vector<6x64xf32>
    %c0_403 = arith.constant 0 : index
    %c0_404 = arith.constant 0 : index
    %c0_405 = arith.constant 0 : index
    %c0_406 = arith.constant 0 : index
    %634 = vector.load %arg12[%c0_403, %c0_404, %c0_405, %c0_406] : memref<3x4x64x16xbf16, #tpu.memory_space<vmem>>, vector<1x1x64x16xbf16>
    %635 = vector.shape_cast %634 : vector<1x1x64x16xbf16> to vector<64x16xbf16>
    %636 = arith.truncf %630 : vector<5x64xf32> to vector<5x64xbf16>
    %cst_407 = arith.constant dense<0.000000e+00> : vector<5x16xf32>
    %637 = tpu.matmul %636, %635, %cst_407 {dimension_numbers = #tpu.dot_dimension_numbers<[1], [0], [0], [1], [0, 0, 1, 1], [], []>} : vector<5x64xbf16>, vector<64x16xbf16>, vector<5x16xf32> -> vector<5x16xf32>
    %c0_408 = arith.constant 0 : index
    %c0_409 = arith.constant 0 : index
    %c0_410 = arith.constant 0 : index
    %c0_411 = arith.constant 0 : index
    %638 = vector.load %arg13[%c0_408, %c0_409, %c0_410, %c0_411] : memref<3x4x1x16xf32, #tpu.memory_space<vmem>>, vector<1x1x1x16xf32>
    %639 = vector.shape_cast %638 : vector<1x1x1x16xf32> to vector<1x16xf32>
    %640 = vector.broadcast %639 : vector<1x16xf32> to vector<5x16xf32>
    %641 = arith.addf %637, %640 : vector<5x16xf32>
    %c0_412 = arith.constant 0 : index
    %c1_413 = arith.constant 1 : index
    %c0_414 = arith.constant 0 : index
    %c0_415 = arith.constant 0 : index
    %642 = vector.load %arg12[%c0_412, %c1_413, %c0_414, %c0_415] : memref<3x4x64x16xbf16, #tpu.memory_space<vmem>>, vector<1x1x64x16xbf16>
    %643 = vector.shape_cast %642 : vector<1x1x64x16xbf16> to vector<64x16xbf16>
    %644 = arith.truncf %630 : vector<5x64xf32> to vector<5x64xbf16>
    %cst_416 = arith.constant dense<0.000000e+00> : vector<5x16xf32>
    %645 = tpu.matmul %644, %643, %cst_416 {dimension_numbers = #tpu.dot_dimension_numbers<[1], [0], [0], [1], [0, 0, 1, 1], [], []>} : vector<5x64xbf16>, vector<64x16xbf16>, vector<5x16xf32> -> vector<5x16xf32>
    %c0_417 = arith.constant 0 : index
    %c1_418 = arith.constant 1 : index
    %c0_419 = arith.constant 0 : index
    %c0_420 = arith.constant 0 : index
    %646 = vector.load %arg13[%c0_417, %c1_418, %c0_419, %c0_420] : memref<3x4x1x16xf32, #tpu.memory_space<vmem>>, vector<1x1x1x16xf32>
    %647 = vector.shape_cast %646 : vector<1x1x1x16xf32> to vector<1x16xf32>
    %648 = vector.broadcast %647 : vector<1x16xf32> to vector<5x16xf32>
    %649 = arith.addf %645, %648 : vector<5x16xf32>
    %c0_421 = arith.constant 0 : index
    %c2_422 = arith.constant 2 : index
    %c0_423 = arith.constant 0 : index
    %c0_424 = arith.constant 0 : index
    %650 = vector.load %arg12[%c0_421, %c2_422, %c0_423, %c0_424] : memref<3x4x64x16xbf16, #tpu.memory_space<vmem>>, vector<1x1x64x16xbf16>
    %651 = vector.shape_cast %650 : vector<1x1x64x16xbf16> to vector<64x16xbf16>
    %652 = arith.truncf %630 : vector<5x64xf32> to vector<5x64xbf16>
    %cst_425 = arith.constant dense<0.000000e+00> : vector<5x16xf32>
    %653 = tpu.matmul %652, %651, %cst_425 {dimension_numbers = #tpu.dot_dimension_numbers<[1], [0], [0], [1], [0, 0, 1, 1], [], []>} : vector<5x64xbf16>, vector<64x16xbf16>, vector<5x16xf32> -> vector<5x16xf32>
    %c0_426 = arith.constant 0 : index
    %c2_427 = arith.constant 2 : index
    %c0_428 = arith.constant 0 : index
    %c0_429 = arith.constant 0 : index
    %654 = vector.load %arg13[%c0_426, %c2_427, %c0_428, %c0_429] : memref<3x4x1x16xf32, #tpu.memory_space<vmem>>, vector<1x1x1x16xf32>
    %655 = vector.shape_cast %654 : vector<1x1x1x16xf32> to vector<1x16xf32>
    %656 = vector.broadcast %655 : vector<1x16xf32> to vector<5x16xf32>
    %657 = arith.addf %653, %656 : vector<5x16xf32>
    %c0_430 = arith.constant 0 : index
    %c3_431 = arith.constant 3 : index
    %c0_432 = arith.constant 0 : index
    %c0_433 = arith.constant 0 : index
    %658 = vector.load %arg12[%c0_430, %c3_431, %c0_432, %c0_433] : memref<3x4x64x16xbf16, #tpu.memory_space<vmem>>, vector<1x1x64x16xbf16>
    %659 = vector.shape_cast %658 : vector<1x1x64x16xbf16> to vector<64x16xbf16>
    %660 = arith.truncf %630 : vector<5x64xf32> to vector<5x64xbf16>
    %cst_434 = arith.constant dense<0.000000e+00> : vector<5x16xf32>
    %661 = tpu.matmul %660, %659, %cst_434 {dimension_numbers = #tpu.dot_dimension_numbers<[1], [0], [0], [1], [0, 0, 1, 1], [], []>} : vector<5x64xbf16>, vector<64x16xbf16>, vector<5x16xf32> -> vector<5x16xf32>
    %c0_435 = arith.constant 0 : index
    %c3_436 = arith.constant 3 : index
    %c0_437 = arith.constant 0 : index
    %c0_438 = arith.constant 0 : index
    %662 = vector.load %arg13[%c0_435, %c3_436, %c0_437, %c0_438] : memref<3x4x1x16xf32, #tpu.memory_space<vmem>>, vector<1x1x1x16xf32>
    %663 = vector.shape_cast %662 : vector<1x1x1x16xf32> to vector<1x16xf32>
    %664 = vector.broadcast %663 : vector<1x16xf32> to vector<5x16xf32>
    %665 = arith.addf %661, %664 : vector<5x16xf32>
    %666 = vector.extract_strided_slice %0 {offsets = [10, 0], sizes = [1, 64], strides = [1, 1]} : vector<14x128xf32> to vector<1x64xf32>
    %c1_439 = arith.constant 1 : index
    %c0_440 = arith.constant 0 : index
    %c0_441 = arith.constant 0 : index
    %c0_442 = arith.constant 0 : index
    %667 = vector.load %arg12[%c1_439, %c0_440, %c0_441, %c0_442] : memref<3x4x64x16xbf16, #tpu.memory_space<vmem>>, vector<1x1x64x16xbf16>
    %668 = vector.shape_cast %667 : vector<1x1x64x16xbf16> to vector<64x16xbf16>
    %669 = arith.truncf %633 : vector<6x64xf32> to vector<6x64xbf16>
    %cst_443 = arith.constant dense<0.000000e+00> : vector<6x16xf32>
    %670 = tpu.matmul %669, %668, %cst_443 {dimension_numbers = #tpu.dot_dimension_numbers<[1], [0], [0], [1], [0, 0, 1, 1], [], []>} : vector<6x64xbf16>, vector<64x16xbf16>, vector<6x16xf32> -> vector<6x16xf32>
    %c1_444 = arith.constant 1 : index
    %c0_445 = arith.constant 0 : index
    %c0_446 = arith.constant 0 : index
    %c0_447 = arith.constant 0 : index
    %671 = vector.load %arg13[%c1_444, %c0_445, %c0_446, %c0_447] : memref<3x4x1x16xf32, #tpu.memory_space<vmem>>, vector<1x1x1x16xf32>
    %672 = vector.shape_cast %671 : vector<1x1x1x16xf32> to vector<1x16xf32>
    %673 = vector.broadcast %672 : vector<1x16xf32> to vector<6x16xf32>
    %674 = arith.addf %670, %673 : vector<6x16xf32>
    %c1_448 = arith.constant 1 : index
    %c1_449 = arith.constant 1 : index
    %c0_450 = arith.constant 0 : index
    %c0_451 = arith.constant 0 : index
    %675 = vector.load %arg12[%c1_448, %c1_449, %c0_450, %c0_451] : memref<3x4x64x16xbf16, #tpu.memory_space<vmem>>, vector<1x1x64x16xbf16>
    %676 = vector.shape_cast %675 : vector<1x1x64x16xbf16> to vector<64x16xbf16>
    %677 = arith.truncf %633 : vector<6x64xf32> to vector<6x64xbf16>
    %cst_452 = arith.constant dense<0.000000e+00> : vector<6x16xf32>
    %678 = tpu.matmul %677, %676, %cst_452 {dimension_numbers = #tpu.dot_dimension_numbers<[1], [0], [0], [1], [0, 0, 1, 1], [], []>} : vector<6x64xbf16>, vector<64x16xbf16>, vector<6x16xf32> -> vector<6x16xf32>
    %c1_453 = arith.constant 1 : index
    %c1_454 = arith.constant 1 : index
    %c0_455 = arith.constant 0 : index
    %c0_456 = arith.constant 0 : index
    %679 = vector.load %arg13[%c1_453, %c1_454, %c0_455, %c0_456] : memref<3x4x1x16xf32, #tpu.memory_space<vmem>>, vector<1x1x1x16xf32>
    %680 = vector.shape_cast %679 : vector<1x1x1x16xf32> to vector<1x16xf32>
    %681 = vector.broadcast %680 : vector<1x16xf32> to vector<6x16xf32>
    %682 = arith.addf %678, %681 : vector<6x16xf32>
    %c1_457 = arith.constant 1 : index
    %c2_458 = arith.constant 2 : index
    %c0_459 = arith.constant 0 : index
    %c0_460 = arith.constant 0 : index
    %683 = vector.load %arg12[%c1_457, %c2_458, %c0_459, %c0_460] : memref<3x4x64x16xbf16, #tpu.memory_space<vmem>>, vector<1x1x64x16xbf16>
    %684 = vector.shape_cast %683 : vector<1x1x64x16xbf16> to vector<64x16xbf16>
    %685 = arith.truncf %633 : vector<6x64xf32> to vector<6x64xbf16>
    %cst_461 = arith.constant dense<0.000000e+00> : vector<6x16xf32>
    %686 = tpu.matmul %685, %684, %cst_461 {dimension_numbers = #tpu.dot_dimension_numbers<[1], [0], [0], [1], [0, 0, 1, 1], [], []>} : vector<6x64xbf16>, vector<64x16xbf16>, vector<6x16xf32> -> vector<6x16xf32>
    %c1_462 = arith.constant 1 : index
    %c2_463 = arith.constant 2 : index
    %c0_464 = arith.constant 0 : index
    %c0_465 = arith.constant 0 : index
    %687 = vector.load %arg13[%c1_462, %c2_463, %c0_464, %c0_465] : memref<3x4x1x16xf32, #tpu.memory_space<vmem>>, vector<1x1x1x16xf32>
    %688 = vector.shape_cast %687 : vector<1x1x1x16xf32> to vector<1x16xf32>
    %689 = vector.broadcast %688 : vector<1x16xf32> to vector<6x16xf32>
    %690 = arith.addf %686, %689 : vector<6x16xf32>
    %c1_466 = arith.constant 1 : index
    %c3_467 = arith.constant 3 : index
    %c0_468 = arith.constant 0 : index
    %c0_469 = arith.constant 0 : index
    %691 = vector.load %arg12[%c1_466, %c3_467, %c0_468, %c0_469] : memref<3x4x64x16xbf16, #tpu.memory_space<vmem>>, vector<1x1x64x16xbf16>
    %692 = vector.shape_cast %691 : vector<1x1x64x16xbf16> to vector<64x16xbf16>
    %693 = arith.truncf %633 : vector<6x64xf32> to vector<6x64xbf16>
    %cst_470 = arith.constant dense<0.000000e+00> : vector<6x16xf32>
    %694 = tpu.matmul %693, %692, %cst_470 {dimension_numbers = #tpu.dot_dimension_numbers<[1], [0], [0], [1], [0, 0, 1, 1], [], []>} : vector<6x64xbf16>, vector<64x16xbf16>, vector<6x16xf32> -> vector<6x16xf32>
    %c1_471 = arith.constant 1 : index
    %c3_472 = arith.constant 3 : index
    %c0_473 = arith.constant 0 : index
    %c0_474 = arith.constant 0 : index
    %695 = vector.load %arg13[%c1_471, %c3_472, %c0_473, %c0_474] : memref<3x4x1x16xf32, #tpu.memory_space<vmem>>, vector<1x1x1x16xf32>
    %696 = vector.shape_cast %695 : vector<1x1x1x16xf32> to vector<1x16xf32>
    %697 = vector.broadcast %696 : vector<1x16xf32> to vector<6x16xf32>
    %698 = arith.addf %694, %697 : vector<6x16xf32>
    %c2_475 = arith.constant 2 : index
    %c0_476 = arith.constant 0 : index
    %c0_477 = arith.constant 0 : index
    %c0_478 = arith.constant 0 : index
    %699 = vector.load %arg12[%c2_475, %c0_476, %c0_477, %c0_478] : memref<3x4x64x16xbf16, #tpu.memory_space<vmem>>, vector<1x1x64x16xbf16>
    %700 = vector.shape_cast %699 : vector<1x1x64x16xbf16> to vector<64x16xbf16>
    %701 = arith.truncf %633 : vector<6x64xf32> to vector<6x64xbf16>
    %cst_479 = arith.constant dense<0.000000e+00> : vector<6x16xf32>
    %702 = tpu.matmul %701, %700, %cst_479 {dimension_numbers = #tpu.dot_dimension_numbers<[1], [0], [0], [1], [0, 0, 1, 1], [], []>} : vector<6x64xbf16>, vector<64x16xbf16>, vector<6x16xf32> -> vector<6x16xf32>
    %c2_480 = arith.constant 2 : index
    %c0_481 = arith.constant 0 : index
    %c0_482 = arith.constant 0 : index
    %c0_483 = arith.constant 0 : index
    %703 = vector.load %arg13[%c2_480, %c0_481, %c0_482, %c0_483] : memref<3x4x1x16xf32, #tpu.memory_space<vmem>>, vector<1x1x1x16xf32>
    %704 = vector.shape_cast %703 : vector<1x1x1x16xf32> to vector<1x16xf32>
    %705 = vector.broadcast %704 : vector<1x16xf32> to vector<6x16xf32>
    %706 = arith.addf %702, %705 : vector<6x16xf32>
    %c2_484 = arith.constant 2 : index
    %c1_485 = arith.constant 1 : index
    %c0_486 = arith.constant 0 : index
    %c0_487 = arith.constant 0 : index
    %707 = vector.load %arg12[%c2_484, %c1_485, %c0_486, %c0_487] : memref<3x4x64x16xbf16, #tpu.memory_space<vmem>>, vector<1x1x64x16xbf16>
    %708 = vector.shape_cast %707 : vector<1x1x64x16xbf16> to vector<64x16xbf16>
    %709 = arith.truncf %633 : vector<6x64xf32> to vector<6x64xbf16>
    %cst_488 = arith.constant dense<0.000000e+00> : vector<6x16xf32>
    %710 = tpu.matmul %709, %708, %cst_488 {dimension_numbers = #tpu.dot_dimension_numbers<[1], [0], [0], [1], [0, 0, 1, 1], [], []>} : vector<6x64xbf16>, vector<64x16xbf16>, vector<6x16xf32> -> vector<6x16xf32>
    %c2_489 = arith.constant 2 : index
    %c1_490 = arith.constant 1 : index
    %c0_491 = arith.constant 0 : index
    %c0_492 = arith.constant 0 : index
    %711 = vector.load %arg13[%c2_489, %c1_490, %c0_491, %c0_492] : memref<3x4x1x16xf32, #tpu.memory_space<vmem>>, vector<1x1x1x16xf32>
    %712 = vector.shape_cast %711 : vector<1x1x1x16xf32> to vector<1x16xf32>
    %713 = vector.broadcast %712 : vector<1x16xf32> to vector<6x16xf32>
    %714 = arith.addf %710, %713 : vector<6x16xf32>
    %c2_493 = arith.constant 2 : index
    %c2_494 = arith.constant 2 : index
    %c0_495 = arith.constant 0 : index
    %c0_496 = arith.constant 0 : index
    %715 = vector.load %arg12[%c2_493, %c2_494, %c0_495, %c0_496] : memref<3x4x64x16xbf16, #tpu.memory_space<vmem>>, vector<1x1x64x16xbf16>
    %716 = vector.shape_cast %715 : vector<1x1x64x16xbf16> to vector<64x16xbf16>
    %717 = arith.truncf %633 : vector<6x64xf32> to vector<6x64xbf16>
    %cst_497 = arith.constant dense<0.000000e+00> : vector<6x16xf32>
    %718 = tpu.matmul %717, %716, %cst_497 {dimension_numbers = #tpu.dot_dimension_numbers<[1], [0], [0], [1], [0, 0, 1, 1], [], []>} : vector<6x64xbf16>, vector<64x16xbf16>, vector<6x16xf32> -> vector<6x16xf32>
    %c2_498 = arith.constant 2 : index
    %c2_499 = arith.constant 2 : index
    %c0_500 = arith.constant 0 : index
    %c0_501 = arith.constant 0 : index
    %719 = vector.load %arg13[%c2_498, %c2_499, %c0_500, %c0_501] : memref<3x4x1x16xf32, #tpu.memory_space<vmem>>, vector<1x1x1x16xf32>
    %720 = vector.shape_cast %719 : vector<1x1x1x16xf32> to vector<1x16xf32>
    %721 = vector.broadcast %720 : vector<1x16xf32> to vector<6x16xf32>
    %722 = arith.addf %718, %721 : vector<6x16xf32>
    %c2_502 = arith.constant 2 : index
    %c3_503 = arith.constant 3 : index
    %c0_504 = arith.constant 0 : index
    %c0_505 = arith.constant 0 : index
    %723 = vector.load %arg12[%c2_502, %c3_503, %c0_504, %c0_505] : memref<3x4x64x16xbf16, #tpu.memory_space<vmem>>, vector<1x1x64x16xbf16>
    %724 = vector.shape_cast %723 : vector<1x1x64x16xbf16> to vector<64x16xbf16>
    %725 = arith.truncf %633 : vector<6x64xf32> to vector<6x64xbf16>
    %cst_506 = arith.constant dense<0.000000e+00> : vector<6x16xf32>
    %726 = tpu.matmul %725, %724, %cst_506 {dimension_numbers = #tpu.dot_dimension_numbers<[1], [0], [0], [1], [0, 0, 1, 1], [], []>} : vector<6x64xbf16>, vector<64x16xbf16>, vector<6x16xf32> -> vector<6x16xf32>
    %c2_507 = arith.constant 2 : index
    %c3_508 = arith.constant 3 : index
    %c0_509 = arith.constant 0 : index
    %c0_510 = arith.constant 0 : index
    %727 = vector.load %arg13[%c2_507, %c3_508, %c0_509, %c0_510] : memref<3x4x1x16xf32, #tpu.memory_space<vmem>>, vector<1x1x1x16xf32>
    %728 = vector.shape_cast %727 : vector<1x1x1x16xf32> to vector<1x16xf32>
    %729 = vector.broadcast %728 : vector<1x16xf32> to vector<6x16xf32>
    %730 = arith.addf %726, %729 : vector<6x16xf32>
    %731 = arith.truncf %641 : vector<5x16xf32> to vector<5x16xbf16>
    %732 = arith.truncf %674 : vector<6x16xf32> to vector<6x16xbf16>
    %cst_511 = arith.constant dense<0.000000e+00> : vector<5x6xf32>
    %733 = tpu.matmul %731, %732, %cst_511 {dimension_numbers = #tpu.dot_dimension_numbers<[1], [1], [0], [0], [0, 0, 1, 0], [], []>} : vector<5x16xbf16>, vector<6x16xbf16>, vector<5x6xf32> -> vector<5x6xf32>
    %cst_512 = arith.constant dense<0xFF800000> : vector<5xf32>
    %734 = vector.multi_reduction <maximumf>, %733, %cst_512 [1] : vector<5x6xf32> to vector<5xf32>
    %735 = vector.shape_cast %734 : vector<5xf32> to vector<5x1xf32>
    %736 = vector.broadcast %735 : vector<5x1xf32> to vector<5x6xf32>
    %737 = arith.subf %733, %736 : vector<5x6xf32>
    %738 = math.exp %737 : vector<5x6xf32>
    %cst_513 = arith.constant dense<0.000000e+00> : vector<5xf32>
    %739 = vector.multi_reduction <add>, %738, %cst_513 [1] : vector<5x6xf32> to vector<5xf32>
    %740 = vector.shape_cast %739 : vector<5xf32> to vector<5x1xf32>
    %741 = vector.broadcast %740 : vector<5x1xf32> to vector<5x6xf32>
    %742 = arith.divf %738, %741 : vector<5x6xf32>
    %743 = arith.truncf %742 : vector<5x6xf32> to vector<5x6xbf16>
    %744 = arith.truncf %706 : vector<6x16xf32> to vector<6x16xbf16>
    %cst_514 = arith.constant dense<0.000000e+00> : vector<5x16xf32>
    %745 = tpu.matmul %743, %744, %cst_514 {dimension_numbers = #tpu.dot_dimension_numbers<[1], [0], [0], [1], [0, 0, 1, 1], [], []>} : vector<5x6xbf16>, vector<6x16xbf16>, vector<5x16xf32> -> vector<5x16xf32>
    %c0_515 = arith.constant 0 : index
    %c0_516 = arith.constant 0 : index
    %c0_517 = arith.constant 0 : index
    %746 = vector.load %arg14[%c0_515, %c0_516, %c0_517] : memref<4x16x64xbf16, #tpu.memory_space<vmem>>, vector<1x16x64xbf16>
    %747 = vector.shape_cast %746 : vector<1x16x64xbf16> to vector<16x64xbf16>
    %748 = arith.truncf %745 : vector<5x16xf32> to vector<5x16xbf16>
    %cst_518 = arith.constant dense<0.000000e+00> : vector<5x64xf32>
    %749 = tpu.matmul %748, %747, %cst_518 {dimension_numbers = #tpu.dot_dimension_numbers<[1], [0], [0], [1], [0, 0, 1, 1], [], []>} : vector<5x16xbf16>, vector<16x64xbf16>, vector<5x64xf32> -> vector<5x64xf32>
    %750 = arith.truncf %649 : vector<5x16xf32> to vector<5x16xbf16>
    %751 = arith.truncf %682 : vector<6x16xf32> to vector<6x16xbf16>
    %cst_519 = arith.constant dense<0.000000e+00> : vector<5x6xf32>
    %752 = tpu.matmul %750, %751, %cst_519 {dimension_numbers = #tpu.dot_dimension_numbers<[1], [1], [0], [0], [0, 0, 1, 0], [], []>} : vector<5x16xbf16>, vector<6x16xbf16>, vector<5x6xf32> -> vector<5x6xf32>
    %cst_520 = arith.constant dense<0xFF800000> : vector<5xf32>
    %753 = vector.multi_reduction <maximumf>, %752, %cst_520 [1] : vector<5x6xf32> to vector<5xf32>
    %754 = vector.shape_cast %753 : vector<5xf32> to vector<5x1xf32>
    %755 = vector.broadcast %754 : vector<5x1xf32> to vector<5x6xf32>
    %756 = arith.subf %752, %755 : vector<5x6xf32>
    %757 = math.exp %756 : vector<5x6xf32>
    %cst_521 = arith.constant dense<0.000000e+00> : vector<5xf32>
    %758 = vector.multi_reduction <add>, %757, %cst_521 [1] : vector<5x6xf32> to vector<5xf32>
    %759 = vector.shape_cast %758 : vector<5xf32> to vector<5x1xf32>
    %760 = vector.broadcast %759 : vector<5x1xf32> to vector<5x6xf32>
    %761 = arith.divf %757, %760 : vector<5x6xf32>
    %762 = arith.truncf %761 : vector<5x6xf32> to vector<5x6xbf16>
    %763 = arith.truncf %714 : vector<6x16xf32> to vector<6x16xbf16>
    %cst_522 = arith.constant dense<0.000000e+00> : vector<5x16xf32>
    %764 = tpu.matmul %762, %763, %cst_522 {dimension_numbers = #tpu.dot_dimension_numbers<[1], [0], [0], [1], [0, 0, 1, 1], [], []>} : vector<5x6xbf16>, vector<6x16xbf16>, vector<5x16xf32> -> vector<5x16xf32>
    %c1_523 = arith.constant 1 : index
    %c0_524 = arith.constant 0 : index
    %c0_525 = arith.constant 0 : index
    %765 = vector.load %arg14[%c1_523, %c0_524, %c0_525] : memref<4x16x64xbf16, #tpu.memory_space<vmem>>, vector<1x16x64xbf16>
    %766 = vector.shape_cast %765 : vector<1x16x64xbf16> to vector<16x64xbf16>
    %767 = arith.truncf %764 : vector<5x16xf32> to vector<5x16xbf16>
    %cst_526 = arith.constant dense<0.000000e+00> : vector<5x64xf32>
    %768 = tpu.matmul %767, %766, %cst_526 {dimension_numbers = #tpu.dot_dimension_numbers<[1], [0], [0], [1], [0, 0, 1, 1], [], []>} : vector<5x16xbf16>, vector<16x64xbf16>, vector<5x64xf32> -> vector<5x64xf32>
    %769 = arith.addf %749, %768 : vector<5x64xf32>
    %770 = arith.truncf %657 : vector<5x16xf32> to vector<5x16xbf16>
    %771 = arith.truncf %690 : vector<6x16xf32> to vector<6x16xbf16>
    %cst_527 = arith.constant dense<0.000000e+00> : vector<5x6xf32>
    %772 = tpu.matmul %770, %771, %cst_527 {dimension_numbers = #tpu.dot_dimension_numbers<[1], [1], [0], [0], [0, 0, 1, 0], [], []>} : vector<5x16xbf16>, vector<6x16xbf16>, vector<5x6xf32> -> vector<5x6xf32>
    %cst_528 = arith.constant dense<0xFF800000> : vector<5xf32>
    %773 = vector.multi_reduction <maximumf>, %772, %cst_528 [1] : vector<5x6xf32> to vector<5xf32>
    %774 = vector.shape_cast %773 : vector<5xf32> to vector<5x1xf32>
    %775 = vector.broadcast %774 : vector<5x1xf32> to vector<5x6xf32>
    %776 = arith.subf %772, %775 : vector<5x6xf32>
    %777 = math.exp %776 : vector<5x6xf32>
    %cst_529 = arith.constant dense<0.000000e+00> : vector<5xf32>
    %778 = vector.multi_reduction <add>, %777, %cst_529 [1] : vector<5x6xf32> to vector<5xf32>
    %779 = vector.shape_cast %778 : vector<5xf32> to vector<5x1xf32>
    %780 = vector.broadcast %779 : vector<5x1xf32> to vector<5x6xf32>
    %781 = arith.divf %777, %780 : vector<5x6xf32>
    %782 = arith.truncf %781 : vector<5x6xf32> to vector<5x6xbf16>
    %783 = arith.truncf %722 : vector<6x16xf32> to vector<6x16xbf16>
    %cst_530 = arith.constant dense<0.000000e+00> : vector<5x16xf32>
    %784 = tpu.matmul %782, %783, %cst_530 {dimension_numbers = #tpu.dot_dimension_numbers<[1], [0], [0], [1], [0, 0, 1, 1], [], []>} : vector<5x6xbf16>, vector<6x16xbf16>, vector<5x16xf32> -> vector<5x16xf32>
    %c2_531 = arith.constant 2 : index
    %c0_532 = arith.constant 0 : index
    %c0_533 = arith.constant 0 : index
    %785 = vector.load %arg14[%c2_531, %c0_532, %c0_533] : memref<4x16x64xbf16, #tpu.memory_space<vmem>>, vector<1x16x64xbf16>
    %786 = vector.shape_cast %785 : vector<1x16x64xbf16> to vector<16x64xbf16>
    %787 = arith.truncf %784 : vector<5x16xf32> to vector<5x16xbf16>
    %cst_534 = arith.constant dense<0.000000e+00> : vector<5x64xf32>
    %788 = tpu.matmul %787, %786, %cst_534 {dimension_numbers = #tpu.dot_dimension_numbers<[1], [0], [0], [1], [0, 0, 1, 1], [], []>} : vector<5x16xbf16>, vector<16x64xbf16>, vector<5x64xf32> -> vector<5x64xf32>
    %789 = arith.addf %769, %788 : vector<5x64xf32>
    %790 = arith.truncf %665 : vector<5x16xf32> to vector<5x16xbf16>
    %791 = arith.truncf %698 : vector<6x16xf32> to vector<6x16xbf16>
    %cst_535 = arith.constant dense<0.000000e+00> : vector<5x6xf32>
    %792 = tpu.matmul %790, %791, %cst_535 {dimension_numbers = #tpu.dot_dimension_numbers<[1], [1], [0], [0], [0, 0, 1, 0], [], []>} : vector<5x16xbf16>, vector<6x16xbf16>, vector<5x6xf32> -> vector<5x6xf32>
    %cst_536 = arith.constant dense<0xFF800000> : vector<5xf32>
    %793 = vector.multi_reduction <maximumf>, %792, %cst_536 [1] : vector<5x6xf32> to vector<5xf32>
    %794 = vector.shape_cast %793 : vector<5xf32> to vector<5x1xf32>
    %795 = vector.broadcast %794 : vector<5x1xf32> to vector<5x6xf32>
    %796 = arith.subf %792, %795 : vector<5x6xf32>
    %797 = math.exp %796 : vector<5x6xf32>
    %cst_537 = arith.constant dense<0.000000e+00> : vector<5xf32>
    %798 = vector.multi_reduction <add>, %797, %cst_537 [1] : vector<5x6xf32> to vector<5xf32>
    %799 = vector.shape_cast %798 : vector<5xf32> to vector<5x1xf32>
    %800 = vector.broadcast %799 : vector<5x1xf32> to vector<5x6xf32>
    %801 = arith.divf %797, %800 : vector<5x6xf32>
    %802 = arith.truncf %801 : vector<5x6xf32> to vector<5x6xbf16>
    %803 = arith.truncf %730 : vector<6x16xf32> to vector<6x16xbf16>
    %cst_538 = arith.constant dense<0.000000e+00> : vector<5x16xf32>
    %804 = tpu.matmul %802, %803, %cst_538 {dimension_numbers = #tpu.dot_dimension_numbers<[1], [0], [0], [1], [0, 0, 1, 1], [], []>} : vector<5x6xbf16>, vector<6x16xbf16>, vector<5x16xf32> -> vector<5x16xf32>
    %c3_539 = arith.constant 3 : index
    %c0_540 = arith.constant 0 : index
    %c0_541 = arith.constant 0 : index
    %805 = vector.load %arg14[%c3_539, %c0_540, %c0_541] : memref<4x16x64xbf16, #tpu.memory_space<vmem>>, vector<1x16x64xbf16>
    %806 = vector.shape_cast %805 : vector<1x16x64xbf16> to vector<16x64xbf16>
    %807 = arith.truncf %804 : vector<5x16xf32> to vector<5x16xbf16>
    %cst_542 = arith.constant dense<0.000000e+00> : vector<5x64xf32>
    %808 = tpu.matmul %807, %806, %cst_542 {dimension_numbers = #tpu.dot_dimension_numbers<[1], [0], [0], [1], [0, 0, 1, 1], [], []>} : vector<5x16xbf16>, vector<16x64xbf16>, vector<5x64xf32> -> vector<5x64xf32>
    %809 = arith.addf %789, %808 : vector<5x64xf32>
    %810 = vector.broadcast %666 : vector<1x64xf32> to vector<5x64xf32>
    %811 = arith.addf %809, %810 : vector<5x64xf32>
    %812 = vector.extract_strided_slice %0 {offsets = [11, 0], sizes = [1, 64], strides = [1, 1]} : vector<14x128xf32> to vector<1x64xf32>
    %c1_543 = arith.constant 1 : index
    %c0_544 = arith.constant 0 : index
    %c0_545 = arith.constant 0 : index
    %c0_546 = arith.constant 0 : index
    %813 = vector.load %arg15[%c1_543, %c0_544, %c0_545, %c0_546] : memref<3x4x64x16xbf16, #tpu.memory_space<vmem>>, vector<1x1x64x16xbf16>
    %814 = vector.shape_cast %813 : vector<1x1x64x16xbf16> to vector<64x16xbf16>
    %815 = arith.truncf %811 : vector<5x64xf32> to vector<5x64xbf16>
    %cst_547 = arith.constant dense<0.000000e+00> : vector<5x16xf32>
    %816 = tpu.matmul %815, %814, %cst_547 {dimension_numbers = #tpu.dot_dimension_numbers<[1], [0], [0], [1], [0, 0, 1, 1], [], []>} : vector<5x64xbf16>, vector<64x16xbf16>, vector<5x16xf32> -> vector<5x16xf32>
    %c1_548 = arith.constant 1 : index
    %c0_549 = arith.constant 0 : index
    %c0_550 = arith.constant 0 : index
    %c0_551 = arith.constant 0 : index
    %817 = vector.load %arg16[%c1_548, %c0_549, %c0_550, %c0_551] : memref<3x4x1x16xf32, #tpu.memory_space<vmem>>, vector<1x1x1x16xf32>
    %818 = vector.shape_cast %817 : vector<1x1x1x16xf32> to vector<1x16xf32>
    %819 = vector.broadcast %818 : vector<1x16xf32> to vector<5x16xf32>
    %820 = arith.addf %816, %819 : vector<5x16xf32>
    %c1_552 = arith.constant 1 : index
    %c1_553 = arith.constant 1 : index
    %c0_554 = arith.constant 0 : index
    %c0_555 = arith.constant 0 : index
    %821 = vector.load %arg15[%c1_552, %c1_553, %c0_554, %c0_555] : memref<3x4x64x16xbf16, #tpu.memory_space<vmem>>, vector<1x1x64x16xbf16>
    %822 = vector.shape_cast %821 : vector<1x1x64x16xbf16> to vector<64x16xbf16>
    %823 = arith.truncf %811 : vector<5x64xf32> to vector<5x64xbf16>
    %cst_556 = arith.constant dense<0.000000e+00> : vector<5x16xf32>
    %824 = tpu.matmul %823, %822, %cst_556 {dimension_numbers = #tpu.dot_dimension_numbers<[1], [0], [0], [1], [0, 0, 1, 1], [], []>} : vector<5x64xbf16>, vector<64x16xbf16>, vector<5x16xf32> -> vector<5x16xf32>
    %c1_557 = arith.constant 1 : index
    %c1_558 = arith.constant 1 : index
    %c0_559 = arith.constant 0 : index
    %c0_560 = arith.constant 0 : index
    %825 = vector.load %arg16[%c1_557, %c1_558, %c0_559, %c0_560] : memref<3x4x1x16xf32, #tpu.memory_space<vmem>>, vector<1x1x1x16xf32>
    %826 = vector.shape_cast %825 : vector<1x1x1x16xf32> to vector<1x16xf32>
    %827 = vector.broadcast %826 : vector<1x16xf32> to vector<5x16xf32>
    %828 = arith.addf %824, %827 : vector<5x16xf32>
    %c1_561 = arith.constant 1 : index
    %c2_562 = arith.constant 2 : index
    %c0_563 = arith.constant 0 : index
    %c0_564 = arith.constant 0 : index
    %829 = vector.load %arg15[%c1_561, %c2_562, %c0_563, %c0_564] : memref<3x4x64x16xbf16, #tpu.memory_space<vmem>>, vector<1x1x64x16xbf16>
    %830 = vector.shape_cast %829 : vector<1x1x64x16xbf16> to vector<64x16xbf16>
    %831 = arith.truncf %811 : vector<5x64xf32> to vector<5x64xbf16>
    %cst_565 = arith.constant dense<0.000000e+00> : vector<5x16xf32>
    %832 = tpu.matmul %831, %830, %cst_565 {dimension_numbers = #tpu.dot_dimension_numbers<[1], [0], [0], [1], [0, 0, 1, 1], [], []>} : vector<5x64xbf16>, vector<64x16xbf16>, vector<5x16xf32> -> vector<5x16xf32>
    %c1_566 = arith.constant 1 : index
    %c2_567 = arith.constant 2 : index
    %c0_568 = arith.constant 0 : index
    %c0_569 = arith.constant 0 : index
    %833 = vector.load %arg16[%c1_566, %c2_567, %c0_568, %c0_569] : memref<3x4x1x16xf32, #tpu.memory_space<vmem>>, vector<1x1x1x16xf32>
    %834 = vector.shape_cast %833 : vector<1x1x1x16xf32> to vector<1x16xf32>
    %835 = vector.broadcast %834 : vector<1x16xf32> to vector<5x16xf32>
    %836 = arith.addf %832, %835 : vector<5x16xf32>
    %c1_570 = arith.constant 1 : index
    %c3_571 = arith.constant 3 : index
    %c0_572 = arith.constant 0 : index
    %c0_573 = arith.constant 0 : index
    %837 = vector.load %arg15[%c1_570, %c3_571, %c0_572, %c0_573] : memref<3x4x64x16xbf16, #tpu.memory_space<vmem>>, vector<1x1x64x16xbf16>
    %838 = vector.shape_cast %837 : vector<1x1x64x16xbf16> to vector<64x16xbf16>
    %839 = arith.truncf %811 : vector<5x64xf32> to vector<5x64xbf16>
    %cst_574 = arith.constant dense<0.000000e+00> : vector<5x16xf32>
    %840 = tpu.matmul %839, %838, %cst_574 {dimension_numbers = #tpu.dot_dimension_numbers<[1], [0], [0], [1], [0, 0, 1, 1], [], []>} : vector<5x64xbf16>, vector<64x16xbf16>, vector<5x16xf32> -> vector<5x16xf32>
    %c1_575 = arith.constant 1 : index
    %c3_576 = arith.constant 3 : index
    %c0_577 = arith.constant 0 : index
    %c0_578 = arith.constant 0 : index
    %841 = vector.load %arg16[%c1_575, %c3_576, %c0_577, %c0_578] : memref<3x4x1x16xf32, #tpu.memory_space<vmem>>, vector<1x1x1x16xf32>
    %842 = vector.shape_cast %841 : vector<1x1x1x16xf32> to vector<1x16xf32>
    %843 = vector.broadcast %842 : vector<1x16xf32> to vector<5x16xf32>
    %844 = arith.addf %840, %843 : vector<5x16xf32>
    %c2_579 = arith.constant 2 : index
    %c0_580 = arith.constant 0 : index
    %c0_581 = arith.constant 0 : index
    %c0_582 = arith.constant 0 : index
    %845 = vector.load %arg15[%c2_579, %c0_580, %c0_581, %c0_582] : memref<3x4x64x16xbf16, #tpu.memory_space<vmem>>, vector<1x1x64x16xbf16>
    %846 = vector.shape_cast %845 : vector<1x1x64x16xbf16> to vector<64x16xbf16>
    %847 = arith.truncf %811 : vector<5x64xf32> to vector<5x64xbf16>
    %cst_583 = arith.constant dense<0.000000e+00> : vector<5x16xf32>
    %848 = tpu.matmul %847, %846, %cst_583 {dimension_numbers = #tpu.dot_dimension_numbers<[1], [0], [0], [1], [0, 0, 1, 1], [], []>} : vector<5x64xbf16>, vector<64x16xbf16>, vector<5x16xf32> -> vector<5x16xf32>
    %c2_584 = arith.constant 2 : index
    %c0_585 = arith.constant 0 : index
    %c0_586 = arith.constant 0 : index
    %c0_587 = arith.constant 0 : index
    %849 = vector.load %arg16[%c2_584, %c0_585, %c0_586, %c0_587] : memref<3x4x1x16xf32, #tpu.memory_space<vmem>>, vector<1x1x1x16xf32>
    %850 = vector.shape_cast %849 : vector<1x1x1x16xf32> to vector<1x16xf32>
    %851 = vector.broadcast %850 : vector<1x16xf32> to vector<5x16xf32>
    %852 = arith.addf %848, %851 : vector<5x16xf32>
    %c2_588 = arith.constant 2 : index
    %c1_589 = arith.constant 1 : index
    %c0_590 = arith.constant 0 : index
    %c0_591 = arith.constant 0 : index
    %853 = vector.load %arg15[%c2_588, %c1_589, %c0_590, %c0_591] : memref<3x4x64x16xbf16, #tpu.memory_space<vmem>>, vector<1x1x64x16xbf16>
    %854 = vector.shape_cast %853 : vector<1x1x64x16xbf16> to vector<64x16xbf16>
    %855 = arith.truncf %811 : vector<5x64xf32> to vector<5x64xbf16>
    %cst_592 = arith.constant dense<0.000000e+00> : vector<5x16xf32>
    %856 = tpu.matmul %855, %854, %cst_592 {dimension_numbers = #tpu.dot_dimension_numbers<[1], [0], [0], [1], [0, 0, 1, 1], [], []>} : vector<5x64xbf16>, vector<64x16xbf16>, vector<5x16xf32> -> vector<5x16xf32>
    %c2_593 = arith.constant 2 : index
    %c1_594 = arith.constant 1 : index
    %c0_595 = arith.constant 0 : index
    %c0_596 = arith.constant 0 : index
    %857 = vector.load %arg16[%c2_593, %c1_594, %c0_595, %c0_596] : memref<3x4x1x16xf32, #tpu.memory_space<vmem>>, vector<1x1x1x16xf32>
    %858 = vector.shape_cast %857 : vector<1x1x1x16xf32> to vector<1x16xf32>
    %859 = vector.broadcast %858 : vector<1x16xf32> to vector<5x16xf32>
    %860 = arith.addf %856, %859 : vector<5x16xf32>
    %c2_597 = arith.constant 2 : index
    %c2_598 = arith.constant 2 : index
    %c0_599 = arith.constant 0 : index
    %c0_600 = arith.constant 0 : index
    %861 = vector.load %arg15[%c2_597, %c2_598, %c0_599, %c0_600] : memref<3x4x64x16xbf16, #tpu.memory_space<vmem>>, vector<1x1x64x16xbf16>
    %862 = vector.shape_cast %861 : vector<1x1x64x16xbf16> to vector<64x16xbf16>
    %863 = arith.truncf %811 : vector<5x64xf32> to vector<5x64xbf16>
    %cst_601 = arith.constant dense<0.000000e+00> : vector<5x16xf32>
    %864 = tpu.matmul %863, %862, %cst_601 {dimension_numbers = #tpu.dot_dimension_numbers<[1], [0], [0], [1], [0, 0, 1, 1], [], []>} : vector<5x64xbf16>, vector<64x16xbf16>, vector<5x16xf32> -> vector<5x16xf32>
    %c2_602 = arith.constant 2 : index
    %c2_603 = arith.constant 2 : index
    %c0_604 = arith.constant 0 : index
    %c0_605 = arith.constant 0 : index
    %865 = vector.load %arg16[%c2_602, %c2_603, %c0_604, %c0_605] : memref<3x4x1x16xf32, #tpu.memory_space<vmem>>, vector<1x1x1x16xf32>
    %866 = vector.shape_cast %865 : vector<1x1x1x16xf32> to vector<1x16xf32>
    %867 = vector.broadcast %866 : vector<1x16xf32> to vector<5x16xf32>
    %868 = arith.addf %864, %867 : vector<5x16xf32>
    %c2_606 = arith.constant 2 : index
    %c3_607 = arith.constant 3 : index
    %c0_608 = arith.constant 0 : index
    %c0_609 = arith.constant 0 : index
    %869 = vector.load %arg15[%c2_606, %c3_607, %c0_608, %c0_609] : memref<3x4x64x16xbf16, #tpu.memory_space<vmem>>, vector<1x1x64x16xbf16>
    %870 = vector.shape_cast %869 : vector<1x1x64x16xbf16> to vector<64x16xbf16>
    %871 = arith.truncf %811 : vector<5x64xf32> to vector<5x64xbf16>
    %cst_610 = arith.constant dense<0.000000e+00> : vector<5x16xf32>
    %872 = tpu.matmul %871, %870, %cst_610 {dimension_numbers = #tpu.dot_dimension_numbers<[1], [0], [0], [1], [0, 0, 1, 1], [], []>} : vector<5x64xbf16>, vector<64x16xbf16>, vector<5x16xf32> -> vector<5x16xf32>
    %c2_611 = arith.constant 2 : index
    %c3_612 = arith.constant 3 : index
    %c0_613 = arith.constant 0 : index
    %c0_614 = arith.constant 0 : index
    %873 = vector.load %arg16[%c2_611, %c3_612, %c0_613, %c0_614] : memref<3x4x1x16xf32, #tpu.memory_space<vmem>>, vector<1x1x1x16xf32>
    %874 = vector.shape_cast %873 : vector<1x1x1x16xf32> to vector<1x16xf32>
    %875 = vector.broadcast %874 : vector<1x16xf32> to vector<5x16xf32>
    %876 = arith.addf %872, %875 : vector<5x16xf32>
    %877 = arith.truncf %31 : vector<16x16xf32> to vector<16x16xbf16>
    %878 = arith.truncf %820 : vector<5x16xf32> to vector<5x16xbf16>
    %cst_615 = arith.constant dense<0.000000e+00> : vector<16x5xf32>
    %879 = tpu.matmul %877, %878, %cst_615 {dimension_numbers = #tpu.dot_dimension_numbers<[1], [1], [0], [0], [0, 0, 1, 0], [], []>} : vector<16x16xbf16>, vector<5x16xbf16>, vector<16x5xf32> -> vector<16x5xf32>
    %cst_616 = arith.constant dense<0xFF800000> : vector<16xf32>
    %880 = vector.multi_reduction <maximumf>, %879, %cst_616 [1] : vector<16x5xf32> to vector<16xf32>
    %881 = vector.shape_cast %880 : vector<16xf32> to vector<16x1xf32>
    %882 = vector.broadcast %881 : vector<16x1xf32> to vector<16x5xf32>
    %883 = arith.subf %879, %882 : vector<16x5xf32>
    %884 = math.exp %883 : vector<16x5xf32>
    %cst_617 = arith.constant dense<0.000000e+00> : vector<16xf32>
    %885 = vector.multi_reduction <add>, %884, %cst_617 [1] : vector<16x5xf32> to vector<16xf32>
    %886 = vector.shape_cast %885 : vector<16xf32> to vector<16x1xf32>
    %887 = vector.broadcast %886 : vector<16x1xf32> to vector<16x5xf32>
    %888 = arith.divf %884, %887 : vector<16x5xf32>
    %889 = arith.truncf %888 : vector<16x5xf32> to vector<16x5xbf16>
    %890 = arith.truncf %852 : vector<5x16xf32> to vector<5x16xbf16>
    %cst_618 = arith.constant dense<0.000000e+00> : vector<16x16xf32>
    %891 = tpu.matmul %889, %890, %cst_618 {dimension_numbers = #tpu.dot_dimension_numbers<[1], [0], [0], [1], [0, 0, 1, 1], [], []>} : vector<16x5xbf16>, vector<5x16xbf16>, vector<16x16xf32> -> vector<16x16xf32>
    %c0_619 = arith.constant 0 : index
    %c0_620 = arith.constant 0 : index
    %c0_621 = arith.constant 0 : index
    %892 = vector.load %arg17[%c0_619, %c0_620, %c0_621] : memref<4x16x64xbf16, #tpu.memory_space<vmem>>, vector<1x16x64xbf16>
    %893 = vector.shape_cast %892 : vector<1x16x64xbf16> to vector<16x64xbf16>
    %894 = arith.truncf %891 : vector<16x16xf32> to vector<16x16xbf16>
    %cst_622 = arith.constant dense<0.000000e+00> : vector<16x64xf32>
    %895 = tpu.matmul %894, %893, %cst_622 {dimension_numbers = #tpu.dot_dimension_numbers<[1], [0], [0], [1], [0, 0, 1, 1], [], []>} : vector<16x16xbf16>, vector<16x64xbf16>, vector<16x64xf32> -> vector<16x64xf32>
    %896 = arith.truncf %39 : vector<16x16xf32> to vector<16x16xbf16>
    %897 = arith.truncf %828 : vector<5x16xf32> to vector<5x16xbf16>
    %cst_623 = arith.constant dense<0.000000e+00> : vector<16x5xf32>
    %898 = tpu.matmul %896, %897, %cst_623 {dimension_numbers = #tpu.dot_dimension_numbers<[1], [1], [0], [0], [0, 0, 1, 0], [], []>} : vector<16x16xbf16>, vector<5x16xbf16>, vector<16x5xf32> -> vector<16x5xf32>
    %cst_624 = arith.constant dense<0xFF800000> : vector<16xf32>
    %899 = vector.multi_reduction <maximumf>, %898, %cst_624 [1] : vector<16x5xf32> to vector<16xf32>
    %900 = vector.shape_cast %899 : vector<16xf32> to vector<16x1xf32>
    %901 = vector.broadcast %900 : vector<16x1xf32> to vector<16x5xf32>
    %902 = arith.subf %898, %901 : vector<16x5xf32>
    %903 = math.exp %902 : vector<16x5xf32>
    %cst_625 = arith.constant dense<0.000000e+00> : vector<16xf32>
    %904 = vector.multi_reduction <add>, %903, %cst_625 [1] : vector<16x5xf32> to vector<16xf32>
    %905 = vector.shape_cast %904 : vector<16xf32> to vector<16x1xf32>
    %906 = vector.broadcast %905 : vector<16x1xf32> to vector<16x5xf32>
    %907 = arith.divf %903, %906 : vector<16x5xf32>
    %908 = arith.truncf %907 : vector<16x5xf32> to vector<16x5xbf16>
    %909 = arith.truncf %860 : vector<5x16xf32> to vector<5x16xbf16>
    %cst_626 = arith.constant dense<0.000000e+00> : vector<16x16xf32>
    %910 = tpu.matmul %908, %909, %cst_626 {dimension_numbers = #tpu.dot_dimension_numbers<[1], [0], [0], [1], [0, 0, 1, 1], [], []>} : vector<16x5xbf16>, vector<5x16xbf16>, vector<16x16xf32> -> vector<16x16xf32>
    %c1_627 = arith.constant 1 : index
    %c0_628 = arith.constant 0 : index
    %c0_629 = arith.constant 0 : index
    %911 = vector.load %arg17[%c1_627, %c0_628, %c0_629] : memref<4x16x64xbf16, #tpu.memory_space<vmem>>, vector<1x16x64xbf16>
    %912 = vector.shape_cast %911 : vector<1x16x64xbf16> to vector<16x64xbf16>
    %913 = arith.truncf %910 : vector<16x16xf32> to vector<16x16xbf16>
    %cst_630 = arith.constant dense<0.000000e+00> : vector<16x64xf32>
    %914 = tpu.matmul %913, %912, %cst_630 {dimension_numbers = #tpu.dot_dimension_numbers<[1], [0], [0], [1], [0, 0, 1, 1], [], []>} : vector<16x16xbf16>, vector<16x64xbf16>, vector<16x64xf32> -> vector<16x64xf32>
    %915 = arith.addf %895, %914 : vector<16x64xf32>
    %916 = arith.truncf %47 : vector<16x16xf32> to vector<16x16xbf16>
    %917 = arith.truncf %836 : vector<5x16xf32> to vector<5x16xbf16>
    %cst_631 = arith.constant dense<0.000000e+00> : vector<16x5xf32>
    %918 = tpu.matmul %916, %917, %cst_631 {dimension_numbers = #tpu.dot_dimension_numbers<[1], [1], [0], [0], [0, 0, 1, 0], [], []>} : vector<16x16xbf16>, vector<5x16xbf16>, vector<16x5xf32> -> vector<16x5xf32>
    %cst_632 = arith.constant dense<0xFF800000> : vector<16xf32>
    %919 = vector.multi_reduction <maximumf>, %918, %cst_632 [1] : vector<16x5xf32> to vector<16xf32>
    %920 = vector.shape_cast %919 : vector<16xf32> to vector<16x1xf32>
    %921 = vector.broadcast %920 : vector<16x1xf32> to vector<16x5xf32>
    %922 = arith.subf %918, %921 : vector<16x5xf32>
    %923 = math.exp %922 : vector<16x5xf32>
    %cst_633 = arith.constant dense<0.000000e+00> : vector<16xf32>
    %924 = vector.multi_reduction <add>, %923, %cst_633 [1] : vector<16x5xf32> to vector<16xf32>
    %925 = vector.shape_cast %924 : vector<16xf32> to vector<16x1xf32>
    %926 = vector.broadcast %925 : vector<16x1xf32> to vector<16x5xf32>
    %927 = arith.divf %923, %926 : vector<16x5xf32>
    %928 = arith.truncf %927 : vector<16x5xf32> to vector<16x5xbf16>
    %929 = arith.truncf %868 : vector<5x16xf32> to vector<5x16xbf16>
    %cst_634 = arith.constant dense<0.000000e+00> : vector<16x16xf32>
    %930 = tpu.matmul %928, %929, %cst_634 {dimension_numbers = #tpu.dot_dimension_numbers<[1], [0], [0], [1], [0, 0, 1, 1], [], []>} : vector<16x5xbf16>, vector<5x16xbf16>, vector<16x16xf32> -> vector<16x16xf32>
    %c2_635 = arith.constant 2 : index
    %c0_636 = arith.constant 0 : index
    %c0_637 = arith.constant 0 : index
    %931 = vector.load %arg17[%c2_635, %c0_636, %c0_637] : memref<4x16x64xbf16, #tpu.memory_space<vmem>>, vector<1x16x64xbf16>
    %932 = vector.shape_cast %931 : vector<1x16x64xbf16> to vector<16x64xbf16>
    %933 = arith.truncf %930 : vector<16x16xf32> to vector<16x16xbf16>
    %cst_638 = arith.constant dense<0.000000e+00> : vector<16x64xf32>
    %934 = tpu.matmul %933, %932, %cst_638 {dimension_numbers = #tpu.dot_dimension_numbers<[1], [0], [0], [1], [0, 0, 1, 1], [], []>} : vector<16x16xbf16>, vector<16x64xbf16>, vector<16x64xf32> -> vector<16x64xf32>
    %935 = arith.addf %915, %934 : vector<16x64xf32>
    %936 = arith.truncf %55 : vector<16x16xf32> to vector<16x16xbf16>
    %937 = arith.truncf %844 : vector<5x16xf32> to vector<5x16xbf16>
    %cst_639 = arith.constant dense<0.000000e+00> : vector<16x5xf32>
    %938 = tpu.matmul %936, %937, %cst_639 {dimension_numbers = #tpu.dot_dimension_numbers<[1], [1], [0], [0], [0, 0, 1, 0], [], []>} : vector<16x16xbf16>, vector<5x16xbf16>, vector<16x5xf32> -> vector<16x5xf32>
    %cst_640 = arith.constant dense<0xFF800000> : vector<16xf32>
    %939 = vector.multi_reduction <maximumf>, %938, %cst_640 [1] : vector<16x5xf32> to vector<16xf32>
    %940 = vector.shape_cast %939 : vector<16xf32> to vector<16x1xf32>
    %941 = vector.broadcast %940 : vector<16x1xf32> to vector<16x5xf32>
    %942 = arith.subf %938, %941 : vector<16x5xf32>
    %943 = math.exp %942 : vector<16x5xf32>
    %cst_641 = arith.constant dense<0.000000e+00> : vector<16xf32>
    %944 = vector.multi_reduction <add>, %943, %cst_641 [1] : vector<16x5xf32> to vector<16xf32>
    %945 = vector.shape_cast %944 : vector<16xf32> to vector<16x1xf32>
    %946 = vector.broadcast %945 : vector<16x1xf32> to vector<16x5xf32>
    %947 = arith.divf %943, %946 : vector<16x5xf32>
    %948 = arith.truncf %947 : vector<16x5xf32> to vector<16x5xbf16>
    %949 = arith.truncf %876 : vector<5x16xf32> to vector<5x16xbf16>
    %cst_642 = arith.constant dense<0.000000e+00> : vector<16x16xf32>
    %950 = tpu.matmul %948, %949, %cst_642 {dimension_numbers = #tpu.dot_dimension_numbers<[1], [0], [0], [1], [0, 0, 1, 1], [], []>} : vector<16x5xbf16>, vector<5x16xbf16>, vector<16x16xf32> -> vector<16x16xf32>
    %c3_643 = arith.constant 3 : index
    %c0_644 = arith.constant 0 : index
    %c0_645 = arith.constant 0 : index
    %951 = vector.load %arg17[%c3_643, %c0_644, %c0_645] : memref<4x16x64xbf16, #tpu.memory_space<vmem>>, vector<1x16x64xbf16>
    %952 = vector.shape_cast %951 : vector<1x16x64xbf16> to vector<16x64xbf16>
    %953 = arith.truncf %950 : vector<16x16xf32> to vector<16x16xbf16>
    %cst_646 = arith.constant dense<0.000000e+00> : vector<16x64xf32>
    %954 = tpu.matmul %953, %952, %cst_646 {dimension_numbers = #tpu.dot_dimension_numbers<[1], [0], [0], [1], [0, 0, 1, 1], [], []>} : vector<16x16xbf16>, vector<16x64xbf16>, vector<16x64xf32> -> vector<16x64xf32>
    %955 = arith.addf %935, %954 : vector<16x64xf32>
    %956 = vector.broadcast %812 : vector<1x64xf32> to vector<16x64xf32>
    %957 = arith.addf %955, %956 : vector<16x64xf32>
    %cst_647 = arith.constant 0.000000e+00 : f32
    %958 = vector.broadcast %cst_647 : f32 to vector<16x64xf32>
    %959 = arith.maximumf %957, %958 : vector<16x64xf32>
    %960 = vector.extract_strided_slice %0 {offsets = [12, 0], sizes = [1, 128], strides = [1, 1]} : vector<14x128xf32> to vector<1x128xf32>
    %961 = vector.extract_strided_slice %959 {offsets = [0, 0], sizes = [1, 64], strides = [1, 1]} : vector<16x64xf32> to vector<1x64xf32>
    %c0_648 = arith.constant 0 : index
    %c0_649 = arith.constant 0 : index
    %c0_650 = arith.constant 0 : index
    %962 = vector.load %arg18[%c0_648, %c0_649, %c0_650] : memref<16x64x128xbf16, #tpu.memory_space<vmem>>, vector<1x64x128xbf16>
    %963 = vector.shape_cast %962 : vector<1x64x128xbf16> to vector<64x128xbf16>
    %964 = arith.truncf %961 : vector<1x64xf32> to vector<1x64xbf16>
    %cst_651 = arith.constant dense<0.000000e+00> : vector<1x128xf32>
    %965 = tpu.matmul %964, %963, %cst_651 {dimension_numbers = #tpu.dot_dimension_numbers<[1], [0], [0], [1], [0, 0, 1, 1], [], []>} : vector<1x64xbf16>, vector<64x128xbf16>, vector<1x128xf32> -> vector<1x128xf32>
    %966 = arith.addf %960, %965 : vector<1x128xf32>
    %967 = vector.extract_strided_slice %959 {offsets = [1, 0], sizes = [1, 64], strides = [1, 1]} : vector<16x64xf32> to vector<1x64xf32>
    %c1_652 = arith.constant 1 : index
    %c0_653 = arith.constant 0 : index
    %c0_654 = arith.constant 0 : index
    %968 = vector.load %arg18[%c1_652, %c0_653, %c0_654] : memref<16x64x128xbf16, #tpu.memory_space<vmem>>, vector<1x64x128xbf16>
    %969 = vector.shape_cast %968 : vector<1x64x128xbf16> to vector<64x128xbf16>
    %970 = arith.truncf %967 : vector<1x64xf32> to vector<1x64xbf16>
    %cst_655 = arith.constant dense<0.000000e+00> : vector<1x128xf32>
    %971 = tpu.matmul %970, %969, %cst_655 {dimension_numbers = #tpu.dot_dimension_numbers<[1], [0], [0], [1], [0, 0, 1, 1], [], []>} : vector<1x64xbf16>, vector<64x128xbf16>, vector<1x128xf32> -> vector<1x128xf32>
    %972 = arith.addf %966, %971 : vector<1x128xf32>
    %973 = vector.extract_strided_slice %959 {offsets = [2, 0], sizes = [1, 64], strides = [1, 1]} : vector<16x64xf32> to vector<1x64xf32>
    %c2_656 = arith.constant 2 : index
    %c0_657 = arith.constant 0 : index
    %c0_658 = arith.constant 0 : index
    %974 = vector.load %arg18[%c2_656, %c0_657, %c0_658] : memref<16x64x128xbf16, #tpu.memory_space<vmem>>, vector<1x64x128xbf16>
    %975 = vector.shape_cast %974 : vector<1x64x128xbf16> to vector<64x128xbf16>
    %976 = arith.truncf %973 : vector<1x64xf32> to vector<1x64xbf16>
    %cst_659 = arith.constant dense<0.000000e+00> : vector<1x128xf32>
    %977 = tpu.matmul %976, %975, %cst_659 {dimension_numbers = #tpu.dot_dimension_numbers<[1], [0], [0], [1], [0, 0, 1, 1], [], []>} : vector<1x64xbf16>, vector<64x128xbf16>, vector<1x128xf32> -> vector<1x128xf32>
    %978 = arith.addf %972, %977 : vector<1x128xf32>
    %979 = vector.extract_strided_slice %959 {offsets = [3, 0], sizes = [1, 64], strides = [1, 1]} : vector<16x64xf32> to vector<1x64xf32>
    %c3_660 = arith.constant 3 : index
    %c0_661 = arith.constant 0 : index
    %c0_662 = arith.constant 0 : index
    %980 = vector.load %arg18[%c3_660, %c0_661, %c0_662] : memref<16x64x128xbf16, #tpu.memory_space<vmem>>, vector<1x64x128xbf16>
    %981 = vector.shape_cast %980 : vector<1x64x128xbf16> to vector<64x128xbf16>
    %982 = arith.truncf %979 : vector<1x64xf32> to vector<1x64xbf16>
    %cst_663 = arith.constant dense<0.000000e+00> : vector<1x128xf32>
    %983 = tpu.matmul %982, %981, %cst_663 {dimension_numbers = #tpu.dot_dimension_numbers<[1], [0], [0], [1], [0, 0, 1, 1], [], []>} : vector<1x64xbf16>, vector<64x128xbf16>, vector<1x128xf32> -> vector<1x128xf32>
    %984 = arith.addf %978, %983 : vector<1x128xf32>
    %985 = vector.extract_strided_slice %959 {offsets = [4, 0], sizes = [1, 64], strides = [1, 1]} : vector<16x64xf32> to vector<1x64xf32>
    %c4_664 = arith.constant 4 : index
    %c0_665 = arith.constant 0 : index
    %c0_666 = arith.constant 0 : index
    %986 = vector.load %arg18[%c4_664, %c0_665, %c0_666] : memref<16x64x128xbf16, #tpu.memory_space<vmem>>, vector<1x64x128xbf16>
    %987 = vector.shape_cast %986 : vector<1x64x128xbf16> to vector<64x128xbf16>
    %988 = arith.truncf %985 : vector<1x64xf32> to vector<1x64xbf16>
    %cst_667 = arith.constant dense<0.000000e+00> : vector<1x128xf32>
    %989 = tpu.matmul %988, %987, %cst_667 {dimension_numbers = #tpu.dot_dimension_numbers<[1], [0], [0], [1], [0, 0, 1, 1], [], []>} : vector<1x64xbf16>, vector<64x128xbf16>, vector<1x128xf32> -> vector<1x128xf32>
    %990 = arith.addf %984, %989 : vector<1x128xf32>
    %991 = vector.extract_strided_slice %959 {offsets = [5, 0], sizes = [1, 64], strides = [1, 1]} : vector<16x64xf32> to vector<1x64xf32>
    %c5_668 = arith.constant 5 : index
    %c0_669 = arith.constant 0 : index
    %c0_670 = arith.constant 0 : index
    %992 = vector.load %arg18[%c5_668, %c0_669, %c0_670] : memref<16x64x128xbf16, #tpu.memory_space<vmem>>, vector<1x64x128xbf16>
    %993 = vector.shape_cast %992 : vector<1x64x128xbf16> to vector<64x128xbf16>
    %994 = arith.truncf %991 : vector<1x64xf32> to vector<1x64xbf16>
    %cst_671 = arith.constant dense<0.000000e+00> : vector<1x128xf32>
    %995 = tpu.matmul %994, %993, %cst_671 {dimension_numbers = #tpu.dot_dimension_numbers<[1], [0], [0], [1], [0, 0, 1, 1], [], []>} : vector<1x64xbf16>, vector<64x128xbf16>, vector<1x128xf32> -> vector<1x128xf32>
    %996 = arith.addf %990, %995 : vector<1x128xf32>
    %997 = vector.extract_strided_slice %959 {offsets = [6, 0], sizes = [1, 64], strides = [1, 1]} : vector<16x64xf32> to vector<1x64xf32>
    %c6_672 = arith.constant 6 : index
    %c0_673 = arith.constant 0 : index
    %c0_674 = arith.constant 0 : index
    %998 = vector.load %arg18[%c6_672, %c0_673, %c0_674] : memref<16x64x128xbf16, #tpu.memory_space<vmem>>, vector<1x64x128xbf16>
    %999 = vector.shape_cast %998 : vector<1x64x128xbf16> to vector<64x128xbf16>
    %1000 = arith.truncf %997 : vector<1x64xf32> to vector<1x64xbf16>
    %cst_675 = arith.constant dense<0.000000e+00> : vector<1x128xf32>
    %1001 = tpu.matmul %1000, %999, %cst_675 {dimension_numbers = #tpu.dot_dimension_numbers<[1], [0], [0], [1], [0, 0, 1, 1], [], []>} : vector<1x64xbf16>, vector<64x128xbf16>, vector<1x128xf32> -> vector<1x128xf32>
    %1002 = arith.addf %996, %1001 : vector<1x128xf32>
    %1003 = vector.extract_strided_slice %959 {offsets = [7, 0], sizes = [1, 64], strides = [1, 1]} : vector<16x64xf32> to vector<1x64xf32>
    %c7_676 = arith.constant 7 : index
    %c0_677 = arith.constant 0 : index
    %c0_678 = arith.constant 0 : index
    %1004 = vector.load %arg18[%c7_676, %c0_677, %c0_678] : memref<16x64x128xbf16, #tpu.memory_space<vmem>>, vector<1x64x128xbf16>
    %1005 = vector.shape_cast %1004 : vector<1x64x128xbf16> to vector<64x128xbf16>
    %1006 = arith.truncf %1003 : vector<1x64xf32> to vector<1x64xbf16>
    %cst_679 = arith.constant dense<0.000000e+00> : vector<1x128xf32>
    %1007 = tpu.matmul %1006, %1005, %cst_679 {dimension_numbers = #tpu.dot_dimension_numbers<[1], [0], [0], [1], [0, 0, 1, 1], [], []>} : vector<1x64xbf16>, vector<64x128xbf16>, vector<1x128xf32> -> vector<1x128xf32>
    %1008 = arith.addf %1002, %1007 : vector<1x128xf32>
    %1009 = vector.extract_strided_slice %959 {offsets = [8, 0], sizes = [1, 64], strides = [1, 1]} : vector<16x64xf32> to vector<1x64xf32>
    %c8_680 = arith.constant 8 : index
    %c0_681 = arith.constant 0 : index
    %c0_682 = arith.constant 0 : index
    %1010 = vector.load %arg18[%c8_680, %c0_681, %c0_682] : memref<16x64x128xbf16, #tpu.memory_space<vmem>>, vector<1x64x128xbf16>
    %1011 = vector.shape_cast %1010 : vector<1x64x128xbf16> to vector<64x128xbf16>
    %1012 = arith.truncf %1009 : vector<1x64xf32> to vector<1x64xbf16>
    %cst_683 = arith.constant dense<0.000000e+00> : vector<1x128xf32>
    %1013 = tpu.matmul %1012, %1011, %cst_683 {dimension_numbers = #tpu.dot_dimension_numbers<[1], [0], [0], [1], [0, 0, 1, 1], [], []>} : vector<1x64xbf16>, vector<64x128xbf16>, vector<1x128xf32> -> vector<1x128xf32>
    %1014 = arith.addf %1008, %1013 : vector<1x128xf32>
    %1015 = vector.extract_strided_slice %959 {offsets = [9, 0], sizes = [1, 64], strides = [1, 1]} : vector<16x64xf32> to vector<1x64xf32>
    %c9_684 = arith.constant 9 : index
    %c0_685 = arith.constant 0 : index
    %c0_686 = arith.constant 0 : index
    %1016 = vector.load %arg18[%c9_684, %c0_685, %c0_686] : memref<16x64x128xbf16, #tpu.memory_space<vmem>>, vector<1x64x128xbf16>
    %1017 = vector.shape_cast %1016 : vector<1x64x128xbf16> to vector<64x128xbf16>
    %1018 = arith.truncf %1015 : vector<1x64xf32> to vector<1x64xbf16>
    %cst_687 = arith.constant dense<0.000000e+00> : vector<1x128xf32>
    %1019 = tpu.matmul %1018, %1017, %cst_687 {dimension_numbers = #tpu.dot_dimension_numbers<[1], [0], [0], [1], [0, 0, 1, 1], [], []>} : vector<1x64xbf16>, vector<64x128xbf16>, vector<1x128xf32> -> vector<1x128xf32>
    %1020 = arith.addf %1014, %1019 : vector<1x128xf32>
    %1021 = vector.extract_strided_slice %959 {offsets = [10, 0], sizes = [1, 64], strides = [1, 1]} : vector<16x64xf32> to vector<1x64xf32>
    %c10_688 = arith.constant 10 : index
    %c0_689 = arith.constant 0 : index
    %c0_690 = arith.constant 0 : index
    %1022 = vector.load %arg18[%c10_688, %c0_689, %c0_690] : memref<16x64x128xbf16, #tpu.memory_space<vmem>>, vector<1x64x128xbf16>
    %1023 = vector.shape_cast %1022 : vector<1x64x128xbf16> to vector<64x128xbf16>
    %1024 = arith.truncf %1021 : vector<1x64xf32> to vector<1x64xbf16>
    %cst_691 = arith.constant dense<0.000000e+00> : vector<1x128xf32>
    %1025 = tpu.matmul %1024, %1023, %cst_691 {dimension_numbers = #tpu.dot_dimension_numbers<[1], [0], [0], [1], [0, 0, 1, 1], [], []>} : vector<1x64xbf16>, vector<64x128xbf16>, vector<1x128xf32> -> vector<1x128xf32>
    %1026 = arith.addf %1020, %1025 : vector<1x128xf32>
    %1027 = vector.extract_strided_slice %959 {offsets = [11, 0], sizes = [1, 64], strides = [1, 1]} : vector<16x64xf32> to vector<1x64xf32>
    %c11_692 = arith.constant 11 : index
    %c0_693 = arith.constant 0 : index
    %c0_694 = arith.constant 0 : index
    %1028 = vector.load %arg18[%c11_692, %c0_693, %c0_694] : memref<16x64x128xbf16, #tpu.memory_space<vmem>>, vector<1x64x128xbf16>
    %1029 = vector.shape_cast %1028 : vector<1x64x128xbf16> to vector<64x128xbf16>
    %1030 = arith.truncf %1027 : vector<1x64xf32> to vector<1x64xbf16>
    %cst_695 = arith.constant dense<0.000000e+00> : vector<1x128xf32>
    %1031 = tpu.matmul %1030, %1029, %cst_695 {dimension_numbers = #tpu.dot_dimension_numbers<[1], [0], [0], [1], [0, 0, 1, 1], [], []>} : vector<1x64xbf16>, vector<64x128xbf16>, vector<1x128xf32> -> vector<1x128xf32>
    %1032 = arith.addf %1026, %1031 : vector<1x128xf32>
    %1033 = vector.extract_strided_slice %959 {offsets = [12, 0], sizes = [1, 64], strides = [1, 1]} : vector<16x64xf32> to vector<1x64xf32>
    %c12_696 = arith.constant 12 : index
    %c0_697 = arith.constant 0 : index
    %c0_698 = arith.constant 0 : index
    %1034 = vector.load %arg18[%c12_696, %c0_697, %c0_698] : memref<16x64x128xbf16, #tpu.memory_space<vmem>>, vector<1x64x128xbf16>
    %1035 = vector.shape_cast %1034 : vector<1x64x128xbf16> to vector<64x128xbf16>
    %1036 = arith.truncf %1033 : vector<1x64xf32> to vector<1x64xbf16>
    %cst_699 = arith.constant dense<0.000000e+00> : vector<1x128xf32>
    %1037 = tpu.matmul %1036, %1035, %cst_699 {dimension_numbers = #tpu.dot_dimension_numbers<[1], [0], [0], [1], [0, 0, 1, 1], [], []>} : vector<1x64xbf16>, vector<64x128xbf16>, vector<1x128xf32> -> vector<1x128xf32>
    %1038 = arith.addf %1032, %1037 : vector<1x128xf32>
    %1039 = vector.extract_strided_slice %959 {offsets = [13, 0], sizes = [1, 64], strides = [1, 1]} : vector<16x64xf32> to vector<1x64xf32>
    %c13_700 = arith.constant 13 : index
    %c0_701 = arith.constant 0 : index
    %c0_702 = arith.constant 0 : index
    %1040 = vector.load %arg18[%c13_700, %c0_701, %c0_702] : memref<16x64x128xbf16, #tpu.memory_space<vmem>>, vector<1x64x128xbf16>
    %1041 = vector.shape_cast %1040 : vector<1x64x128xbf16> to vector<64x128xbf16>
    %1042 = arith.truncf %1039 : vector<1x64xf32> to vector<1x64xbf16>
    %cst_703 = arith.constant dense<0.000000e+00> : vector<1x128xf32>
    %1043 = tpu.matmul %1042, %1041, %cst_703 {dimension_numbers = #tpu.dot_dimension_numbers<[1], [0], [0], [1], [0, 0, 1, 1], [], []>} : vector<1x64xbf16>, vector<64x128xbf16>, vector<1x128xf32> -> vector<1x128xf32>
    %1044 = arith.addf %1038, %1043 : vector<1x128xf32>
    %1045 = vector.extract_strided_slice %959 {offsets = [14, 0], sizes = [1, 64], strides = [1, 1]} : vector<16x64xf32> to vector<1x64xf32>
    %c14_704 = arith.constant 14 : index
    %c0_705 = arith.constant 0 : index
    %c0_706 = arith.constant 0 : index
    %1046 = vector.load %arg18[%c14_704, %c0_705, %c0_706] : memref<16x64x128xbf16, #tpu.memory_space<vmem>>, vector<1x64x128xbf16>
    %1047 = vector.shape_cast %1046 : vector<1x64x128xbf16> to vector<64x128xbf16>
    %1048 = arith.truncf %1045 : vector<1x64xf32> to vector<1x64xbf16>
    %cst_707 = arith.constant dense<0.000000e+00> : vector<1x128xf32>
    %1049 = tpu.matmul %1048, %1047, %cst_707 {dimension_numbers = #tpu.dot_dimension_numbers<[1], [0], [0], [1], [0, 0, 1, 1], [], []>} : vector<1x64xbf16>, vector<64x128xbf16>, vector<1x128xf32> -> vector<1x128xf32>
    %1050 = arith.addf %1044, %1049 : vector<1x128xf32>
    %1051 = vector.extract_strided_slice %959 {offsets = [15, 0], sizes = [1, 64], strides = [1, 1]} : vector<16x64xf32> to vector<1x64xf32>
    %c15_708 = arith.constant 15 : index
    %c0_709 = arith.constant 0 : index
    %c0_710 = arith.constant 0 : index
    %1052 = vector.load %arg18[%c15_708, %c0_709, %c0_710] : memref<16x64x128xbf16, #tpu.memory_space<vmem>>, vector<1x64x128xbf16>
    %1053 = vector.shape_cast %1052 : vector<1x64x128xbf16> to vector<64x128xbf16>
    %1054 = arith.truncf %1051 : vector<1x64xf32> to vector<1x64xbf16>
    %cst_711 = arith.constant dense<0.000000e+00> : vector<1x128xf32>
    %1055 = tpu.matmul %1054, %1053, %cst_711 {dimension_numbers = #tpu.dot_dimension_numbers<[1], [0], [0], [1], [0, 0, 1, 1], [], []>} : vector<1x64xbf16>, vector<64x128xbf16>, vector<1x128xf32> -> vector<1x128xf32>
    %1056 = arith.addf %1050, %1055 : vector<1x128xf32>
    %cst_712 = arith.constant 0.000000e+00 : f32
    %1057 = vector.broadcast %cst_712 : f32 to vector<1x128xf32>
    %1058 = arith.maximumf %1056, %1057 : vector<1x128xf32>
    %c0_713 = arith.constant 0 : index
    %c0_714 = arith.constant 0 : index
    %1059 = vector.load %arg19[%c0_713, %c0_714] : memref<128x16xbf16, #tpu.memory_space<vmem>>, vector<128x16xbf16>
    %1060 = arith.truncf %1058 : vector<1x128xf32> to vector<1x128xbf16>
    %cst_715 = arith.constant dense<0.000000e+00> : vector<1x16xf32>
    %1061 = tpu.matmul %1060, %1059, %cst_715 {dimension_numbers = #tpu.dot_dimension_numbers<[1], [0], [0], [1], [0, 0, 1, 1], [], []>} : vector<1x128xbf16>, vector<128x16xbf16>, vector<1x16xf32> -> vector<1x16xf32>
    %1062 = vector.extract_strided_slice %0 {offsets = [13, 0], sizes = [1, 16], strides = [1, 1]} : vector<14x128xf32> to vector<1x16xf32>
    %1063 = arith.addf %1061, %1062 : vector<1x16xf32>
    %1064 = tpu.concatenate %559, %1063 in 0 : vector<1x16xf32>, vector<1x16xf32> -> vector<2x16xf32>
    %c0_716 = arith.constant 0 : index
    %c0_717 = arith.constant 0 : index
    %1065 = vector.load %arg21[%c0_716, %c0_717] : memref<2x16xf32, #tpu.memory_space<vmem>>, vector<2x16xf32>
    tpu.vector_store %arg21[%c0_716, %c0_717], %1064 {strides = array<i32>} : memref<2x16xf32, #tpu.memory_space<vmem>>, vector<2x16xf32>,
    return
  }
}

</mosaic_0001>

<llo_original>
// kernel: _forward_impl.1
$region0: #{_forward_impl.1}
  #allocation0 [shape = 'u32[]', space=smem, size = 0x4, offset = 0x4, fixed_abs, tag = 'smem constant byte address 0x4 - core index']
  #allocation1 [shape = 'u32[144,128]{1,0:T(1,128)}', space=vmem, size = 0x12000, scoped, tag = 'internal scratch']
  %s0 = inlined_call_operand.vmem [shape: f32[2,8], index: 0, kind: input, shape index: {}]
  %s1 = inlined_call_operand.vmem [shape: f32[2,6,50], index: 1, kind: input, shape index: {}]
  %s2 = inlined_call_operand.vmem [shape: f32[2,5,16], index: 2, kind: input, shape index: {}]
  %s3 = inlined_call_operand.vmem [shape: bf16[16,48], index: 3, kind: input, shape index: {}]
  %s4 = inlined_call_operand.vmem [shape: bf16[48,64], index: 4, kind: input, shape index: {}]
  %s5 = inlined_call_operand.vmem [shape: bf16[8,64], index: 5, kind: input, shape index: {}]
  %s6 = inlined_call_operand.vmem [shape: bf16[64,64], index: 6, kind: input, shape index: {}]
  %s7 = inlined_call_operand.vmem [shape: bf16[50,16], index: 7, kind: input, shape index: {}]
  %s8 = inlined_call_operand.vmem [shape: bf16[16,64], index: 8, kind: input, shape index: {}]
  %s9 = inlined_call_operand.vmem [shape: bf16[64,32], index: 9, kind: input, shape index: {}]
  %s10 = inlined_call_operand.vmem [shape: bf16[16,64], index: 10, kind: input, shape index: {}]
  %s11 = inlined_call_operand.vmem [shape: bf16[64,16], index: 11, kind: input, shape index: {}]
  %s12 = inlined_call_operand.vmem [shape: bf16[3,4,64,16], index: 12, kind: input, shape index: {}]
  %s13 = inlined_call_operand.vmem [shape: f32[3,4,1,16], index: 13, kind: input, shape index: {}]
  %s14 = inlined_call_operand.vmem [shape: bf16[4,16,64], index: 14, kind: input, shape index: {}]
  %s15 = inlined_call_operand.vmem [shape: bf16[3,4,64,16], index: 15, kind: input, shape index: {}]
  %s16 = inlined_call_operand.vmem [shape: f32[3,4,1,16], index: 16, kind: input, shape index: {}]
  %s17 = inlined_call_operand.vmem [shape: bf16[4,16,64], index: 17, kind: input, shape index: {}]
  %s18 = inlined_call_operand.vmem [shape: bf16[16,64,128], index: 18, kind: input, shape index: {}]
  %s19 = inlined_call_operand.vmem [shape: bf16[128,16], index: 19, kind: input, shape index: {}]
  %s20 = inlined_call_operand.vmem [shape: f32[14,128], index: 20, kind: input, shape index: {}]
  %s21 = inlined_call_operand.hbm [shape: f32[2,16], index: 21, kind: output, shape index: {}]
  %s22 = sld [smem:[#allocation0]]
  $region94: #{_forward_impl.1} parent=0
    _
  %s24 = ssub.s32 1, %s22
  %s25 = scalar_select 0, %s24, %s22
  $region1: #{_forward_impl.1} parent=0
    #allocation2 [shape = 'u8[1024]{0}', space=vmem, size = 0x400, scoped, tag = 'output window, operand 0, single buffered']
    #allocation3 [shape = 's32[1]{0}', space=sflag, size = 0x4, scoped, tag = 'scoped memory for _forward_impl.1']
    %26 = vsyncpa [#allocation3], 0
    // Predicated region
    $region2: #{_forward_impl.1} parent=1 // pred_check
      _
    $region3: #{_forward_impl.1} parent=1 // pred_check_branch
      %28 = sbr.rel (0) target = $region5
    $region4: #{_forward_impl.1} parent=1 // pred_region
      _
    $region5: #{_forward_impl.1} parent=1 // pred_fallthru
      _
    // Predicated region
    $region6: #{_forward_impl.1} parent=1 // pred_check
      _
    $region7: #{_forward_impl.1} parent=1 // pred_check_branch
      %30 = sbr.rel (0) target = $region9
    $region8: #{_forward_impl.1} parent=1 // pred_region
      _
    $region9: #{_forward_impl.1} parent=1 // pred_fallthru
      _
    // Predicated region
    $region10: #{_forward_impl.1} parent=1 // pred_check
      _
    $region11: #{_forward_impl.1} parent=1 // pred_check_branch
      %32 = sbr.rel (0) target = $region13
    $region12: #{_forward_impl.1} parent=1 // pred_region
      _
    $region13: #{_forward_impl.1} parent=1 // pred_fallthru
      _
    // Predicated region
    $region14: #{_forward_impl.1} parent=1 // pred_check
      _
    $region15: #{_forward_impl.1} parent=1 // pred_check_branch
      %34 = sbr.rel (0) target = $region17
    $region16: #{_forward_impl.1} parent=1 // pred_region
      _
    $region17: #{_forward_impl.1} parent=1 // pred_fallthru
      _
    // Predicated region
    $region18: #{_forward_impl.1} parent=1 // pred_check
      _
    $region19: #{_forward_impl.1} parent=1 // pred_check_branch
      %36 = sbr.rel (0) target = $region21
    $region20: #{_forward_impl.1} parent=1 // pred_region
      _
    $region21: #{_forward_impl.1} parent=1 // pred_fallthru
      _
    // Predicated region
    $region22: #{_forward_impl.1} parent=1 // pred_check
      _
    $region23: #{_forward_impl.1} parent=1 // pred_check_branch
      %38 = sbr.rel (0) target = $region25
    $region24: #{_forward_impl.1} parent=1 // pred_region
      _
    $region25: #{_forward_impl.1} parent=1 // pred_fallthru
      _
    // Predicated region
    $region26: #{_forward_impl.1} parent=1 // pred_check
      _
    $region27: #{_forward_impl.1} parent=1 // pred_check_branch
      %40 = sbr.rel (0) target = $region29
    $region28: #{_forward_impl.1} parent=1 // pred_region
      _
    $region29: #{_forward_impl.1} parent=1 // pred_fallthru
      _
    // Predicated region
    $region30: #{_forward_impl.1} parent=1 // pred_check
      _
    $region31: #{_forward_impl.1} parent=1 // pred_check_branch
      %42 = sbr.rel (0) target = $region33
    $region32: #{_forward_impl.1} parent=1 // pred_region
      _
    $region33: #{_forward_impl.1} parent=1 // pred_fallthru
      _
    // Predicated region
    $region34: #{_forward_impl.1} parent=1 // pred_check
      _
    $region35: #{_forward_impl.1} parent=1 // pred_check_branch
      %44 = sbr.rel (0) target = $region37
    $region36: #{_forward_impl.1} parent=1 // pred_region
      _
    $region37: #{_forward_impl.1} parent=1 // pred_fallthru
      _
    // Predicated region
    $region38: #{_forward_impl.1} parent=1 // pred_check
      _
    $region39: #{_forward_impl.1} parent=1 // pred_check_branch
      %46 = sbr.rel (0) target = $region41
    $region40: #{_forward_impl.1} parent=1 // pred_region
      _
    $region41: #{_forward_impl.1} parent=1 // pred_fallthru
      _
    // Predicated region
    $region42: #{_forward_impl.1} parent=1 // pred_check
      _
    $region43: #{_forward_impl.1} parent=1 // pred_check_branch
      %48 = sbr.rel (0) target = $region45
    $region44: #{_forward_impl.1} parent=1 // pred_region
      _
    $region45: #{_forward_impl.1} parent=1 // pred_fallthru
      _
    // Predicated region
    $region46: #{_forward_impl.1} parent=1 // pred_check
      _
    $region47: #{_forward_impl.1} parent=1 // pred_check_branch
      %50 = sbr.rel (0) target = $region49
    $region48: #{_forward_impl.1} parent=1 // pred_region
      _
    $region49: #{_forward_impl.1} parent=1 // pred_fallthru
      _
    // Predicated region
    $region50: #{_forward_impl.1} parent=1 // pred_check
      _
    $region51: #{_forward_impl.1} parent=1 // pred_check_branch
      %52 = sbr.rel (0) target = $region53
    $region52: #{_forward_impl.1} parent=1 // pred_region
      _
    $region53: #{_forward_impl.1} parent=1 // pred_fallthru
      _
    // Predicated region
    $region54: #{_forward_impl.1} parent=1 // pred_check
      _
    $region55: #{_forward_impl.1} parent=1 // pred_check_branch
      %54 = sbr.rel (0) target = $region57
    $region56: #{_forward_impl.1} parent=1 // pred_region
      _
    $region57: #{_forward_impl.1} parent=1 // pred_fallthru
      _
    // Predicated region
    $region58: #{_forward_impl.1} parent=1 // pred_check
      _
    $region59: #{_forward_impl.1} parent=1 // pred_check_branch
      %56 = sbr.rel (0) target = $region61
    $region60: #{_forward_impl.1} parent=1 // pred_region
      _
    $region61: #{_forward_impl.1} parent=1 // pred_fallthru
      _
    // Predicated region
    $region62: #{_forward_impl.1} parent=1 // pred_check
      _
    $region63: #{_forward_impl.1} parent=1 // pred_check_branch
      %58 = sbr.rel (0) target = $region65
    $region64: #{_forward_impl.1} parent=1 // pred_region
      _
    $region65: #{_forward_impl.1} parent=1 // pred_fallthru
      _
    // Predicated region
    $region66: #{_forward_impl.1} parent=1 // pred_check
      _
    $region67: #{_forward_impl.1} parent=1 // pred_check_branch
      %60 = sbr.rel (0) target = $region69
    $region68: #{_forward_impl.1} parent=1 // pred_region
      _
    $region69: #{_forward_impl.1} parent=1 // pred_fallthru
      _
    // Predicated region
    $region70: #{_forward_impl.1} parent=1 // pred_check
      _
    $region71: #{_forward_impl.1} parent=1 // pred_check_branch
      %62 = sbr.rel (0) target = $region73
    $region72: #{_forward_impl.1} parent=1 // pred_region
      _
    $region73: #{_forward_impl.1} parent=1 // pred_fallthru
      _
    // Predicated region
    $region74: #{_forward_impl.1} parent=1 // pred_check
      _
    $region75: #{_forward_impl.1} parent=1 // pred_check_branch
      %64 = sbr.rel (0) target = $region77
    $region76: #{_forward_impl.1} parent=1 // pred_region
      _
    $region77: #{_forward_impl.1} parent=1 // pred_fallthru
      _
    // Predicated region
    $region78: #{_forward_impl.1} parent=1 // pred_check
      _
    $region79: #{_forward_impl.1} parent=1 // pred_check_branch
      %66 = sbr.rel (0) target = $region81
    $region80: #{_forward_impl.1} parent=1 // pred_region
      _
    $region81: #{_forward_impl.1} parent=1 // pred_fallthru
      _
    // Predicated region
    $region82: #{_forward_impl.1} parent=1 // pred_check
      _
    $region83: #{_forward_impl.1} parent=1 // pred_check_branch
      %68 = sbr.rel (0) target = $region85
    $region84: #{_forward_impl.1} parent=1 // pred_region
      _
    $region85: #{_forward_impl.1} parent=1 // pred_fallthru
      _
    %v70 = vld [vmem:[%s20] sm:$0xff]
    %v71 = vld [vmem:[%s20 + $0x8] sm:$0x3f]
    %v72 = vld [vmem:[%s3] sm:$0xf]
    %v73 = vld [vmem:[%s3 + $0x4] sm:$0xf]
    %v74 = vld [vmem:[%s4] sm:$0xf]
    %v75 = vld [vmem:[%s4 + $0x4] sm:$0xf]
    %v76 = vld [vmem:[%s4 + $0x8] sm:$0xf]
    %v77 = vld [vmem:[%s4 + $0xc] sm:$0xf]
    %v78 = vld [vmem:[%s4 + $0x10] sm:$0xf]
    %v79 = vld [vmem:[%s4 + $0x14] sm:$0xf]
    %v80 = vlaneseq
    %v81 = vshrl.u32 %v80, 7
    %v82 = vsub.s32 0, %v81
    %v83 = vrot.slane %v70, %v82
    %v86 = vunpack.c.l.b16 %v72
    %v87 = vunpack.c.l.b16 %v73
    %v88 = vpack.c.b16 %v87, %v86
    %v95 = vunpack.c.l.b16 %v74
    %v96 = vunpack.c.l.b16 %v75
    %v97 = vunpack.c.l.b16 %v76
    %v98 = vunpack.c.l.b16 %v77
    %v99 = vunpack.c.l.b16 %v78
    %v100 = vunpack.c.l.b16 %v79
    %v101 = vpack.c.b16 %v96, %v95
    %v102 = vpack.c.b16 %v98, %v97
    %v103 = vpack.c.b16 %v100, %v99
    %vm107 = vcmask 392192
    %v109 = vsel %vm107, %v88, 0
    %111 = vmatprep.subr.bf16.mxu0 0
    %112 = vmatpush1.bf16.msra.mxu0 %v101
    %113 = vmatprep.subr.bf16.mxu0 0
    %114 = vmatpush1.bf16.msra.mxu0 %v102
    %115 = vmatprep.subr.bf16.mxu0 0
    %116 = vmatpush1.bf16.msra.mxu0 %v103
    %117 = vmatprep.subr.bf16.mxu0 0
    %118 = vmatpush1.bf16.msra.mxu0 0
    %119 = vmatprep.subr.bf16.mxu0 0
    %120 = vmatpush1.bf16.msra.mxu0 0
    %121 = vmatprep.subr.bf16.mxu0 0
    %122 = vmatpush1.bf16.msra.mxu0 0
    %123 = vmatprep.subr.bf16.mxu0 0
    %124 = vmatpush1.bf16.msra.mxu0 0
    %125 = vmatprep.subr.bf16.mxu0 0
    %126 = vmatpush1.bf16.msra.mxu0 0
    %127 = vmatprep.subr.bf16.mxu0 0
    %128 = vmatpush1.bf16.msra.mxu0 0
    %129 = vmatprep.subr.bf16.mxu0 0
    %130 = vmatpush1.bf16.msra.mxu0 0
    %131 = vmatprep.subr.bf16.mxu0 0
    %132 = vmatpush1.bf16.msra.mxu0 0
    %133 = vmatprep.subr.bf16.mxu0 0
    %134 = vmatpush1.bf16.msra.mxu0 0
    %135 = vmatprep.subr.bf16.mxu0 0
    %136 = vmatpush1.bf16.msra.mxu0 0
    %137 = vmatprep.subr.bf16.mxu0 0
    %138 = vmatpush1.bf16.msra.mxu0 0
    %139 = vmatprep.subr.bf16.mxu0 0
    %140 = vmatpush1.bf16.msra.mxu0 0
    %141 = vmatprep.subr.bf16.mxu0 0
    %142 = vmatpush1.bf16.msra.mxu0 0
    %143 = vmatprep.mubr.bf16.mxu0 0
    %144 = vmatmul.mubr.bf16.gmra.mrb[0].mxu0 %v109
    %v145 = vpop.f32.mrb[0].mxu0
    %v146 = vadd.f32 %v83, %v145
    %v147 = vpop.f32.mrb[0].mxu0
    %v148 = vpop.f32.mrb[0].mxu0
    %v149 = vadd.f32 %v83, %v148
    %v150 = vpop.f32.mrb[0].mxu0
    %151 = vdwg.mxu0
    %v152 = vld [vmem:[%s0] sm:$0x3]
    %v153 = vld [vmem:[%s5] sm:$0xf]
    %v154 = vpack.c.bf16 %v152, %v152
    %v155 = vlaneseq
    %v156 = vshrl.u32 %v155, 7
    %v157 = vsub.s32 1, %v156
    %v158 = vrot.slane %v70, %v157
    %vm159 = vcmask 64512
    %v161 = vsel %vm159, %v154, 0
    %vm163 = vcmask 1043456
    %v165 = vsel %vm163, %v153, 0
    %167 = vmatprep.subr.bf16.mxu0 0
    %168 = vmatpush1.bf16.msra.mxu0 %v165
    %169 = vmatprep.subr.bf16.mxu0 0
    %170 = vmatpush1.bf16.msra.mxu0 0
    %171 = vmatprep.subr.bf16.mxu0 0
    %172 = vmatpush1.bf16.msra.mxu0 0
    %173 = vmatprep.subr.bf16.mxu0 0
    %174 = vmatpush1.bf16.msra.mxu0 0
    %175 = vmatprep.subr.bf16.mxu0 0
    %176 = vmatpush1.bf16.msra.mxu0 0
    %177 = vmatprep.subr.bf16.mxu0 0
    %178 = vmatpush1.bf16.msra.mxu0 0
    %179 = vmatprep.subr.bf16.mxu0 0
    %180 = vmatpush1.bf16.msra.mxu0 0
    %181 = vmatprep.subr.bf16.mxu0 0
    %182 = vmatpush1.bf16.msra.mxu0 0
    %183 = vmatprep.subr.bf16.mxu0 0
    %184 = vmatpush1.bf16.msra.mxu0 0
    %185 = vmatprep.subr.bf16.mxu0 0
    %186 = vmatpush1.bf16.msra.mxu0 0
    %187 = vmatprep.subr.bf16.mxu0 0
    %188 = vmatpush1.bf16.msra.mxu0 0
    %189 = vmatprep.subr.bf16.mxu0 0
    %190 = vmatpush1.bf16.msra.mxu0 0
    %191 = vmatprep.subr.bf16.mxu0 0
    %192 = vmatpush1.bf16.msra.mxu0 0
    %193 = vmatprep.subr.bf16.mxu0 0
    %194 = vmatpush1.bf16.msra.mxu0 0
    %195 = vmatprep.subr.bf16.mxu0 0
    %196 = vmatpush1.bf16.msra.mxu0 0
    %197 = vmatprep.subr.bf16.mxu0 0
    %198 = vmatpush1.bf16.msra.mxu0 0
    %199 = vmatprep.mubr.bf16.mxu0 0
    %200 = vmatmul.mubr.bf16.gmra.mrb[0].mxu0 %v161
    %v201 = vpop.f32.mrb[0].mxu0
    %v202 = vadd.f32 %v158, %v201
    %v203 = vpop.f32.mrb[0].mxu0
    %v204 = vpop.f32.mrb[0].mxu0
    %v205 = vpop.f32.mrb[0].mxu0
    %206 = vdwg.mxu0
    %v207 = vmax.f32 %v202, 0.0
    %v208 = vld [vmem:[%s6] sm:$0xf]
    %v209 = vld [vmem:[%s6 + $0x4] sm:$0xf]
    %v210 = vld [vmem:[%s6 + $0x8] sm:$0xf]
    %v211 = vld [vmem:[%s6 + $0xc] sm:$0xf]
    %v212 = vld [vmem:[%s6 + $0x10] sm:$0xf]
    %v213 = vld [vmem:[%s6 + $0x14] sm:$0xf]
    %v214 = vld [vmem:[%s6 + $0x18] sm:$0xf]
    %v215 = vld [vmem:[%s6 + $0x1c] sm:$0xf]
    %v216 = vpack.c.bf16 %v207, %v207
    %v217 = vlaneseq
    %v218 = vshrl.u32 %v217, 7
    %v219 = vsub.s32 2, %v218
    %v220 = vrot.slane %v70, %v219
    %v229 = vunpack.c.l.b16 %v208
    %v230 = vunpack.c.l.b16 %v209
    %v231 = vunpack.c.l.b16 %v210
    %v232 = vunpack.c.l.b16 %v211
    %v233 = vunpack.c.l.b16 %v212
    %v234 = vunpack.c.l.b16 %v213
    %v235 = vunpack.c.l.b16 %v214
    %v236 = vunpack.c.l.b16 %v215
    %v237 = vpack.c.b16 %v230, %v229
    %v238 = vpack.c.b16 %v232, %v231
    %v239 = vpack.c.b16 %v234, %v233
    %v240 = vpack.c.b16 %v236, %v235
    %vm245 = vcmask 523264
    %v247 = vsel %vm245, %v216, 0
    %249 = vmatprep.subr.bf16.mxu0 0
    %250 = vmatpush1.bf16.msra.mxu0 %v237
    %251 = vmatprep.subr.bf16.mxu0 0
    %252 = vmatpush1.bf16.msra.mxu0 %v238
    %253 = vmatprep.subr.bf16.mxu0 0
    %254 = vmatpush1.bf16.msra.mxu0 %v239
    %255 = vmatprep.subr.bf16.mxu0 0
    %256 = vmatpush1.bf16.msra.mxu0 %v240
    %257 = vmatprep.subr.bf16.mxu0 0
    %258 = vmatpush1.bf16.msra.mxu0 0
    %259 = vmatprep.subr.bf16.mxu0 0
    %260 = vmatpush1.bf16.msra.mxu0 0
    %261 = vmatprep.subr.bf16.mxu0 0
    %262 = vmatpush1.bf16.msra.mxu0 0
    %263 = vmatprep.subr.bf16.mxu0 0
    %264 = vmatpush1.bf16.msra.mxu0 0
    %265 = vmatprep.subr.bf16.mxu0 0
    %266 = vmatpush1.bf16.msra.mxu0 0
    %267 = vmatprep.subr.bf16.mxu0 0
    %268 = vmatpush1.bf16.msra.mxu0 0
    %269 = vmatprep.subr.bf16.mxu0 0
    %270 = vmatpush1.bf16.msra.mxu0 0
    %271 = vmatprep.subr.bf16.mxu0 0
    %272 = vmatpush1.bf16.msra.mxu0 0
    %273 = vmatprep.subr.bf16.mxu0 0
    %274 = vmatpush1.bf16.msra.mxu0 0
    %275 = vmatprep.subr.bf16.mxu0 0
    %276 = vmatpush1.bf16.msra.mxu0 0
    %277 = vmatprep.subr.bf16.mxu0 0
    %278 = vmatpush1.bf16.msra.mxu0 0
    %279 = vmatprep.subr.bf16.mxu0 0
    %280 = vmatpush1.bf16.msra.mxu0 0
    %281 = vmatprep.mubr.bf16.mxu0 0
    %282 = vmatmul.mubr.bf16.gmra.mrb[0].mxu0 %v247
    %v283 = vpop.f32.mrb[0].mxu0
    %v284 = vadd.f32 %v220, %v283
    %v285 = vpop.f32.mrb[0].mxu0
    %v286 = vpop.f32.mrb[0].mxu0
    %v287 = vpop.f32.mrb[0].mxu0
    %288 = vdwg.mxu0
    %v289 = vmax.f32 %v284, 0.0
    %v290 = vld [vmem:[%s15] sm:$0xf]
    %v291 = vld [vmem:[%s15 + $0x4] sm:$0xf]
    %v292 = vld [vmem:[%s15 + $0x8] sm:$0xf]
    %v293 = vld [vmem:[%s15 + $0xc] sm:$0xf]
    %v294 = vld [vmem:[%s15 + $0x10] sm:$0xf]
    %v295 = vld [vmem:[%s15 + $0x14] sm:$0xf]
    %v296 = vld [vmem:[%s15 + $0x18] sm:$0xf]
    %v297 = vld [vmem:[%s15 + $0x1c] sm:$0xf]
    %v298 = vpack.c.bf16 %v149, %v146
    %v299 = vld [vmem:[%s16] sm:$0x1]
    %v301 = vlaneseq
    %v302 = vshrl.u32 %v301, 7
    %v303 = vsub.s32 0, %v302
    %v304 = vrot.slane %v299, %v303
    %v314 = vunpack.c.l.b16 %v290
    %v315 = vunpack.c.l.b16 %v291
    %v316 = vunpack.c.l.b16 %v292
    %v317 = vunpack.c.l.b16 %v293
    %v318 = vunpack.c.l.b16 %v294
    %v319 = vunpack.c.l.b16 %v295
    %v320 = vunpack.c.l.b16 %v296
    %v321 = vunpack.c.l.b16 %v297
    %v322 = vpack.c.b16 %v315, %v314
    %v323 = vpack.c.b16 %v317, %v316
    %v324 = vpack.c.b16 %v319, %v318
    %v325 = vpack.c.b16 %v321, %v320
    %v331 = vsel %vm245, %v298, 0
    %333 = vmatprep.subr.bf16.mxu0 0
    %334 = vmatpush1.bf16.msra.mxu0 %v322
    %335 = vmatprep.subr.bf16.mxu0 0
    %336 = vmatpush1.bf16.msra.mxu0 %v323
    %337 = vmatprep.subr.bf16.mxu0 0
    %338 = vmatpush1.bf16.msra.mxu0 %v324
    %339 = vmatprep.subr.bf16.mxu0 0
    %340 = vmatpush1.bf16.msra.mxu0 %v325
    %341 = vmatprep.subr.bf16.mxu0 0
    %342 = vmatpush1.bf16.msra.mxu0 0
    %343 = vmatprep.subr.bf16.mxu0 0
    %344 = vmatpush1.bf16.msra.mxu0 0
    %345 = vmatprep.subr.bf16.mxu0 0
    %346 = vmatpush1.bf16.msra.mxu0 0
    %347 = vmatprep.subr.bf16.mxu0 0
    %348 = vmatpush1.bf16.msra.mxu0 0
    %349 = vmatprep.subr.bf16.mxu0 0
    %350 = vmatpush1.bf16.msra.mxu0 0
    %351 = vmatprep.subr.bf16.mxu0 0
    %352 = vmatpush1.bf16.msra.mxu0 0
    %353 = vmatprep.subr.bf16.mxu0 0
    %354 = vmatpush1.bf16.msra.mxu0 0
    %355 = vmatprep.subr.bf16.mxu0 0
    %356 = vmatpush1.bf16.msra.mxu0 0
    %357 = vmatprep.subr.bf16.mxu0 0
    %358 = vmatpush1.bf16.msra.mxu0 0
    %359 = vmatprep.subr.bf16.mxu0 0
    %360 = vmatpush1.bf16.msra.mxu0 0
    %361 = vmatprep.subr.bf16.mxu0 0
    %362 = vmatpush1.bf16.msra.mxu0 0
    %363 = vmatprep.subr.bf16.mxu0 0
    %364 = vmatpush1.bf16.msra.mxu0 0
    %365 = vmatprep.mubr.bf16.mxu0 0
    %366 = vmatmul.mubr.bf16.gmra.mrb[0].mxu0 %v331
    %v367 = vpop.f32.mrb[0].mxu0
    %v368 = vadd.f32 %v304, %v367
    %v369 = vpop.f32.mrb[0].mxu0
    %v370 = vpop.f32.mrb[0].mxu0
    %v371 = vadd.f32 %v304, %v370
    %v372 = vpop.f32.mrb[0].mxu0
    %373 = vdwg.mxu0
    %s374 = scalar_lea.vmem %s15, 32
    %v375 = vld [vmem:[%s374] sm:$0xf]
    %v376 = vld [vmem:[%s374 + $0x4] sm:$0xf]
    %v377 = vld [vmem:[%s374 + $0x8] sm:$0xf]
    %v378 = vld [vmem:[%s374 + $0xc] sm:$0xf]
    %v379 = vld [vmem:[%s374 + $0x10] sm:$0xf]
    %v380 = vld [vmem:[%s374 + $0x14] sm:$0xf]
    %v381 = vld [vmem:[%s374 + $0x18] sm:$0xf]
    %v382 = vld [vmem:[%s374 + $0x1c] sm:$0xf]
    %s383 = scalar_lea.vmem %s16, 1
    %v384 = vld [vmem:[%s383] sm:$0x1]
    %v386 = vlaneseq
    %v387 = vshrl.u32 %v386, 7
    %v388 = vsub.s32 0, %v387
    %v389 = vrot.slane %v384, %v388
    %v399 = vunpack.c.l.b16 %v375
    %v400 = vunpack.c.l.b16 %v376
    %v401 = vunpack.c.l.b16 %v377
    %v402 = vunpack.c.l.b16 %v378
    %v403 = vunpack.c.l.b16 %v379
    %v404 = vunpack.c.l.b16 %v380
    %v405 = vunpack.c.l.b16 %v381
    %v406 = vunpack.c.l.b16 %v382
    %v407 = vpack.c.b16 %v400, %v399
    %v408 = vpack.c.b16 %v402, %v401
    %v409 = vpack.c.b16 %v404, %v403
    %v410 = vpack.c.b16 %v406, %v405
    %415 = vmatprep.subr.bf16.mxu0 0
    %416 = vmatpush1.bf16.msra.mxu0 %v407
    %417 = vmatprep.subr.bf16.mxu0 0
    %418 = vmatpush1.bf16.msra.mxu0 %v408
    %419 = vmatprep.subr.bf16.mxu0 0
    %420 = vmatpush1.bf16.msra.mxu0 %v409
    %421 = vmatprep.subr.bf16.mxu0 0
    %422 = vmatpush1.bf16.msra.mxu0 %v410
    %423 = vmatprep.subr.bf16.mxu0 0
    %424 = vmatpush1.bf16.msra.mxu0 0
    %425 = vmatprep.subr.bf16.mxu0 0
    %426 = vmatpush1.bf16.msra.mxu0 0
    %427 = vmatprep.subr.bf16.mxu0 0
    %428 = vmatpush1.bf16.msra.mxu0 0
    %429 = vmatprep.subr.bf16.mxu0 0
    %430 = vmatpush1.bf16.msra.mxu0 0
    %431 = vmatprep.subr.bf16.mxu0 0
    %432 = vmatpush1.bf16.msra.mxu0 0
    %433 = vmatprep.subr.bf16.mxu0 0
    %434 = vmatpush1.bf16.msra.mxu0 0
    %435 = vmatprep.subr.bf16.mxu0 0
    %436 = vmatpush1.bf16.msra.mxu0 0
    %437 = vmatprep.subr.bf16.mxu0 0
    %438 = vmatpush1.bf16.msra.mxu0 0
    %439 = vmatprep.subr.bf16.mxu0 0
    %440 = vmatpush1.bf16.msra.mxu0 0
    %441 = vmatprep.subr.bf16.mxu0 0
    %442 = vmatpush1.bf16.msra.mxu0 0
    %443 = vmatprep.subr.bf16.mxu0 0
    %444 = vmatpush1.bf16.msra.mxu0 0
    %445 = vmatprep.subr.bf16.mxu0 0
    %446 = vmatpush1.bf16.msra.mxu0 0
    %447 = vmatprep.mubr.bf16.mxu0 0
    %448 = vmatmul.mubr.bf16.gmra.mrb[0].mxu0 %v331
    %v449 = vpop.f32.mrb[0].mxu0
    %v450 = vadd.f32 %v389, %v449
    %v451 = vpop.f32.mrb[0].mxu0
    %v452 = vpop.f32.mrb[0].mxu0
    %v453 = vadd.f32 %v389, %v452
    %v454 = vpop.f32.mrb[0].mxu0
    %455 = vdwg.mxu0
    %s456 = scalar_lea.vmem %s15, 64
    %v457 = vld [vmem:[%s456] sm:$0xf]
    %v458 = vld [vmem:[%s456 + $0x4] sm:$0xf]
    %v459 = vld [vmem:[%s456 + $0x8] sm:$0xf]
    %v460 = vld [vmem:[%s456 + $0xc] sm:$0xf]
    %v461 = vld [vmem:[%s456 + $0x10] sm:$0xf]
    %v462 = vld [vmem:[%s456 + $0x14] sm:$0xf]
    %v463 = vld [vmem:[%s456 + $0x18] sm:$0xf]
    %v464 = vld [vmem:[%s456 + $0x1c] sm:$0xf]
    %s465 = scalar_lea.vmem %s16, 2
    %v466 = vld [vmem:[%s465] sm:$0x1]
    %v468 = vlaneseq
    %v469 = vshrl.u32 %v468, 7
    %v470 = vsub.s32 0, %v469
    %v471 = vrot.slane %v466, %v470
    %v481 = vunpack.c.l.b16 %v457
    %v482 = vunpack.c.l.b16 %v458
    %v483 = vunpack.c.l.b16 %v459
    %v484 = vunpack.c.l.b16 %v460
    %v485 = vunpack.c.l.b16 %v461
    %v486 = vunpack.c.l.b16 %v462
    %v487 = vunpack.c.l.b16 %v463
    %v488 = vunpack.c.l.b16 %v464
    %v489 = vpack.c.b16 %v482, %v481
    %v490 = vpack.c.b16 %v484, %v483
    %v491 = vpack.c.b16 %v486, %v485
    %v492 = vpack.c.b16 %v488, %v487
    %497 = vmatprep.subr.bf16.mxu0 0
    %498 = vmatpush1.bf16.msra.mxu0 %v489
    %499 = vmatprep.subr.bf16.mxu0 0
    %500 = vmatpush1.bf16.msra.mxu0 %v490
    %501 = vmatprep.subr.bf16.mxu0 0
    %502 = vmatpush1.bf16.msra.mxu0 %v491
    %503 = vmatprep.subr.bf16.mxu0 0
    %504 = vmatpush1.bf16.msra.mxu0 %v492
    %505 = vmatprep.subr.bf16.mxu0 0
    %506 = vmatpush1.bf16.msra.mxu0 0
    %507 = vmatprep.subr.bf16.mxu0 0
    %508 = vmatpush1.bf16.msra.mxu0 0
    %509 = vmatprep.subr.bf16.mxu0 0
    %510 = vmatpush1.bf16.msra.mxu0 0
    %511 = vmatprep.subr.bf16.mxu0 0
    %512 = vmatpush1.bf16.msra.mxu0 0
    %513 = vmatprep.subr.bf16.mxu0 0
    %514 = vmatpush1.bf16.msra.mxu0 0
    %515 = vmatprep.subr.bf16.mxu0 0
    %516 = vmatpush1.bf16.msra.mxu0 0
    %517 = vmatprep.subr.bf16.mxu0 0
    %518 = vmatpush1.bf16.msra.mxu0 0
    %519 = vmatprep.subr.bf16.mxu0 0
    %520 = vmatpush1.bf16.msra.mxu0 0
    %521 = vmatprep.subr.bf16.mxu0 0
    %522 = vmatpush1.bf16.msra.mxu0 0
    %523 = vmatprep.subr.bf16.mxu0 0
    %524 = vmatpush1.bf16.msra.mxu0 0
    %525 = vmatprep.subr.bf16.mxu0 0
    %526 = vmatpush1.bf16.msra.mxu0 0
    %527 = vmatprep.subr.bf16.mxu0 0
    %528 = vmatpush1.bf16.msra.mxu0 0
    %529 = vmatprep.mubr.bf16.mxu0 0
    %530 = vmatmul.mubr.bf16.gmra.mrb[0].mxu0 %v331
    %v531 = vpop.f32.mrb[0].mxu0
    %v532 = vadd.f32 %v471, %v531
    %v533 = vpop.f32.mrb[0].mxu0
    %v534 = vpop.f32.mrb[0].mxu0
    %v535 = vadd.f32 %v471, %v534
    %v536 = vpop.f32.mrb[0].mxu0
    %537 = vdwg.mxu0
    %s538 = scalar_lea.vmem %s15, 96
    %v539 = vld [vmem:[%s538] sm:$0xf]
    %v540 = vld [vmem:[%s538 + $0x4] sm:$0xf]
    %v541 = vld [vmem:[%s538 + $0x8] sm:$0xf]
    %v542 = vld [vmem:[%s538 + $0xc] sm:$0xf]
    %v543 = vld [vmem:[%s538 + $0x10] sm:$0xf]
    %v544 = vld [vmem:[%s538 + $0x14] sm:$0xf]
    %v545 = vld [vmem:[%s538 + $0x18] sm:$0xf]
    %v546 = vld [vmem:[%s538 + $0x1c] sm:$0xf]
    %s547 = scalar_lea.vmem %s16, 3
    %v548 = vld [vmem:[%s547] sm:$0x1]
    %v550 = vlaneseq
    %v551 = vshrl.u32 %v550, 7
    %v552 = vsub.s32 0, %v551
    %v553 = vrot.slane %v548, %v552
    %v563 = vunpack.c.l.b16 %v539
    %v564 = vunpack.c.l.b16 %v540
    %v565 = vunpack.c.l.b16 %v541
    %v566 = vunpack.c.l.b16 %v542
    %v567 = vunpack.c.l.b16 %v543
    %v568 = vunpack.c.l.b16 %v544
    %v569 = vunpack.c.l.b16 %v545
    %v570 = vunpack.c.l.b16 %v546
    %v571 = vpack.c.b16 %v564, %v563
    %v572 = vpack.c.b16 %v566, %v565
    %v573 = vpack.c.b16 %v568, %v567
    %v574 = vpack.c.b16 %v570, %v569
    %579 = vmatprep.subr.bf16.mxu0 0
    %580 = vmatpush1.bf16.msra.mxu0 %v571
    %581 = vmatprep.subr.bf16.mxu0 0
    %582 = vmatpush1.bf16.msra.mxu0 %v572
    %583 = vmatprep.subr.bf16.mxu0 0
    %584 = vmatpush1.bf16.msra.mxu0 %v573
    %585 = vmatprep.subr.bf16.mxu0 0
    %586 = vmatpush1.bf16.msra.mxu0 %v574
    %587 = vmatprep.subr.bf16.mxu0 0
    %588 = vmatpush1.bf16.msra.mxu0 0
    %589 = vmatprep.subr.bf16.mxu0 0
    %590 = vmatpush1.bf16.msra.mxu0 0
    %591 = vmatprep.subr.bf16.mxu0 0
    %592 = vmatpush1.bf16.msra.mxu0 0
    %593 = vmatprep.subr.bf16.mxu0 0
    %594 = vmatpush1.bf16.msra.mxu0 0
    %595 = vmatprep.subr.bf16.mxu0 0
    %596 = vmatpush1.bf16.msra.mxu0 0
    %597 = vmatprep.subr.bf16.mxu0 0
    %598 = vmatpush1.bf16.msra.mxu0 0
    %599 = vmatprep.subr.bf16.mxu0 0
    %600 = vmatpush1.bf16.msra.mxu0 0
    %601 = vmatprep.subr.bf16.mxu0 0
    %602 = vmatpush1.bf16.msra.mxu0 0
    %603 = vmatprep.subr.bf16.mxu0 0
    %604 = vmatpush1.bf16.msra.mxu0 0
    %605 = vmatprep.subr.bf16.mxu0 0
    %606 = vmatpush1.bf16.msra.mxu0 0
    %607 = vmatprep.subr.bf16.mxu0 0
    %608 = vmatpush1.bf16.msra.mxu0 0
    %609 = vmatprep.subr.bf16.mxu0 0
    %610 = vmatpush1.bf16.msra.mxu0 0
    %611 = vmatprep.mubr.bf16.mxu0 0
    %612 = vmatmul.mubr.bf16.gmra.mrb[0].mxu0 %v331
    %v613 = vpop.f32.mrb[0].mxu0
    %v614 = vadd.f32 %v553, %v613
    %v615 = vpop.f32.mrb[0].mxu0
    %v616 = vpop.f32.mrb[0].mxu0
    %v617 = vadd.f32 %v553, %v616
    %v618 = vpop.f32.mrb[0].mxu0
    %619 = vdwg.mxu0
    %v620 = vld [vmem:[%s1] sm:$0x3f]
    %v621 = vld [vmem:[%s7] sm:$0xf]
    %v622 = vld [vmem:[%s7 + $0x4] sm:$0xf]
    %v623 = vld [vmem:[%s7 + $0x8] sm:$0xf]
    %v624 = vld [vmem:[%s7 + $0xc] sm:$0xf]
    %v625 = vld [vmem:[%s7 + $0x10] sm:$0xf]
    %v626 = vld [vmem:[%s7 + $0x14] sm:$0xf]
    %v627 = vld [vmem:[%s7 + $0x18] sm:$0x1]
    %v628 = vpack.c.bf16 %v620, %v620
    %v629 = vlaneseq
    %v630 = vshrl.u32 %v629, 7
    %v631 = vsub.s32 3, %v630
    %v632 = vrot.slane %v70, %v631
    %v640 = vunpack.c.l.b16 %v621
    %v641 = vunpack.c.l.b16 %v622
    %v642 = vunpack.c.l.b16 %v623
    %v643 = vunpack.c.l.b16 %v624
    %v644 = vunpack.c.l.b16 %v625
    %v645 = vunpack.c.l.b16 %v626
    %v646 = vunpack.c.l.b16 %v627
    %v647 = vpack.c.b16 %v641, %v640
    %v648 = vpack.c.b16 %v643, %v642
    %v649 = vpack.c.b16 %v645, %v644
    %v650 = vpack.c.b16 %v646, %v646
    %vm654 = vcmask 408576
    %v656 = vsel %vm654, %v628, 0
    %vm658 = vcmask 1040384
    %v660 = vsel %vm658, %v650, 0
    %662 = vmatprep.subr.bf16.mxu0 0
    %663 = vmatpush1.bf16.msra.mxu0 %v647
    %664 = vmatprep.subr.bf16.mxu0 0
    %665 = vmatpush1.bf16.msra.mxu0 %v648
    %666 = vmatprep.subr.bf16.mxu0 0
    %667 = vmatpush1.bf16.msra.mxu0 %v649
    %668 = vmatprep.subr.bf16.mxu0 0
    %669 = vmatpush1.bf16.msra.mxu0 %v660
    %670 = vmatprep.subr.bf16.mxu0 0
    %671 = vmatpush1.bf16.msra.mxu0 0
    %672 = vmatprep.subr.bf16.mxu0 0
    %673 = vmatpush1.bf16.msra.mxu0 0
    %674 = vmatprep.subr.bf16.mxu0 0
    %675 = vmatpush1.bf16.msra.mxu0 0
    %676 = vmatprep.subr.bf16.mxu0 0
    %677 = vmatpush1.bf16.msra.mxu0 0
    %678 = vmatprep.subr.bf16.mxu0 0
    %679 = vmatpush1.bf16.msra.mxu0 0
    %680 = vmatprep.subr.bf16.mxu0 0
    %681 = vmatpush1.bf16.msra.mxu0 0
    %682 = vmatprep.subr.bf16.mxu0 0
    %683 = vmatpush1.bf16.msra.mxu0 0
    %684 = vmatprep.subr.bf16.mxu0 0
    %685 = vmatpush1.bf16.msra.mxu0 0
    %686 = vmatprep.subr.bf16.mxu0 0
    %687 = vmatpush1.bf16.msra.mxu0 0
    %688 = vmatprep.subr.bf16.mxu0 0
    %689 = vmatpush1.bf16.msra.mxu0 0
    %690 = vmatprep.subr.bf16.mxu0 0
    %691 = vmatpush1.bf16.msra.mxu0 0
    %692 = vmatprep.subr.bf16.mxu0 0
    %693 = vmatpush1.bf16.msra.mxu0 0
    %694 = vmatprep.mubr.bf16.mxu0 0
    %695 = vmatmul.mubr.bf16.gmra.mrb[0].mxu0 %v656
    %v696 = vpop.f32.mrb[0].mxu0
    %v697 = vadd.f32 %v632, %v696
    %v698 = vpop.f32.mrb[0].mxu0
    %v699 = vpop.f32.mrb[0].mxu0
    %v700 = vpop.f32.mrb[0].mxu0
    %701 = vdwg.mxu0
    %v702 = vtanh.pop %v697
    %v703 = vld [vmem:[%s10] sm:$0xf]
    %v704 = vld [vmem:[%s10 + $0x4] sm:$0xf]
    %v705 = vld [vmem:[%s11] sm:$0xf]
    %v706 = vld [vmem:[%s11 + $0x4] sm:$0xf]
    %v707 = vld [vmem:[%s11 + $0x8] sm:$0xf]
    %v708 = vld [vmem:[%s11 + $0xc] sm:$0xf]
    %v709 = vld [vmem:[%s11 + $0x10] sm:$0xf]
    %v710 = vld [vmem:[%s11 + $0x14] sm:$0xf]
    %v711 = vld [vmem:[%s11 + $0x18] sm:$0xf]
    %v712 = vld [vmem:[%s11 + $0x1c] sm:$0xf]
    %v713 = vpack.c.bf16 %v702, %v702
    %v714 = vlaneseq
    %v715 = vshrl.u32 %v714, 7
    %v716 = vsub.s32 7, %v715
    %v717 = vrot.slane %v70, %v716
    %v720 = vunpack.c.l.b16 %v703
    %v721 = vunpack.c.l.b16 %v704
    %v722 = vpack.c.b16 %v721, %v720
    %vm724 = vcmask 130048
    %v726 = vsel %vm724, %v713, 0
    %728 = vmatprep.subr.bf16.mxu0 0
    %729 = vmatpush1.bf16.msra.mxu0 %v722
    %730 = vmatprep.subr.bf16.mxu0 0
    %731 = vmatpush1.bf16.msra.mxu0 0
    %732 = vmatprep.subr.bf16.mxu0 0
    %733 = vmatpush1.bf16.msra.mxu0 0
    %734 = vmatprep.subr.bf16.mxu0 0
    %735 = vmatpush1.bf16.msra.mxu0 0
    %736 = vmatprep.subr.bf16.mxu0 0
    %737 = vmatpush1.bf16.msra.mxu0 0
    %738 = vmatprep.subr.bf16.mxu0 0
    %739 = vmatpush1.bf16.msra.mxu0 0
    %740 = vmatprep.subr.bf16.mxu0 0
    %741 = vmatpush1.bf16.msra.mxu0 0
    %742 = vmatprep.subr.bf16.mxu0 0
    %743 = vmatpush1.bf16.msra.mxu0 0
    %744 = vmatprep.subr.bf16.mxu0 0
    %745 = vmatpush1.bf16.msra.mxu0 0
    %746 = vmatprep.subr.bf16.mxu0 0
    %747 = vmatpush1.bf16.msra.mxu0 0
    %748 = vmatprep.subr.bf16.mxu0 0
    %749 = vmatpush1.bf16.msra.mxu0 0
    %750 = vmatprep.subr.bf16.mxu0 0
    %751 = vmatpush1.bf16.msra.mxu0 0
    %752 = vmatprep.subr.bf16.mxu0 0
    %753 = vmatpush1.bf16.msra.mxu0 0
    %754 = vmatprep.subr.bf16.mxu0 0
    %755 = vmatpush1.bf16.msra.mxu0 0
    %756 = vmatprep.subr.bf16.mxu0 0
    %757 = vmatpush1.bf16.msra.mxu0 0
    %758 = vmatprep.subr.bf16.mxu0 0
    %759 = vmatpush1.bf16.msra.mxu0 0
    %760 = vmatprep.mubr.bf16.mxu0 0
    %761 = vmatmul.mubr.bf16.gmra.mrb[0].mxu0 %v726
    %v762 = vpop.f32.mrb[0].mxu0
    %v763 = vadd.f32 %v717, %v762
    %v764 = vpop.f32.mrb[0].mxu0
    %v765 = vpop.f32.mrb[0].mxu0
    %v766 = vpop.f32.mrb[0].mxu0
    %767 = vdwg.mxu0
    %v768 = vtanh.pop %v763
    %v769 = vpack.c.bf16 %v768, %v768
    %v770 = vlaneseq
    %v771 = vshrl.u32 %v770, 7
    %v772 = vsub.s32 0, %v771
    %v773 = vrot.slane %v71, %v772
    %v782 = vunpack.c.l.b16 %v705
    %v783 = vunpack.c.l.b16 %v706
    %v784 = vunpack.c.l.b16 %v707
    %v785 = vunpack.c.l.b16 %v708
    %v786 = vunpack.c.l.b16 %v709
    %v787 = vunpack.c.l.b16 %v710
    %v788 = vunpack.c.l.b16 %v711
    %v789 = vunpack.c.l.b16 %v712
    %v790 = vpack.c.b16 %v783, %v782
    %v791 = vpack.c.b16 %v785, %v784
    %v792 = vpack.c.b16 %v787, %v786
    %v793 = vpack.c.b16 %v789, %v788
    %v799 = vsel %vm245, %v769, 0
    %801 = vmatprep.subr.bf16.mxu0 0
    %802 = vmatpush1.bf16.msra.mxu0 %v790
    %803 = vmatprep.subr.bf16.mxu0 0
    %804 = vmatpush1.bf16.msra.mxu0 %v791
    %805 = vmatprep.subr.bf16.mxu0 0
    %806 = vmatpush1.bf16.msra.mxu0 %v792
    %807 = vmatprep.subr.bf16.mxu0 0
    %808 = vmatpush1.bf16.msra.mxu0 %v793
    %809 = vmatprep.subr.bf16.mxu0 0
    %810 = vmatpush1.bf16.msra.mxu0 0
    %811 = vmatprep.subr.bf16.mxu0 0
    %812 = vmatpush1.bf16.msra.mxu0 0
    %813 = vmatprep.subr.bf16.mxu0 0
    %814 = vmatpush1.bf16.msra.mxu0 0
    %815 = vmatprep.subr.bf16.mxu0 0
    %816 = vmatpush1.bf16.msra.mxu0 0
    %817 = vmatprep.subr.bf16.mxu0 0
    %818 = vmatpush1.bf16.msra.mxu0 0
    %819 = vmatprep.subr.bf16.mxu0 0
    %820 = vmatpush1.bf16.msra.mxu0 0
    %821 = vmatprep.subr.bf16.mxu0 0
    %822 = vmatpush1.bf16.msra.mxu0 0
    %823 = vmatprep.subr.bf16.mxu0 0
    %824 = vmatpush1.bf16.msra.mxu0 0
    %825 = vmatprep.subr.bf16.mxu0 0
    %826 = vmatpush1.bf16.msra.mxu0 0
    %827 = vmatprep.subr.bf16.mxu0 0
    %828 = vmatpush1.bf16.msra.mxu0 0
    %829 = vmatprep.subr.bf16.mxu0 0
    %830 = vmatpush1.bf16.msra.mxu0 0
    %831 = vmatprep.subr.bf16.mxu0 0
    %832 = vmatpush1.bf16.msra.mxu0 0
    %833 = vmatprep.mubr.bf16.mxu0 0
    %834 = vmatmul.mubr.bf16.gmra.mrb[0].mxu0 %v799
    %v835 = vpop.f32.mrb[0].mxu0
    %v836 = vadd.f32 %v773, %v835
    %v837 = vpop.f32.mrb[0].mxu0
    %v838 = vpop.f32.mrb[0].mxu0
    %v839 = vpop.f32.mrb[0].mxu0
    %840 = vdwg.mxu0
    %v841 = vtanh.pop %v836
    %v842 = vlaneseq
    %v843 = vshrl.u32 %v842, 7
    %v844 = vsub.s32 1, %v843
    %v845 = vrot.slane %v71, %v844
    %v846 = vmul.f32 %v841, %v845
    %vm847 = vcmask 128000
    %v848 = vsel %vm847, %v846, 0.0
    %849 = vadd.xlane.f32.xlu0 %v848
    %v850 = vpop.xlane.xlu0 %849
    %vm851 = vcmask 1045504
    %v852 = vsel %vm851, %v850, -inf
    %v853 = vrot.slane %v852, 4
    %v854 = vmax.f32 %v852, %v853
    %v855 = vrot.slane %v854, 2
    %v856 = vmax.f32 %v854, %v855
    %v857 = vrot.slane %v856, 1
    %v858 = vmax.f32 %v856, %v857
    %v859 = vsub.f32 %v850, %v858
    %v860 = vmul.f32 %v859, 1.442695
    %v861 = vpow.pop %v860
    %v862 = vsel %vm851, %v861, 0.0
    %v863 = vrot.slane %v862, 4
    %v864 = vadd.f32 %v862, %v863
    %v865 = vrot.slane %v864, 2
    %v866 = vadd.f32 %v864, %v865
    %v867 = vrot.slane %v866, 1
    %v868 = vadd.f32 %v866, %v867
    %v869 = vrcp.pop %v868
    %v870 = vmul.f32 %v861, %v869
    %v871 = vmul.f32 %v870, %v768
    %v872 = vld [vmem:[%s2] sm:$0x1f]
    %v873 = vld [vmem:[%s8] sm:$0xf]
    %v874 = vld [vmem:[%s8 + $0x4] sm:$0xf]
    %v875 = vld [vmem:[%s9] sm:$0xf]
    %v876 = vld [vmem:[%s9 + $0x4] sm:$0xf]
    %v877 = vld [vmem:[%s9 + $0x8] sm:$0xf]
    %v878 = vld [vmem:[%s9 + $0xc] sm:$0xf]
    %v879 = vld [vmem:[%s9 + $0x10] sm:$0xf]
    %v880 = vld [vmem:[%s9 + $0x14] sm:$0xf]
    %v881 = vld [vmem:[%s9 + $0x18] sm:$0xf]
    %v882 = vld [vmem:[%s9 + $0x1c] sm:$0xf]
    %v883 = vpack.c.bf16 %v872, %v872
    %v884 = vlaneseq
    %v885 = vshrl.u32 %v884, 7
    %v886 = vsub.s32 4, %v885
    %v887 = vrot.slane %v70, %v886
    %v890 = vunpack.c.l.b16 %v873
    %v891 = vunpack.c.l.b16 %v874
    %v892 = vpack.c.b16 %v891, %v890
    %v895 = vsel %vm724, %v883, 0
    %897 = vmatprep.subr.bf16.mxu0 0
    %898 = vmatpush1.bf16.msra.mxu0 %v892
    %899 = vmatprep.subr.bf16.mxu0 0
    %900 = vmatpush1.bf16.msra.mxu0 0
    %901 = vmatprep.subr.bf16.mxu0 0
    %902 = vmatpush1.bf16.msra.mxu0 0
    %903 = vmatprep.subr.bf16.mxu0 0
    %904 = vmatpush1.bf16.msra.mxu0 0
    %905 = vmatprep.subr.bf16.mxu0 0
    %906 = vmatpush1.bf16.msra.mxu0 0
    %907 = vmatprep.subr.bf16.mxu0 0
    %908 = vmatpush1.bf16.msra.mxu0 0
    %909 = vmatprep.subr.bf16.mxu0 0
    %910 = vmatpush1.bf16.msra.mxu0 0
    %911 = vmatprep.subr.bf16.mxu0 0
    %912 = vmatpush1.bf16.msra.mxu0 0
    %913 = vmatprep.subr.bf16.mxu0 0
    %914 = vmatpush1.bf16.msra.mxu0 0
    %915 = vmatprep.subr.bf16.mxu0 0
    %916 = vmatpush1.bf16.msra.mxu0 0
    %917 = vmatprep.subr.bf16.mxu0 0
    %918 = vmatpush1.bf16.msra.mxu0 0
    %919 = vmatprep.subr.bf16.mxu0 0
    %920 = vmatpush1.bf16.msra.mxu0 0
    %921 = vmatprep.subr.bf16.mxu0 0
    %922 = vmatpush1.bf16.msra.mxu0 0
    %923 = vmatprep.subr.bf16.mxu0 0
    %924 = vmatpush1.bf16.msra.mxu0 0
    %925 = vmatprep.subr.bf16.mxu0 0
    %926 = vmatpush1.bf16.msra.mxu0 0
    %927 = vmatprep.subr.bf16.mxu0 0
    %928 = vmatpush1.bf16.msra.mxu0 0
    %929 = vmatprep.mubr.bf16.mxu0 0
    %930 = vmatmul.mubr.bf16.gmra.mrb[0].mxu0 %v895
    %v931 = vpop.f32.mrb[0].mxu0
    %v932 = vadd.f32 %v887, %v931
    %v933 = vpop.f32.mrb[0].mxu0
    %v934 = vpop.f32.mrb[0].mxu0
    %v935 = vpop.f32.mrb[0].mxu0
    %936 = vdwg.mxu0
    %v937 = vtanh.pop %v932
    %v938 = vpack.c.bf16 %v937, %v937
    %v939 = vlaneseq
    %v940 = vshrl.u32 %v939, 7
    %v941 = vsub.s32 5, %v940
    %v942 = vrot.slane %v70, %v941
    %v951 = vunpack.c.l.b16 %v875
    %v952 = vunpack.c.l.b16 %v876
    %v953 = vunpack.c.l.b16 %v877
    %v954 = vunpack.c.l.b16 %v878
    %v955 = vunpack.c.l.b16 %v879
    %v956 = vunpack.c.l.b16 %v880
    %v957 = vunpack.c.l.b16 %v881
    %v958 = vunpack.c.l.b16 %v882
    %v959 = vpack.c.b16 %v952, %v951
    %v960 = vpack.c.b16 %v954, %v953
    %v961 = vpack.c.b16 %v956, %v955
    %v962 = vpack.c.b16 %v958, %v957
    %v968 = vsel %vm245, %v938, 0
    %970 = vmatprep.subr.bf16.mxu0 0
    %971 = vmatpush1.bf16.msra.mxu0 %v959
    %972 = vmatprep.subr.bf16.mxu0 0
    %973 = vmatpush1.bf16.msra.mxu0 %v960
    %974 = vmatprep.subr.bf16.mxu0 0
    %975 = vmatpush1.bf16.msra.mxu0 %v961
    %976 = vmatprep.subr.bf16.mxu0 0
    %977 = vmatpush1.bf16.msra.mxu0 %v962
    %978 = vmatprep.subr.bf16.mxu0 0
    %979 = vmatpush1.bf16.msra.mxu0 0
    %980 = vmatprep.subr.bf16.mxu0 0
    %981 = vmatpush1.bf16.msra.mxu0 0
    %982 = vmatprep.subr.bf16.mxu0 0
    %983 = vmatpush1.bf16.msra.mxu0 0
    %984 = vmatprep.subr.bf16.mxu0 0
    %985 = vmatpush1.bf16.msra.mxu0 0
    %986 = vmatprep.subr.bf16.mxu0 0
    %987 = vmatpush1.bf16.msra.mxu0 0
    %988 = vmatprep.subr.bf16.mxu0 0
    %989 = vmatpush1.bf16.msra.mxu0 0
    %990 = vmatprep.subr.bf16.mxu0 0
    %991 = vmatpush1.bf16.msra.mxu0 0
    %992 = vmatprep.subr.bf16.mxu0 0
    %993 = vmatpush1.bf16.msra.mxu0 0
    %994 = vmatprep.subr.bf16.mxu0 0
    %995 = vmatpush1.bf16.msra.mxu0 0
    %996 = vmatprep.subr.bf16.mxu0 0
    %997 = vmatpush1.bf16.msra.mxu0 0
    %998 = vmatprep.subr.bf16.mxu0 0
    %999 = vmatpush1.bf16.msra.mxu0 0
    %1000 = vmatprep.subr.bf16.mxu0 0
    %1001 = vmatpush1.bf16.msra.mxu0 0
    %1002 = vmatprep.mubr.bf16.mxu0 0
    %1003 = vmatmul.mubr.bf16.gmra.mrb[0].mxu0 %v968
    %v1004 = vpop.f32.mrb[0].mxu0
    %v1005 = vadd.f32 %v942, %v1004
    %v1006 = vpop.f32.mrb[0].mxu0
    %v1007 = vpop.f32.mrb[0].mxu0
    %v1008 = vpop.f32.mrb[0].mxu0
    %1009 = vdwg.mxu0
    %v1010 = vtanh.pop %v1005
    %v1011 = vlaneseq
    %v1012 = vshrl.u32 %v1011, 7
    %v1013 = vsub.s32 6, %v1012
    %v1014 = vrot.slane %v70, %v1013
    %v1015 = vmul.f32 %v1010, %v1014
    %vm1016 = vcmask 258048
    %v1017 = vsel %vm1016, %v1015, 0.0
    %1018 = vadd.xlane.f32.xlu0 %v1017
    %v1019 = vpop.xlane.xlu0 %1018
    %vm1020 = vcmask 1044480
    %v1021 = vsel %vm1020, %v1019, -inf
    %v1022 = vrot.slane %v1021, 4
    %v1023 = vmax.f32 %v1021, %v1022
    %v1024 = vrot.slane %v1023, 2
    %v1025 = vmax.f32 %v1023, %v1024
    %v1026 = vrot.slane %v1025, 1
    %v1027 = vmax.f32 %v1025, %v1026
    %v1028 = vsub.f32 %v1019, %v1027
    %v1029 = vmul.f32 %v1028, 1.442695
    %v1030 = vpow.pop %v1029
    %v1031 = vsel %vm1020, %v1030, 0.0
    %v1032 = vrot.slane %v1031, 4
    %v1033 = vadd.f32 %v1031, %v1032
    %v1034 = vrot.slane %v1033, 2
    %v1035 = vadd.f32 %v1033, %v1034
    %v1036 = vrot.slane %v1035, 1
    %v1037 = vadd.f32 %v1035, %v1036
    %v1038 = vrcp.pop %v1037
    %v1039 = vmul.f32 %v1030, %v1038
    %v1040 = vmul.f32 %v1039, %v937
    %v1041 = vlaneseq
    %v1042 = vshrl.u32 %v1041, 7
    %v1043 = vsub.s32 0, %v1042
    %v1044 = vrot.slane %v289, %v1043
    %v1045 = vadd.f32 %v871, %v1044
    %v1046 = vld [vmem:[%s12] sm:$0xf]
    %v1047 = vld [vmem:[%s12 + $0x4] sm:$0xf]
    %v1048 = vld [vmem:[%s12 + $0x8] sm:$0xf]
    %v1049 = vld [vmem:[%s12 + $0xc] sm:$0xf]
    %v1050 = vld [vmem:[%s12 + $0x10] sm:$0xf]
    %v1051 = vld [vmem:[%s12 + $0x14] sm:$0xf]
    %v1052 = vld [vmem:[%s12 + $0x18] sm:$0xf]
    %v1053 = vld [vmem:[%s12 + $0x1c] sm:$0xf]
    %v1054 = vpack.c.bf16 %v1040, %v1040
    %v1055 = vld [vmem:[%s13] sm:$0x1]
    %v1057 = vlaneseq
    %v1058 = vshrl.u32 %v1057, 7
    %v1059 = vsub.s32 0, %v1058
    %v1060 = vrot.slane %v1055, %v1059
    %v1070 = vunpack.c.l.b16 %v1046
    %v1071 = vunpack.c.l.b16 %v1047
    %v1072 = vunpack.c.l.b16 %v1048
    %v1073 = vunpack.c.l.b16 %v1049
    %v1074 = vunpack.c.l.b16 %v1050
    %v1075 = vunpack.c.l.b16 %v1051
    %v1076 = vunpack.c.l.b16 %v1052
    %v1077 = vunpack.c.l.b16 %v1053
    %v1078 = vpack.c.b16 %v1071, %v1070
    %v1079 = vpack.c.b16 %v1073, %v1072
    %v1080 = vpack.c.b16 %v1075, %v1074
    %v1081 = vpack.c.b16 %v1077, %v1076
    %v1087 = vsel %vm245, %v1054, 0
    %1089 = vmatprep.subr.bf16.mxu0 0
    %1090 = vmatpush1.bf16.msra.mxu0 %v1078
    %1091 = vmatprep.subr.bf16.mxu0 0
    %1092 = vmatpush1.bf16.msra.mxu0 %v1079
    %1093 = vmatprep.subr.bf16.mxu0 0
    %1094 = vmatpush1.bf16.msra.mxu0 %v1080
    %1095 = vmatprep.subr.bf16.mxu0 0
    %1096 = vmatpush1.bf16.msra.mxu0 %v1081
    %1097 = vmatprep.subr.bf16.mxu0 0
    %1098 = vmatpush1.bf16.msra.mxu0 0
    %1099 = vmatprep.subr.bf16.mxu0 0
    %1100 = vmatpush1.bf16.msra.mxu0 0
    %1101 = vmatprep.subr.bf16.mxu0 0
    %1102 = vmatpush1.bf16.msra.mxu0 0
    %1103 = vmatprep.subr.bf16.mxu0 0
    %1104 = vmatpush1.bf16.msra.mxu0 0
    %1105 = vmatprep.subr.bf16.mxu0 0
    %1106 = vmatpush1.bf16.msra.mxu0 0
    %1107 = vmatprep.subr.bf16.mxu0 0
    %1108 = vmatpush1.bf16.msra.mxu0 0
    %1109 = vmatprep.subr.bf16.mxu0 0
    %1110 = vmatpush1.bf16.msra.mxu0 0
    %1111 = vmatprep.subr.bf16.mxu0 0
    %1112 = vmatpush1.bf16.msra.mxu0 0
    %1113 = vmatprep.subr.bf16.mxu0 0
    %1114 = vmatpush1.bf16.msra.mxu0 0
    %1115 = vmatprep.subr.bf16.mxu0 0
    %1116 = vmatpush1.bf16.msra.mxu0 0
    %1117 = vmatprep.subr.bf16.mxu0 0
    %1118 = vmatpush1.bf16.msra.mxu0 0
    %1119 = vmatprep.subr.bf16.mxu0 0
    %1120 = vmatpush1.bf16.msra.mxu0 0
    %1121 = vmatprep.mubr.bf16.mxu0 0
    %1122 = vmatmul.mubr.bf16.gmra.mrb[0].mxu0 %v1087
    %v1123 = vpop.f32.mrb[0].mxu0
    %v1124 = vadd.f32 %v1060, %v1123
    %v1125 = vpop.f32.mrb[0].mxu0
    %v1126 = vpop.f32.mrb[0].mxu0
    %v1127 = vpop.f32.mrb[0].mxu0
    %1128 = vdwg.mxu0
    %s1129 = scalar_lea.vmem %s12, 32
    %v1130 = vld [vmem:[%s1129] sm:$0xf]
    %v1131 = vld [vmem:[%s1129 + $0x4] sm:$0xf]
    %v1132 = vld [vmem:[%s1129 + $0x8] sm:$0xf]
    %v1133 = vld [vmem:[%s1129 + $0xc] sm:$0xf]
    %v1134 = vld [vmem:[%s1129 + $0x10] sm:$0xf]
    %v1135 = vld [vmem:[%s1129 + $0x14] sm:$0xf]
    %v1136 = vld [vmem:[%s1129 + $0x18] sm:$0xf]
    %v1137 = vld [vmem:[%s1129 + $0x1c] sm:$0xf]
    %s1138 = scalar_lea.vmem %s13, 1
    %v1139 = vld [vmem:[%s1138] sm:$0x1]
    %v1141 = vlaneseq
    %v1142 = vshrl.u32 %v1141, 7
    %v1143 = vsub.s32 0, %v1142
    %v1144 = vrot.slane %v1139, %v1143
    %v1154 = vunpack.c.l.b16 %v1130
    %v1155 = vunpack.c.l.b16 %v1131
    %v1156 = vunpack.c.l.b16 %v1132
    %v1157 = vunpack.c.l.b16 %v1133
    %v1158 = vunpack.c.l.b16 %v1134
    %v1159 = vunpack.c.l.b16 %v1135
    %v1160 = vunpack.c.l.b16 %v1136
    %v1161 = vunpack.c.l.b16 %v1137
    %v1162 = vpack.c.b16 %v1155, %v1154
    %v1163 = vpack.c.b16 %v1157, %v1156
    %v1164 = vpack.c.b16 %v1159, %v1158
    %v1165 = vpack.c.b16 %v1161, %v1160
    %1170 = vmatprep.subr.bf16.mxu0 0
    %1171 = vmatpush1.bf16.msra.mxu0 %v1162
    %1172 = vmatprep.subr.bf16.mxu0 0
    %1173 = vmatpush1.bf16.msra.mxu0 %v1163
    %1174 = vmatprep.subr.bf16.mxu0 0
    %1175 = vmatpush1.bf16.msra.mxu0 %v1164
    %1176 = vmatprep.subr.bf16.mxu0 0
    %1177 = vmatpush1.bf16.msra.mxu0 %v1165
    %1178 = vmatprep.subr.bf16.mxu0 0
    %1179 = vmatpush1.bf16.msra.mxu0 0
    %1180 = vmatprep.subr.bf16.mxu0 0
    %1181 = vmatpush1.bf16.msra.mxu0 0
    %1182 = vmatprep.subr.bf16.mxu0 0
    %1183 = vmatpush1.bf16.msra.mxu0 0
    %1184 = vmatprep.subr.bf16.mxu0 0
    %1185 = vmatpush1.bf16.msra.mxu0 0
    %1186 = vmatprep.subr.bf16.mxu0 0
    %1187 = vmatpush1.bf16.msra.mxu0 0
    %1188 = vmatprep.subr.bf16.mxu0 0
    %1189 = vmatpush1.bf16.msra.mxu0 0
    %1190 = vmatprep.subr.bf16.mxu0 0
    %1191 = vmatpush1.bf16.msra.mxu0 0
    %1192 = vmatprep.subr.bf16.mxu0 0
    %1193 = vmatpush1.bf16.msra.mxu0 0
    %1194 = vmatprep.subr.bf16.mxu0 0
    %1195 = vmatpush1.bf16.msra.mxu0 0
    %1196 = vmatprep.subr.bf16.mxu0 0
    %1197 = vmatpush1.bf16.msra.mxu0 0
    %1198 = vmatprep.subr.bf16.mxu0 0
    %1199 = vmatpush1.bf16.msra.mxu0 0
    %1200 = vmatprep.subr.bf16.mxu0 0
    %1201 = vmatpush1.bf16.msra.mxu0 0
    %1202 = vmatprep.mubr.bf16.mxu0 0
    %1203 = vmatmul.mubr.bf16.gmra.mrb[0].mxu0 %v1087
    %v1204 = vpop.f32.mrb[0].mxu0
    %v1205 = vadd.f32 %v1144, %v1204
    %v1206 = vpop.f32.mrb[0].mxu0
    %v1207 = vpop.f32.mrb[0].mxu0
    %v1208 = vpop.f32.mrb[0].mxu0
    %1209 = vdwg.mxu0
    %s1210 = scalar_lea.vmem %s12, 64
    %v1211 = vld [vmem:[%s1210] sm:$0xf]
    %v1212 = vld [vmem:[%s1210 + $0x4] sm:$0xf]
    %v1213 = vld [vmem:[%s1210 + $0x8] sm:$0xf]
    %v1214 = vld [vmem:[%s1210 + $0xc] sm:$0xf]
    %v1215 = vld [vmem:[%s1210 + $0x10] sm:$0xf]
    %v1216 = vld [vmem:[%s1210 + $0x14] sm:$0xf]
    %v1217 = vld [vmem:[%s1210 + $0x18] sm:$0xf]
    %v1218 = vld [vmem:[%s1210 + $0x1c] sm:$0xf]
    %s1219 = scalar_lea.vmem %s13, 2
    %v1220 = vld [vmem:[%s1219] sm:$0x1]
    %v1222 = vlaneseq
    %v1223 = vshrl.u32 %v1222, 7
    %v1224 = vsub.s32 0, %v1223
    %v1225 = vrot.slane %v1220, %v1224
    %v1235 = vunpack.c.l.b16 %v1211
    %v1236 = vunpack.c.l.b16 %v1212
    %v1237 = vunpack.c.l.b16 %v1213
    %v1238 = vunpack.c.l.b16 %v1214
    %v1239 = vunpack.c.l.b16 %v1215
    %v1240 = vunpack.c.l.b16 %v1216
    %v1241 = vunpack.c.l.b16 %v1217
    %v1242 = vunpack.c.l.b16 %v1218
    %v1243 = vpack.c.b16 %v1236, %v1235
    %v1244 = vpack.c.b16 %v1238, %v1237
    %v1245 = vpack.c.b16 %v1240, %v1239
    %v1246 = vpack.c.b16 %v1242, %v1241
    %1251 = vmatprep.subr.bf16.mxu0 0
    %1252 = vmatpush1.bf16.msra.mxu0 %v1243
    %1253 = vmatprep.subr.bf16.mxu0 0
    %1254 = vmatpush1.bf16.msra.mxu0 %v1244
    %1255 = vmatprep.subr.bf16.mxu0 0
    %1256 = vmatpush1.bf16.msra.mxu0 %v1245
    %1257 = vmatprep.subr.bf16.mxu0 0
    %1258 = vmatpush1.bf16.msra.mxu0 %v1246
    %1259 = vmatprep.subr.bf16.mxu0 0
    %1260 = vmatpush1.bf16.msra.mxu0 0
    %1261 = vmatprep.subr.bf16.mxu0 0
    %1262 = vmatpush1.bf16.msra.mxu0 0
    %1263 = vmatprep.subr.bf16.mxu0 0
    %1264 = vmatpush1.bf16.msra.mxu0 0
    %1265 = vmatprep.subr.bf16.mxu0 0
    %1266 = vmatpush1.bf16.msra.mxu0 0
    %1267 = vmatprep.subr.bf16.mxu0 0
    %1268 = vmatpush1.bf16.msra.mxu0 0
    %1269 = vmatprep.subr.bf16.mxu0 0
    %1270 = vmatpush1.bf16.msra.mxu0 0
    %1271 = vmatprep.subr.bf16.mxu0 0
    %1272 = vmatpush1.bf16.msra.mxu0 0
    %1273 = vmatprep.subr.bf16.mxu0 0
    %1274 = vmatpush1.bf16.msra.mxu0 0
    %1275 = vmatprep.subr.bf16.mxu0 0
    %1276 = vmatpush1.bf16.msra.mxu0 0
    %1277 = vmatprep.subr.bf16.mxu0 0
    %1278 = vmatpush1.bf16.msra.mxu0 0
    %1279 = vmatprep.subr.bf16.mxu0 0
    %1280 = vmatpush1.bf16.msra.mxu0 0
    %1281 = vmatprep.subr.bf16.mxu0 0
    %1282 = vmatpush1.bf16.msra.mxu0 0
    %1283 = vmatprep.mubr.bf16.mxu0 0
    %1284 = vmatmul.mubr.bf16.gmra.mrb[0].mxu0 %v1087
    %v1285 = vpop.f32.mrb[0].mxu0
    %v1286 = vadd.f32 %v1225, %v1285
    %v1287 = vpop.f32.mrb[0].mxu0
    %v1288 = vpop.f32.mrb[0].mxu0
    %v1289 = vpop.f32.mrb[0].mxu0
    %1290 = vdwg.mxu0
    %s1291 = scalar_lea.vmem %s12, 96
    %v1292 = vld [vmem:[%s1291] sm:$0xf]
    %v1293 = vld [vmem:[%s1291 + $0x4] sm:$0xf]
    %v1294 = vld [vmem:[%s1291 + $0x8] sm:$0xf]
    %v1295 = vld [vmem:[%s1291 + $0xc] sm:$0xf]
    %v1296 = vld [vmem:[%s1291 + $0x10] sm:$0xf]
    %v1297 = vld [vmem:[%s1291 + $0x14] sm:$0xf]
    %v1298 = vld [vmem:[%s1291 + $0x18] sm:$0xf]
    %v1299 = vld [vmem:[%s1291 + $0x1c] sm:$0xf]
    %s1300 = scalar_lea.vmem %s13, 3
    %v1301 = vld [vmem:[%s1300] sm:$0x1]
    %v1303 = vlaneseq
    %v1304 = vshrl.u32 %v1303, 7
    %v1305 = vsub.s32 0, %v1304
    %v1306 = vrot.slane %v1301, %v1305
    %v1316 = vunpack.c.l.b16 %v1292
    %v1317 = vunpack.c.l.b16 %v1293
    %v1318 = vunpack.c.l.b16 %v1294
    %v1319 = vunpack.c.l.b16 %v1295
    %v1320 = vunpack.c.l.b16 %v1296
    %v1321 = vunpack.c.l.b16 %v1297
    %v1322 = vunpack.c.l.b16 %v1298
    %v1323 = vunpack.c.l.b16 %v1299
    %v1324 = vpack.c.b16 %v1317, %v1316
    %v1325 = vpack.c.b16 %v1319, %v1318
    %v1326 = vpack.c.b16 %v1321, %v1320
    %v1327 = vpack.c.b16 %v1323, %v1322
    %1332 = vmatprep.subr.bf16.mxu0 0
    %1333 = vmatpush1.bf16.msra.mxu0 %v1324
    %1334 = vmatprep.subr.bf16.mxu0 0
    %1335 = vmatpush1.bf16.msra.mxu0 %v1325
    %1336 = vmatprep.subr.bf16.mxu0 0
    %1337 = vmatpush1.bf16.msra.mxu0 %v1326
    %1338 = vmatprep.subr.bf16.mxu0 0
    %1339 = vmatpush1.bf16.msra.mxu0 %v1327
    %1340 = vmatprep.subr.bf16.mxu0 0
    %1341 = vmatpush1.bf16.msra.mxu0 0
    %1342 = vmatprep.subr.bf16.mxu0 0
    %1343 = vmatpush1.bf16.msra.mxu0 0
    %1344 = vmatprep.subr.bf16.mxu0 0
    %1345 = vmatpush1.bf16.msra.mxu0 0
    %1346 = vmatprep.subr.bf16.mxu0 0
    %1347 = vmatpush1.bf16.msra.mxu0 0
    %1348 = vmatprep.subr.bf16.mxu0 0
    %1349 = vmatpush1.bf16.msra.mxu0 0
    %1350 = vmatprep.subr.bf16.mxu0 0
    %1351 = vmatpush1.bf16.msra.mxu0 0
    %1352 = vmatprep.subr.bf16.mxu0 0
    %1353 = vmatpush1.bf16.msra.mxu0 0
    %1354 = vmatprep.subr.bf16.mxu0 0
    %1355 = vmatpush1.bf16.msra.mxu0 0
    %1356 = vmatprep.subr.bf16.mxu0 0
    %1357 = vmatpush1.bf16.msra.mxu0 0
    %1358 = vmatprep.subr.bf16.mxu0 0
    %1359 = vmatpush1.bf16.msra.mxu0 0
    %1360 = vmatprep.subr.bf16.mxu0 0
    %1361 = vmatpush1.bf16.msra.mxu0 0
    %1362 = vmatprep.subr.bf16.mxu0 0
    %1363 = vmatpush1.bf16.msra.mxu0 0
    %1364 = vmatprep.mubr.bf16.mxu0 0
    %1365 = vmatmul.mubr.bf16.gmra.mrb[0].mxu0 %v1087
    %v1366 = vpop.f32.mrb[0].mxu0
    %v1367 = vadd.f32 %v1306, %v1366
    %v1368 = vpop.f32.mrb[0].mxu0
    %v1369 = vpop.f32.mrb[0].mxu0
    %v1370 = vpop.f32.mrb[0].mxu0
    %1371 = vdwg.mxu0
    %s1372 = scalar_lea.vmem %s12, 128
    %v1373 = vld [vmem:[%s1372] sm:$0xf]
    %v1374 = vld [vmem:[%s1372 + $0x4] sm:$0xf]
    %v1375 = vld [vmem:[%s1372 + $0x8] sm:$0xf]
    %v1376 = vld [vmem:[%s1372 + $0xc] sm:$0xf]
    %v1377 = vld [vmem:[%s1372 + $0x10] sm:$0xf]
    %v1378 = vld [vmem:[%s1372 + $0x14] sm:$0xf]
    %v1379 = vld [vmem:[%s1372 + $0x18] sm:$0xf]
    %v1380 = vld [vmem:[%s1372 + $0x1c] sm:$0xf]
    %v1381 = vpack.c.bf16 %v1045, %v1045
    %s1382 = scalar_lea.vmem %s13, 4
    %v1383 = vld [vmem:[%s1382] sm:$0x1]
    %v1385 = vlaneseq
    %v1386 = vshrl.u32 %v1385, 7
    %v1387 = vsub.s32 0, %v1386
    %v1388 = vrot.slane %v1383, %v1387
    %v1398 = vunpack.c.l.b16 %v1373
    %v1399 = vunpack.c.l.b16 %v1374
    %v1400 = vunpack.c.l.b16 %v1375
    %v1401 = vunpack.c.l.b16 %v1376
    %v1402 = vunpack.c.l.b16 %v1377
    %v1403 = vunpack.c.l.b16 %v1378
    %v1404 = vunpack.c.l.b16 %v1379
    %v1405 = vunpack.c.l.b16 %v1380
    %v1406 = vpack.c.b16 %v1399, %v1398
    %v1407 = vpack.c.b16 %v1401, %v1400
    %v1408 = vpack.c.b16 %v1403, %v1402
    %v1409 = vpack.c.b16 %v1405, %v1404
    %v1415 = vsel %vm245, %v1381, 0
    %1417 = vmatprep.subr.bf16.mxu0 0
    %1418 = vmatpush1.bf16.msra.mxu0 %v1406
    %1419 = vmatprep.subr.bf16.mxu0 0
    %1420 = vmatpush1.bf16.msra.mxu0 %v1407
    %1421 = vmatprep.subr.bf16.mxu0 0
    %1422 = vmatpush1.bf16.msra.mxu0 %v1408
    %1423 = vmatprep.subr.bf16.mxu0 0
    %1424 = vmatpush1.bf16.msra.mxu0 %v1409
    %1425 = vmatprep.subr.bf16.mxu0 0
    %1426 = vmatpush1.bf16.msra.mxu0 0
    %1427 = vmatprep.subr.bf16.mxu0 0
    %1428 = vmatpush1.bf16.msra.mxu0 0
    %1429 = vmatprep.subr.bf16.mxu0 0
    %1430 = vmatpush1.bf16.msra.mxu0 0
    %1431 = vmatprep.subr.bf16.mxu0 0
    %1432 = vmatpush1.bf16.msra.mxu0 0
    %1433 = vmatprep.subr.bf16.mxu0 0
    %1434 = vmatpush1.bf16.msra.mxu0 0
    %1435 = vmatprep.subr.bf16.mxu0 0
    %1436 = vmatpush1.bf16.msra.mxu0 0
    %1437 = vmatprep.subr.bf16.mxu0 0
    %1438 = vmatpush1.bf16.msra.mxu0 0
    %1439 = vmatprep.subr.bf16.mxu0 0
    %1440 = vmatpush1.bf16.msra.mxu0 0
    %1441 = vmatprep.subr.bf16.mxu0 0
    %1442 = vmatpush1.bf16.msra.mxu0 0
    %1443 = vmatprep.subr.bf16.mxu0 0
    %1444 = vmatpush1.bf16.msra.mxu0 0
    %1445 = vmatprep.subr.bf16.mxu0 0
    %1446 = vmatpush1.bf16.msra.mxu0 0
    %1447 = vmatprep.subr.bf16.mxu0 0
    %1448 = vmatpush1.bf16.msra.mxu0 0
    %1449 = vmatprep.mubr.bf16.mxu0 0
    %1450 = vmatmul.mubr.bf16.gmra.mrb[0].mxu0 %v1415
    %v1451 = vpop.f32.mrb[0].mxu0
    %v1452 = vadd.f32 %v1388, %v1451
    %v1453 = vpop.f32.mrb[0].mxu0
    %v1454 = vpop.f32.mrb[0].mxu0
    %v1455 = vpop.f32.mrb[0].mxu0
    %1456 = vdwg.mxu0
    %s1457 = scalar_lea.vmem %s12, 160
    %v1458 = vld [vmem:[%s1457] sm:$0xf]
    %v1459 = vld [vmem:[%s1457 + $0x4] sm:$0xf]
    %v1460 = vld [vmem:[%s1457 + $0x8] sm:$0xf]
    %v1461 = vld [vmem:[%s1457 + $0xc] sm:$0xf]
    %v1462 = vld [vmem:[%s1457 + $0x10] sm:$0xf]
    %v1463 = vld [vmem:[%s1457 + $0x14] sm:$0xf]
    %v1464 = vld [vmem:[%s1457 + $0x18] sm:$0xf]
    %v1465 = vld [vmem:[%s1457 + $0x1c] sm:$0xf]
    %s1466 = scalar_lea.vmem %s13, 5
    %v1467 = vld [vmem:[%s1466] sm:$0x1]
    %v1469 = vlaneseq
    %v1470 = vshrl.u32 %v1469, 7
    %v1471 = vsub.s32 0, %v1470
    %v1472 = vrot.slane %v1467, %v1471
    %v1482 = vunpack.c.l.b16 %v1458
    %v1483 = vunpack.c.l.b16 %v1459
    %v1484 = vunpack.c.l.b16 %v1460
    %v1485 = vunpack.c.l.b16 %v1461
    %v1486 = vunpack.c.l.b16 %v1462
    %v1487 = vunpack.c.l.b16 %v1463
    %v1488 = vunpack.c.l.b16 %v1464
    %v1489 = vunpack.c.l.b16 %v1465
    %v1490 = vpack.c.b16 %v1483, %v1482
    %v1491 = vpack.c.b16 %v1485, %v1484
    %v1492 = vpack.c.b16 %v1487, %v1486
    %v1493 = vpack.c.b16 %v1489, %v1488
    %1498 = vmatprep.subr.bf16.mxu0 0
    %1499 = vmatpush1.bf16.msra.mxu0 %v1490
    %1500 = vmatprep.subr.bf16.mxu0 0
    %1501 = vmatpush1.bf16.msra.mxu0 %v1491
    %1502 = vmatprep.subr.bf16.mxu0 0
    %1503 = vmatpush1.bf16.msra.mxu0 %v1492
    %1504 = vmatprep.subr.bf16.mxu0 0
    %1505 = vmatpush1.bf16.msra.mxu0 %v1493
    %1506 = vmatprep.subr.bf16.mxu0 0
    %1507 = vmatpush1.bf16.msra.mxu0 0
    %1508 = vmatprep.subr.bf16.mxu0 0
    %1509 = vmatpush1.bf16.msra.mxu0 0
    %1510 = vmatprep.subr.bf16.mxu0 0
    %1511 = vmatpush1.bf16.msra.mxu0 0
    %1512 = vmatprep.subr.bf16.mxu0 0
    %1513 = vmatpush1.bf16.msra.mxu0 0
    %1514 = vmatprep.subr.bf16.mxu0 0
    %1515 = vmatpush1.bf16.msra.mxu0 0
    %1516 = vmatprep.subr.bf16.mxu0 0
    %1517 = vmatpush1.bf16.msra.mxu0 0
    %1518 = vmatprep.subr.bf16.mxu0 0
    %1519 = vmatpush1.bf16.msra.mxu0 0
    %1520 = vmatprep.subr.bf16.mxu0 0
    %1521 = vmatpush1.bf16.msra.mxu0 0
    %1522 = vmatprep.subr.bf16.mxu0 0
    %1523 = vmatpush1.bf16.msra.mxu0 0
    %1524 = vmatprep.subr.bf16.mxu0 0
    %1525 = vmatpush1.bf16.msra.mxu0 0
    %1526 = vmatprep.subr.bf16.mxu0 0
    %1527 = vmatpush1.bf16.msra.mxu0 0
    %1528 = vmatprep.subr.bf16.mxu0 0
    %1529 = vmatpush1.bf16.msra.mxu0 0
    %1530 = vmatprep.mubr.bf16.mxu0 0
    %1531 = vmatmul.mubr.bf16.gmra.mrb[0].mxu0 %v1415
    %v1532 = vpop.f32.mrb[0].mxu0
    %v1533 = vadd.f32 %v1472, %v1532
    %v1534 = vpop.f32.mrb[0].mxu0
    %v1535 = vpop.f32.mrb[0].mxu0
    %v1536 = vpop.f32.mrb[0].mxu0
    %1537 = vdwg.mxu0
    %s1538 = scalar_lea.vmem %s12, 192
    %v1539 = vld [vmem:[%s1538] sm:$0xf]
    %v1540 = vld [vmem:[%s1538 + $0x4] sm:$0xf]
    %v1541 = vld [vmem:[%s1538 + $0x8] sm:$0xf]
    %v1542 = vld [vmem:[%s1538 + $0xc] sm:$0xf]
    %v1543 = vld [vmem:[%s1538 + $0x10] sm:$0xf]
    %v1544 = vld [vmem:[%s1538 + $0x14] sm:$0xf]
    %v1545 = vld [vmem:[%s1538 + $0x18] sm:$0xf]
    %v1546 = vld [vmem:[%s1538 + $0x1c] sm:$0xf]
    %s1547 = scalar_lea.vmem %s13, 6
    %v1548 = vld [vmem:[%s1547] sm:$0x1]
    %v1550 = vlaneseq
    %v1551 = vshrl.u32 %v1550, 7
    %v1552 = vsub.s32 0, %v1551
    %v1553 = vrot.slane %v1548, %v1552
    %v1563 = vunpack.c.l.b16 %v1539
    %v1564 = vunpack.c.l.b16 %v1540
    %v1565 = vunpack.c.l.b16 %v1541
    %v1566 = vunpack.c.l.b16 %v1542
    %v1567 = vunpack.c.l.b16 %v1543
    %v1568 = vunpack.c.l.b16 %v1544
    %v1569 = vunpack.c.l.b16 %v1545
    %v1570 = vunpack.c.l.b16 %v1546
    %v1571 = vpack.c.b16 %v1564, %v1563
    %v1572 = vpack.c.b16 %v1566, %v1565
    %v1573 = vpack.c.b16 %v1568, %v1567
    %v1574 = vpack.c.b16 %v1570, %v1569
    %1579 = vmatprep.subr.bf16.mxu0 0
    %1580 = vmatpush1.bf16.msra.mxu0 %v1571
    %1581 = vmatprep.subr.bf16.mxu0 0
    %1582 = vmatpush1.bf16.msra.mxu0 %v1572
    %1583 = vmatprep.subr.bf16.mxu0 0
    %1584 = vmatpush1.bf16.msra.mxu0 %v1573
    %1585 = vmatprep.subr.bf16.mxu0 0
    %1586 = vmatpush1.bf16.msra.mxu0 %v1574
    %1587 = vmatprep.subr.bf16.mxu0 0
    %1588 = vmatpush1.bf16.msra.mxu0 0
    %1589 = vmatprep.subr.bf16.mxu0 0
    %1590 = vmatpush1.bf16.msra.mxu0 0
    %1591 = vmatprep.subr.bf16.mxu0 0
    %1592 = vmatpush1.bf16.msra.mxu0 0
    %1593 = vmatprep.subr.bf16.mxu0 0
    %1594 = vmatpush1.bf16.msra.mxu0 0
    %1595 = vmatprep.subr.bf16.mxu0 0
    %1596 = vmatpush1.bf16.msra.mxu0 0
    %1597 = vmatprep.subr.bf16.mxu0 0
    %1598 = vmatpush1.bf16.msra.mxu0 0
    %1599 = vmatprep.subr.bf16.mxu0 0
    %1600 = vmatpush1.bf16.msra.mxu0 0
    %1601 = vmatprep.subr.bf16.mxu0 0
    %1602 = vmatpush1.bf16.msra.mxu0 0
    %1603 = vmatprep.subr.bf16.mxu0 0
    %1604 = vmatpush1.bf16.msra.mxu0 0
    %1605 = vmatprep.subr.bf16.mxu0 0
    %1606 = vmatpush1.bf16.msra.mxu0 0
    %1607 = vmatprep.subr.bf16.mxu0 0
    %1608 = vmatpush1.bf16.msra.mxu0 0
    %1609 = vmatprep.subr.bf16.mxu0 0
    %1610 = vmatpush1.bf16.msra.mxu0 0
    %1611 = vmatprep.mubr.bf16.mxu0 0
    %1612 = vmatmul.mubr.bf16.gmra.mrb[0].mxu0 %v1415
    %v1613 = vpop.f32.mrb[0].mxu0
    %v1614 = vadd.f32 %v1553, %v1613
    %v1615 = vpop.f32.mrb[0].mxu0
    %v1616 = vpop.f32.mrb[0].mxu0
    %v1617 = vpop.f32.mrb[0].mxu0
    %1618 = vdwg.mxu0
    %s1619 = scalar_lea.vmem %s12, 224
    %v1620 = vld [vmem:[%s1619] sm:$0xf]
    %v1621 = vld [vmem:[%s1619 + $0x4] sm:$0xf]
    %v1622 = vld [vmem:[%s1619 + $0x8] sm:$0xf]
    %v1623 = vld [vmem:[%s1619 + $0xc] sm:$0xf]
    %v1624 = vld [vmem:[%s1619 + $0x10] sm:$0xf]
    %v1625 = vld [vmem:[%s1619 + $0x14] sm:$0xf]
    %v1626 = vld [vmem:[%s1619 + $0x18] sm:$0xf]
    %v1627 = vld [vmem:[%s1619 + $0x1c] sm:$0xf]
    %s1628 = scalar_lea.vmem %s13, 7
    %v1629 = vld [vmem:[%s1628] sm:$0x1]
    %v1631 = vlaneseq
    %v1632 = vshrl.u32 %v1631, 7
    %v1633 = vsub.s32 0, %v1632
    %v1634 = vrot.slane %v1629, %v1633
    %v1644 = vunpack.c.l.b16 %v1620
    %v1645 = vunpack.c.l.b16 %v1621
    %v1646 = vunpack.c.l.b16 %v1622
    %v1647 = vunpack.c.l.b16 %v1623
    %v1648 = vunpack.c.l.b16 %v1624
    %v1649 = vunpack.c.l.b16 %v1625
    %v1650 = vunpack.c.l.b16 %v1626
    %v1651 = vunpack.c.l.b16 %v1627
    %v1652 = vpack.c.b16 %v1645, %v1644
    %v1653 = vpack.c.b16 %v1647, %v1646
    %v1654 = vpack.c.b16 %v1649, %v1648
    %v1655 = vpack.c.b16 %v1651, %v1650
    %1660 = vmatprep.subr.bf16.mxu0 0
    %1661 = vmatpush1.bf16.msra.mxu0 %v1652
    %1662 = vmatprep.subr.bf16.mxu0 0
    %1663 = vmatpush1.bf16.msra.mxu0 %v1653
    %1664 = vmatprep.subr.bf16.mxu0 0
    %1665 = vmatpush1.bf16.msra.mxu0 %v1654
    %1666 = vmatprep.subr.bf16.mxu0 0
    %1667 = vmatpush1.bf16.msra.mxu0 %v1655
    %1668 = vmatprep.subr.bf16.mxu0 0
    %1669 = vmatpush1.bf16.msra.mxu0 0
    %1670 = vmatprep.subr.bf16.mxu0 0
    %1671 = vmatpush1.bf16.msra.mxu0 0
    %1672 = vmatprep.subr.bf16.mxu0 0
    %1673 = vmatpush1.bf16.msra.mxu0 0
    %1674 = vmatprep.subr.bf16.mxu0 0
    %1675 = vmatpush1.bf16.msra.mxu0 0
    %1676 = vmatprep.subr.bf16.mxu0 0
    %1677 = vmatpush1.bf16.msra.mxu0 0
    %1678 = vmatprep.subr.bf16.mxu0 0
    %1679 = vmatpush1.bf16.msra.mxu0 0
    %1680 = vmatprep.subr.bf16.mxu0 0
    %1681 = vmatpush1.bf16.msra.mxu0 0
    %1682 = vmatprep.subr.bf16.mxu0 0
    %1683 = vmatpush1.bf16.msra.mxu0 0
    %1684 = vmatprep.subr.bf16.mxu0 0
    %1685 = vmatpush1.bf16.msra.mxu0 0
    %1686 = vmatprep.subr.bf16.mxu0 0
    %1687 = vmatpush1.bf16.msra.mxu0 0
    %1688 = vmatprep.subr.bf16.mxu0 0
    %1689 = vmatpush1.bf16.msra.mxu0 0
    %1690 = vmatprep.subr.bf16.mxu0 0
    %1691 = vmatpush1.bf16.msra.mxu0 0
    %1692 = vmatprep.mubr.bf16.mxu0 0
    %1693 = vmatmul.mubr.bf16.gmra.mrb[0].mxu0 %v1415
    %v1694 = vpop.f32.mrb[0].mxu0
    %v1695 = vadd.f32 %v1634, %v1694
    %v1696 = vpop.f32.mrb[0].mxu0
    %v1697 = vpop.f32.mrb[0].mxu0
    %v1698 = vpop.f32.mrb[0].mxu0
    %1699 = vdwg.mxu0
    %s1700 = scalar_lea.vmem %s12, 256
    %v1701 = vld [vmem:[%s1700] sm:$0xf]
    %v1702 = vld [vmem:[%s1700 + $0x4] sm:$0xf]
    %v1703 = vld [vmem:[%s1700 + $0x8] sm:$0xf]
    %v1704 = vld [vmem:[%s1700 + $0xc] sm:$0xf]
    %v1705 = vld [vmem:[%s1700 + $0x10] sm:$0xf]
    %v1706 = vld [vmem:[%s1700 + $0x14] sm:$0xf]
    %v1707 = vld [vmem:[%s1700 + $0x18] sm:$0xf]
    %v1708 = vld [vmem:[%s1700 + $0x1c] sm:$0xf]
    %s1709 = scalar_lea.vmem %s13, 8
    %v1710 = vld [vmem:[%s1709] sm:$0x1]
    %v1712 = vlaneseq
    %v1713 = vshrl.u32 %v1712, 7
    %v1714 = vsub.s32 0, %v1713
    %v1715 = vrot.slane %v1710, %v1714
    %v1725 = vunpack.c.l.b16 %v1701
    %v1726 = vunpack.c.l.b16 %v1702
    %v1727 = vunpack.c.l.b16 %v1703
    %v1728 = vunpack.c.l.b16 %v1704
    %v1729 = vunpack.c.l.b16 %v1705
    %v1730 = vunpack.c.l.b16 %v1706
    %v1731 = vunpack.c.l.b16 %v1707
    %v1732 = vunpack.c.l.b16 %v1708
    %v1733 = vpack.c.b16 %v1726, %v1725
    %v1734 = vpack.c.b16 %v1728, %v1727
    %v1735 = vpack.c.b16 %v1730, %v1729
    %v1736 = vpack.c.b16 %v1732, %v1731
    %1741 = vmatprep.subr.bf16.mxu0 0
    %1742 = vmatpush1.bf16.msra.mxu0 %v1733
    %1743 = vmatprep.subr.bf16.mxu0 0
    %1744 = vmatpush1.bf16.msra.mxu0 %v1734
    %1745 = vmatprep.subr.bf16.mxu0 0
    %1746 = vmatpush1.bf16.msra.mxu0 %v1735
    %1747 = vmatprep.subr.bf16.mxu0 0
    %1748 = vmatpush1.bf16.msra.mxu0 %v1736
    %1749 = vmatprep.subr.bf16.mxu0 0
    %1750 = vmatpush1.bf16.msra.mxu0 0
    %1751 = vmatprep.subr.bf16.mxu0 0
    %1752 = vmatpush1.bf16.msra.mxu0 0
    %1753 = vmatprep.subr.bf16.mxu0 0
    %1754 = vmatpush1.bf16.msra.mxu0 0
    %1755 = vmatprep.subr.bf16.mxu0 0
    %1756 = vmatpush1.bf16.msra.mxu0 0
    %1757 = vmatprep.subr.bf16.mxu0 0
    %1758 = vmatpush1.bf16.msra.mxu0 0
    %1759 = vmatprep.subr.bf16.mxu0 0
    %1760 = vmatpush1.bf16.msra.mxu0 0
    %1761 = vmatprep.subr.bf16.mxu0 0
    %1762 = vmatpush1.bf16.msra.mxu0 0
    %1763 = vmatprep.subr.bf16.mxu0 0
    %1764 = vmatpush1.bf16.msra.mxu0 0
    %1765 = vmatprep.subr.bf16.mxu0 0
    %1766 = vmatpush1.bf16.msra.mxu0 0
    %1767 = vmatprep.subr.bf16.mxu0 0
    %1768 = vmatpush1.bf16.msra.mxu0 0
    %1769 = vmatprep.subr.bf16.mxu0 0
    %1770 = vmatpush1.bf16.msra.mxu0 0
    %1771 = vmatprep.subr.bf16.mxu0 0
    %1772 = vmatpush1.bf16.msra.mxu0 0
    %1773 = vmatprep.mubr.bf16.mxu0 0
    %1774 = vmatmul.mubr.bf16.gmra.mrb[0].mxu0 %v1415
    %v1775 = vpop.f32.mrb[0].mxu0
    %v1776 = vadd.f32 %v1715, %v1775
    %v1777 = vpop.f32.mrb[0].mxu0
    %v1778 = vpop.f32.mrb[0].mxu0
    %v1779 = vpop.f32.mrb[0].mxu0
    %1780 = vdwg.mxu0
    %s1781 = scalar_lea.vmem %s12, 288
    %v1782 = vld [vmem:[%s1781] sm:$0xf]
    %v1783 = vld [vmem:[%s1781 + $0x4] sm:$0xf]
    %v1784 = vld [vmem:[%s1781 + $0x8] sm:$0xf]
    %v1785 = vld [vmem:[%s1781 + $0xc] sm:$0xf]
    %v1786 = vld [vmem:[%s1781 + $0x10] sm:$0xf]
    %v1787 = vld [vmem:[%s1781 + $0x14] sm:$0xf]
    %v1788 = vld [vmem:[%s1781 + $0x18] sm:$0xf]
    %v1789 = vld [vmem:[%s1781 + $0x1c] sm:$0xf]
    %s1790 = scalar_lea.vmem %s13, 9
    %v1791 = vld [vmem:[%s1790] sm:$0x1]
    %v1793 = vlaneseq
    %v1794 = vshrl.u32 %v1793, 7
    %v1795 = vsub.s32 0, %v1794
    %v1796 = vrot.slane %v1791, %v1795
    %v1806 = vunpack.c.l.b16 %v1782
    %v1807 = vunpack.c.l.b16 %v1783
    %v1808 = vunpack.c.l.b16 %v1784
    %v1809 = vunpack.c.l.b16 %v1785
    %v1810 = vunpack.c.l.b16 %v1786
    %v1811 = vunpack.c.l.b16 %v1787
    %v1812 = vunpack.c.l.b16 %v1788
    %v1813 = vunpack.c.l.b16 %v1789
    %v1814 = vpack.c.b16 %v1807, %v1806
    %v1815 = vpack.c.b16 %v1809, %v1808
    %v1816 = vpack.c.b16 %v1811, %v1810
    %v1817 = vpack.c.b16 %v1813, %v1812
    %1822 = vmatprep.subr.bf16.mxu0 0
    %1823 = vmatpush1.bf16.msra.mxu0 %v1814
    %1824 = vmatprep.subr.bf16.mxu0 0
    %1825 = vmatpush1.bf16.msra.mxu0 %v1815
    %1826 = vmatprep.subr.bf16.mxu0 0
    %1827 = vmatpush1.bf16.msra.mxu0 %v1816
    %1828 = vmatprep.subr.bf16.mxu0 0
    %1829 = vmatpush1.bf16.msra.mxu0 %v1817
    %1830 = vmatprep.subr.bf16.mxu0 0
    %1831 = vmatpush1.bf16.msra.mxu0 0
    %1832 = vmatprep.subr.bf16.mxu0 0
    %1833 = vmatpush1.bf16.msra.mxu0 0
    %1834 = vmatprep.subr.bf16.mxu0 0
    %1835 = vmatpush1.bf16.msra.mxu0 0
    %1836 = vmatprep.subr.bf16.mxu0 0
    %1837 = vmatpush1.bf16.msra.mxu0 0
    %1838 = vmatprep.subr.bf16.mxu0 0
    %1839 = vmatpush1.bf16.msra.mxu0 0
    %1840 = vmatprep.subr.bf16.mxu0 0
    %1841 = vmatpush1.bf16.msra.mxu0 0
    %1842 = vmatprep.subr.bf16.mxu0 0
    %1843 = vmatpush1.bf16.msra.mxu0 0
    %1844 = vmatprep.subr.bf16.mxu0 0
    %1845 = vmatpush1.bf16.msra.mxu0 0
    %1846 = vmatprep.subr.bf16.mxu0 0
    %1847 = vmatpush1.bf16.msra.mxu0 0
    %1848 = vmatprep.subr.bf16.mxu0 0
    %1849 = vmatpush1.bf16.msra.mxu0 0
    %1850 = vmatprep.subr.bf16.mxu0 0
    %1851 = vmatpush1.bf16.msra.mxu0 0
    %1852 = vmatprep.subr.bf16.mxu0 0
    %1853 = vmatpush1.bf16.msra.mxu0 0
    %1854 = vmatprep.mubr.bf16.mxu0 0
    %1855 = vmatmul.mubr.bf16.gmra.mrb[0].mxu0 %v1415
    %v1856 = vpop.f32.mrb[0].mxu0
    %v1857 = vadd.f32 %v1796, %v1856
    %v1858 = vpop.f32.mrb[0].mxu0
    %v1859 = vpop.f32.mrb[0].mxu0
    %v1860 = vpop.f32.mrb[0].mxu0
    %1861 = vdwg.mxu0
    %s1862 = scalar_lea.vmem %s12, 320
    %v1863 = vld [vmem:[%s1862] sm:$0xf]
    %v1864 = vld [vmem:[%s1862 + $0x4] sm:$0xf]
    %v1865 = vld [vmem:[%s1862 + $0x8] sm:$0xf]
    %v1866 = vld [vmem:[%s1862 + $0xc] sm:$0xf]
    %v1867 = vld [vmem:[%s1862 + $0x10] sm:$0xf]
    %v1868 = vld [vmem:[%s1862 + $0x14] sm:$0xf]
    %v1869 = vld [vmem:[%s1862 + $0x18] sm:$0xf]
    %v1870 = vld [vmem:[%s1862 + $0x1c] sm:$0xf]
    %s1871 = scalar_lea.vmem %s13, 10
    %v1872 = vld [vmem:[%s1871] sm:$0x1]
    %v1874 = vlaneseq
    %v1875 = vshrl.u32 %v1874, 7
    %v1876 = vsub.s32 0, %v1875
    %v1877 = vrot.slane %v1872, %v1876
    %v1887 = vunpack.c.l.b16 %v1863
    %v1888 = vunpack.c.l.b16 %v1864
    %v1889 = vunpack.c.l.b16 %v1865
    %v1890 = vunpack.c.l.b16 %v1866
    %v1891 = vunpack.c.l.b16 %v1867
    %v1892 = vunpack.c.l.b16 %v1868
    %v1893 = vunpack.c.l.b16 %v1869
    %v1894 = vunpack.c.l.b16 %v1870
    %v1895 = vpack.c.b16 %v1888, %v1887
    %v1896 = vpack.c.b16 %v1890, %v1889
    %v1897 = vpack.c.b16 %v1892, %v1891
    %v1898 = vpack.c.b16 %v1894, %v1893
    %1903 = vmatprep.subr.bf16.mxu0 0
    %1904 = vmatpush1.bf16.msra.mxu0 %v1895
    %1905 = vmatprep.subr.bf16.mxu0 0
    %1906 = vmatpush1.bf16.msra.mxu0 %v1896
    %1907 = vmatprep.subr.bf16.mxu0 0
    %1908 = vmatpush1.bf16.msra.mxu0 %v1897
    %1909 = vmatprep.subr.bf16.mxu0 0
    %1910 = vmatpush1.bf16.msra.mxu0 %v1898
    %1911 = vmatprep.subr.bf16.mxu0 0
    %1912 = vmatpush1.bf16.msra.mxu0 0
    %1913 = vmatprep.subr.bf16.mxu0 0
    %1914 = vmatpush1.bf16.msra.mxu0 0
    %1915 = vmatprep.subr.bf16.mxu0 0
    %1916 = vmatpush1.bf16.msra.mxu0 0
    %1917 = vmatprep.subr.bf16.mxu0 0
    %1918 = vmatpush1.bf16.msra.mxu0 0
    %1919 = vmatprep.subr.bf16.mxu0 0
    %1920 = vmatpush1.bf16.msra.mxu0 0
    %1921 = vmatprep.subr.bf16.mxu0 0
    %1922 = vmatpush1.bf16.msra.mxu0 0
    %1923 = vmatprep.subr.bf16.mxu0 0
    %1924 = vmatpush1.bf16.msra.mxu0 0
    %1925 = vmatprep.subr.bf16.mxu0 0
    %1926 = vmatpush1.bf16.msra.mxu0 0
    %1927 = vmatprep.subr.bf16.mxu0 0
    %1928 = vmatpush1.bf16.msra.mxu0 0
    %1929 = vmatprep.subr.bf16.mxu0 0
    %1930 = vmatpush1.bf16.msra.mxu0 0
    %1931 = vmatprep.subr.bf16.mxu0 0
    %1932 = vmatpush1.bf16.msra.mxu0 0
    %1933 = vmatprep.subr.bf16.mxu0 0
    %1934 = vmatpush1.bf16.msra.mxu0 0
    %1935 = vmatprep.mubr.bf16.mxu0 0
    %1936 = vmatmul.mubr.bf16.gmra.mrb[0].mxu0 %v1415
    %v1937 = vpop.f32.mrb[0].mxu0
    %v1938 = vadd.f32 %v1877, %v1937
    %v1939 = vpop.f32.mrb[0].mxu0
    %v1940 = vpop.f32.mrb[0].mxu0
    %v1941 = vpop.f32.mrb[0].mxu0
    %1942 = vdwg.mxu0
    %s1943 = scalar_lea.vmem %s12, 352
    %v1944 = vld [vmem:[%s1943] sm:$0xf]
    %v1945 = vld [vmem:[%s1943 + $0x4] sm:$0xf]
    %v1946 = vld [vmem:[%s1943 + $0x8] sm:$0xf]
    %v1947 = vld [vmem:[%s1943 + $0xc] sm:$0xf]
    %v1948 = vld [vmem:[%s1943 + $0x10] sm:$0xf]
    %v1949 = vld [vmem:[%s1943 + $0x14] sm:$0xf]
    %v1950 = vld [vmem:[%s1943 + $0x18] sm:$0xf]
    %v1951 = vld [vmem:[%s1943 + $0x1c] sm:$0xf]
    %s1952 = scalar_lea.vmem %s13, 11
    %v1953 = vld [vmem:[%s1952] sm:$0x1]
    %v1955 = vlaneseq
    %v1956 = vshrl.u32 %v1955, 7
    %v1957 = vsub.s32 0, %v1956
    %v1958 = vrot.slane %v1953, %v1957
    %v1968 = vunpack.c.l.b16 %v1944
    %v1969 = vunpack.c.l.b16 %v1945
    %v1970 = vunpack.c.l.b16 %v1946
    %v1971 = vunpack.c.l.b16 %v1947
    %v1972 = vunpack.c.l.b16 %v1948
    %v1973 = vunpack.c.l.b16 %v1949
    %v1974 = vunpack.c.l.b16 %v1950
    %v1975 = vunpack.c.l.b16 %v1951
    %v1976 = vpack.c.b16 %v1969, %v1968
    %v1977 = vpack.c.b16 %v1971, %v1970
    %v1978 = vpack.c.b16 %v1973, %v1972
    %v1979 = vpack.c.b16 %v1975, %v1974
    %1984 = vmatprep.subr.bf16.mxu0 0
    %1985 = vmatpush1.bf16.msra.mxu0 %v1976
    %1986 = vmatprep.subr.bf16.mxu0 0
    %1987 = vmatpush1.bf16.msra.mxu0 %v1977
    %1988 = vmatprep.subr.bf16.mxu0 0
    %1989 = vmatpush1.bf16.msra.mxu0 %v1978
    %1990 = vmatprep.subr.bf16.mxu0 0
    %1991 = vmatpush1.bf16.msra.mxu0 %v1979
    %1992 = vmatprep.subr.bf16.mxu0 0
    %1993 = vmatpush1.bf16.msra.mxu0 0
    %1994 = vmatprep.subr.bf16.mxu0 0
    %1995 = vmatpush1.bf16.msra.mxu0 0
    %1996 = vmatprep.subr.bf16.mxu0 0
    %1997 = vmatpush1.bf16.msra.mxu0 0
    %1998 = vmatprep.subr.bf16.mxu0 0
    %1999 = vmatpush1.bf16.msra.mxu0 0
    %2000 = vmatprep.subr.bf16.mxu0 0
    %2001 = vmatpush1.bf16.msra.mxu0 0
    %2002 = vmatprep.subr.bf16.mxu0 0
    %2003 = vmatpush1.bf16.msra.mxu0 0
    %2004 = vmatprep.subr.bf16.mxu0 0
    %2005 = vmatpush1.bf16.msra.mxu0 0
    %2006 = vmatprep.subr.bf16.mxu0 0
    %2007 = vmatpush1.bf16.msra.mxu0 0
    %2008 = vmatprep.subr.bf16.mxu0 0
    %2009 = vmatpush1.bf16.msra.mxu0 0
    %2010 = vmatprep.subr.bf16.mxu0 0
    %2011 = vmatpush1.bf16.msra.mxu0 0
    %2012 = vmatprep.subr.bf16.mxu0 0
    %2013 = vmatpush1.bf16.msra.mxu0 0
    %2014 = vmatprep.subr.bf16.mxu0 0
    %2015 = vmatpush1.bf16.msra.mxu0 0
    %2016 = vmatprep.mubr.bf16.mxu0 0
    %2017 = vmatmul.mubr.bf16.gmra.mrb[0].mxu0 %v1415
    %v2018 = vpop.f32.mrb[0].mxu0
    %v2019 = vadd.f32 %v1958, %v2018
    %v2020 = vpop.f32.mrb[0].mxu0
    %v2021 = vpop.f32.mrb[0].mxu0
    %v2022 = vpop.f32.mrb[0].mxu0
    %2023 = vdwg.mxu0
    %v2024 = vpack.c.bf16 %v1124, %v1124
    %v2025 = vpack.c.bf16 %v1452, %v1452
    %v2027 = vsel %vm724, %v2024, 0
    %v2030 = vsel %vm724, %v2025, 0
    %2032 = vmatprep.subr.bf16.mxu0 0
    %2033 = vmatpush1.bf16.xpose.msra.mxu0 %v2030
    %2034 = vmatprep.subr.bf16.mxu0 0
    %2035 = vmatpush1.bf16.xpose.msra.mxu0 0
    %2036 = vmatprep.subr.bf16.mxu0 0
    %2037 = vmatpush1.bf16.xpose.msra.mxu0 0
    %2038 = vmatprep.subr.bf16.mxu0 0
    %2039 = vmatpush1.bf16.xpose.msra.mxu0 0
    %2040 = vmatprep.subr.bf16.mxu0 0
    %2041 = vmatpush1.bf16.xpose.msra.mxu0 0
    %2042 = vmatprep.subr.bf16.mxu0 0
    %2043 = vmatpush1.bf16.xpose.msra.mxu0 0
    %2044 = vmatprep.subr.bf16.mxu0 0
    %2045 = vmatpush1.bf16.xpose.msra.mxu0 0
    %2046 = vmatprep.subr.bf16.mxu0 0
    %2047 = vmatpush1.bf16.xpose.msra.mxu0 0
    %2048 = vmatprep.subr.bf16.mxu0 0
    %2049 = vmatpush1.bf16.xpose.msra.mxu0 0
    %2050 = vmatprep.subr.bf16.mxu0 0
    %2051 = vmatpush1.bf16.xpose.msra.mxu0 0
    %2052 = vmatprep.subr.bf16.mxu0 0
    %2053 = vmatpush1.bf16.xpose.msra.mxu0 0
    %2054 = vmatprep.subr.bf16.mxu0 0
    %2055 = vmatpush1.bf16.xpose.msra.mxu0 0
    %2056 = vmatprep.subr.bf16.mxu0 0
    %2057 = vmatpush1.bf16.xpose.msra.mxu0 0
    %2058 = vmatprep.subr.bf16.mxu0 0
    %2059 = vmatpush1.bf16.xpose.msra.mxu0 0
    %2060 = vmatprep.subr.bf16.mxu0 0
    %2061 = vmatpush1.bf16.xpose.msra.mxu0 0
    %2062 = vmatprep.subr.bf16.mxu0 0
    %2063 = vmatpush1.bf16.xpose.msra.mxu0 0
    %2064 = vmatprep.mubr.bf16.mxu0 0
    %2065 = vmatmul.mubr.bf16.gmra.mrb[0].mxu0 %v2027
    %v2066 = vpop.f32.mrb[0].mxu0
    %v2067 = vadd.f32 0.0, %v2066
    %v2068 = vpop.f32.mrb[0].mxu0
    %v2069 = vpop.f32.mrb[0].mxu0
    %v2070 = vpop.f32.mrb[0].mxu0
    %2071 = vdwg.mxu0
    %vm2072 = vcmask 45056
    %v2073 = vsel %vm2072, %v2067, -inf
    %2074 = vmax.xlane.f32.xlu0 %v2073
    %v2075 = vpop.xlane.xlu0 %2074
    %v2076 = vsub.f32 %v2067, %v2075
    %v2077 = vmul.f32 %v2076, 1.442695
    %v2078 = vpow.pop %v2077
    %v2079 = vsel %vm2072, %v2078, 0.0
    %2080 = vadd.xlane.f32.xlu0 %v2079
    %v2081 = vpop.xlane.xlu0 %2080
    %v2082 = vrcp.pop %v2081
    %v2083 = vmul.f32 %v2078, %v2082
    %v2084 = vpack.c.bf16 %v2083, %v2083
    %v2085 = vpack.c.bf16 %v1776, %v1776
    %vm2086 = vcmask 48128
    %v2088 = vsel %vm2086, %v2084, 0
    %vm2090 = vcmask 1042432
    %v2092 = vsel %vm2090, %v2085, 0
    %2094 = vmatprep.subr.bf16.mxu0 0
    %2095 = vmatpush1.bf16.msra.mxu0 %v2092
    %2096 = vmatprep.subr.bf16.mxu0 0
    %2097 = vmatpush1.bf16.msra.mxu0 0
    %2098 = vmatprep.subr.bf16.mxu0 0
    %2099 = vmatpush1.bf16.msra.mxu0 0
    %2100 = vmatprep.subr.bf16.mxu0 0
    %2101 = vmatpush1.bf16.msra.mxu0 0
    %2102 = vmatprep.subr.bf16.mxu0 0
    %2103 = vmatpush1.bf16.msra.mxu0 0
    %2104 = vmatprep.subr.bf16.mxu0 0
    %2105 = vmatpush1.bf16.msra.mxu0 0
    %2106 = vmatprep.subr.bf16.mxu0 0
    %2107 = vmatpush1.bf16.msra.mxu0 0
    %2108 = vmatprep.subr.bf16.mxu0 0
    %2109 = vmatpush1.bf16.msra.mxu0 0
    %2110 = vmatprep.subr.bf16.mxu0 0
    %2111 = vmatpush1.bf16.msra.mxu0 0
    %2112 = vmatprep.subr.bf16.mxu0 0
    %2113 = vmatpush1.bf16.msra.mxu0 0
    %2114 = vmatprep.subr.bf16.mxu0 0
    %2115 = vmatpush1.bf16.msra.mxu0 0
    %2116 = vmatprep.subr.bf16.mxu0 0
    %2117 = vmatpush1.bf16.msra.mxu0 0
    %2118 = vmatprep.subr.bf16.mxu0 0
    %2119 = vmatpush1.bf16.msra.mxu0 0
    %2120 = vmatprep.subr.bf16.mxu0 0
    %2121 = vmatpush1.bf16.msra.mxu0 0
    %2122 = vmatprep.subr.bf16.mxu0 0
    %2123 = vmatpush1.bf16.msra.mxu0 0
    %2124 = vmatprep.subr.bf16.mxu0 0
    %2125 = vmatpush1.bf16.msra.mxu0 0
    %2126 = vmatprep.mubr.bf16.mxu0 0
    %2127 = vmatmul.mubr.bf16.gmra.mrb[0].mxu0 %v2088
    %v2128 = vpop.f32.mrb[0].mxu0
    %v2129 = vadd.f32 0.0, %v2128
    %v2130 = vpop.f32.mrb[0].mxu0
    %v2131 = vpop.f32.mrb[0].mxu0
    %v2132 = vpop.f32.mrb[0].mxu0
    %2133 = vdwg.mxu0
    %v2134 = vld [vmem:[%s14] sm:$0xf]
    %v2135 = vld [vmem:[%s14 + $0x4] sm:$0xf]
    %v2136 = vpack.c.bf16 %v2129, %v2129
    %v2137 = vpack.c.bf16 %v1205, %v1205
    %v2138 = vpack.c.bf16 %v1533, %v1533
    %v2140 = vsel %vm724, %v2137, 0
    %v2143 = vsel %vm724, %v2138, 0
    %2145 = vmatprep.subr.bf16.mxu0 0
    %2146 = vmatpush1.bf16.xpose.msra.mxu0 %v2143
    %2147 = vmatprep.subr.bf16.mxu0 0
    %2148 = vmatpush1.bf16.xpose.msra.mxu0 0
    %2149 = vmatprep.subr.bf16.mxu0 0
    %2150 = vmatpush1.bf16.xpose.msra.mxu0 0
    %2151 = vmatprep.subr.bf16.mxu0 0
    %2152 = vmatpush1.bf16.xpose.msra.mxu0 0
    %2153 = vmatprep.subr.bf16.mxu0 0
    %2154 = vmatpush1.bf16.xpose.msra.mxu0 0
    %2155 = vmatprep.subr.bf16.mxu0 0
    %2156 = vmatpush1.bf16.xpose.msra.mxu0 0
    %2157 = vmatprep.subr.bf16.mxu0 0
    %2158 = vmatpush1.bf16.xpose.msra.mxu0 0
    %2159 = vmatprep.subr.bf16.mxu0 0
    %2160 = vmatpush1.bf16.xpose.msra.mxu0 0
    %2161 = vmatprep.subr.bf16.mxu0 0
    %2162 = vmatpush1.bf16.xpose.msra.mxu0 0
    %2163 = vmatprep.subr.bf16.mxu0 0
    %2164 = vmatpush1.bf16.xpose.msra.mxu0 0
    %2165 = vmatprep.subr.bf16.mxu0 0
    %2166 = vmatpush1.bf16.xpose.msra.mxu0 0
    %2167 = vmatprep.subr.bf16.mxu0 0
    %2168 = vmatpush1.bf16.xpose.msra.mxu0 0
    %2169 = vmatprep.subr.bf16.mxu0 0
    %2170 = vmatpush1.bf16.xpose.msra.mxu0 0
    %2171 = vmatprep.subr.bf16.mxu0 0
    %2172 = vmatpush1.bf16.xpose.msra.mxu0 0
    %2173 = vmatprep.subr.bf16.mxu0 0
    %2174 = vmatpush1.bf16.xpose.msra.mxu0 0
    %2175 = vmatprep.subr.bf16.mxu0 0
    %2176 = vmatpush1.bf16.xpose.msra.mxu0 0
    %2177 = vmatprep.mubr.bf16.mxu0 0
    %2178 = vmatmul.mubr.bf16.gmra.mrb[0].mxu0 %v2140
    %v2179 = vpop.f32.mrb[0].mxu0
    %v2180 = vadd.f32 0.0, %v2179
    %v2181 = vpop.f32.mrb[0].mxu0
    %v2182 = vpop.f32.mrb[0].mxu0
    %v2183 = vpop.f32.mrb[0].mxu0
    %2184 = vdwg.mxu0
    %v2185 = vsel %vm2072, %v2180, -inf
    %2186 = vmax.xlane.f32.xlu0 %v2185
    %v2187 = vpop.xlane.xlu0 %2186
    %v2188 = vsub.f32 %v2180, %v2187
    %v2189 = vmul.f32 %v2188, 1.442695
    %v2190 = vpow.pop %v2189
    %v2191 = vsel %vm2072, %v2190, 0.0
    %2192 = vadd.xlane.f32.xlu0 %v2191
    %v2193 = vpop.xlane.xlu0 %2192
    %v2194 = vrcp.pop %v2193
    %v2195 = vmul.f32 %v2190, %v2194
    %v2196 = vpack.c.bf16 %v2195, %v2195
    %v2197 = vpack.c.bf16 %v1857, %v1857
    %v2199 = vsel %vm2086, %v2196, 0
    %v2202 = vsel %vm2090, %v2197, 0
    %2204 = vmatprep.subr.bf16.mxu0 0
    %2205 = vmatpush1.bf16.msra.mxu0 %v2202
    %2206 = vmatprep.subr.bf16.mxu0 0
    %2207 = vmatpush1.bf16.msra.mxu0 0
    %2208 = vmatprep.subr.bf16.mxu0 0
    %2209 = vmatpush1.bf16.msra.mxu0 0
    %2210 = vmatprep.subr.bf16.mxu0 0
    %2211 = vmatpush1.bf16.msra.mxu0 0
    %2212 = vmatprep.subr.bf16.mxu0 0
    %2213 = vmatpush1.bf16.msra.mxu0 0
    %2214 = vmatprep.subr.bf16.mxu0 0
    %2215 = vmatpush1.bf16.msra.mxu0 0
    %2216 = vmatprep.subr.bf16.mxu0 0
    %2217 = vmatpush1.bf16.msra.mxu0 0
    %2218 = vmatprep.subr.bf16.mxu0 0
    %2219 = vmatpush1.bf16.msra.mxu0 0
    %2220 = vmatprep.subr.bf16.mxu0 0
    %2221 = vmatpush1.bf16.msra.mxu0 0
    %2222 = vmatprep.subr.bf16.mxu0 0
    %2223 = vmatpush1.bf16.msra.mxu0 0
    %2224 = vmatprep.subr.bf16.mxu0 0
    %2225 = vmatpush1.bf16.msra.mxu0 0
    %2226 = vmatprep.subr.bf16.mxu0 0
    %2227 = vmatpush1.bf16.msra.mxu0 0
    %2228 = vmatprep.subr.bf16.mxu0 0
    %2229 = vmatpush1.bf16.msra.mxu0 0
    %2230 = vmatprep.subr.bf16.mxu0 0
    %2231 = vmatpush1.bf16.msra.mxu0 0
    %2232 = vmatprep.subr.bf16.mxu0 0
    %2233 = vmatpush1.bf16.msra.mxu0 0
    %2234 = vmatprep.subr.bf16.mxu0 0
    %2235 = vmatpush1.bf16.msra.mxu0 0
    %2236 = vmatprep.mubr.bf16.mxu0 0
    %2237 = vmatmul.mubr.bf16.gmra.mrb[0].mxu0 %v2199
    %v2238 = vpop.f32.mrb[0].mxu0
    %v2239 = vadd.f32 0.0, %v2238
    %v2240 = vpop.f32.mrb[0].mxu0
    %v2241 = vpop.f32.mrb[0].mxu0
    %v2242 = vpop.f32.mrb[0].mxu0
    %2243 = vdwg.mxu0
    %s2244 = scalar_lea.vmem %s14, 8
    %v2245 = vld [vmem:[%s2244] sm:$0xf]
    %v2246 = vld [vmem:[%s2244 + $0x4] sm:$0xf]
    %v2247 = vpack.c.bf16 %v2239, %v2239
    %v2250 = vunpack.c.l.b16 %v2245
    %v2251 = vunpack.c.l.b16 %v2246
    %v2252 = vpack.c.b16 %v2251, %v2250
    %v2255 = vsel %vm724, %v2247, 0
    %2257 = vmatprep.subr.bf16.mxu0 0
    %2258 = vmatpush1.bf16.msra.mxu0 %v2252
    %2259 = vmatprep.subr.bf16.mxu0 0
    %2260 = vmatpush1.bf16.msra.mxu0 0
    %2261 = vmatprep.subr.bf16.mxu0 0
    %2262 = vmatpush1.bf16.msra.mxu0 0
    %2263 = vmatprep.subr.bf16.mxu0 0
    %2264 = vmatpush1.bf16.msra.mxu0 0
    %2265 = vmatprep.subr.bf16.mxu0 0
    %2266 = vmatpush1.bf16.msra.mxu0 0
    %2267 = vmatprep.subr.bf16.mxu0 0
    %2268 = vmatpush1.bf16.msra.mxu0 0
    %2269 = vmatprep.subr.bf16.mxu0 0
    %2270 = vmatpush1.bf16.msra.mxu0 0
    %2271 = vmatprep.subr.bf16.mxu0 0
    %2272 = vmatpush1.bf16.msra.mxu0 0
    %2273 = vmatprep.subr.bf16.mxu0 0
    %2274 = vmatpush1.bf16.msra.mxu0 0
    %2275 = vmatprep.subr.bf16.mxu0 0
    %2276 = vmatpush1.bf16.msra.mxu0 0
    %2277 = vmatprep.subr.bf16.mxu0 0
    %2278 = vmatpush1.bf16.msra.mxu0 0
    %2279 = vmatprep.subr.bf16.mxu0 0
    %2280 = vmatpush1.bf16.msra.mxu0 0
    %2281 = vmatprep.subr.bf16.mxu0 0
    %2282 = vmatpush1.bf16.msra.mxu0 0
    %2283 = vmatprep.subr.bf16.mxu0 0
    %2284 = vmatpush1.bf16.msra.mxu0 0
    %2285 = vmatprep.subr.bf16.mxu0 0
    %2286 = vmatpush1.bf16.msra.mxu0 0
    %2287 = vmatprep.subr.bf16.mxu0 0
    %2288 = vmatpush1.bf16.msra.mxu0 0
    %2289 = vmatprep.mubr.bf16.mxu0 0
    %2290 = vmatmul.mubr.bf16.gmra.mrb[0].mxu0 %v2255
    %v2291 = vpop.f32.mrb[0].mxu0
    %v2292 = vadd.f32 0.0, %v2291
    %v2293 = vpop.f32.mrb[0].mxu0
    %v2294 = vpop.f32.mrb[0].mxu0
    %v2295 = vpop.f32.mrb[0].mxu0
    %2296 = vdwg.mxu0
    %v2299 = vunpack.c.l.b16 %v2134
    %v2300 = vunpack.c.l.b16 %v2135
    %v2301 = vpack.c.b16 %v2300, %v2299
    %v2304 = vsel %vm724, %v2136, 0
    %2306 = vmatprep.subr.bf16.mxu0 0
    %2307 = vmatpush1.bf16.msra.mxu0 %v2301
    %2308 = vmatprep.subr.bf16.mxu0 0
    %2309 = vmatpush1.bf16.msra.mxu0 0
    %2310 = vmatprep.subr.bf16.mxu0 0
    %2311 = vmatpush1.bf16.msra.mxu0 0
    %2312 = vmatprep.subr.bf16.mxu0 0
    %2313 = vmatpush1.bf16.msra.mxu0 0
    %2314 = vmatprep.subr.bf16.mxu0 0
    %2315 = vmatpush1.bf16.msra.mxu0 0
    %2316 = vmatprep.subr.bf16.mxu0 0
    %2317 = vmatpush1.bf16.msra.mxu0 0
    %2318 = vmatprep.subr.bf16.mxu0 0
    %2319 = vmatpush1.bf16.msra.mxu0 0
    %2320 = vmatprep.subr.bf16.mxu0 0
    %2321 = vmatpush1.bf16.msra.mxu0 0
    %2322 = vmatprep.subr.bf16.mxu0 0
    %2323 = vmatpush1.bf16.msra.mxu0 0
    %2324 = vmatprep.subr.bf16.mxu0 0
    %2325 = vmatpush1.bf16.msra.mxu0 0
    %2326 = vmatprep.subr.bf16.mxu0 0
    %2327 = vmatpush1.bf16.msra.mxu0 0
    %2328 = vmatprep.subr.bf16.mxu0 0
    %2329 = vmatpush1.bf16.msra.mxu0 0
    %2330 = vmatprep.subr.bf16.mxu0 0
    %2331 = vmatpush1.bf16.msra.mxu0 0
    %2332 = vmatprep.subr.bf16.mxu0 0
    %2333 = vmatpush1.bf16.msra.mxu0 0
    %2334 = vmatprep.subr.bf16.mxu0 0
    %2335 = vmatpush1.bf16.msra.mxu0 0
    %2336 = vmatprep.subr.bf16.mxu0 0
    %2337 = vmatpush1.bf16.msra.mxu0 0
    %2338 = vmatprep.mubr.bf16.mxu0 0
    %2339 = vmatmul.mubr.bf16.gmra.mrb[0].mxu0 %v2304
    %v2340 = vpop.f32.mrb[0].mxu0
    %v2341 = vadd.f32 %v2292, %v2340
    %v2342 = vpop.f32.mrb[0].mxu0
    %v2343 = vpop.f32.mrb[0].mxu0
    %v2344 = vpop.f32.mrb[0].mxu0
    %2345 = vdwg.mxu0
    %v2346 = vpack.c.bf16 %v1286, %v1286
    %v2347 = vpack.c.bf16 %v1614, %v1614
    %v2349 = vsel %vm724, %v2346, 0
    %v2352 = vsel %vm724, %v2347, 0
    %2354 = vmatprep.subr.bf16.mxu0 0
    %2355 = vmatpush1.bf16.xpose.msra.mxu0 %v2352
    %2356 = vmatprep.subr.bf16.mxu0 0
    %2357 = vmatpush1.bf16.xpose.msra.mxu0 0
    %2358 = vmatprep.subr.bf16.mxu0 0
    %2359 = vmatpush1.bf16.xpose.msra.mxu0 0
    %2360 = vmatprep.subr.bf16.mxu0 0
    %2361 = vmatpush1.bf16.xpose.msra.mxu0 0
    %2362 = vmatprep.subr.bf16.mxu0 0
    %2363 = vmatpush1.bf16.xpose.msra.mxu0 0
    %2364 = vmatprep.subr.bf16.mxu0 0
    %2365 = vmatpush1.bf16.xpose.msra.mxu0 0
    %2366 = vmatprep.subr.bf16.mxu0 0
    %2367 = vmatpush1.bf16.xpose.msra.mxu0 0
    %2368 = vmatprep.subr.bf16.mxu0 0
    %2369 = vmatpush1.bf16.xpose.msra.mxu0 0
    %2370 = vmatprep.subr.bf16.mxu0 0
    %2371 = vmatpush1.bf16.xpose.msra.mxu0 0
    %2372 = vmatprep.subr.bf16.mxu0 0
    %2373 = vmatpush1.bf16.xpose.msra.mxu0 0
    %2374 = vmatprep.subr.bf16.mxu0 0
    %2375 = vmatpush1.bf16.xpose.msra.mxu0 0
    %2376 = vmatprep.subr.bf16.mxu0 0
    %2377 = vmatpush1.bf16.xpose.msra.mxu0 0
    %2378 = vmatprep.subr.bf16.mxu0 0
    %2379 = vmatpush1.bf16.xpose.msra.mxu0 0
    %2380 = vmatprep.subr.bf16.mxu0 0
    %2381 = vmatpush1.bf16.xpose.msra.mxu0 0
    %2382 = vmatprep.subr.bf16.mxu0 0
    %2383 = vmatpush1.bf16.xpose.msra.mxu0 0
    %2384 = vmatprep.subr.bf16.mxu0 0
    %2385 = vmatpush1.bf16.xpose.msra.mxu0 0
    %2386 = vmatprep.mubr.bf16.mxu0 0
    %2387 = vmatmul.mubr.bf16.gmra.mrb[0].mxu0 %v2349
    %v2388 = vpop.f32.mrb[0].mxu0
    %v2389 = vadd.f32 0.0, %v2388
    %v2390 = vpop.f32.mrb[0].mxu0
    %v2391 = vpop.f32.mrb[0].mxu0
    %v2392 = vpop.f32.mrb[0].mxu0
    %2393 = vdwg.mxu0
    %v2394 = vsel %vm2072, %v2389, -inf
    %2395 = vmax.xlane.f32.xlu0 %v2394
    %v2396 = vpop.xlane.xlu0 %2395
    %v2397 = vsub.f32 %v2389, %v2396
    %v2398 = vmul.f32 %v2397, 1.442695
    %v2399 = vpow.pop %v2398
    %v2400 = vsel %vm2072, %v2399, 0.0
    %2401 = vadd.xlane.f32.xlu0 %v2400
    %v2402 = vpop.xlane.xlu0 %2401
    %v2403 = vrcp.pop %v2402
    %v2404 = vmul.f32 %v2399, %v2403
    %v2405 = vpack.c.bf16 %v2404, %v2404
    %v2406 = vpack.c.bf16 %v1938, %v1938
    %v2408 = vsel %vm2086, %v2405, 0
    %v2411 = vsel %vm2090, %v2406, 0
    %2413 = vmatprep.subr.bf16.mxu0 0
    %2414 = vmatpush1.bf16.msra.mxu0 %v2411
    %2415 = vmatprep.subr.bf16.mxu0 0
    %2416 = vmatpush1.bf16.msra.mxu0 0
    %2417 = vmatprep.subr.bf16.mxu0 0
    %2418 = vmatpush1.bf16.msra.mxu0 0
    %2419 = vmatprep.subr.bf16.mxu0 0
    %2420 = vmatpush1.bf16.msra.mxu0 0
    %2421 = vmatprep.subr.bf16.mxu0 0
    %2422 = vmatpush1.bf16.msra.mxu0 0
    %2423 = vmatprep.subr.bf16.mxu0 0
    %2424 = vmatpush1.bf16.msra.mxu0 0
    %2425 = vmatprep.subr.bf16.mxu0 0
    %2426 = vmatpush1.bf16.msra.mxu0 0
    %2427 = vmatprep.subr.bf16.mxu0 0
    %2428 = vmatpush1.bf16.msra.mxu0 0
    %2429 = vmatprep.subr.bf16.mxu0 0
    %2430 = vmatpush1.bf16.msra.mxu0 0
    %2431 = vmatprep.subr.bf16.mxu0 0
    %2432 = vmatpush1.bf16.msra.mxu0 0
    %2433 = vmatprep.subr.bf16.mxu0 0
    %2434 = vmatpush1.bf16.msra.mxu0 0
    %2435 = vmatprep.subr.bf16.mxu0 0
    %2436 = vmatpush1.bf16.msra.mxu0 0
    %2437 = vmatprep.subr.bf16.mxu0 0
    %2438 = vmatpush1.bf16.msra.mxu0 0
    %2439 = vmatprep.subr.bf16.mxu0 0
    %2440 = vmatpush1.bf16.msra.mxu0 0
    %2441 = vmatprep.subr.bf16.mxu0 0
    %2442 = vmatpush1.bf16.msra.mxu0 0
    %2443 = vmatprep.subr.bf16.mxu0 0
    %2444 = vmatpush1.bf16.msra.mxu0 0
    %2445 = vmatprep.mubr.bf16.mxu0 0
    %2446 = vmatmul.mubr.bf16.gmra.mrb[0].mxu0 %v2408
    %v2447 = vpop.f32.mrb[0].mxu0
    %v2448 = vadd.f32 0.0, %v2447
    %v2449 = vpop.f32.mrb[0].mxu0
    %v2450 = vpop.f32.mrb[0].mxu0
    %v2451 = vpop.f32.mrb[0].mxu0
    %2452 = vdwg.mxu0
    %s2453 = scalar_lea.vmem %s14, 16
    %v2454 = vld [vmem:[%s2453] sm:$0xf]
    %v2455 = vld [vmem:[%s2453 + $0x4] sm:$0xf]
    %v2456 = vpack.c.bf16 %v2448, %v2448
    %v2459 = vunpack.c.l.b16 %v2454
    %v2460 = vunpack.c.l.b16 %v2455
    %v2461 = vpack.c.b16 %v2460, %v2459
    %v2464 = vsel %vm724, %v2456, 0
    %2466 = vmatprep.subr.bf16.mxu0 0
    %2467 = vmatpush1.bf16.msra.mxu0 %v2461
    %2468 = vmatprep.subr.bf16.mxu0 0
    %2469 = vmatpush1.bf16.msra.mxu0 0
    %2470 = vmatprep.subr.bf16.mxu0 0
    %2471 = vmatpush1.bf16.msra.mxu0 0
    %2472 = vmatprep.subr.bf16.mxu0 0
    %2473 = vmatpush1.bf16.msra.mxu0 0
    %2474 = vmatprep.subr.bf16.mxu0 0
    %2475 = vmatpush1.bf16.msra.mxu0 0
    %2476 = vmatprep.subr.bf16.mxu0 0
    %2477 = vmatpush1.bf16.msra.mxu0 0
    %2478 = vmatprep.subr.bf16.mxu0 0
    %2479 = vmatpush1.bf16.msra.mxu0 0
    %2480 = vmatprep.subr.bf16.mxu0 0
    %2481 = vmatpush1.bf16.msra.mxu0 0
    %2482 = vmatprep.subr.bf16.mxu0 0
    %2483 = vmatpush1.bf16.msra.mxu0 0
    %2484 = vmatprep.subr.bf16.mxu0 0
    %2485 = vmatpush1.bf16.msra.mxu0 0
    %2486 = vmatprep.subr.bf16.mxu0 0
    %2487 = vmatpush1.bf16.msra.mxu0 0
    %2488 = vmatprep.subr.bf16.mxu0 0
    %2489 = vmatpush1.bf16.msra.mxu0 0
    %2490 = vmatprep.subr.bf16.mxu0 0
    %2491 = vmatpush1.bf16.msra.mxu0 0
    %2492 = vmatprep.subr.bf16.mxu0 0
    %2493 = vmatpush1.bf16.msra.mxu0 0
    %2494 = vmatprep.subr.bf16.mxu0 0
    %2495 = vmatpush1.bf16.msra.mxu0 0
    %2496 = vmatprep.subr.bf16.mxu0 0
    %2497 = vmatpush1.bf16.msra.mxu0 0
    %2498 = vmatprep.mubr.bf16.mxu0 0
    %2499 = vmatmul.mubr.bf16.gmra.mrb[0].mxu0 %v2464
    %v2500 = vpop.f32.mrb[0].mxu0
    %v2501 = vadd.f32 0.0, %v2500
    %v2502 = vpop.f32.mrb[0].mxu0
    %v2503 = vpop.f32.mrb[0].mxu0
    %v2504 = vpop.f32.mrb[0].mxu0
    %2505 = vdwg.mxu0
    %v2506 = vadd.f32 %v2341, %v2501
    %v2507 = vpack.c.bf16 %v1367, %v1367
    %v2508 = vpack.c.bf16 %v1695, %v1695
    %v2510 = vsel %vm724, %v2507, 0
    %v2513 = vsel %vm724, %v2508, 0
    %2515 = vmatprep.subr.bf16.mxu0 0
    %2516 = vmatpush1.bf16.xpose.msra.mxu0 %v2513
    %2517 = vmatprep.subr.bf16.mxu0 0
    %2518 = vmatpush1.bf16.xpose.msra.mxu0 0
    %2519 = vmatprep.subr.bf16.mxu0 0
    %2520 = vmatpush1.bf16.xpose.msra.mxu0 0
    %2521 = vmatprep.subr.bf16.mxu0 0
    %2522 = vmatpush1.bf16.xpose.msra.mxu0 0
    %2523 = vmatprep.subr.bf16.mxu0 0
    %2524 = vmatpush1.bf16.xpose.msra.mxu0 0
    %2525 = vmatprep.subr.bf16.mxu0 0
    %2526 = vmatpush1.bf16.xpose.msra.mxu0 0
    %2527 = vmatprep.subr.bf16.mxu0 0
    %2528 = vmatpush1.bf16.xpose.msra.mxu0 0
    %2529 = vmatprep.subr.bf16.mxu0 0
    %2530 = vmatpush1.bf16.xpose.msra.mxu0 0
    %2531 = vmatprep.subr.bf16.mxu0 0
    %2532 = vmatpush1.bf16.xpose.msra.mxu0 0
    %2533 = vmatprep.subr.bf16.mxu0 0
    %2534 = vmatpush1.bf16.xpose.msra.mxu0 0
    %2535 = vmatprep.subr.bf16.mxu0 0
    %2536 = vmatpush1.bf16.xpose.msra.mxu0 0
    %2537 = vmatprep.subr.bf16.mxu0 0
    %2538 = vmatpush1.bf16.xpose.msra.mxu0 0
    %2539 = vmatprep.subr.bf16.mxu0 0
    %2540 = vmatpush1.bf16.xpose.msra.mxu0 0
    %2541 = vmatprep.subr.bf16.mxu0 0
    %2542 = vmatpush1.bf16.xpose.msra.mxu0 0
    %2543 = vmatprep.subr.bf16.mxu0 0
    %2544 = vmatpush1.bf16.xpose.msra.mxu0 0
    %2545 = vmatprep.subr.bf16.mxu0 0
    %2546 = vmatpush1.bf16.xpose.msra.mxu0 0
    %2547 = vmatprep.mubr.bf16.mxu0 0
    %2548 = vmatmul.mubr.bf16.gmra.mrb[0].mxu0 %v2510
    %v2549 = vpop.f32.mrb[0].mxu0
    %v2550 = vadd.f32 0.0, %v2549
    %v2551 = vpop.f32.mrb[0].mxu0
    %v2552 = vpop.f32.mrb[0].mxu0
    %v2553 = vpop.f32.mrb[0].mxu0
    %2554 = vdwg.mxu0
    %v2555 = vsel %vm2072, %v2550, -inf
    %2556 = vmax.xlane.f32.xlu0 %v2555
    %v2557 = vpop.xlane.xlu0 %2556
    %v2558 = vsub.f32 %v2550, %v2557
    %v2559 = vmul.f32 %v2558, 1.442695
    %v2560 = vpow.pop %v2559
    %v2561 = vsel %vm2072, %v2560, 0.0
    %2562 = vadd.xlane.f32.xlu0 %v2561
    %v2563 = vpop.xlane.xlu0 %2562
    %v2564 = vrcp.pop %v2563
    %v2565 = vmul.f32 %v2560, %v2564
    %v2566 = vpack.c.bf16 %v2565, %v2565
    %v2567 = vpack.c.bf16 %v2019, %v2019
    %v2569 = vsel %vm2086, %v2566, 0
    %v2572 = vsel %vm2090, %v2567, 0
    %2574 = vmatprep.subr.bf16.mxu0 0
    %2575 = vmatpush1.bf16.msra.mxu0 %v2572
    %2576 = vmatprep.subr.bf16.mxu0 0
    %2577 = vmatpush1.bf16.msra.mxu0 0
    %2578 = vmatprep.subr.bf16.mxu0 0
    %2579 = vmatpush1.bf16.msra.mxu0 0
    %2580 = vmatprep.subr.bf16.mxu0 0
    %2581 = vmatpush1.bf16.msra.mxu0 0
    %2582 = vmatprep.subr.bf16.mxu0 0
    %2583 = vmatpush1.bf16.msra.mxu0 0
    %2584 = vmatprep.subr.bf16.mxu0 0
    %2585 = vmatpush1.bf16.msra.mxu0 0
    %2586 = vmatprep.subr.bf16.mxu0 0
    %2587 = vmatpush1.bf16.msra.mxu0 0
    %2588 = vmatprep.subr.bf16.mxu0 0
    %2589 = vmatpush1.bf16.msra.mxu0 0
    %2590 = vmatprep.subr.bf16.mxu0 0
    %2591 = vmatpush1.bf16.msra.mxu0 0
    %2592 = vmatprep.subr.bf16.mxu0 0
    %2593 = vmatpush1.bf16.msra.mxu0 0
    %2594 = vmatprep.subr.bf16.mxu0 0
    %2595 = vmatpush1.bf16.msra.mxu0 0
    %2596 = vmatprep.subr.bf16.mxu0 0
    %2597 = vmatpush1.bf16.msra.mxu0 0
    %2598 = vmatprep.subr.bf16.mxu0 0
    %2599 = vmatpush1.bf16.msra.mxu0 0
    %2600 = vmatprep.subr.bf16.mxu0 0
    %2601 = vmatpush1.bf16.msra.mxu0 0
    %2602 = vmatprep.subr.bf16.mxu0 0
    %2603 = vmatpush1.bf16.msra.mxu0 0
    %2604 = vmatprep.subr.bf16.mxu0 0
    %2605 = vmatpush1.bf16.msra.mxu0 0
    %2606 = vmatprep.mubr.bf16.mxu0 0
    %2607 = vmatmul.mubr.bf16.gmra.mrb[0].mxu0 %v2569
    %v2608 = vpop.f32.mrb[0].mxu0
    %v2609 = vadd.f32 0.0, %v2608
    %v2610 = vpop.f32.mrb[0].mxu0
    %v2611 = vpop.f32.mrb[0].mxu0
    %v2612 = vpop.f32.mrb[0].mxu0
    %2613 = vdwg.mxu0
    %s2614 = scalar_lea.vmem %s14, 24
    %v2615 = vld [vmem:[%s2614] sm:$0xf]
    %v2616 = vld [vmem:[%s2614 + $0x4] sm:$0xf]
    %v2617 = vpack.c.bf16 %v2609, %v2609
    %v2620 = vunpack.c.l.b16 %v2615
    %v2621 = vunpack.c.l.b16 %v2616
    %v2622 = vpack.c.b16 %v2621, %v2620
    %v2625 = vsel %vm724, %v2617, 0
    %2627 = vmatprep.subr.bf16.mxu0 0
    %2628 = vmatpush1.bf16.msra.mxu0 %v2622
    %2629 = vmatprep.subr.bf16.mxu0 0
    %2630 = vmatpush1.bf16.msra.mxu0 0
    %2631 = vmatprep.subr.bf16.mxu0 0
    %2632 = vmatpush1.bf16.msra.mxu0 0
    %2633 = vmatprep.subr.bf16.mxu0 0
    %2634 = vmatpush1.bf16.msra.mxu0 0
    %2635 = vmatprep.subr.bf16.mxu0 0
    %2636 = vmatpush1.bf16.msra.mxu0 0
    %2637 = vmatprep.subr.bf16.mxu0 0
    %2638 = vmatpush1.bf16.msra.mxu0 0
    %2639 = vmatprep.subr.bf16.mxu0 0
    %2640 = vmatpush1.bf16.msra.mxu0 0
    %2641 = vmatprep.subr.bf16.mxu0 0
    %2642 = vmatpush1.bf16.msra.mxu0 0
    %2643 = vmatprep.subr.bf16.mxu0 0
    %2644 = vmatpush1.bf16.msra.mxu0 0
    %2645 = vmatprep.subr.bf16.mxu0 0
    %2646 = vmatpush1.bf16.msra.mxu0 0
    %2647 = vmatprep.subr.bf16.mxu0 0
    %2648 = vmatpush1.bf16.msra.mxu0 0
    %2649 = vmatprep.subr.bf16.mxu0 0
    %2650 = vmatpush1.bf16.msra.mxu0 0
    %2651 = vmatprep.subr.bf16.mxu0 0
    %2652 = vmatpush1.bf16.msra.mxu0 0
    %2653 = vmatprep.subr.bf16.mxu0 0
    %2654 = vmatpush1.bf16.msra.mxu0 0
    %2655 = vmatprep.subr.bf16.mxu0 0
    %2656 = vmatpush1.bf16.msra.mxu0 0
    %2657 = vmatprep.subr.bf16.mxu0 0
    %2658 = vmatpush1.bf16.msra.mxu0 0
    %2659 = vmatprep.mubr.bf16.mxu0 0
    %2660 = vmatmul.mubr.bf16.gmra.mrb[0].mxu0 %v2625
    %v2661 = vpop.f32.mrb[0].mxu0
    %v2662 = vadd.f32 0.0, %v2661
    %v2663 = vpop.f32.mrb[0].mxu0
    %v2664 = vpop.f32.mrb[0].mxu0
    %v2665 = vpop.f32.mrb[0].mxu0
    %2666 = vdwg.mxu0
    %v2667 = vadd.f32 %v2506, %v2662
    %v2668 = vlaneseq
    %v2669 = vshrl.u32 %v2668, 7
    %v2670 = vsub.s32 2, %v2669
    %v2671 = vrot.slane %v71, %v2670
    %v2672 = vadd.f32 %v2667, %v2671
    %s2673 = scalar_lea.vmem %s15, 128
    %v2674 = vld [vmem:[%s2673] sm:$0xf]
    %v2675 = vld [vmem:[%s2673 + $0x4] sm:$0xf]
    %v2676 = vld [vmem:[%s2673 + $0x8] sm:$0xf]
    %v2677 = vld [vmem:[%s2673 + $0xc] sm:$0xf]
    %v2678 = vld [vmem:[%s2673 + $0x10] sm:$0xf]
    %v2679 = vld [vmem:[%s2673 + $0x14] sm:$0xf]
    %v2680 = vld [vmem:[%s2673 + $0x18] sm:$0xf]
    %v2681 = vld [vmem:[%s2673 + $0x1c] sm:$0xf]
    %v2682 = vpack.c.bf16 %v2672, %v2672
    %s2683 = scalar_lea.vmem %s16, 4
    %v2684 = vld [vmem:[%s2683] sm:$0x1]
    %v2686 = vlaneseq
    %v2687 = vshrl.u32 %v2686, 7
    %v2688 = vsub.s32 0, %v2687
    %v2689 = vrot.slane %v2684, %v2688
    %v2699 = vunpack.c.l.b16 %v2674
    %v2700 = vunpack.c.l.b16 %v2675
    %v2701 = vunpack.c.l.b16 %v2676
    %v2702 = vunpack.c.l.b16 %v2677
    %v2703 = vunpack.c.l.b16 %v2678
    %v2704 = vunpack.c.l.b16 %v2679
    %v2705 = vunpack.c.l.b16 %v2680
    %v2706 = vunpack.c.l.b16 %v2681
    %v2707 = vpack.c.b16 %v2700, %v2699
    %v2708 = vpack.c.b16 %v2702, %v2701
    %v2709 = vpack.c.b16 %v2704, %v2703
    %v2710 = vpack.c.b16 %v2706, %v2705
    %v2716 = vsel %vm245, %v2682, 0
    %2718 = vmatprep.subr.bf16.mxu0 0
    %2719 = vmatpush1.bf16.msra.mxu0 %v2707
    %2720 = vmatprep.subr.bf16.mxu0 0
    %2721 = vmatpush1.bf16.msra.mxu0 %v2708
    %2722 = vmatprep.subr.bf16.mxu0 0
    %2723 = vmatpush1.bf16.msra.mxu0 %v2709
    %2724 = vmatprep.subr.bf16.mxu0 0
    %2725 = vmatpush1.bf16.msra.mxu0 %v2710
    %2726 = vmatprep.subr.bf16.mxu0 0
    %2727 = vmatpush1.bf16.msra.mxu0 0
    %2728 = vmatprep.subr.bf16.mxu0 0
    %2729 = vmatpush1.bf16.msra.mxu0 0
    %2730 = vmatprep.subr.bf16.mxu0 0
    %2731 = vmatpush1.bf16.msra.mxu0 0
    %2732 = vmatprep.subr.bf16.mxu0 0
    %2733 = vmatpush1.bf16.msra.mxu0 0
    %2734 = vmatprep.subr.bf16.mxu0 0
    %2735 = vmatpush1.bf16.msra.mxu0 0
    %2736 = vmatprep.subr.bf16.mxu0 0
    %2737 = vmatpush1.bf16.msra.mxu0 0
    %2738 = vmatprep.subr.bf16.mxu0 0
    %2739 = vmatpush1.bf16.msra.mxu0 0
    %2740 = vmatprep.subr.bf16.mxu0 0
    %2741 = vmatpush1.bf16.msra.mxu0 0
    %2742 = vmatprep.subr.bf16.mxu0 0
    %2743 = vmatpush1.bf16.msra.mxu0 0
    %2744 = vmatprep.subr.bf16.mxu0 0
    %2745 = vmatpush1.bf16.msra.mxu0 0
    %2746 = vmatprep.subr.bf16.mxu0 0
    %2747 = vmatpush1.bf16.msra.mxu0 0
    %2748 = vmatprep.subr.bf16.mxu0 0
    %2749 = vmatpush1.bf16.msra.mxu0 0
    %2750 = vmatprep.mubr.bf16.mxu0 0
    %2751 = vmatmul.mubr.bf16.gmra.mrb[0].mxu0 %v2716
    %v2752 = vpop.f32.mrb[0].mxu0
    %v2753 = vadd.f32 %v2689, %v2752
    %v2754 = vpop.f32.mrb[0].mxu0
    %v2755 = vpop.f32.mrb[0].mxu0
    %v2756 = vpop.f32.mrb[0].mxu0
    %2757 = vdwg.mxu0
    %s2758 = scalar_lea.vmem %s15, 160
    %v2759 = vld [vmem:[%s2758] sm:$0xf]
    %v2760 = vld [vmem:[%s2758 + $0x4] sm:$0xf]
    %v2761 = vld [vmem:[%s2758 + $0x8] sm:$0xf]
    %v2762 = vld [vmem:[%s2758 + $0xc] sm:$0xf]
    %v2763 = vld [vmem:[%s2758 + $0x10] sm:$0xf]
    %v2764 = vld [vmem:[%s2758 + $0x14] sm:$0xf]
    %v2765 = vld [vmem:[%s2758 + $0x18] sm:$0xf]
    %v2766 = vld [vmem:[%s2758 + $0x1c] sm:$0xf]
    %s2767 = scalar_lea.vmem %s16, 5
    %v2768 = vld [vmem:[%s2767] sm:$0x1]
    %v2770 = vlaneseq
    %v2771 = vshrl.u32 %v2770, 7
    %v2772 = vsub.s32 0, %v2771
    %v2773 = vrot.slane %v2768, %v2772
    %v2783 = vunpack.c.l.b16 %v2759
    %v2784 = vunpack.c.l.b16 %v2760
    %v2785 = vunpack.c.l.b16 %v2761
    %v2786 = vunpack.c.l.b16 %v2762
    %v2787 = vunpack.c.l.b16 %v2763
    %v2788 = vunpack.c.l.b16 %v2764
    %v2789 = vunpack.c.l.b16 %v2765
    %v2790 = vunpack.c.l.b16 %v2766
    %v2791 = vpack.c.b16 %v2784, %v2783
    %v2792 = vpack.c.b16 %v2786, %v2785
    %v2793 = vpack.c.b16 %v2788, %v2787
    %v2794 = vpack.c.b16 %v2790, %v2789
    %2799 = vmatprep.subr.bf16.mxu0 0
    %2800 = vmatpush1.bf16.msra.mxu0 %v2791
    %2801 = vmatprep.subr.bf16.mxu0 0
    %2802 = vmatpush1.bf16.msra.mxu0 %v2792
    %2803 = vmatprep.subr.bf16.mxu0 0
    %2804 = vmatpush1.bf16.msra.mxu0 %v2793
    %2805 = vmatprep.subr.bf16.mxu0 0
    %2806 = vmatpush1.bf16.msra.mxu0 %v2794
    %2807 = vmatprep.subr.bf16.mxu0 0
    %2808 = vmatpush1.bf16.msra.mxu0 0
    %2809 = vmatprep.subr.bf16.mxu0 0
    %2810 = vmatpush1.bf16.msra.mxu0 0
    %2811 = vmatprep.subr.bf16.mxu0 0
    %2812 = vmatpush1.bf16.msra.mxu0 0
    %2813 = vmatprep.subr.bf16.mxu0 0
    %2814 = vmatpush1.bf16.msra.mxu0 0
    %2815 = vmatprep.subr.bf16.mxu0 0
    %2816 = vmatpush1.bf16.msra.mxu0 0
    %2817 = vmatprep.subr.bf16.mxu0 0
    %2818 = vmatpush1.bf16.msra.mxu0 0
    %2819 = vmatprep.subr.bf16.mxu0 0
    %2820 = vmatpush1.bf16.msra.mxu0 0
    %2821 = vmatprep.subr.bf16.mxu0 0
    %2822 = vmatpush1.bf16.msra.mxu0 0
    %2823 = vmatprep.subr.bf16.mxu0 0
    %2824 = vmatpush1.bf16.msra.mxu0 0
    %2825 = vmatprep.subr.bf16.mxu0 0
    %2826 = vmatpush1.bf16.msra.mxu0 0
    %2827 = vmatprep.subr.bf16.mxu0 0
    %2828 = vmatpush1.bf16.msra.mxu0 0
    %2829 = vmatprep.subr.bf16.mxu0 0
    %2830 = vmatpush1.bf16.msra.mxu0 0
    %2831 = vmatprep.mubr.bf16.mxu0 0
    %2832 = vmatmul.mubr.bf16.gmra.mrb[0].mxu0 %v2716
    %v2833 = vpop.f32.mrb[0].mxu0
    %v2834 = vadd.f32 %v2773, %v2833
    %v2835 = vpop.f32.mrb[0].mxu0
    %v2836 = vpop.f32.mrb[0].mxu0
    %v2837 = vpop.f32.mrb[0].mxu0
    %2838 = vdwg.mxu0
    %s2839 = scalar_lea.vmem %s15, 192
    %v2840 = vld [vmem:[%s2839] sm:$0xf]
    %v2841 = vld [vmem:[%s2839 + $0x4] sm:$0xf]
    %v2842 = vld [vmem:[%s2839 + $0x8] sm:$0xf]
    %v2843 = vld [vmem:[%s2839 + $0xc] sm:$0xf]
    %v2844 = vld [vmem:[%s2839 + $0x10] sm:$0xf]
    %v2845 = vld [vmem:[%s2839 + $0x14] sm:$0xf]
    %v2846 = vld [vmem:[%s2839 + $0x18] sm:$0xf]
    %v2847 = vld [vmem:[%s2839 + $0x1c] sm:$0xf]
    %s2848 = scalar_lea.vmem %s16, 6
    %v2849 = vld [vmem:[%s2848] sm:$0x1]
    %v2851 = vlaneseq
    %v2852 = vshrl.u32 %v2851, 7
    %v2853 = vsub.s32 0, %v2852
    %v2854 = vrot.slane %v2849, %v2853
    %v2864 = vunpack.c.l.b16 %v2840
    %v2865 = vunpack.c.l.b16 %v2841
    %v2866 = vunpack.c.l.b16 %v2842
    %v2867 = vunpack.c.l.b16 %v2843
    %v2868 = vunpack.c.l.b16 %v2844
    %v2869 = vunpack.c.l.b16 %v2845
    %v2870 = vunpack.c.l.b16 %v2846
    %v2871 = vunpack.c.l.b16 %v2847
    %v2872 = vpack.c.b16 %v2865, %v2864
    %v2873 = vpack.c.b16 %v2867, %v2866
    %v2874 = vpack.c.b16 %v2869, %v2868
    %v2875 = vpack.c.b16 %v2871, %v2870
    %2880 = vmatprep.subr.bf16.mxu0 0
    %2881 = vmatpush1.bf16.msra.mxu0 %v2872
    %2882 = vmatprep.subr.bf16.mxu0 0
    %2883 = vmatpush1.bf16.msra.mxu0 %v2873
    %2884 = vmatprep.subr.bf16.mxu0 0
    %2885 = vmatpush1.bf16.msra.mxu0 %v2874
    %2886 = vmatprep.subr.bf16.mxu0 0
    %2887 = vmatpush1.bf16.msra.mxu0 %v2875
    %2888 = vmatprep.subr.bf16.mxu0 0
    %2889 = vmatpush1.bf16.msra.mxu0 0
    %2890 = vmatprep.subr.bf16.mxu0 0
    %2891 = vmatpush1.bf16.msra.mxu0 0
    %2892 = vmatprep.subr.bf16.mxu0 0
    %2893 = vmatpush1.bf16.msra.mxu0 0
    %2894 = vmatprep.subr.bf16.mxu0 0
    %2895 = vmatpush1.bf16.msra.mxu0 0
    %2896 = vmatprep.subr.bf16.mxu0 0
    %2897 = vmatpush1.bf16.msra.mxu0 0
    %2898 = vmatprep.subr.bf16.mxu0 0
    %2899 = vmatpush1.bf16.msra.mxu0 0
    %2900 = vmatprep.subr.bf16.mxu0 0
    %2901 = vmatpush1.bf16.msra.mxu0 0
    %2902 = vmatprep.subr.bf16.mxu0 0
    %2903 = vmatpush1.bf16.msra.mxu0 0
    %2904 = vmatprep.subr.bf16.mxu0 0
    %2905 = vmatpush1.bf16.msra.mxu0 0
    %2906 = vmatprep.subr.bf16.mxu0 0
    %2907 = vmatpush1.bf16.msra.mxu0 0
    %2908 = vmatprep.subr.bf16.mxu0 0
    %2909 = vmatpush1.bf16.msra.mxu0 0
    %2910 = vmatprep.subr.bf16.mxu0 0
    %2911 = vmatpush1.bf16.msra.mxu0 0
    %2912 = vmatprep.mubr.bf16.mxu0 0
    %2913 = vmatmul.mubr.bf16.gmra.mrb[0].mxu0 %v2716
    %v2914 = vpop.f32.mrb[0].mxu0
    %v2915 = vadd.f32 %v2854, %v2914
    %v2916 = vpop.f32.mrb[0].mxu0
    %v2917 = vpop.f32.mrb[0].mxu0
    %v2918 = vpop.f32.mrb[0].mxu0
    %2919 = vdwg.mxu0
    %s2920 = scalar_lea.vmem %s15, 224
    %v2921 = vld [vmem:[%s2920] sm:$0xf]
    %v2922 = vld [vmem:[%s2920 + $0x4] sm:$0xf]
    %v2923 = vld [vmem:[%s2920 + $0x8] sm:$0xf]
    %v2924 = vld [vmem:[%s2920 + $0xc] sm:$0xf]
    %v2925 = vld [vmem:[%s2920 + $0x10] sm:$0xf]
    %v2926 = vld [vmem:[%s2920 + $0x14] sm:$0xf]
    %v2927 = vld [vmem:[%s2920 + $0x18] sm:$0xf]
    %v2928 = vld [vmem:[%s2920 + $0x1c] sm:$0xf]
    %s2929 = scalar_lea.vmem %s16, 7
    %v2930 = vld [vmem:[%s2929] sm:$0x1]
    %v2932 = vlaneseq
    %v2933 = vshrl.u32 %v2932, 7
    %v2934 = vsub.s32 0, %v2933
    %v2935 = vrot.slane %v2930, %v2934
    %v2945 = vunpack.c.l.b16 %v2921
    %v2946 = vunpack.c.l.b16 %v2922
    %v2947 = vunpack.c.l.b16 %v2923
    %v2948 = vunpack.c.l.b16 %v2924
    %v2949 = vunpack.c.l.b16 %v2925
    %v2950 = vunpack.c.l.b16 %v2926
    %v2951 = vunpack.c.l.b16 %v2927
    %v2952 = vunpack.c.l.b16 %v2928
    %v2953 = vpack.c.b16 %v2946, %v2945
    %v2954 = vpack.c.b16 %v2948, %v2947
    %v2955 = vpack.c.b16 %v2950, %v2949
    %v2956 = vpack.c.b16 %v2952, %v2951
    %2961 = vmatprep.subr.bf16.mxu0 0
    %2962 = vmatpush1.bf16.msra.mxu0 %v2953
    %2963 = vmatprep.subr.bf16.mxu0 0
    %2964 = vmatpush1.bf16.msra.mxu0 %v2954
    %2965 = vmatprep.subr.bf16.mxu0 0
    %2966 = vmatpush1.bf16.msra.mxu0 %v2955
    %2967 = vmatprep.subr.bf16.mxu0 0
    %2968 = vmatpush1.bf16.msra.mxu0 %v2956
    %2969 = vmatprep.subr.bf16.mxu0 0
    %2970 = vmatpush1.bf16.msra.mxu0 0
    %2971 = vmatprep.subr.bf16.mxu0 0
    %2972 = vmatpush1.bf16.msra.mxu0 0
    %2973 = vmatprep.subr.bf16.mxu0 0
    %2974 = vmatpush1.bf16.msra.mxu0 0
    %2975 = vmatprep.subr.bf16.mxu0 0
    %2976 = vmatpush1.bf16.msra.mxu0 0
    %2977 = vmatprep.subr.bf16.mxu0 0
    %2978 = vmatpush1.bf16.msra.mxu0 0
    %2979 = vmatprep.subr.bf16.mxu0 0
    %2980 = vmatpush1.bf16.msra.mxu0 0
    %2981 = vmatprep.subr.bf16.mxu0 0
    %2982 = vmatpush1.bf16.msra.mxu0 0
    %2983 = vmatprep.subr.bf16.mxu0 0
    %2984 = vmatpush1.bf16.msra.mxu0 0
    %2985 = vmatprep.subr.bf16.mxu0 0
    %2986 = vmatpush1.bf16.msra.mxu0 0
    %2987 = vmatprep.subr.bf16.mxu0 0
    %2988 = vmatpush1.bf16.msra.mxu0 0
    %2989 = vmatprep.subr.bf16.mxu0 0
    %2990 = vmatpush1.bf16.msra.mxu0 0
    %2991 = vmatprep.subr.bf16.mxu0 0
    %2992 = vmatpush1.bf16.msra.mxu0 0
    %2993 = vmatprep.mubr.bf16.mxu0 0
    %2994 = vmatmul.mubr.bf16.gmra.mrb[0].mxu0 %v2716
    %v2995 = vpop.f32.mrb[0].mxu0
    %v2996 = vadd.f32 %v2935, %v2995
    %v2997 = vpop.f32.mrb[0].mxu0
    %v2998 = vpop.f32.mrb[0].mxu0
    %v2999 = vpop.f32.mrb[0].mxu0
    %3000 = vdwg.mxu0
    %s3001 = scalar_lea.vmem %s15, 256
    %v3002 = vld [vmem:[%s3001] sm:$0xf]
    %v3003 = vld [vmem:[%s3001 + $0x4] sm:$0xf]
    %v3004 = vld [vmem:[%s3001 + $0x8] sm:$0xf]
    %v3005 = vld [vmem:[%s3001 + $0xc] sm:$0xf]
    %v3006 = vld [vmem:[%s3001 + $0x10] sm:$0xf]
    %v3007 = vld [vmem:[%s3001 + $0x14] sm:$0xf]
    %v3008 = vld [vmem:[%s3001 + $0x18] sm:$0xf]
    %v3009 = vld [vmem:[%s3001 + $0x1c] sm:$0xf]
    %s3010 = scalar_lea.vmem %s16, 8
    %v3011 = vld [vmem:[%s3010] sm:$0x1]
    %v3013 = vlaneseq
    %v3014 = vshrl.u32 %v3013, 7
    %v3015 = vsub.s32 0, %v3014
    %v3016 = vrot.slane %v3011, %v3015
    %v3026 = vunpack.c.l.b16 %v3002
    %v3027 = vunpack.c.l.b16 %v3003
    %v3028 = vunpack.c.l.b16 %v3004
    %v3029 = vunpack.c.l.b16 %v3005
    %v3030 = vunpack.c.l.b16 %v3006
    %v3031 = vunpack.c.l.b16 %v3007
    %v3032 = vunpack.c.l.b16 %v3008
    %v3033 = vunpack.c.l.b16 %v3009
    %v3034 = vpack.c.b16 %v3027, %v3026
    %v3035 = vpack.c.b16 %v3029, %v3028
    %v3036 = vpack.c.b16 %v3031, %v3030
    %v3037 = vpack.c.b16 %v3033, %v3032
    %3042 = vmatprep.subr.bf16.mxu0 0
    %3043 = vmatpush1.bf16.msra.mxu0 %v3034
    %3044 = vmatprep.subr.bf16.mxu0 0
    %3045 = vmatpush1.bf16.msra.mxu0 %v3035
    %3046 = vmatprep.subr.bf16.mxu0 0
    %3047 = vmatpush1.bf16.msra.mxu0 %v3036
    %3048 = vmatprep.subr.bf16.mxu0 0
    %3049 = vmatpush1.bf16.msra.mxu0 %v3037
    %3050 = vmatprep.subr.bf16.mxu0 0
    %3051 = vmatpush1.bf16.msra.mxu0 0
    %3052 = vmatprep.subr.bf16.mxu0 0
    %3053 = vmatpush1.bf16.msra.mxu0 0
    %3054 = vmatprep.subr.bf16.mxu0 0
    %3055 = vmatpush1.bf16.msra.mxu0 0
    %3056 = vmatprep.subr.bf16.mxu0 0
    %3057 = vmatpush1.bf16.msra.mxu0 0
    %3058 = vmatprep.subr.bf16.mxu0 0
    %3059 = vmatpush1.bf16.msra.mxu0 0
    %3060 = vmatprep.subr.bf16.mxu0 0
    %3061 = vmatpush1.bf16.msra.mxu0 0
    %3062 = vmatprep.subr.bf16.mxu0 0
    %3063 = vmatpush1.bf16.msra.mxu0 0
    %3064 = vmatprep.subr.bf16.mxu0 0
    %3065 = vmatpush1.bf16.msra.mxu0 0
    %3066 = vmatprep.subr.bf16.mxu0 0
    %3067 = vmatpush1.bf16.msra.mxu0 0
    %3068 = vmatprep.subr.bf16.mxu0 0
    %3069 = vmatpush1.bf16.msra.mxu0 0
    %3070 = vmatprep.subr.bf16.mxu0 0
    %3071 = vmatpush1.bf16.msra.mxu0 0
    %3072 = vmatprep.subr.bf16.mxu0 0
    %3073 = vmatpush1.bf16.msra.mxu0 0
    %3074 = vmatprep.mubr.bf16.mxu0 0
    %3075 = vmatmul.mubr.bf16.gmra.mrb[0].mxu0 %v2716
    %v3076 = vpop.f32.mrb[0].mxu0
    %v3077 = vadd.f32 %v3016, %v3076
    %v3078 = vpop.f32.mrb[0].mxu0
    %v3079 = vpop.f32.mrb[0].mxu0
    %v3080 = vpop.f32.mrb[0].mxu0
    %3081 = vdwg.mxu0
    %s3082 = scalar_lea.vmem %s15, 288
    %v3083 = vld [vmem:[%s3082] sm:$0xf]
    %v3084 = vld [vmem:[%s3082 + $0x4] sm:$0xf]
    %v3085 = vld [vmem:[%s3082 + $0x8] sm:$0xf]
    %v3086 = vld [vmem:[%s3082 + $0xc] sm:$0xf]
    %v3087 = vld [vmem:[%s3082 + $0x10] sm:$0xf]
    %v3088 = vld [vmem:[%s3082 + $0x14] sm:$0xf]
    %v3089 = vld [vmem:[%s3082 + $0x18] sm:$0xf]
    %v3090 = vld [vmem:[%s3082 + $0x1c] sm:$0xf]
    %s3091 = scalar_lea.vmem %s16, 9
    %v3092 = vld [vmem:[%s3091] sm:$0x1]
    %v3094 = vlaneseq
    %v3095 = vshrl.u32 %v3094, 7
    %v3096 = vsub.s32 0, %v3095
    %v3097 = vrot.slane %v3092, %v3096
    %v3107 = vunpack.c.l.b16 %v3083
    %v3108 = vunpack.c.l.b16 %v3084
    %v3109 = vunpack.c.l.b16 %v3085
    %v3110 = vunpack.c.l.b16 %v3086
    %v3111 = vunpack.c.l.b16 %v3087
    %v3112 = vunpack.c.l.b16 %v3088
    %v3113 = vunpack.c.l.b16 %v3089
    %v3114 = vunpack.c.l.b16 %v3090
    %v3115 = vpack.c.b16 %v3108, %v3107
    %v3116 = vpack.c.b16 %v3110, %v3109
    %v3117 = vpack.c.b16 %v3112, %v3111
    %v3118 = vpack.c.b16 %v3114, %v3113
    %3123 = vmatprep.subr.bf16.mxu0 0
    %3124 = vmatpush1.bf16.msra.mxu0 %v3115
    %3125 = vmatprep.subr.bf16.mxu0 0
    %3126 = vmatpush1.bf16.msra.mxu0 %v3116
    %3127 = vmatprep.subr.bf16.mxu0 0
    %3128 = vmatpush1.bf16.msra.mxu0 %v3117
    %3129 = vmatprep.subr.bf16.mxu0 0
    %3130 = vmatpush1.bf16.msra.mxu0 %v3118
    %3131 = vmatprep.subr.bf16.mxu0 0
    %3132 = vmatpush1.bf16.msra.mxu0 0
    %3133 = vmatprep.subr.bf16.mxu0 0
    %3134 = vmatpush1.bf16.msra.mxu0 0
    %3135 = vmatprep.subr.bf16.mxu0 0
    %3136 = vmatpush1.bf16.msra.mxu0 0
    %3137 = vmatprep.subr.bf16.mxu0 0
    %3138 = vmatpush1.bf16.msra.mxu0 0
    %3139 = vmatprep.subr.bf16.mxu0 0
    %3140 = vmatpush1.bf16.msra.mxu0 0
    %3141 = vmatprep.subr.bf16.mxu0 0
    %3142 = vmatpush1.bf16.msra.mxu0 0
    %3143 = vmatprep.subr.bf16.mxu0 0
    %3144 = vmatpush1.bf16.msra.mxu0 0
    %3145 = vmatprep.subr.bf16.mxu0 0
    %3146 = vmatpush1.bf16.msra.mxu0 0
    %3147 = vmatprep.subr.bf16.mxu0 0
    %3148 = vmatpush1.bf16.msra.mxu0 0
    %3149 = vmatprep.subr.bf16.mxu0 0
    %3150 = vmatpush1.bf16.msra.mxu0 0
    %3151 = vmatprep.subr.bf16.mxu0 0
    %3152 = vmatpush1.bf16.msra.mxu0 0
    %3153 = vmatprep.subr.bf16.mxu0 0
    %3154 = vmatpush1.bf16.msra.mxu0 0
    %3155 = vmatprep.mubr.bf16.mxu0 0
    %3156 = vmatmul.mubr.bf16.gmra.mrb[0].mxu0 %v2716
    %v3157 = vpop.f32.mrb[0].mxu0
    %v3158 = vadd.f32 %v3097, %v3157
    %v3159 = vpop.f32.mrb[0].mxu0
    %v3160 = vpop.f32.mrb[0].mxu0
    %v3161 = vpop.f32.mrb[0].mxu0
    %3162 = vdwg.mxu0
    %s3163 = scalar_lea.vmem %s15, 320
    %v3164 = vld [vmem:[%s3163] sm:$0xf]
    %v3165 = vld [vmem:[%s3163 + $0x4] sm:$0xf]
    %v3166 = vld [vmem:[%s3163 + $0x8] sm:$0xf]
    %v3167 = vld [vmem:[%s3163 + $0xc] sm:$0xf]
    %v3168 = vld [vmem:[%s3163 + $0x10] sm:$0xf]
    %v3169 = vld [vmem:[%s3163 + $0x14] sm:$0xf]
    %v3170 = vld [vmem:[%s3163 + $0x18] sm:$0xf]
    %v3171 = vld [vmem:[%s3163 + $0x1c] sm:$0xf]
    %s3172 = scalar_lea.vmem %s16, 10
    %v3173 = vld [vmem:[%s3172] sm:$0x1]
    %v3175 = vlaneseq
    %v3176 = vshrl.u32 %v3175, 7
    %v3177 = vsub.s32 0, %v3176
    %v3178 = vrot.slane %v3173, %v3177
    %v3188 = vunpack.c.l.b16 %v3164
    %v3189 = vunpack.c.l.b16 %v3165
    %v3190 = vunpack.c.l.b16 %v3166
    %v3191 = vunpack.c.l.b16 %v3167
    %v3192 = vunpack.c.l.b16 %v3168
    %v3193 = vunpack.c.l.b16 %v3169
    %v3194 = vunpack.c.l.b16 %v3170
    %v3195 = vunpack.c.l.b16 %v3171
    %v3196 = vpack.c.b16 %v3189, %v3188
    %v3197 = vpack.c.b16 %v3191, %v3190
    %v3198 = vpack.c.b16 %v3193, %v3192
    %v3199 = vpack.c.b16 %v3195, %v3194
    %3204 = vmatprep.subr.bf16.mxu0 0
    %3205 = vmatpush1.bf16.msra.mxu0 %v3196
    %3206 = vmatprep.subr.bf16.mxu0 0
    %3207 = vmatpush1.bf16.msra.mxu0 %v3197
    %3208 = vmatprep.subr.bf16.mxu0 0
    %3209 = vmatpush1.bf16.msra.mxu0 %v3198
    %3210 = vmatprep.subr.bf16.mxu0 0
    %3211 = vmatpush1.bf16.msra.mxu0 %v3199
    %3212 = vmatprep.subr.bf16.mxu0 0
    %3213 = vmatpush1.bf16.msra.mxu0 0
    %3214 = vmatprep.subr.bf16.mxu0 0
    %3215 = vmatpush1.bf16.msra.mxu0 0
    %3216 = vmatprep.subr.bf16.mxu0 0
    %3217 = vmatpush1.bf16.msra.mxu0 0
    %3218 = vmatprep.subr.bf16.mxu0 0
    %3219 = vmatpush1.bf16.msra.mxu0 0
    %3220 = vmatprep.subr.bf16.mxu0 0
    %3221 = vmatpush1.bf16.msra.mxu0 0
    %3222 = vmatprep.subr.bf16.mxu0 0
    %3223 = vmatpush1.bf16.msra.mxu0 0
    %3224 = vmatprep.subr.bf16.mxu0 0
    %3225 = vmatpush1.bf16.msra.mxu0 0
    %3226 = vmatprep.subr.bf16.mxu0 0
    %3227 = vmatpush1.bf16.msra.mxu0 0
    %3228 = vmatprep.subr.bf16.mxu0 0
    %3229 = vmatpush1.bf16.msra.mxu0 0
    %3230 = vmatprep.subr.bf16.mxu0 0
    %3231 = vmatpush1.bf16.msra.mxu0 0
    %3232 = vmatprep.subr.bf16.mxu0 0
    %3233 = vmatpush1.bf16.msra.mxu0 0
    %3234 = vmatprep.subr.bf16.mxu0 0
    %3235 = vmatpush1.bf16.msra.mxu0 0
    %3236 = vmatprep.mubr.bf16.mxu0 0
    %3237 = vmatmul.mubr.bf16.gmra.mrb[0].mxu0 %v2716
    %v3238 = vpop.f32.mrb[0].mxu0
    %v3239 = vadd.f32 %v3178, %v3238
    %v3240 = vpop.f32.mrb[0].mxu0
    %v3241 = vpop.f32.mrb[0].mxu0
    %v3242 = vpop.f32.mrb[0].mxu0
    %3243 = vdwg.mxu0
    %s3244 = scalar_lea.vmem %s15, 352
    %v3245 = vld [vmem:[%s3244] sm:$0xf]
    %v3246 = vld [vmem:[%s3244 + $0x4] sm:$0xf]
    %v3247 = vld [vmem:[%s3244 + $0x8] sm:$0xf]
    %v3248 = vld [vmem:[%s3244 + $0xc] sm:$0xf]
    %v3249 = vld [vmem:[%s3244 + $0x10] sm:$0xf]
    %v3250 = vld [vmem:[%s3244 + $0x14] sm:$0xf]
    %v3251 = vld [vmem:[%s3244 + $0x18] sm:$0xf]
    %v3252 = vld [vmem:[%s3244 + $0x1c] sm:$0xf]
    %s3253 = scalar_lea.vmem %s16, 11
    %v3254 = vld [vmem:[%s3253] sm:$0x1]
    %v3256 = vlaneseq
    %v3257 = vshrl.u32 %v3256, 7
    %v3258 = vsub.s32 0, %v3257
    %v3259 = vrot.slane %v3254, %v3258
    %v3269 = vunpack.c.l.b16 %v3245
    %v3270 = vunpack.c.l.b16 %v3246
    %v3271 = vunpack.c.l.b16 %v3247
    %v3272 = vunpack.c.l.b16 %v3248
    %v3273 = vunpack.c.l.b16 %v3249
    %v3274 = vunpack.c.l.b16 %v3250
    %v3275 = vunpack.c.l.b16 %v3251
    %v3276 = vunpack.c.l.b16 %v3252
    %v3277 = vpack.c.b16 %v3270, %v3269
    %v3278 = vpack.c.b16 %v3272, %v3271
    %v3279 = vpack.c.b16 %v3274, %v3273
    %v3280 = vpack.c.b16 %v3276, %v3275
    %3285 = vmatprep.subr.bf16.mxu0 0
    %3286 = vmatpush1.bf16.msra.mxu0 %v3277
    %3287 = vmatprep.subr.bf16.mxu0 0
    %3288 = vmatpush1.bf16.msra.mxu0 %v3278
    %3289 = vmatprep.subr.bf16.mxu0 0
    %3290 = vmatpush1.bf16.msra.mxu0 %v3279
    %3291 = vmatprep.subr.bf16.mxu0 0
    %3292 = vmatpush1.bf16.msra.mxu0 %v3280
    %3293 = vmatprep.subr.bf16.mxu0 0
    %3294 = vmatpush1.bf16.msra.mxu0 0
    %3295 = vmatprep.subr.bf16.mxu0 0
    %3296 = vmatpush1.bf16.msra.mxu0 0
    %3297 = vmatprep.subr.bf16.mxu0 0
    %3298 = vmatpush1.bf16.msra.mxu0 0
    %3299 = vmatprep.subr.bf16.mxu0 0
    %3300 = vmatpush1.bf16.msra.mxu0 0
    %3301 = vmatprep.subr.bf16.mxu0 0
    %3302 = vmatpush1.bf16.msra.mxu0 0
    %3303 = vmatprep.subr.bf16.mxu0 0
    %3304 = vmatpush1.bf16.msra.mxu0 0
    %3305 = vmatprep.subr.bf16.mxu0 0
    %3306 = vmatpush1.bf16.msra.mxu0 0
    %3307 = vmatprep.subr.bf16.mxu0 0
    %3308 = vmatpush1.bf16.msra.mxu0 0
    %3309 = vmatprep.subr.bf16.mxu0 0
    %3310 = vmatpush1.bf16.msra.mxu0 0
    %3311 = vmatprep.subr.bf16.mxu0 0
    %3312 = vmatpush1.bf16.msra.mxu0 0
    %3313 = vmatprep.subr.bf16.mxu0 0
    %3314 = vmatpush1.bf16.msra.mxu0 0
    %3315 = vmatprep.subr.bf16.mxu0 0
    %3316 = vmatpush1.bf16.msra.mxu0 0
    %3317 = vmatprep.mubr.bf16.mxu0 0
    %3318 = vmatmul.mubr.bf16.gmra.mrb[0].mxu0 %v2716
    %v3319 = vpop.f32.mrb[0].mxu0
    %v3320 = vadd.f32 %v3259, %v3319
    %v3321 = vpop.f32.mrb[0].mxu0
    %v3322 = vpop.f32.mrb[0].mxu0
    %v3323 = vpop.f32.mrb[0].mxu0
    %3324 = vdwg.mxu0
    %v3325 = vpack.c.bf16 %v371, %v368
    %v3326 = vpack.c.bf16 %v2753, %v2753
    %v3328 = vsel %vm724, %v3325, 0
    %v3331 = vsel %vm724, %v3326, 0
    %3333 = vmatprep.subr.bf16.mxu0 0
    %3334 = vmatpush1.bf16.xpose.msra.mxu0 %v3331
    %3335 = vmatprep.subr.bf16.mxu0 0
    %3336 = vmatpush1.bf16.xpose.msra.mxu0 0
    %3337 = vmatprep.subr.bf16.mxu0 0
    %3338 = vmatpush1.bf16.xpose.msra.mxu0 0
    %3339 = vmatprep.subr.bf16.mxu0 0
    %3340 = vmatpush1.bf16.xpose.msra.mxu0 0
    %3341 = vmatprep.subr.bf16.mxu0 0
    %3342 = vmatpush1.bf16.xpose.msra.mxu0 0
    %3343 = vmatprep.subr.bf16.mxu0 0
    %3344 = vmatpush1.bf16.xpose.msra.mxu0 0
    %3345 = vmatprep.subr.bf16.mxu0 0
    %3346 = vmatpush1.bf16.xpose.msra.mxu0 0
    %3347 = vmatprep.subr.bf16.mxu0 0
    %3348 = vmatpush1.bf16.xpose.msra.mxu0 0
    %3349 = vmatprep.subr.bf16.mxu0 0
    %3350 = vmatpush1.bf16.xpose.msra.mxu0 0
    %3351 = vmatprep.subr.bf16.mxu0 0
    %3352 = vmatpush1.bf16.xpose.msra.mxu0 0
    %3353 = vmatprep.subr.bf16.mxu0 0
    %3354 = vmatpush1.bf16.xpose.msra.mxu0 0
    %3355 = vmatprep.subr.bf16.mxu0 0
    %3356 = vmatpush1.bf16.xpose.msra.mxu0 0
    %3357 = vmatprep.subr.bf16.mxu0 0
    %3358 = vmatpush1.bf16.xpose.msra.mxu0 0
    %3359 = vmatprep.subr.bf16.mxu0 0
    %3360 = vmatpush1.bf16.xpose.msra.mxu0 0
    %3361 = vmatprep.subr.bf16.mxu0 0
    %3362 = vmatpush1.bf16.xpose.msra.mxu0 0
    %3363 = vmatprep.subr.bf16.mxu0 0
    %3364 = vmatpush1.bf16.xpose.msra.mxu0 0
    %3365 = vmatprep.mubr.bf16.mxu0 0
    %3366 = vmatmul.mubr.bf16.gmra.mrb[0].mxu0 %v3328
    %v3367 = vpop.f32.mrb[0].mxu0
    %v3368 = vadd.f32 0.0, %v3367
    %v3369 = vpop.f32.mrb[0].mxu0
    %v3370 = vpop.f32.mrb[0].mxu0
    %v3371 = vadd.f32 0.0, %v3370
    %v3372 = vpop.f32.mrb[0].mxu0
    %3373 = vdwg.mxu0
    %vm3374 = vcmask 39936
    %v3375 = vsel %vm3374, %v3368, -inf
    %3376 = vmax.xlane.f32.xlu0 %v3375
    %v3377 = vpop.xlane.xlu0 %3376
    %v3378 = vsel %vm3374, %v3371, -inf
    %3379 = vmax.xlane.f32.xlu0 %v3378
    %v3380 = vpop.xlane.xlu0 %3379
    %v3381 = vsub.f32 %v3368, %v3377
    %v3382 = vsub.f32 %v3371, %v3380
    %v3383 = vmul.f32 %v3381, 1.442695
    %v3384 = vpow.pop %v3383
    %v3385 = vmul.f32 %v3382, 1.442695
    %v3386 = vpow.pop %v3385
    %v3387 = vsel %vm3374, %v3384, 0.0
    %3388 = vadd.xlane.f32.xlu0 %v3387
    %v3389 = vpop.xlane.xlu0 %3388
    %v3390 = vsel %vm3374, %v3386, 0.0
    %3391 = vadd.xlane.f32.xlu0 %v3390
    %v3392 = vpop.xlane.xlu0 %3391
    %v3393 = vrcp.pop %v3389
    %v3394 = vmul.f32 %v3384, %v3393
    %v3395 = vrcp.pop %v3392
    %v3396 = vmul.f32 %v3386, %v3395
    %v3397 = vpack.c.bf16 %v3396, %v3394
    %v3398 = vpack.c.bf16 %v3077, %v3077
    %v3400 = vsel %vm3374, %v3397, 0
    %vm3402 = vcmask 1041408
    %v3403 = vsel %vm3402, 4294967295, 65535
    %v3404 = vsel %vm2090, %v3403, 0
    %v3406 = vand.u32 %v3398, %v3404
    %3408 = vmatprep.subr.bf16.mxu0 0
    %3409 = vmatpush1.bf16.msra.mxu0 %v3406
    %3410 = vmatprep.subr.bf16.mxu0 0
    %3411 = vmatpush1.bf16.msra.mxu0 0
    %3412 = vmatprep.subr.bf16.mxu0 0
    %3413 = vmatpush1.bf16.msra.mxu0 0
    %3414 = vmatprep.subr.bf16.mxu0 0
    %3415 = vmatpush1.bf16.msra.mxu0 0
    %3416 = vmatprep.subr.bf16.mxu0 0
    %3417 = vmatpush1.bf16.msra.mxu0 0
    %3418 = vmatprep.subr.bf16.mxu0 0
    %3419 = vmatpush1.bf16.msra.mxu0 0
    %3420 = vmatprep.subr.bf16.mxu0 0
    %3421 = vmatpush1.bf16.msra.mxu0 0
    %3422 = vmatprep.subr.bf16.mxu0 0
    %3423 = vmatpush1.bf16.msra.mxu0 0
    %3424 = vmatprep.subr.bf16.mxu0 0
    %3425 = vmatpush1.bf16.msra.mxu0 0
    %3426 = vmatprep.subr.bf16.mxu0 0
    %3427 = vmatpush1.bf16.msra.mxu0 0
    %3428 = vmatprep.subr.bf16.mxu0 0
    %3429 = vmatpush1.bf16.msra.mxu0 0
    %3430 = vmatprep.subr.bf16.mxu0 0
    %3431 = vmatpush1.bf16.msra.mxu0 0
    %3432 = vmatprep.subr.bf16.mxu0 0
    %3433 = vmatpush1.bf16.msra.mxu0 0
    %3434 = vmatprep.subr.bf16.mxu0 0
    %3435 = vmatpush1.bf16.msra.mxu0 0
    %3436 = vmatprep.subr.bf16.mxu0 0
    %3437 = vmatpush1.bf16.msra.mxu0 0
    %3438 = vmatprep.subr.bf16.mxu0 0
    %3439 = vmatpush1.bf16.msra.mxu0 0
    %3440 = vmatprep.mubr.bf16.mxu0 0
    %3441 = vmatmul.mubr.bf16.gmra.mrb[0].mxu0 %v3400
    %v3442 = vpop.f32.mrb[0].mxu0
    %v3443 = vadd.f32 0.0, %v3442
    %v3444 = vpop.f32.mrb[0].mxu0
    %v3445 = vpop.f32.mrb[0].mxu0
    %v3446 = vadd.f32 0.0, %v3445
    %v3447 = vpop.f32.mrb[0].mxu0
    %3448 = vdwg.mxu0
    %v3449 = vld [vmem:[%s17] sm:$0xf]
    %v3450 = vld [vmem:[%s17 + $0x4] sm:$0xf]
    %v3451 = vpack.c.bf16 %v3446, %v3443
    %v3452 = vpack.c.bf16 %v453, %v450
    %v3453 = vpack.c.bf16 %v2834, %v2834
    %v3455 = vsel %vm724, %v3452, 0
    %v3458 = vsel %vm724, %v3453, 0
    %3460 = vmatprep.subr.bf16.mxu0 0
    %3461 = vmatpush1.bf16.xpose.msra.mxu0 %v3458
    %3462 = vmatprep.subr.bf16.mxu0 0
    %3463 = vmatpush1.bf16.xpose.msra.mxu0 0
    %3464 = vmatprep.subr.bf16.mxu0 0
    %3465 = vmatpush1.bf16.xpose.msra.mxu0 0
    %3466 = vmatprep.subr.bf16.mxu0 0
    %3467 = vmatpush1.bf16.xpose.msra.mxu0 0
    %3468 = vmatprep.subr.bf16.mxu0 0
    %3469 = vmatpush1.bf16.xpose.msra.mxu0 0
    %3470 = vmatprep.subr.bf16.mxu0 0
    %3471 = vmatpush1.bf16.xpose.msra.mxu0 0
    %3472 = vmatprep.subr.bf16.mxu0 0
    %3473 = vmatpush1.bf16.xpose.msra.mxu0 0
    %3474 = vmatprep.subr.bf16.mxu0 0
    %3475 = vmatpush1.bf16.xpose.msra.mxu0 0
    %3476 = vmatprep.subr.bf16.mxu0 0
    %3477 = vmatpush1.bf16.xpose.msra.mxu0 0
    %3478 = vmatprep.subr.bf16.mxu0 0
    %3479 = vmatpush1.bf16.xpose.msra.mxu0 0
    %3480 = vmatprep.subr.bf16.mxu0 0
    %3481 = vmatpush1.bf16.xpose.msra.mxu0 0
    %3482 = vmatprep.subr.bf16.mxu0 0
    %3483 = vmatpush1.bf16.xpose.msra.mxu0 0
    %3484 = vmatprep.subr.bf16.mxu0 0
    %3485 = vmatpush1.bf16.xpose.msra.mxu0 0
    %3486 = vmatprep.subr.bf16.mxu0 0
    %3487 = vmatpush1.bf16.xpose.msra.mxu0 0
    %3488 = vmatprep.subr.bf16.mxu0 0
    %3489 = vmatpush1.bf16.xpose.msra.mxu0 0
    %3490 = vmatprep.subr.bf16.mxu0 0
    %3491 = vmatpush1.bf16.xpose.msra.mxu0 0
    %3492 = vmatprep.mubr.bf16.mxu0 0
    %3493 = vmatmul.mubr.bf16.gmra.mrb[0].mxu0 %v3455
    %v3494 = vpop.f32.mrb[0].mxu0
    %v3495 = vadd.f32 0.0, %v3494
    %v3496 = vpop.f32.mrb[0].mxu0
    %v3497 = vpop.f32.mrb[0].mxu0
    %v3498 = vadd.f32 0.0, %v3497
    %v3499 = vpop.f32.mrb[0].mxu0
    %3500 = vdwg.mxu0
    %v3501 = vsel %vm3374, %v3495, -inf
    %3502 = vmax.xlane.f32.xlu0 %v3501
    %v3503 = vpop.xlane.xlu0 %3502
    %v3504 = vsel %vm3374, %v3498, -inf
    %3505 = vmax.xlane.f32.xlu0 %v3504
    %v3506 = vpop.xlane.xlu0 %3505
    %v3507 = vsub.f32 %v3495, %v3503
    %v3508 = vsub.f32 %v3498, %v3506
    %v3509 = vmul.f32 %v3507, 1.442695
    %v3510 = vpow.pop %v3509
    %v3511 = vmul.f32 %v3508, 1.442695
    %v3512 = vpow.pop %v3511
    %v3513 = vsel %vm3374, %v3510, 0.0
    %3514 = vadd.xlane.f32.xlu0 %v3513
    %v3515 = vpop.xlane.xlu0 %3514
    %v3516 = vsel %vm3374, %v3512, 0.0
    %3517 = vadd.xlane.f32.xlu0 %v3516
    %v3518 = vpop.xlane.xlu0 %3517
    %v3519 = vrcp.pop %v3515
    %v3520 = vmul.f32 %v3510, %v3519
    %v3521 = vrcp.pop %v3518
    %v3522 = vmul.f32 %v3512, %v3521
    %v3523 = vpack.c.bf16 %v3522, %v3520
    %v3524 = vpack.c.bf16 %v3158, %v3158
    %v3526 = vsel %vm3374, %v3523, 0
    %v3529 = vand.u32 %v3524, %v3404
    %3531 = vmatprep.subr.bf16.mxu0 0
    %3532 = vmatpush1.bf16.msra.mxu0 %v3529
    %3533 = vmatprep.subr.bf16.mxu0 0
    %3534 = vmatpush1.bf16.msra.mxu0 0
    %3535 = vmatprep.subr.bf16.mxu0 0
    %3536 = vmatpush1.bf16.msra.mxu0 0
    %3537 = vmatprep.subr.bf16.mxu0 0
    %3538 = vmatpush1.bf16.msra.mxu0 0
    %3539 = vmatprep.subr.bf16.mxu0 0
    %3540 = vmatpush1.bf16.msra.mxu0 0
    %3541 = vmatprep.subr.bf16.mxu0 0
    %3542 = vmatpush1.bf16.msra.mxu0 0
    %3543 = vmatprep.subr.bf16.mxu0 0
    %3544 = vmatpush1.bf16.msra.mxu0 0
    %3545 = vmatprep.subr.bf16.mxu0 0
    %3546 = vmatpush1.bf16.msra.mxu0 0
    %3547 = vmatprep.subr.bf16.mxu0 0
    %3548 = vmatpush1.bf16.msra.mxu0 0
    %3549 = vmatprep.subr.bf16.mxu0 0
    %3550 = vmatpush1.bf16.msra.mxu0 0
    %3551 = vmatprep.subr.bf16.mxu0 0
    %3552 = vmatpush1.bf16.msra.mxu0 0
    %3553 = vmatprep.subr.bf16.mxu0 0
    %3554 = vmatpush1.bf16.msra.mxu0 0
    %3555 = vmatprep.subr.bf16.mxu0 0
    %3556 = vmatpush1.bf16.msra.mxu0 0
    %3557 = vmatprep.subr.bf16.mxu0 0
    %3558 = vmatpush1.bf16.msra.mxu0 0
    %3559 = vmatprep.subr.bf16.mxu0 0
    %3560 = vmatpush1.bf16.msra.mxu0 0
    %3561 = vmatprep.subr.bf16.mxu0 0
    %3562 = vmatpush1.bf16.msra.mxu0 0
    %3563 = vmatprep.mubr.bf16.mxu0 0
    %3564 = vmatmul.mubr.bf16.gmra.mrb[0].mxu0 %v3526
    %v3565 = vpop.f32.mrb[0].mxu0
    %v3566 = vadd.f32 0.0, %v3565
    %v3567 = vpop.f32.mrb[0].mxu0
    %v3568 = vpop.f32.mrb[0].mxu0
    %v3569 = vadd.f32 0.0, %v3568
    %v3570 = vpop.f32.mrb[0].mxu0
    %3571 = vdwg.mxu0
    %s3572 = scalar_lea.vmem %s17, 8
    %v3573 = vld [vmem:[%s3572] sm:$0xf]
    %v3574 = vld [vmem:[%s3572 + $0x4] sm:$0xf]
    %v3575 = vpack.c.bf16 %v3569, %v3566
    %v3578 = vunpack.c.l.b16 %v3573
    %v3579 = vunpack.c.l.b16 %v3574
    %v3580 = vpack.c.b16 %v3579, %v3578
    %v3583 = vsel %vm724, %v3575, 0
    %3585 = vmatprep.subr.bf16.mxu0 0
    %3586 = vmatpush1.bf16.msra.mxu0 %v3580
    %3587 = vmatprep.subr.bf16.mxu0 0
    %3588 = vmatpush1.bf16.msra.mxu0 0
    %3589 = vmatprep.subr.bf16.mxu0 0
    %3590 = vmatpush1.bf16.msra.mxu0 0
    %3591 = vmatprep.subr.bf16.mxu0 0
    %3592 = vmatpush1.bf16.msra.mxu0 0
    %3593 = vmatprep.subr.bf16.mxu0 0
    %3594 = vmatpush1.bf16.msra.mxu0 0
    %3595 = vmatprep.subr.bf16.mxu0 0
    %3596 = vmatpush1.bf16.msra.mxu0 0
    %3597 = vmatprep.subr.bf16.mxu0 0
    %3598 = vmatpush1.bf16.msra.mxu0 0
    %3599 = vmatprep.subr.bf16.mxu0 0
    %3600 = vmatpush1.bf16.msra.mxu0 0
    %3601 = vmatprep.subr.bf16.mxu0 0
    %3602 = vmatpush1.bf16.msra.mxu0 0
    %3603 = vmatprep.subr.bf16.mxu0 0
    %3604 = vmatpush1.bf16.msra.mxu0 0
    %3605 = vmatprep.subr.bf16.mxu0 0
    %3606 = vmatpush1.bf16.msra.mxu0 0
    %3607 = vmatprep.subr.bf16.mxu0 0
    %3608 = vmatpush1.bf16.msra.mxu0 0
    %3609 = vmatprep.subr.bf16.mxu0 0
    %3610 = vmatpush1.bf16.msra.mxu0 0
    %3611 = vmatprep.subr.bf16.mxu0 0
    %3612 = vmatpush1.bf16.msra.mxu0 0
    %3613 = vmatprep.subr.bf16.mxu0 0
    %3614 = vmatpush1.bf16.msra.mxu0 0
    %3615 = vmatprep.subr.bf16.mxu0 0
    %3616 = vmatpush1.bf16.msra.mxu0 0
    %3617 = vmatprep.mubr.bf16.mxu0 0
    %3618 = vmatmul.mubr.bf16.gmra.mrb[0].mxu0 %v3583
    %v3619 = vpop.f32.mrb[0].mxu0
    %v3620 = vadd.f32 0.0, %v3619
    %v3621 = vpop.f32.mrb[0].mxu0
    %v3622 = vpop.f32.mrb[0].mxu0
    %v3623 = vadd.f32 0.0, %v3622
    %v3624 = vpop.f32.mrb[0].mxu0
    %3625 = vdwg.mxu0
    %v3628 = vunpack.c.l.b16 %v3449
    %v3629 = vunpack.c.l.b16 %v3450
    %v3630 = vpack.c.b16 %v3629, %v3628
    %v3633 = vsel %vm724, %v3451, 0
    %3635 = vmatprep.subr.bf16.mxu0 0
    %3636 = vmatpush1.bf16.msra.mxu0 %v3630
    %3637 = vmatprep.subr.bf16.mxu0 0
    %3638 = vmatpush1.bf16.msra.mxu0 0
    %3639 = vmatprep.subr.bf16.mxu0 0
    %3640 = vmatpush1.bf16.msra.mxu0 0
    %3641 = vmatprep.subr.bf16.mxu0 0
    %3642 = vmatpush1.bf16.msra.mxu0 0
    %3643 = vmatprep.subr.bf16.mxu0 0
    %3644 = vmatpush1.bf16.msra.mxu0 0
    %3645 = vmatprep.subr.bf16.mxu0 0
    %3646 = vmatpush1.bf16.msra.mxu0 0
    %3647 = vmatprep.subr.bf16.mxu0 0
    %3648 = vmatpush1.bf16.msra.mxu0 0
    %3649 = vmatprep.subr.bf16.mxu0 0
    %3650 = vmatpush1.bf16.msra.mxu0 0
    %3651 = vmatprep.subr.bf16.mxu0 0
    %3652 = vmatpush1.bf16.msra.mxu0 0
    %3653 = vmatprep.subr.bf16.mxu0 0
    %3654 = vmatpush1.bf16.msra.mxu0 0
    %3655 = vmatprep.subr.bf16.mxu0 0
    %3656 = vmatpush1.bf16.msra.mxu0 0
    %3657 = vmatprep.subr.bf16.mxu0 0
    %3658 = vmatpush1.bf16.msra.mxu0 0
    %3659 = vmatprep.subr.bf16.mxu0 0
    %3660 = vmatpush1.bf16.msra.mxu0 0
    %3661 = vmatprep.subr.bf16.mxu0 0
    %3662 = vmatpush1.bf16.msra.mxu0 0
    %3663 = vmatprep.subr.bf16.mxu0 0
    %3664 = vmatpush1.bf16.msra.mxu0 0
    %3665 = vmatprep.subr.bf16.mxu0 0
    %3666 = vmatpush1.bf16.msra.mxu0 0
    %3667 = vmatprep.mubr.bf16.mxu0 0
    %3668 = vmatmul.mubr.bf16.gmra.mrb[0].mxu0 %v3633
    %v3669 = vpop.f32.mrb[0].mxu0
    %v3670 = vadd.f32 %v3620, %v3669
    %v3671 = vpop.f32.mrb[0].mxu0
    %v3672 = vpop.f32.mrb[0].mxu0
    %v3673 = vadd.f32 %v3623, %v3672
    %v3674 = vpop.f32.mrb[0].mxu0
    %3675 = vdwg.mxu0
    %v3676 = vpack.c.bf16 %v535, %v532
    %v3677 = vpack.c.bf16 %v2915, %v2915
    %v3679 = vsel %vm724, %v3676, 0
    %v3682 = vsel %vm724, %v3677, 0
    %3684 = vmatprep.subr.bf16.mxu0 0
    %3685 = vmatpush1.bf16.xpose.msra.mxu0 %v3682
    %3686 = vmatprep.subr.bf16.mxu0 0
    %3687 = vmatpush1.bf16.xpose.msra.mxu0 0
    %3688 = vmatprep.subr.bf16.mxu0 0
    %3689 = vmatpush1.bf16.xpose.msra.mxu0 0
    %3690 = vmatprep.subr.bf16.mxu0 0
    %3691 = vmatpush1.bf16.xpose.msra.mxu0 0
    %3692 = vmatprep.subr.bf16.mxu0 0
    %3693 = vmatpush1.bf16.xpose.msra.mxu0 0
    %3694 = vmatprep.subr.bf16.mxu0 0
    %3695 = vmatpush1.bf16.xpose.msra.mxu0 0
    %3696 = vmatprep.subr.bf16.mxu0 0
    %3697 = vmatpush1.bf16.xpose.msra.mxu0 0
    %3698 = vmatprep.subr.bf16.mxu0 0
    %3699 = vmatpush1.bf16.xpose.msra.mxu0 0
    %3700 = vmatprep.subr.bf16.mxu0 0
    %3701 = vmatpush1.bf16.xpose.msra.mxu0 0
    %3702 = vmatprep.subr.bf16.mxu0 0
    %3703 = vmatpush1.bf16.xpose.msra.mxu0 0
    %3704 = vmatprep.subr.bf16.mxu0 0
    %3705 = vmatpush1.bf16.xpose.msra.mxu0 0
    %3706 = vmatprep.subr.bf16.mxu0 0
    %3707 = vmatpush1.bf16.xpose.msra.mxu0 0
    %3708 = vmatprep.subr.bf16.mxu0 0
    %3709 = vmatpush1.bf16.xpose.msra.mxu0 0
    %3710 = vmatprep.subr.bf16.mxu0 0
    %3711 = vmatpush1.bf16.xpose.msra.mxu0 0
    %3712 = vmatprep.subr.bf16.mxu0 0
    %3713 = vmatpush1.bf16.xpose.msra.mxu0 0
    %3714 = vmatprep.subr.bf16.mxu0 0
    %3715 = vmatpush1.bf16.xpose.msra.mxu0 0
    %3716 = vmatprep.mubr.bf16.mxu0 0
    %3717 = vmatmul.mubr.bf16.gmra.mrb[0].mxu0 %v3679
    %v3718 = vpop.f32.mrb[0].mxu0
    %v3719 = vadd.f32 0.0, %v3718
    %v3720 = vpop.f32.mrb[0].mxu0
    %v3721 = vpop.f32.mrb[0].mxu0
    %v3722 = vadd.f32 0.0, %v3721
    %v3723 = vpop.f32.mrb[0].mxu0
    %3724 = vdwg.mxu0
    %v3725 = vsel %vm3374, %v3719, -inf
    %3726 = vmax.xlane.f32.xlu0 %v3725
    %v3727 = vpop.xlane.xlu0 %3726
    %v3728 = vsel %vm3374, %v3722, -inf
    %3729 = vmax.xlane.f32.xlu0 %v3728
    %v3730 = vpop.xlane.xlu0 %3729
    %v3731 = vsub.f32 %v3719, %v3727
    %v3732 = vsub.f32 %v3722, %v3730
    %v3733 = vmul.f32 %v3731, 1.442695
    %v3734 = vpow.pop %v3733
    %v3735 = vmul.f32 %v3732, 1.442695
    %v3736 = vpow.pop %v3735
    %v3737 = vsel %vm3374, %v3734, 0.0
    %3738 = vadd.xlane.f32.xlu0 %v3737
    %v3739 = vpop.xlane.xlu0 %3738
    %v3740 = vsel %vm3374, %v3736, 0.0
    %3741 = vadd.xlane.f32.xlu0 %v3740
    %v3742 = vpop.xlane.xlu0 %3741
    %v3743 = vrcp.pop %v3739
    %v3744 = vmul.f32 %v3734, %v3743
    %v3745 = vrcp.pop %v3742
    %v3746 = vmul.f32 %v3736, %v3745
    %v3747 = vpack.c.bf16 %v3746, %v3744
    %v3748 = vpack.c.bf16 %v3239, %v3239
    %v3750 = vsel %vm3374, %v3747, 0
    %v3753 = vand.u32 %v3748, %v3404
    %3755 = vmatprep.subr.bf16.mxu0 0
    %3756 = vmatpush1.bf16.msra.mxu0 %v3753
    %3757 = vmatprep.subr.bf16.mxu0 0
    %3758 = vmatpush1.bf16.msra.mxu0 0
    %3759 = vmatprep.subr.bf16.mxu0 0
    %3760 = vmatpush1.bf16.msra.mxu0 0
    %3761 = vmatprep.subr.bf16.mxu0 0
    %3762 = vmatpush1.bf16.msra.mxu0 0
    %3763 = vmatprep.subr.bf16.mxu0 0
    %3764 = vmatpush1.bf16.msra.mxu0 0
    %3765 = vmatprep.subr.bf16.mxu0 0
    %3766 = vmatpush1.bf16.msra.mxu0 0
    %3767 = vmatprep.subr.bf16.mxu0 0
    %3768 = vmatpush1.bf16.msra.mxu0 0
    %3769 = vmatprep.subr.bf16.mxu0 0
    %3770 = vmatpush1.bf16.msra.mxu0 0
    %3771 = vmatprep.subr.bf16.mxu0 0
    %3772 = vmatpush1.bf16.msra.mxu0 0
    %3773 = vmatprep.subr.bf16.mxu0 0
    %3774 = vmatpush1.bf16.msra.mxu0 0
    %3775 = vmatprep.subr.bf16.mxu0 0
    %3776 = vmatpush1.bf16.msra.mxu0 0
    %3777 = vmatprep.subr.bf16.mxu0 0
    %3778 = vmatpush1.bf16.msra.mxu0 0
    %3779 = vmatprep.subr.bf16.mxu0 0
    %3780 = vmatpush1.bf16.msra.mxu0 0
    %3781 = vmatprep.subr.bf16.mxu0 0
    %3782 = vmatpush1.bf16.msra.mxu0 0
    %3783 = vmatprep.subr.bf16.mxu0 0
    %3784 = vmatpush1.bf16.msra.mxu0 0
    %3785 = vmatprep.subr.bf16.mxu0 0
    %3786 = vmatpush1.bf16.msra.mxu0 0
    %3787 = vmatprep.mubr.bf16.mxu0 0
    %3788 = vmatmul.mubr.bf16.gmra.mrb[0].mxu0 %v3750
    %v3789 = vpop.f32.mrb[0].mxu0
    %v3790 = vadd.f32 0.0, %v3789
    %v3791 = vpop.f32.mrb[0].mxu0
    %v3792 = vpop.f32.mrb[0].mxu0
    %v3793 = vadd.f32 0.0, %v3792
    %v3794 = vpop.f32.mrb[0].mxu0
    %3795 = vdwg.mxu0
    %s3796 = scalar_lea.vmem %s17, 16
    %v3797 = vld [vmem:[%s3796] sm:$0xf]
    %v3798 = vld [vmem:[%s3796 + $0x4] sm:$0xf]
    %v3799 = vpack.c.bf16 %v3793, %v3790
    %v3802 = vunpack.c.l.b16 %v3797
    %v3803 = vunpack.c.l.b16 %v3798
    %v3804 = vpack.c.b16 %v3803, %v3802
    %v3807 = vsel %vm724, %v3799, 0
    %3809 = vmatprep.subr.bf16.mxu0 0
    %3810 = vmatpush1.bf16.msra.mxu0 %v3804
    %3811 = vmatprep.subr.bf16.mxu0 0
    %3812 = vmatpush1.bf16.msra.mxu0 0
    %3813 = vmatprep.subr.bf16.mxu0 0
    %3814 = vmatpush1.bf16.msra.mxu0 0
    %3815 = vmatprep.subr.bf16.mxu0 0
    %3816 = vmatpush1.bf16.msra.mxu0 0
    %3817 = vmatprep.subr.bf16.mxu0 0
    %3818 = vmatpush1.bf16.msra.mxu0 0
    %3819 = vmatprep.subr.bf16.mxu0 0
    %3820 = vmatpush1.bf16.msra.mxu0 0
    %3821 = vmatprep.subr.bf16.mxu0 0
    %3822 = vmatpush1.bf16.msra.mxu0 0
    %3823 = vmatprep.subr.bf16.mxu0 0
    %3824 = vmatpush1.bf16.msra.mxu0 0
    %3825 = vmatprep.subr.bf16.mxu0 0
    %3826 = vmatpush1.bf16.msra.mxu0 0
    %3827 = vmatprep.subr.bf16.mxu0 0
    %3828 = vmatpush1.bf16.msra.mxu0 0
    %3829 = vmatprep.subr.bf16.mxu0 0
    %3830 = vmatpush1.bf16.msra.mxu0 0
    %3831 = vmatprep.subr.bf16.mxu0 0
    %3832 = vmatpush1.bf16.msra.mxu0 0
    %3833 = vmatprep.subr.bf16.mxu0 0
    %3834 = vmatpush1.bf16.msra.mxu0 0
    %3835 = vmatprep.subr.bf16.mxu0 0
    %3836 = vmatpush1.bf16.msra.mxu0 0
    %3837 = vmatprep.subr.bf16.mxu0 0
    %3838 = vmatpush1.bf16.msra.mxu0 0
    %3839 = vmatprep.subr.bf16.mxu0 0
    %3840 = vmatpush1.bf16.msra.mxu0 0
    %3841 = vmatprep.mubr.bf16.mxu0 0
    %3842 = vmatmul.mubr.bf16.gmra.mrb[0].mxu0 %v3807
    %v3843 = vpop.f32.mrb[0].mxu0
    %v3844 = vadd.f32 0.0, %v3843
    %v3845 = vpop.f32.mrb[0].mxu0
    %v3846 = vpop.f32.mrb[0].mxu0
    %v3847 = vadd.f32 0.0, %v3846
    %v3848 = vpop.f32.mrb[0].mxu0
    %3849 = vdwg.mxu0
    %v3850 = vadd.f32 %v3670, %v3844
    %v3851 = vadd.f32 %v3673, %v3847
    %v3852 = vpack.c.bf16 %v617, %v614
    %v3853 = vpack.c.bf16 %v2996, %v2996
    %v3855 = vsel %vm724, %v3852, 0
    %v3858 = vsel %vm724, %v3853, 0
    %3860 = vmatprep.subr.bf16.mxu0 0
    %3861 = vmatpush1.bf16.xpose.msra.mxu0 %v3858
    %3862 = vmatprep.subr.bf16.mxu0 0
    %3863 = vmatpush1.bf16.xpose.msra.mxu0 0
    %3864 = vmatprep.subr.bf16.mxu0 0
    %3865 = vmatpush1.bf16.xpose.msra.mxu0 0
    %3866 = vmatprep.subr.bf16.mxu0 0
    %3867 = vmatpush1.bf16.xpose.msra.mxu0 0
    %3868 = vmatprep.subr.bf16.mxu0 0
    %3869 = vmatpush1.bf16.xpose.msra.mxu0 0
    %3870 = vmatprep.subr.bf16.mxu0 0
    %3871 = vmatpush1.bf16.xpose.msra.mxu0 0
    %3872 = vmatprep.subr.bf16.mxu0 0
    %3873 = vmatpush1.bf16.xpose.msra.mxu0 0
    %3874 = vmatprep.subr.bf16.mxu0 0
    %3875 = vmatpush1.bf16.xpose.msra.mxu0 0
    %3876 = vmatprep.subr.bf16.mxu0 0
    %3877 = vmatpush1.bf16.xpose.msra.mxu0 0
    %3878 = vmatprep.subr.bf16.mxu0 0
    %3879 = vmatpush1.bf16.xpose.msra.mxu0 0
    %3880 = vmatprep.subr.bf16.mxu0 0
    %3881 = vmatpush1.bf16.xpose.msra.mxu0 0
    %3882 = vmatprep.subr.bf16.mxu0 0
    %3883 = vmatpush1.bf16.xpose.msra.mxu0 0
    %3884 = vmatprep.subr.bf16.mxu0 0
    %3885 = vmatpush1.bf16.xpose.msra.mxu0 0
    %3886 = vmatprep.subr.bf16.mxu0 0
    %3887 = vmatpush1.bf16.xpose.msra.mxu0 0
    %3888 = vmatprep.subr.bf16.mxu0 0
    %3889 = vmatpush1.bf16.xpose.msra.mxu0 0
    %3890 = vmatprep.subr.bf16.mxu0 0
    %3891 = vmatpush1.bf16.xpose.msra.mxu0 0
    %3892 = vmatprep.mubr.bf16.mxu0 0
    %3893 = vmatmul.mubr.bf16.gmra.mrb[0].mxu0 %v3855
    %v3894 = vpop.f32.mrb[0].mxu0
    %v3895 = vadd.f32 0.0, %v3894
    %v3896 = vpop.f32.mrb[0].mxu0
    %v3897 = vpop.f32.mrb[0].mxu0
    %v3898 = vadd.f32 0.0, %v3897
    %v3899 = vpop.f32.mrb[0].mxu0
    %3900 = vdwg.mxu0
    %v3901 = vsel %vm3374, %v3895, -inf
    %3902 = vmax.xlane.f32.xlu0 %v3901
    %v3903 = vpop.xlane.xlu0 %3902
    %v3904 = vsel %vm3374, %v3898, -inf
    %3905 = vmax.xlane.f32.xlu0 %v3904
    %v3906 = vpop.xlane.xlu0 %3905
    %v3907 = vsub.f32 %v3895, %v3903
    %v3908 = vsub.f32 %v3898, %v3906
    %v3909 = vmul.f32 %v3907, 1.442695
    %v3910 = vpow.pop %v3909
    %v3911 = vmul.f32 %v3908, 1.442695
    %v3912 = vpow.pop %v3911
    %v3913 = vsel %vm3374, %v3910, 0.0
    %3914 = vadd.xlane.f32.xlu0 %v3913
    %v3915 = vpop.xlane.xlu0 %3914
    %v3916 = vsel %vm3374, %v3912, 0.0
    %3917 = vadd.xlane.f32.xlu0 %v3916
    %v3918 = vpop.xlane.xlu0 %3917
    %v3919 = vrcp.pop %v3915
    %v3920 = vmul.f32 %v3910, %v3919
    %v3921 = vrcp.pop %v3918
    %v3922 = vmul.f32 %v3912, %v3921
    %v3923 = vpack.c.bf16 %v3922, %v3920
    %v3924 = vpack.c.bf16 %v3320, %v3320
    %v3926 = vsel %vm3374, %v3923, 0
    %v3929 = vand.u32 %v3924, %v3404
    %3931 = vmatprep.subr.bf16.mxu0 0
    %3932 = vmatpush1.bf16.msra.mxu0 %v3929
    %3933 = vmatprep.subr.bf16.mxu0 0
    %3934 = vmatpush1.bf16.msra.mxu0 0
    %3935 = vmatprep.subr.bf16.mxu0 0
    %3936 = vmatpush1.bf16.msra.mxu0 0
    %3937 = vmatprep.subr.bf16.mxu0 0
    %3938 = vmatpush1.bf16.msra.mxu0 0
    %3939 = vmatprep.subr.bf16.mxu0 0
    %3940 = vmatpush1.bf16.msra.mxu0 0
    %3941 = vmatprep.subr.bf16.mxu0 0
    %3942 = vmatpush1.bf16.msra.mxu0 0
    %3943 = vmatprep.subr.bf16.mxu0 0
    %3944 = vmatpush1.bf16.msra.mxu0 0
    %3945 = vmatprep.subr.bf16.mxu0 0
    %3946 = vmatpush1.bf16.msra.mxu0 0
    %3947 = vmatprep.subr.bf16.mxu0 0
    %3948 = vmatpush1.bf16.msra.mxu0 0
    %3949 = vmatprep.subr.bf16.mxu0 0
    %3950 = vmatpush1.bf16.msra.mxu0 0
    %3951 = vmatprep.subr.bf16.mxu0 0
    %3952 = vmatpush1.bf16.msra.mxu0 0
    %3953 = vmatprep.subr.bf16.mxu0 0
    %3954 = vmatpush1.bf16.msra.mxu0 0
    %3955 = vmatprep.subr.bf16.mxu0 0
    %3956 = vmatpush1.bf16.msra.mxu0 0
    %3957 = vmatprep.subr.bf16.mxu0 0
    %3958 = vmatpush1.bf16.msra.mxu0 0
    %3959 = vmatprep.subr.bf16.mxu0 0
    %3960 = vmatpush1.bf16.msra.mxu0 0
    %3961 = vmatprep.subr.bf16.mxu0 0
    %3962 = vmatpush1.bf16.msra.mxu0 0
    %3963 = vmatprep.mubr.bf16.mxu0 0
    %3964 = vmatmul.mubr.bf16.gmra.mrb[0].mxu0 %v3926
    %v3965 = vpop.f32.mrb[0].mxu0
    %v3966 = vadd.f32 0.0, %v3965
    %v3967 = vpop.f32.mrb[0].mxu0
    %v3968 = vpop.f32.mrb[0].mxu0
    %v3969 = vadd.f32 0.0, %v3968
    %v3970 = vpop.f32.mrb[0].mxu0
    %3971 = vdwg.mxu0
    %s3972 = scalar_lea.vmem %s17, 24
    %v3973 = vld [vmem:[%s3972] sm:$0xf]
    %v3974 = vld [vmem:[%s3972 + $0x4] sm:$0xf]
    %v3975 = vpack.c.bf16 %v3969, %v3966
    %v3978 = vunpack.c.l.b16 %v3973
    %v3979 = vunpack.c.l.b16 %v3974
    %v3980 = vpack.c.b16 %v3979, %v3978
    %v3983 = vsel %vm724, %v3975, 0
    %3985 = vmatprep.subr.bf16.mxu0 0
    %3986 = vmatpush1.bf16.msra.mxu0 %v3980
    %3987 = vmatprep.subr.bf16.mxu0 0
    %3988 = vmatpush1.bf16.msra.mxu0 0
    %3989 = vmatprep.subr.bf16.mxu0 0
    %3990 = vmatpush1.bf16.msra.mxu0 0
    %3991 = vmatprep.subr.bf16.mxu0 0
    %3992 = vmatpush1.bf16.msra.mxu0 0
    %3993 = vmatprep.subr.bf16.mxu0 0
    %3994 = vmatpush1.bf16.msra.mxu0 0
    %3995 = vmatprep.subr.bf16.mxu0 0
    %3996 = vmatpush1.bf16.msra.mxu0 0
    %3997 = vmatprep.subr.bf16.mxu0 0
    %3998 = vmatpush1.bf16.msra.mxu0 0
    %3999 = vmatprep.subr.bf16.mxu0 0
    %4000 = vmatpush1.bf16.msra.mxu0 0
    %4001 = vmatprep.subr.bf16.mxu0 0
    %4002 = vmatpush1.bf16.msra.mxu0 0
    %4003 = vmatprep.subr.bf16.mxu0 0
    %4004 = vmatpush1.bf16.msra.mxu0 0
    %4005 = vmatprep.subr.bf16.mxu0 0
    %4006 = vmatpush1.bf16.msra.mxu0 0
    %4007 = vmatprep.subr.bf16.mxu0 0
    %4008 = vmatpush1.bf16.msra.mxu0 0
    %4009 = vmatprep.subr.bf16.mxu0 0
    %4010 = vmatpush1.bf16.msra.mxu0 0
    %4011 = vmatprep.subr.bf16.mxu0 0
    %4012 = vmatpush1.bf16.msra.mxu0 0
    %4013 = vmatprep.subr.bf16.mxu0 0
    %4014 = vmatpush1.bf16.msra.mxu0 0
    %4015 = vmatprep.subr.bf16.mxu0 0
    %4016 = vmatpush1.bf16.msra.mxu0 0
    %4017 = vmatprep.mubr.bf16.mxu0 0
    %4018 = vmatmul.mubr.bf16.gmra.mrb[0].mxu0 %v3983
    %v4019 = vpop.f32.mrb[0].mxu0
    %v4020 = vadd.f32 0.0, %v4019
    %v4021 = vpop.f32.mrb[0].mxu0
    %v4022 = vpop.f32.mrb[0].mxu0
    %v4023 = vadd.f32 0.0, %v4022
    %v4024 = vpop.f32.mrb[0].mxu0
    %4025 = vdwg.mxu0
    %v4026 = vadd.f32 %v3850, %v4020
    %v4027 = vadd.f32 %v3851, %v4023
    %v4028 = vlaneseq
    %v4029 = vshrl.u32 %v4028, 7
    %v4030 = vsub.s32 3, %v4029
    %v4031 = vrot.slane %v71, %v4030
    %v4032 = vadd.f32 %v4026, %v4031
    %v4033 = vadd.f32 %v4027, %v4031
    %v4034 = vmax.f32 %v4032, 0.0
    %v4035 = vmax.f32 %v4033, 0.0
    %v4036 = vld [vmem:[%s18] sm:$0xf]
    %v4037 = vld [vmem:[%s18 + $0x4] sm:$0xf]
    %v4038 = vld [vmem:[%s18 + $0x8] sm:$0xf]
    %v4039 = vld [vmem:[%s18 + $0xc] sm:$0xf]
    %v4040 = vld [vmem:[%s18 + $0x10] sm:$0xf]
    %v4041 = vld [vmem:[%s18 + $0x14] sm:$0xf]
    %v4042 = vld [vmem:[%s18 + $0x18] sm:$0xf]
    %v4043 = vld [vmem:[%s18 + $0x1c] sm:$0xf]
    %v4044 = vpack.c.bf16 %v4034, %v4034
    %v4053 = vunpack.c.l.b16 %v4036
    %v4054 = vunpack.c.l.b16 %v4037
    %v4055 = vunpack.c.l.b16 %v4038
    %v4056 = vunpack.c.l.b16 %v4039
    %v4057 = vunpack.c.l.b16 %v4040
    %v4058 = vunpack.c.l.b16 %v4041
    %v4059 = vunpack.c.l.b16 %v4042
    %v4060 = vunpack.c.l.b16 %v4043
    %v4061 = vpack.c.b16 %v4054, %v4053
    %v4062 = vpack.c.b16 %v4056, %v4055
    %v4063 = vpack.c.b16 %v4058, %v4057
    %v4064 = vpack.c.b16 %v4060, %v4059
    %v4070 = vsel %vm245, %v4044, 0
    %4072 = vmatprep.subr.bf16.mxu0 0
    %4073 = vmatpush1.bf16.msra.mxu0 %v4061
    %4074 = vmatprep.subr.bf16.mxu0 0
    %4075 = vmatpush1.bf16.msra.mxu0 %v4062
    %4076 = vmatprep.subr.bf16.mxu0 0
    %4077 = vmatpush1.bf16.msra.mxu0 %v4063
    %4078 = vmatprep.subr.bf16.mxu0 0
    %4079 = vmatpush1.bf16.msra.mxu0 %v4064
    %4080 = vmatprep.subr.bf16.mxu0 0
    %4081 = vmatpush1.bf16.msra.mxu0 0
    %4082 = vmatprep.subr.bf16.mxu0 0
    %4083 = vmatpush1.bf16.msra.mxu0 0
    %4084 = vmatprep.subr.bf16.mxu0 0
    %4085 = vmatpush1.bf16.msra.mxu0 0
    %4086 = vmatprep.subr.bf16.mxu0 0
    %4087 = vmatpush1.bf16.msra.mxu0 0
    %4088 = vmatprep.subr.bf16.mxu0 0
    %4089 = vmatpush1.bf16.msra.mxu0 0
    %4090 = vmatprep.subr.bf16.mxu0 0
    %4091 = vmatpush1.bf16.msra.mxu0 0
    %4092 = vmatprep.subr.bf16.mxu0 0
    %4093 = vmatpush1.bf16.msra.mxu0 0
    %4094 = vmatprep.subr.bf16.mxu0 0
    %4095 = vmatpush1.bf16.msra.mxu0 0
    %4096 = vmatprep.subr.bf16.mxu0 0
    %4097 = vmatpush1.bf16.msra.mxu0 0
    %4098 = vmatprep.subr.bf16.mxu0 0
    %4099 = vmatpush1.bf16.msra.mxu0 0
    %4100 = vmatprep.subr.bf16.mxu0 0
    %4101 = vmatpush1.bf16.msra.mxu0 0
    %4102 = vmatprep.subr.bf16.mxu0 0
    %4103 = vmatpush1.bf16.msra.mxu0 0
    %4104 = vmatprep.mubr.bf16.mxu0 0
    %4105 = vmatmul.mubr.bf16.gmra.mrb[0].mxu0 %v4070
    %v4106 = vpop.f32.mrb[0].mxu0
    %v4107 = vadd.f32 0.0, %v4106
    %v4108 = vpop.f32.mrb[0].mxu0
    %v4109 = vpop.f32.mrb[0].mxu0
    %v4110 = vpop.f32.mrb[0].mxu0
    %4111 = vdwg.mxu0
    %v4113 = vrot.slane %v4107, 4
    %v4115 = vadd.f32 %v71, %v4113
    %s4116 = scalar_lea.vmem %s18, 32
    %v4117 = vld [vmem:[%s4116] sm:$0xf]
    %v4118 = vld [vmem:[%s4116 + $0x4] sm:$0xf]
    %v4119 = vld [vmem:[%s4116 + $0x8] sm:$0xf]
    %v4120 = vld [vmem:[%s4116 + $0xc] sm:$0xf]
    %v4121 = vld [vmem:[%s4116 + $0x10] sm:$0xf]
    %v4122 = vld [vmem:[%s4116 + $0x14] sm:$0xf]
    %v4123 = vld [vmem:[%s4116 + $0x18] sm:$0xf]
    %v4124 = vld [vmem:[%s4116 + $0x1c] sm:$0xf]
    %v4125 = vshrl.u32 %v4044, 16
    %v4135 = vunpack.c.l.b16 %v4117
    %v4136 = vunpack.c.l.b16 %v4118
    %v4137 = vunpack.c.l.b16 %v4119
    %v4138 = vunpack.c.l.b16 %v4120
    %v4139 = vunpack.c.l.b16 %v4121
    %v4140 = vunpack.c.l.b16 %v4122
    %v4141 = vunpack.c.l.b16 %v4123
    %v4142 = vunpack.c.l.b16 %v4124
    %v4143 = vpack.c.b16 %v4136, %v4135
    %v4144 = vpack.c.b16 %v4138, %v4137
    %v4145 = vpack.c.b16 %v4140, %v4139
    %v4146 = vpack.c.b16 %v4142, %v4141
    %v4152 = vsel %vm245, %v4125, 0
    %4154 = vmatprep.subr.bf16.mxu0 0
    %4155 = vmatpush1.bf16.msra.mxu0 %v4143
    %4156 = vmatprep.subr.bf16.mxu0 0
    %4157 = vmatpush1.bf16.msra.mxu0 %v4144
    %4158 = vmatprep.subr.bf16.mxu0 0
    %4159 = vmatpush1.bf16.msra.mxu0 %v4145
    %4160 = vmatprep.subr.bf16.mxu0 0
    %4161 = vmatpush1.bf16.msra.mxu0 %v4146
    %4162 = vmatprep.subr.bf16.mxu0 0
    %4163 = vmatpush1.bf16.msra.mxu0 0
    %4164 = vmatprep.subr.bf16.mxu0 0
    %4165 = vmatpush1.bf16.msra.mxu0 0
    %4166 = vmatprep.subr.bf16.mxu0 0
    %4167 = vmatpush1.bf16.msra.mxu0 0
    %4168 = vmatprep.subr.bf16.mxu0 0
    %4169 = vmatpush1.bf16.msra.mxu0 0
    %4170 = vmatprep.subr.bf16.mxu0 0
    %4171 = vmatpush1.bf16.msra.mxu0 0
    %4172 = vmatprep.subr.bf16.mxu0 0
    %4173 = vmatpush1.bf16.msra.mxu0 0
    %4174 = vmatprep.subr.bf16.mxu0 0
    %4175 = vmatpush1.bf16.msra.mxu0 0
    %4176 = vmatprep.subr.bf16.mxu0 0
    %4177 = vmatpush1.bf16.msra.mxu0 0
    %4178 = vmatprep.subr.bf16.mxu0 0
    %4179 = vmatpush1.bf16.msra.mxu0 0
    %4180 = vmatprep.subr.bf16.mxu0 0
    %4181 = vmatpush1.bf16.msra.mxu0 0
    %4182 = vmatprep.subr.bf16.mxu0 0
    %4183 = vmatpush1.bf16.msra.mxu0 0
    %4184 = vmatprep.subr.bf16.mxu0 0
    %4185 = vmatpush1.bf16.msra.mxu0 0
    %4186 = vmatprep.mubr.bf16.mxu0 0
    %4187 = vmatmul.mubr.bf16.gmra.mrb[0].mxu0 %v4152
    %v4188 = vpop.f32.mrb[0].mxu0
    %v4189 = vadd.f32 0.0, %v4188
    %v4190 = vpop.f32.mrb[0].mxu0
    %v4191 = vpop.f32.mrb[0].mxu0
    %v4192 = vpop.f32.mrb[0].mxu0
    %4193 = vdwg.mxu0
    %v4195 = vrot.slane %v4189, 4
    %v4197 = vadd.f32 %v4115, %v4195
    %s4198 = scalar_lea.vmem %s18, 64
    %v4199 = vld [vmem:[%s4198] sm:$0xf]
    %v4200 = vld [vmem:[%s4198 + $0x4] sm:$0xf]
    %v4201 = vld [vmem:[%s4198 + $0x8] sm:$0xf]
    %v4202 = vld [vmem:[%s4198 + $0xc] sm:$0xf]
    %v4203 = vld [vmem:[%s4198 + $0x10] sm:$0xf]
    %v4204 = vld [vmem:[%s4198 + $0x14] sm:$0xf]
    %v4205 = vld [vmem:[%s4198 + $0x18] sm:$0xf]
    %v4206 = vld [vmem:[%s4198 + $0x1c] sm:$0xf]
    %v4208 = vrot.slane %v4044, 1
    %v4217 = vunpack.c.l.b16 %v4199
    %v4218 = vunpack.c.l.b16 %v4200
    %v4219 = vunpack.c.l.b16 %v4201
    %v4220 = vunpack.c.l.b16 %v4202
    %v4221 = vunpack.c.l.b16 %v4203
    %v4222 = vunpack.c.l.b16 %v4204
    %v4223 = vunpack.c.l.b16 %v4205
    %v4224 = vunpack.c.l.b16 %v4206
    %v4225 = vpack.c.b16 %v4218, %v4217
    %v4226 = vpack.c.b16 %v4220, %v4219
    %v4227 = vpack.c.b16 %v4222, %v4221
    %v4228 = vpack.c.b16 %v4224, %v4223
    %v4234 = vsel %vm245, %v4208, 0
    %4236 = vmatprep.subr.bf16.mxu0 0
    %4237 = vmatpush1.bf16.msra.mxu0 %v4225
    %4238 = vmatprep.subr.bf16.mxu0 0
    %4239 = vmatpush1.bf16.msra.mxu0 %v4226
    %4240 = vmatprep.subr.bf16.mxu0 0
    %4241 = vmatpush1.bf16.msra.mxu0 %v4227
    %4242 = vmatprep.subr.bf16.mxu0 0
    %4243 = vmatpush1.bf16.msra.mxu0 %v4228
    %4244 = vmatprep.subr.bf16.mxu0 0
    %4245 = vmatpush1.bf16.msra.mxu0 0
    %4246 = vmatprep.subr.bf16.mxu0 0
    %4247 = vmatpush1.bf16.msra.mxu0 0
    %4248 = vmatprep.subr.bf16.mxu0 0
    %4249 = vmatpush1.bf16.msra.mxu0 0
    %4250 = vmatprep.subr.bf16.mxu0 0
    %4251 = vmatpush1.bf16.msra.mxu0 0
    %4252 = vmatprep.subr.bf16.mxu0 0
    %4253 = vmatpush1.bf16.msra.mxu0 0
    %4254 = vmatprep.subr.bf16.mxu0 0
    %4255 = vmatpush1.bf16.msra.mxu0 0
    %4256 = vmatprep.subr.bf16.mxu0 0
    %4257 = vmatpush1.bf16.msra.mxu0 0
    %4258 = vmatprep.subr.bf16.mxu0 0
    %4259 = vmatpush1.bf16.msra.mxu0 0
    %4260 = vmatprep.subr.bf16.mxu0 0
    %4261 = vmatpush1.bf16.msra.mxu0 0
    %4262 = vmatprep.subr.bf16.mxu0 0
    %4263 = vmatpush1.bf16.msra.mxu0 0
    %4264 = vmatprep.subr.bf16.mxu0 0
    %4265 = vmatpush1.bf16.msra.mxu0 0
    %4266 = vmatprep.subr.bf16.mxu0 0
    %4267 = vmatpush1.bf16.msra.mxu0 0
    %4268 = vmatprep.mubr.bf16.mxu0 0
    %4269 = vmatmul.mubr.bf16.gmra.mrb[0].mxu0 %v4234
    %v4270 = vpop.f32.mrb[0].mxu0
    %v4271 = vadd.f32 0.0, %v4270
    %v4272 = vpop.f32.mrb[0].mxu0
    %v4273 = vpop.f32.mrb[0].mxu0
    %v4274 = vpop.f32.mrb[0].mxu0
    %4275 = vdwg.mxu0
    %v4277 = vrot.slane %v4271, 4
    %v4279 = vadd.f32 %v4197, %v4277
    %s4280 = scalar_lea.vmem %s18, 96
    %v4281 = vld [vmem:[%s4280] sm:$0xf]
    %v4282 = vld [vmem:[%s4280 + $0x4] sm:$0xf]
    %v4283 = vld [vmem:[%s4280 + $0x8] sm:$0xf]
    %v4284 = vld [vmem:[%s4280 + $0xc] sm:$0xf]
    %v4285 = vld [vmem:[%s4280 + $0x10] sm:$0xf]
    %v4286 = vld [vmem:[%s4280 + $0x14] sm:$0xf]
    %v4287 = vld [vmem:[%s4280 + $0x18] sm:$0xf]
    %v4288 = vld [vmem:[%s4280 + $0x1c] sm:$0xf]
    %v4289 = vrot.slane %v4125, 1
    %v4298 = vunpack.c.l.b16 %v4281
    %v4299 = vunpack.c.l.b16 %v4282
    %v4300 = vunpack.c.l.b16 %v4283
    %v4301 = vunpack.c.l.b16 %v4284
    %v4302 = vunpack.c.l.b16 %v4285
    %v4303 = vunpack.c.l.b16 %v4286
    %v4304 = vunpack.c.l.b16 %v4287
    %v4305 = vunpack.c.l.b16 %v4288
    %v4306 = vpack.c.b16 %v4299, %v4298
    %v4307 = vpack.c.b16 %v4301, %v4300
    %v4308 = vpack.c.b16 %v4303, %v4302
    %v4309 = vpack.c.b16 %v4305, %v4304
    %v4315 = vsel %vm245, %v4289, 0
    %4317 = vmatprep.subr.bf16.mxu0 0
    %4318 = vmatpush1.bf16.msra.mxu0 %v4306
    %4319 = vmatprep.subr.bf16.mxu0 0
    %4320 = vmatpush1.bf16.msra.mxu0 %v4307
    %4321 = vmatprep.subr.bf16.mxu0 0
    %4322 = vmatpush1.bf16.msra.mxu0 %v4308
    %4323 = vmatprep.subr.bf16.mxu0 0
    %4324 = vmatpush1.bf16.msra.mxu0 %v4309
    %4325 = vmatprep.subr.bf16.mxu0 0
    %4326 = vmatpush1.bf16.msra.mxu0 0
    %4327 = vmatprep.subr.bf16.mxu0 0
    %4328 = vmatpush1.bf16.msra.mxu0 0
    %4329 = vmatprep.subr.bf16.mxu0 0
    %4330 = vmatpush1.bf16.msra.mxu0 0
    %4331 = vmatprep.subr.bf16.mxu0 0
    %4332 = vmatpush1.bf16.msra.mxu0 0
    %4333 = vmatprep.subr.bf16.mxu0 0
    %4334 = vmatpush1.bf16.msra.mxu0 0
    %4335 = vmatprep.subr.bf16.mxu0 0
    %4336 = vmatpush1.bf16.msra.mxu0 0
    %4337 = vmatprep.subr.bf16.mxu0 0
    %4338 = vmatpush1.bf16.msra.mxu0 0
    %4339 = vmatprep.subr.bf16.mxu0 0
    %4340 = vmatpush1.bf16.msra.mxu0 0
    %4341 = vmatprep.subr.bf16.mxu0 0
    %4342 = vmatpush1.bf16.msra.mxu0 0
    %4343 = vmatprep.subr.bf16.mxu0 0
    %4344 = vmatpush1.bf16.msra.mxu0 0
    %4345 = vmatprep.subr.bf16.mxu0 0
    %4346 = vmatpush1.bf16.msra.mxu0 0
    %4347 = vmatprep.subr.bf16.mxu0 0
    %4348 = vmatpush1.bf16.msra.mxu0 0
    %4349 = vmatprep.mubr.bf16.mxu0 0
    %4350 = vmatmul.mubr.bf16.gmra.mrb[0].mxu0 %v4315
    %v4351 = vpop.f32.mrb[0].mxu0
    %v4352 = vadd.f32 0.0, %v4351
    %v4353 = vpop.f32.mrb[0].mxu0
    %v4354 = vpop.f32.mrb[0].mxu0
    %v4355 = vpop.f32.mrb[0].mxu0
    %4356 = vdwg.mxu0
    %v4358 = vrot.slane %v4352, 4
    %v4360 = vadd.f32 %v4279, %v4358
    %s4361 = scalar_lea.vmem %s18, 128
    %v4362 = vld [vmem:[%s4361] sm:$0xf]
    %v4363 = vld [vmem:[%s4361 + $0x4] sm:$0xf]
    %v4364 = vld [vmem:[%s4361 + $0x8] sm:$0xf]
    %v4365 = vld [vmem:[%s4361 + $0xc] sm:$0xf]
    %v4366 = vld [vmem:[%s4361 + $0x10] sm:$0xf]
    %v4367 = vld [vmem:[%s4361 + $0x14] sm:$0xf]
    %v4368 = vld [vmem:[%s4361 + $0x18] sm:$0xf]
    %v4369 = vld [vmem:[%s4361 + $0x1c] sm:$0xf]
    %v4370 = vrot.slane %v4044, 2
    %v4379 = vunpack.c.l.b16 %v4362
    %v4380 = vunpack.c.l.b16 %v4363
    %v4381 = vunpack.c.l.b16 %v4364
    %v4382 = vunpack.c.l.b16 %v4365
    %v4383 = vunpack.c.l.b16 %v4366
    %v4384 = vunpack.c.l.b16 %v4367
    %v4385 = vunpack.c.l.b16 %v4368
    %v4386 = vunpack.c.l.b16 %v4369
    %v4387 = vpack.c.b16 %v4380, %v4379
    %v4388 = vpack.c.b16 %v4382, %v4381
    %v4389 = vpack.c.b16 %v4384, %v4383
    %v4390 = vpack.c.b16 %v4386, %v4385
    %v4396 = vsel %vm245, %v4370, 0
    %4398 = vmatprep.subr.bf16.mxu0 0
    %4399 = vmatpush1.bf16.msra.mxu0 %v4387
    %4400 = vmatprep.subr.bf16.mxu0 0
    %4401 = vmatpush1.bf16.msra.mxu0 %v4388
    %4402 = vmatprep.subr.bf16.mxu0 0
    %4403 = vmatpush1.bf16.msra.mxu0 %v4389
    %4404 = vmatprep.subr.bf16.mxu0 0
    %4405 = vmatpush1.bf16.msra.mxu0 %v4390
    %4406 = vmatprep.subr.bf16.mxu0 0
    %4407 = vmatpush1.bf16.msra.mxu0 0
    %4408 = vmatprep.subr.bf16.mxu0 0
    %4409 = vmatpush1.bf16.msra.mxu0 0
    %4410 = vmatprep.subr.bf16.mxu0 0
    %4411 = vmatpush1.bf16.msra.mxu0 0
    %4412 = vmatprep.subr.bf16.mxu0 0
    %4413 = vmatpush1.bf16.msra.mxu0 0
    %4414 = vmatprep.subr.bf16.mxu0 0
    %4415 = vmatpush1.bf16.msra.mxu0 0
    %4416 = vmatprep.subr.bf16.mxu0 0
    %4417 = vmatpush1.bf16.msra.mxu0 0
    %4418 = vmatprep.subr.bf16.mxu0 0
    %4419 = vmatpush1.bf16.msra.mxu0 0
    %4420 = vmatprep.subr.bf16.mxu0 0
    %4421 = vmatpush1.bf16.msra.mxu0 0
    %4422 = vmatprep.subr.bf16.mxu0 0
    %4423 = vmatpush1.bf16.msra.mxu0 0
    %4424 = vmatprep.subr.bf16.mxu0 0
    %4425 = vmatpush1.bf16.msra.mxu0 0
    %4426 = vmatprep.subr.bf16.mxu0 0
    %4427 = vmatpush1.bf16.msra.mxu0 0
    %4428 = vmatprep.subr.bf16.mxu0 0
    %4429 = vmatpush1.bf16.msra.mxu0 0
    %4430 = vmatprep.mubr.bf16.mxu0 0
    %4431 = vmatmul.mubr.bf16.gmra.mrb[0].mxu0 %v4396
    %v4432 = vpop.f32.mrb[0].mxu0
    %v4433 = vadd.f32 0.0, %v4432
    %v4434 = vpop.f32.mrb[0].mxu0
    %v4435 = vpop.f32.mrb[0].mxu0
    %v4436 = vpop.f32.mrb[0].mxu0
    %4437 = vdwg.mxu0
    %v4439 = vrot.slane %v4433, 4
    %v4441 = vadd.f32 %v4360, %v4439
    %s4442 = scalar_lea.vmem %s18, 160
    %v4443 = vld [vmem:[%s4442] sm:$0xf]
    %v4444 = vld [vmem:[%s4442 + $0x4] sm:$0xf]
    %v4445 = vld [vmem:[%s4442 + $0x8] sm:$0xf]
    %v4446 = vld [vmem:[%s4442 + $0xc] sm:$0xf]
    %v4447 = vld [vmem:[%s4442 + $0x10] sm:$0xf]
    %v4448 = vld [vmem:[%s4442 + $0x14] sm:$0xf]
    %v4449 = vld [vmem:[%s4442 + $0x18] sm:$0xf]
    %v4450 = vld [vmem:[%s4442 + $0x1c] sm:$0xf]
    %v4451 = vrot.slane %v4125, 2
    %v4460 = vunpack.c.l.b16 %v4443
    %v4461 = vunpack.c.l.b16 %v4444
    %v4462 = vunpack.c.l.b16 %v4445
    %v4463 = vunpack.c.l.b16 %v4446
    %v4464 = vunpack.c.l.b16 %v4447
    %v4465 = vunpack.c.l.b16 %v4448
    %v4466 = vunpack.c.l.b16 %v4449
    %v4467 = vunpack.c.l.b16 %v4450
    %v4468 = vpack.c.b16 %v4461, %v4460
    %v4469 = vpack.c.b16 %v4463, %v4462
    %v4470 = vpack.c.b16 %v4465, %v4464
    %v4471 = vpack.c.b16 %v4467, %v4466
    %v4477 = vsel %vm245, %v4451, 0
    %4479 = vmatprep.subr.bf16.mxu0 0
    %4480 = vmatpush1.bf16.msra.mxu0 %v4468
    %4481 = vmatprep.subr.bf16.mxu0 0
    %4482 = vmatpush1.bf16.msra.mxu0 %v4469
    %4483 = vmatprep.subr.bf16.mxu0 0
    %4484 = vmatpush1.bf16.msra.mxu0 %v4470
    %4485 = vmatprep.subr.bf16.mxu0 0
    %4486 = vmatpush1.bf16.msra.mxu0 %v4471
    %4487 = vmatprep.subr.bf16.mxu0 0
    %4488 = vmatpush1.bf16.msra.mxu0 0
    %4489 = vmatprep.subr.bf16.mxu0 0
    %4490 = vmatpush1.bf16.msra.mxu0 0
    %4491 = vmatprep.subr.bf16.mxu0 0
    %4492 = vmatpush1.bf16.msra.mxu0 0
    %4493 = vmatprep.subr.bf16.mxu0 0
    %4494 = vmatpush1.bf16.msra.mxu0 0
    %4495 = vmatprep.subr.bf16.mxu0 0
    %4496 = vmatpush1.bf16.msra.mxu0 0
    %4497 = vmatprep.subr.bf16.mxu0 0
    %4498 = vmatpush1.bf16.msra.mxu0 0
    %4499 = vmatprep.subr.bf16.mxu0 0
    %4500 = vmatpush1.bf16.msra.mxu0 0
    %4501 = vmatprep.subr.bf16.mxu0 0
    %4502 = vmatpush1.bf16.msra.mxu0 0
    %4503 = vmatprep.subr.bf16.mxu0 0
    %4504 = vmatpush1.bf16.msra.mxu0 0
    %4505 = vmatprep.subr.bf16.mxu0 0
    %4506 = vmatpush1.bf16.msra.mxu0 0
    %4507 = vmatprep.subr.bf16.mxu0 0
    %4508 = vmatpush1.bf16.msra.mxu0 0
    %4509 = vmatprep.subr.bf16.mxu0 0
    %4510 = vmatpush1.bf16.msra.mxu0 0
    %4511 = vmatprep.mubr.bf16.mxu0 0
    %4512 = vmatmul.mubr.bf16.gmra.mrb[0].mxu0 %v4477
    %v4513 = vpop.f32.mrb[0].mxu0
    %v4514 = vadd.f32 0.0, %v4513
    %v4515 = vpop.f32.mrb[0].mxu0
    %v4516 = vpop.f32.mrb[0].mxu0
    %v4517 = vpop.f32.mrb[0].mxu0
    %4518 = vdwg.mxu0
    %v4520 = vrot.slane %v4514, 4
    %v4522 = vadd.f32 %v4441, %v4520
    %s4523 = scalar_lea.vmem %s18, 192
    %v4524 = vld [vmem:[%s4523] sm:$0xf]
    %v4525 = vld [vmem:[%s4523 + $0x4] sm:$0xf]
    %v4526 = vld [vmem:[%s4523 + $0x8] sm:$0xf]
    %v4527 = vld [vmem:[%s4523 + $0xc] sm:$0xf]
    %v4528 = vld [vmem:[%s4523 + $0x10] sm:$0xf]
    %v4529 = vld [vmem:[%s4523 + $0x14] sm:$0xf]
    %v4530 = vld [vmem:[%s4523 + $0x18] sm:$0xf]
    %v4531 = vld [vmem:[%s4523 + $0x1c] sm:$0xf]
    %v4532 = vrot.slane %v4044, 3
    %v4541 = vunpack.c.l.b16 %v4524
    %v4542 = vunpack.c.l.b16 %v4525
    %v4543 = vunpack.c.l.b16 %v4526
    %v4544 = vunpack.c.l.b16 %v4527
    %v4545 = vunpack.c.l.b16 %v4528
    %v4546 = vunpack.c.l.b16 %v4529
    %v4547 = vunpack.c.l.b16 %v4530
    %v4548 = vunpack.c.l.b16 %v4531
    %v4549 = vpack.c.b16 %v4542, %v4541
    %v4550 = vpack.c.b16 %v4544, %v4543
    %v4551 = vpack.c.b16 %v4546, %v4545
    %v4552 = vpack.c.b16 %v4548, %v4547
    %v4558 = vsel %vm245, %v4532, 0
    %4560 = vmatprep.subr.bf16.mxu0 0
    %4561 = vmatpush1.bf16.msra.mxu0 %v4549
    %4562 = vmatprep.subr.bf16.mxu0 0
    %4563 = vmatpush1.bf16.msra.mxu0 %v4550
    %4564 = vmatprep.subr.bf16.mxu0 0
    %4565 = vmatpush1.bf16.msra.mxu0 %v4551
    %4566 = vmatprep.subr.bf16.mxu0 0
    %4567 = vmatpush1.bf16.msra.mxu0 %v4552
    %4568 = vmatprep.subr.bf16.mxu0 0
    %4569 = vmatpush1.bf16.msra.mxu0 0
    %4570 = vmatprep.subr.bf16.mxu0 0
    %4571 = vmatpush1.bf16.msra.mxu0 0
    %4572 = vmatprep.subr.bf16.mxu0 0
    %4573 = vmatpush1.bf16.msra.mxu0 0
    %4574 = vmatprep.subr.bf16.mxu0 0
    %4575 = vmatpush1.bf16.msra.mxu0 0
    %4576 = vmatprep.subr.bf16.mxu0 0
    %4577 = vmatpush1.bf16.msra.mxu0 0
    %4578 = vmatprep.subr.bf16.mxu0 0
    %4579 = vmatpush1.bf16.msra.mxu0 0
    %4580 = vmatprep.subr.bf16.mxu0 0
    %4581 = vmatpush1.bf16.msra.mxu0 0
    %4582 = vmatprep.subr.bf16.mxu0 0
    %4583 = vmatpush1.bf16.msra.mxu0 0
    %4584 = vmatprep.subr.bf16.mxu0 0
    %4585 = vmatpush1.bf16.msra.mxu0 0
    %4586 = vmatprep.subr.bf16.mxu0 0
    %4587 = vmatpush1.bf16.msra.mxu0 0
    %4588 = vmatprep.subr.bf16.mxu0 0
    %4589 = vmatpush1.bf16.msra.mxu0 0
    %4590 = vmatprep.subr.bf16.mxu0 0
    %4591 = vmatpush1.bf16.msra.mxu0 0
    %4592 = vmatprep.mubr.bf16.mxu0 0
    %4593 = vmatmul.mubr.bf16.gmra.mrb[0].mxu0 %v4558
    %v4594 = vpop.f32.mrb[0].mxu0
    %v4595 = vadd.f32 0.0, %v4594
    %v4596 = vpop.f32.mrb[0].mxu0
    %v4597 = vpop.f32.mrb[0].mxu0
    %v4598 = vpop.f32.mrb[0].mxu0
    %4599 = vdwg.mxu0
    %v4601 = vrot.slane %v4595, 4
    %v4603 = vadd.f32 %v4522, %v4601
    %s4604 = scalar_lea.vmem %s18, 224
    %v4605 = vld [vmem:[%s4604] sm:$0xf]
    %v4606 = vld [vmem:[%s4604 + $0x4] sm:$0xf]
    %v4607 = vld [vmem:[%s4604 + $0x8] sm:$0xf]
    %v4608 = vld [vmem:[%s4604 + $0xc] sm:$0xf]
    %v4609 = vld [vmem:[%s4604 + $0x10] sm:$0xf]
    %v4610 = vld [vmem:[%s4604 + $0x14] sm:$0xf]
    %v4611 = vld [vmem:[%s4604 + $0x18] sm:$0xf]
    %v4612 = vld [vmem:[%s4604 + $0x1c] sm:$0xf]
    %v4613 = vrot.slane %v4125, 3
    %v4622 = vunpack.c.l.b16 %v4605
    %v4623 = vunpack.c.l.b16 %v4606
    %v4624 = vunpack.c.l.b16 %v4607
    %v4625 = vunpack.c.l.b16 %v4608
    %v4626 = vunpack.c.l.b16 %v4609
    %v4627 = vunpack.c.l.b16 %v4610
    %v4628 = vunpack.c.l.b16 %v4611
    %v4629 = vunpack.c.l.b16 %v4612
    %v4630 = vpack.c.b16 %v4623, %v4622
    %v4631 = vpack.c.b16 %v4625, %v4624
    %v4632 = vpack.c.b16 %v4627, %v4626
    %v4633 = vpack.c.b16 %v4629, %v4628
    %v4639 = vsel %vm245, %v4613, 0
    %4641 = vmatprep.subr.bf16.mxu0 0
    %4642 = vmatpush1.bf16.msra.mxu0 %v4630
    %4643 = vmatprep.subr.bf16.mxu0 0
    %4644 = vmatpush1.bf16.msra.mxu0 %v4631
    %4645 = vmatprep.subr.bf16.mxu0 0
    %4646 = vmatpush1.bf16.msra.mxu0 %v4632
    %4647 = vmatprep.subr.bf16.mxu0 0
    %4648 = vmatpush1.bf16.msra.mxu0 %v4633
    %4649 = vmatprep.subr.bf16.mxu0 0
    %4650 = vmatpush1.bf16.msra.mxu0 0
    %4651 = vmatprep.subr.bf16.mxu0 0
    %4652 = vmatpush1.bf16.msra.mxu0 0
    %4653 = vmatprep.subr.bf16.mxu0 0
    %4654 = vmatpush1.bf16.msra.mxu0 0
    %4655 = vmatprep.subr.bf16.mxu0 0
    %4656 = vmatpush1.bf16.msra.mxu0 0
    %4657 = vmatprep.subr.bf16.mxu0 0
    %4658 = vmatpush1.bf16.msra.mxu0 0
    %4659 = vmatprep.subr.bf16.mxu0 0
    %4660 = vmatpush1.bf16.msra.mxu0 0
    %4661 = vmatprep.subr.bf16.mxu0 0
    %4662 = vmatpush1.bf16.msra.mxu0 0
    %4663 = vmatprep.subr.bf16.mxu0 0
    %4664 = vmatpush1.bf16.msra.mxu0 0
    %4665 = vmatprep.subr.bf16.mxu0 0
    %4666 = vmatpush1.bf16.msra.mxu0 0
    %4667 = vmatprep.subr.bf16.mxu0 0
    %4668 = vmatpush1.bf16.msra.mxu0 0
    %4669 = vmatprep.subr.bf16.mxu0 0
    %4670 = vmatpush1.bf16.msra.mxu0 0
    %4671 = vmatprep.subr.bf16.mxu0 0
    %4672 = vmatpush1.bf16.msra.mxu0 0
    %4673 = vmatprep.mubr.bf16.mxu0 0
    %4674 = vmatmul.mubr.bf16.gmra.mrb[0].mxu0 %v4639
    %v4675 = vpop.f32.mrb[0].mxu0
    %v4676 = vadd.f32 0.0, %v4675
    %v4677 = vpop.f32.mrb[0].mxu0
    %v4678 = vpop.f32.mrb[0].mxu0
    %v4679 = vpop.f32.mrb[0].mxu0
    %4680 = vdwg.mxu0
    %v4682 = vrot.slane %v4676, 4
    %v4684 = vadd.f32 %v4603, %v4682
    %s4685 = scalar_lea.vmem %s18, 256
    %v4686 = vld [vmem:[%s4685] sm:$0xf]
    %v4687 = vld [vmem:[%s4685 + $0x4] sm:$0xf]
    %v4688 = vld [vmem:[%s4685 + $0x8] sm:$0xf]
    %v4689 = vld [vmem:[%s4685 + $0xc] sm:$0xf]
    %v4690 = vld [vmem:[%s4685 + $0x10] sm:$0xf]
    %v4691 = vld [vmem:[%s4685 + $0x14] sm:$0xf]
    %v4692 = vld [vmem:[%s4685 + $0x18] sm:$0xf]
    %v4693 = vld [vmem:[%s4685 + $0x1c] sm:$0xf]
    %v4694 = vpack.c.bf16 %v4035, %v4035
    %v4703 = vunpack.c.l.b16 %v4686
    %v4704 = vunpack.c.l.b16 %v4687
    %v4705 = vunpack.c.l.b16 %v4688
    %v4706 = vunpack.c.l.b16 %v4689
    %v4707 = vunpack.c.l.b16 %v4690
    %v4708 = vunpack.c.l.b16 %v4691
    %v4709 = vunpack.c.l.b16 %v4692
    %v4710 = vunpack.c.l.b16 %v4693
    %v4711 = vpack.c.b16 %v4704, %v4703
    %v4712 = vpack.c.b16 %v4706, %v4705
    %v4713 = vpack.c.b16 %v4708, %v4707
    %v4714 = vpack.c.b16 %v4710, %v4709
    %v4720 = vsel %vm245, %v4694, 0
    %4722 = vmatprep.subr.bf16.mxu0 0
    %4723 = vmatpush1.bf16.msra.mxu0 %v4711
    %4724 = vmatprep.subr.bf16.mxu0 0
    %4725 = vmatpush1.bf16.msra.mxu0 %v4712
    %4726 = vmatprep.subr.bf16.mxu0 0
    %4727 = vmatpush1.bf16.msra.mxu0 %v4713
    %4728 = vmatprep.subr.bf16.mxu0 0
    %4729 = vmatpush1.bf16.msra.mxu0 %v4714
    %4730 = vmatprep.subr.bf16.mxu0 0
    %4731 = vmatpush1.bf16.msra.mxu0 0
    %4732 = vmatprep.subr.bf16.mxu0 0
    %4733 = vmatpush1.bf16.msra.mxu0 0
    %4734 = vmatprep.subr.bf16.mxu0 0
    %4735 = vmatpush1.bf16.msra.mxu0 0
    %4736 = vmatprep.subr.bf16.mxu0 0
    %4737 = vmatpush1.bf16.msra.mxu0 0
    %4738 = vmatprep.subr.bf16.mxu0 0
    %4739 = vmatpush1.bf16.msra.mxu0 0
    %4740 = vmatprep.subr.bf16.mxu0 0
    %4741 = vmatpush1.bf16.msra.mxu0 0
    %4742 = vmatprep.subr.bf16.mxu0 0
    %4743 = vmatpush1.bf16.msra.mxu0 0
    %4744 = vmatprep.subr.bf16.mxu0 0
    %4745 = vmatpush1.bf16.msra.mxu0 0
    %4746 = vmatprep.subr.bf16.mxu0 0
    %4747 = vmatpush1.bf16.msra.mxu0 0
    %4748 = vmatprep.subr.bf16.mxu0 0
    %4749 = vmatpush1.bf16.msra.mxu0 0
    %4750 = vmatprep.subr.bf16.mxu0 0
    %4751 = vmatpush1.bf16.msra.mxu0 0
    %4752 = vmatprep.subr.bf16.mxu0 0
    %4753 = vmatpush1.bf16.msra.mxu0 0
    %4754 = vmatprep.mubr.bf16.mxu0 0
    %4755 = vmatmul.mubr.bf16.gmra.mrb[0].mxu0 %v4720
    %v4756 = vpop.f32.mrb[0].mxu0
    %v4757 = vadd.f32 0.0, %v4756
    %v4758 = vpop.f32.mrb[0].mxu0
    %v4759 = vpop.f32.mrb[0].mxu0
    %v4760 = vpop.f32.mrb[0].mxu0
    %4761 = vdwg.mxu0
    %v4763 = vrot.slane %v4757, 4
    %v4765 = vadd.f32 %v4684, %v4763
    %s4766 = scalar_lea.vmem %s18, 288
    %v4767 = vld [vmem:[%s4766] sm:$0xf]
    %v4768 = vld [vmem:[%s4766 + $0x4] sm:$0xf]
    %v4769 = vld [vmem:[%s4766 + $0x8] sm:$0xf]
    %v4770 = vld [vmem:[%s4766 + $0xc] sm:$0xf]
    %v4771 = vld [vmem:[%s4766 + $0x10] sm:$0xf]
    %v4772 = vld [vmem:[%s4766 + $0x14] sm:$0xf]
    %v4773 = vld [vmem:[%s4766 + $0x18] sm:$0xf]
    %v4774 = vld [vmem:[%s4766 + $0x1c] sm:$0xf]
    %v4775 = vshrl.u32 %v4694, 16
    %v4785 = vunpack.c.l.b16 %v4767
    %v4786 = vunpack.c.l.b16 %v4768
    %v4787 = vunpack.c.l.b16 %v4769
    %v4788 = vunpack.c.l.b16 %v4770
    %v4789 = vunpack.c.l.b16 %v4771
    %v4790 = vunpack.c.l.b16 %v4772
    %v4791 = vunpack.c.l.b16 %v4773
    %v4792 = vunpack.c.l.b16 %v4774
    %v4793 = vpack.c.b16 %v4786, %v4785
    %v4794 = vpack.c.b16 %v4788, %v4787
    %v4795 = vpack.c.b16 %v4790, %v4789
    %v4796 = vpack.c.b16 %v4792, %v4791
    %v4802 = vsel %vm245, %v4775, 0
    %4804 = vmatprep.subr.bf16.mxu0 0
    %4805 = vmatpush1.bf16.msra.mxu0 %v4793
    %4806 = vmatprep.subr.bf16.mxu0 0
    %4807 = vmatpush1.bf16.msra.mxu0 %v4794
    %4808 = vmatprep.subr.bf16.mxu0 0
    %4809 = vmatpush1.bf16.msra.mxu0 %v4795
    %4810 = vmatprep.subr.bf16.mxu0 0
    %4811 = vmatpush1.bf16.msra.mxu0 %v4796
    %4812 = vmatprep.subr.bf16.mxu0 0
    %4813 = vmatpush1.bf16.msra.mxu0 0
    %4814 = vmatprep.subr.bf16.mxu0 0
    %4815 = vmatpush1.bf16.msra.mxu0 0
    %4816 = vmatprep.subr.bf16.mxu0 0
    %4817 = vmatpush1.bf16.msra.mxu0 0
    %4818 = vmatprep.subr.bf16.mxu0 0
    %4819 = vmatpush1.bf16.msra.mxu0 0
    %4820 = vmatprep.subr.bf16.mxu0 0
    %4821 = vmatpush1.bf16.msra.mxu0 0
    %4822 = vmatprep.subr.bf16.mxu0 0
    %4823 = vmatpush1.bf16.msra.mxu0 0
    %4824 = vmatprep.subr.bf16.mxu0 0
    %4825 = vmatpush1.bf16.msra.mxu0 0
    %4826 = vmatprep.subr.bf16.mxu0 0
    %4827 = vmatpush1.bf16.msra.mxu0 0
    %4828 = vmatprep.subr.bf16.mxu0 0
    %4829 = vmatpush1.bf16.msra.mxu0 0
    %4830 = vmatprep.subr.bf16.mxu0 0
    %4831 = vmatpush1.bf16.msra.mxu0 0
    %4832 = vmatprep.subr.bf16.mxu0 0
    %4833 = vmatpush1.bf16.msra.mxu0 0
    %4834 = vmatprep.subr.bf16.mxu0 0
    %4835 = vmatpush1.bf16.msra.mxu0 0
    %4836 = vmatprep.mubr.bf16.mxu0 0
    %4837 = vmatmul.mubr.bf16.gmra.mrb[0].mxu0 %v4802
    %v4838 = vpop.f32.mrb[0].mxu0
    %v4839 = vadd.f32 0.0, %v4838
    %v4840 = vpop.f32.mrb[0].mxu0
    %v4841 = vpop.f32.mrb[0].mxu0
    %v4842 = vpop.f32.mrb[0].mxu0
    %4843 = vdwg.mxu0
    %v4845 = vrot.slane %v4839, 4
    %v4847 = vadd.f32 %v4765, %v4845
    %s4848 = scalar_lea.vmem %s18, 320
    %v4849 = vld [vmem:[%s4848] sm:$0xf]
    %v4850 = vld [vmem:[%s4848 + $0x4] sm:$0xf]
    %v4851 = vld [vmem:[%s4848 + $0x8] sm:$0xf]
    %v4852 = vld [vmem:[%s4848 + $0xc] sm:$0xf]
    %v4853 = vld [vmem:[%s4848 + $0x10] sm:$0xf]
    %v4854 = vld [vmem:[%s4848 + $0x14] sm:$0xf]
    %v4855 = vld [vmem:[%s4848 + $0x18] sm:$0xf]
    %v4856 = vld [vmem:[%s4848 + $0x1c] sm:$0xf]
    %v4858 = vrot.slane %v4694, 1
    %v4867 = vunpack.c.l.b16 %v4849
    %v4868 = vunpack.c.l.b16 %v4850
    %v4869 = vunpack.c.l.b16 %v4851
    %v4870 = vunpack.c.l.b16 %v4852
    %v4871 = vunpack.c.l.b16 %v4853
    %v4872 = vunpack.c.l.b16 %v4854
    %v4873 = vunpack.c.l.b16 %v4855
    %v4874 = vunpack.c.l.b16 %v4856
    %v4875 = vpack.c.b16 %v4868, %v4867
    %v4876 = vpack.c.b16 %v4870, %v4869
    %v4877 = vpack.c.b16 %v4872, %v4871
    %v4878 = vpack.c.b16 %v4874, %v4873
    %v4884 = vsel %vm245, %v4858, 0
    %4886 = vmatprep.subr.bf16.mxu0 0
    %4887 = vmatpush1.bf16.msra.mxu0 %v4875
    %4888 = vmatprep.subr.bf16.mxu0 0
    %4889 = vmatpush1.bf16.msra.mxu0 %v4876
    %4890 = vmatprep.subr.bf16.mxu0 0
    %4891 = vmatpush1.bf16.msra.mxu0 %v4877
    %4892 = vmatprep.subr.bf16.mxu0 0
    %4893 = vmatpush1.bf16.msra.mxu0 %v4878
    %4894 = vmatprep.subr.bf16.mxu0 0
    %4895 = vmatpush1.bf16.msra.mxu0 0
    %4896 = vmatprep.subr.bf16.mxu0 0
    %4897 = vmatpush1.bf16.msra.mxu0 0
    %4898 = vmatprep.subr.bf16.mxu0 0
    %4899 = vmatpush1.bf16.msra.mxu0 0
    %4900 = vmatprep.subr.bf16.mxu0 0
    %4901 = vmatpush1.bf16.msra.mxu0 0
    %4902 = vmatprep.subr.bf16.mxu0 0
    %4903 = vmatpush1.bf16.msra.mxu0 0
    %4904 = vmatprep.subr.bf16.mxu0 0
    %4905 = vmatpush1.bf16.msra.mxu0 0
    %4906 = vmatprep.subr.bf16.mxu0 0
    %4907 = vmatpush1.bf16.msra.mxu0 0
    %4908 = vmatprep.subr.bf16.mxu0 0
    %4909 = vmatpush1.bf16.msra.mxu0 0
    %4910 = vmatprep.subr.bf16.mxu0 0
    %4911 = vmatpush1.bf16.msra.mxu0 0
    %4912 = vmatprep.subr.bf16.mxu0 0
    %4913 = vmatpush1.bf16.msra.mxu0 0
    %4914 = vmatprep.subr.bf16.mxu0 0
    %4915 = vmatpush1.bf16.msra.mxu0 0
    %4916 = vmatprep.subr.bf16.mxu0 0
    %4917 = vmatpush1.bf16.msra.mxu0 0
    %4918 = vmatprep.mubr.bf16.mxu0 0
    %4919 = vmatmul.mubr.bf16.gmra.mrb[0].mxu0 %v4884
    %v4920 = vpop.f32.mrb[0].mxu0
    %v4921 = vadd.f32 0.0, %v4920
    %v4922 = vpop.f32.mrb[0].mxu0
    %v4923 = vpop.f32.mrb[0].mxu0
    %v4924 = vpop.f32.mrb[0].mxu0
    %4925 = vdwg.mxu0
    %v4927 = vrot.slane %v4921, 4
    %v4929 = vadd.f32 %v4847, %v4927
    %s4930 = scalar_lea.vmem %s18, 352
    %v4931 = vld [vmem:[%s4930] sm:$0xf]
    %v4932 = vld [vmem:[%s4930 + $0x4] sm:$0xf]
    %v4933 = vld [vmem:[%s4930 + $0x8] sm:$0xf]
    %v4934 = vld [vmem:[%s4930 + $0xc] sm:$0xf]
    %v4935 = vld [vmem:[%s4930 + $0x10] sm:$0xf]
    %v4936 = vld [vmem:[%s4930 + $0x14] sm:$0xf]
    %v4937 = vld [vmem:[%s4930 + $0x18] sm:$0xf]
    %v4938 = vld [vmem:[%s4930 + $0x1c] sm:$0xf]
    %v4939 = vrot.slane %v4775, 1
    %v4948 = vunpack.c.l.b16 %v4931
    %v4949 = vunpack.c.l.b16 %v4932
    %v4950 = vunpack.c.l.b16 %v4933
    %v4951 = vunpack.c.l.b16 %v4934
    %v4952 = vunpack.c.l.b16 %v4935
    %v4953 = vunpack.c.l.b16 %v4936
    %v4954 = vunpack.c.l.b16 %v4937
    %v4955 = vunpack.c.l.b16 %v4938
    %v4956 = vpack.c.b16 %v4949, %v4948
    %v4957 = vpack.c.b16 %v4951, %v4950
    %v4958 = vpack.c.b16 %v4953, %v4952
    %v4959 = vpack.c.b16 %v4955, %v4954
    %v4965 = vsel %vm245, %v4939, 0
    %4967 = vmatprep.subr.bf16.mxu0 0
    %4968 = vmatpush1.bf16.msra.mxu0 %v4956
    %4969 = vmatprep.subr.bf16.mxu0 0
    %4970 = vmatpush1.bf16.msra.mxu0 %v4957
    %4971 = vmatprep.subr.bf16.mxu0 0
    %4972 = vmatpush1.bf16.msra.mxu0 %v4958
    %4973 = vmatprep.subr.bf16.mxu0 0
    %4974 = vmatpush1.bf16.msra.mxu0 %v4959
    %4975 = vmatprep.subr.bf16.mxu0 0
    %4976 = vmatpush1.bf16.msra.mxu0 0
    %4977 = vmatprep.subr.bf16.mxu0 0
    %4978 = vmatpush1.bf16.msra.mxu0 0
    %4979 = vmatprep.subr.bf16.mxu0 0
    %4980 = vmatpush1.bf16.msra.mxu0 0
    %4981 = vmatprep.subr.bf16.mxu0 0
    %4982 = vmatpush1.bf16.msra.mxu0 0
    %4983 = vmatprep.subr.bf16.mxu0 0
    %4984 = vmatpush1.bf16.msra.mxu0 0
    %4985 = vmatprep.subr.bf16.mxu0 0
    %4986 = vmatpush1.bf16.msra.mxu0 0
    %4987 = vmatprep.subr.bf16.mxu0 0
    %4988 = vmatpush1.bf16.msra.mxu0 0
    %4989 = vmatprep.subr.bf16.mxu0 0
    %4990 = vmatpush1.bf16.msra.mxu0 0
    %4991 = vmatprep.subr.bf16.mxu0 0
    %4992 = vmatpush1.bf16.msra.mxu0 0
    %4993 = vmatprep.subr.bf16.mxu0 0
    %4994 = vmatpush1.bf16.msra.mxu0 0
    %4995 = vmatprep.subr.bf16.mxu0 0
    %4996 = vmatpush1.bf16.msra.mxu0 0
    %4997 = vmatprep.subr.bf16.mxu0 0
    %4998 = vmatpush1.bf16.msra.mxu0 0
    %4999 = vmatprep.mubr.bf16.mxu0 0
    %5000 = vmatmul.mubr.bf16.gmra.mrb[0].mxu0 %v4965
    %v5001 = vpop.f32.mrb[0].mxu0
    %v5002 = vadd.f32 0.0, %v5001
    %v5003 = vpop.f32.mrb[0].mxu0
    %v5004 = vpop.f32.mrb[0].mxu0
    %v5005 = vpop.f32.mrb[0].mxu0
    %5006 = vdwg.mxu0
    %v5008 = vrot.slane %v5002, 4
    %v5010 = vadd.f32 %v4929, %v5008
    %s5011 = scalar_lea.vmem %s18, 384
    %v5012 = vld [vmem:[%s5011] sm:$0xf]
    %v5013 = vld [vmem:[%s5011 + $0x4] sm:$0xf]
    %v5014 = vld [vmem:[%s5011 + $0x8] sm:$0xf]
    %v5015 = vld [vmem:[%s5011 + $0xc] sm:$0xf]
    %v5016 = vld [vmem:[%s5011 + $0x10] sm:$0xf]
    %v5017 = vld [vmem:[%s5011 + $0x14] sm:$0xf]
    %v5018 = vld [vmem:[%s5011 + $0x18] sm:$0xf]
    %v5019 = vld [vmem:[%s5011 + $0x1c] sm:$0xf]
    %v5020 = vrot.slane %v4694, 2
    %v5029 = vunpack.c.l.b16 %v5012
    %v5030 = vunpack.c.l.b16 %v5013
    %v5031 = vunpack.c.l.b16 %v5014
    %v5032 = vunpack.c.l.b16 %v5015
    %v5033 = vunpack.c.l.b16 %v5016
    %v5034 = vunpack.c.l.b16 %v5017
    %v5035 = vunpack.c.l.b16 %v5018
    %v5036 = vunpack.c.l.b16 %v5019
    %v5037 = vpack.c.b16 %v5030, %v5029
    %v5038 = vpack.c.b16 %v5032, %v5031
    %v5039 = vpack.c.b16 %v5034, %v5033
    %v5040 = vpack.c.b16 %v5036, %v5035
    %v5046 = vsel %vm245, %v5020, 0
    %5048 = vmatprep.subr.bf16.mxu0 0
    %5049 = vmatpush1.bf16.msra.mxu0 %v5037
    %5050 = vmatprep.subr.bf16.mxu0 0
    %5051 = vmatpush1.bf16.msra.mxu0 %v5038
    %5052 = vmatprep.subr.bf16.mxu0 0
    %5053 = vmatpush1.bf16.msra.mxu0 %v5039
    %5054 = vmatprep.subr.bf16.mxu0 0
    %5055 = vmatpush1.bf16.msra.mxu0 %v5040
    %5056 = vmatprep.subr.bf16.mxu0 0
    %5057 = vmatpush1.bf16.msra.mxu0 0
    %5058 = vmatprep.subr.bf16.mxu0 0
    %5059 = vmatpush1.bf16.msra.mxu0 0
    %5060 = vmatprep.subr.bf16.mxu0 0
    %5061 = vmatpush1.bf16.msra.mxu0 0
    %5062 = vmatprep.subr.bf16.mxu0 0
    %5063 = vmatpush1.bf16.msra.mxu0 0
    %5064 = vmatprep.subr.bf16.mxu0 0
    %5065 = vmatpush1.bf16.msra.mxu0 0
    %5066 = vmatprep.subr.bf16.mxu0 0
    %5067 = vmatpush1.bf16.msra.mxu0 0
    %5068 = vmatprep.subr.bf16.mxu0 0
    %5069 = vmatpush1.bf16.msra.mxu0 0
    %5070 = vmatprep.subr.bf16.mxu0 0
    %5071 = vmatpush1.bf16.msra.mxu0 0
    %5072 = vmatprep.subr.bf16.mxu0 0
    %5073 = vmatpush1.bf16.msra.mxu0 0
    %5074 = vmatprep.subr.bf16.mxu0 0
    %5075 = vmatpush1.bf16.msra.mxu0 0
    %5076 = vmatprep.subr.bf16.mxu0 0
    %5077 = vmatpush1.bf16.msra.mxu0 0
    %5078 = vmatprep.subr.bf16.mxu0 0
    %5079 = vmatpush1.bf16.msra.mxu0 0
    %5080 = vmatprep.mubr.bf16.mxu0 0
    %5081 = vmatmul.mubr.bf16.gmra.mrb[0].mxu0 %v5046
    %v5082 = vpop.f32.mrb[0].mxu0
    %v5083 = vadd.f32 0.0, %v5082
    %v5084 = vpop.f32.mrb[0].mxu0
    %v5085 = vpop.f32.mrb[0].mxu0
    %v5086 = vpop.f32.mrb[0].mxu0
    %5087 = vdwg.mxu0
    %v5089 = vrot.slane %v5083, 4
    %v5091 = vadd.f32 %v5010, %v5089
    %s5092 = scalar_lea.vmem %s18, 416
    %v5093 = vld [vmem:[%s5092] sm:$0xf]
    %v5094 = vld [vmem:[%s5092 + $0x4] sm:$0xf]
    %v5095 = vld [vmem:[%s5092 + $0x8] sm:$0xf]
    %v5096 = vld [vmem:[%s5092 + $0xc] sm:$0xf]
    %v5097 = vld [vmem:[%s5092 + $0x10] sm:$0xf]
    %v5098 = vld [vmem:[%s5092 + $0x14] sm:$0xf]
    %v5099 = vld [vmem:[%s5092 + $0x18] sm:$0xf]
    %v5100 = vld [vmem:[%s5092 + $0x1c] sm:$0xf]
    %v5101 = vrot.slane %v4775, 2
    %v5110 = vunpack.c.l.b16 %v5093
    %v5111 = vunpack.c.l.b16 %v5094
    %v5112 = vunpack.c.l.b16 %v5095
    %v5113 = vunpack.c.l.b16 %v5096
    %v5114 = vunpack.c.l.b16 %v5097
    %v5115 = vunpack.c.l.b16 %v5098
    %v5116 = vunpack.c.l.b16 %v5099
    %v5117 = vunpack.c.l.b16 %v5100
    %v5118 = vpack.c.b16 %v5111, %v5110
    %v5119 = vpack.c.b16 %v5113, %v5112
    %v5120 = vpack.c.b16 %v5115, %v5114
    %v5121 = vpack.c.b16 %v5117, %v5116
    %v5127 = vsel %vm245, %v5101, 0
    %5129 = vmatprep.subr.bf16.mxu0 0
    %5130 = vmatpush1.bf16.msra.mxu0 %v5118
    %5131 = vmatprep.subr.bf16.mxu0 0
    %5132 = vmatpush1.bf16.msra.mxu0 %v5119
    %5133 = vmatprep.subr.bf16.mxu0 0
    %5134 = vmatpush1.bf16.msra.mxu0 %v5120
    %5135 = vmatprep.subr.bf16.mxu0 0
    %5136 = vmatpush1.bf16.msra.mxu0 %v5121
    %5137 = vmatprep.subr.bf16.mxu0 0
    %5138 = vmatpush1.bf16.msra.mxu0 0
    %5139 = vmatprep.subr.bf16.mxu0 0
    %5140 = vmatpush1.bf16.msra.mxu0 0
    %5141 = vmatprep.subr.bf16.mxu0 0
    %5142 = vmatpush1.bf16.msra.mxu0 0
    %5143 = vmatprep.subr.bf16.mxu0 0
    %5144 = vmatpush1.bf16.msra.mxu0 0
    %5145 = vmatprep.subr.bf16.mxu0 0
    %5146 = vmatpush1.bf16.msra.mxu0 0
    %5147 = vmatprep.subr.bf16.mxu0 0
    %5148 = vmatpush1.bf16.msra.mxu0 0
    %5149 = vmatprep.subr.bf16.mxu0 0
    %5150 = vmatpush1.bf16.msra.mxu0 0
    %5151 = vmatprep.subr.bf16.mxu0 0
    %5152 = vmatpush1.bf16.msra.mxu0 0
    %5153 = vmatprep.subr.bf16.mxu0 0
    %5154 = vmatpush1.bf16.msra.mxu0 0
    %5155 = vmatprep.subr.bf16.mxu0 0
    %5156 = vmatpush1.bf16.msra.mxu0 0
    %5157 = vmatprep.subr.bf16.mxu0 0
    %5158 = vmatpush1.bf16.msra.mxu0 0
    %5159 = vmatprep.subr.bf16.mxu0 0
    %5160 = vmatpush1.bf16.msra.mxu0 0
    %5161 = vmatprep.mubr.bf16.mxu0 0
    %5162 = vmatmul.mubr.bf16.gmra.mrb[0].mxu0 %v5127
    %v5163 = vpop.f32.mrb[0].mxu0
    %v5164 = vadd.f32 0.0, %v5163
    %v5165 = vpop.f32.mrb[0].mxu0
    %v5166 = vpop.f32.mrb[0].mxu0
    %v5167 = vpop.f32.mrb[0].mxu0
    %5168 = vdwg.mxu0
    %v5170 = vrot.slane %v5164, 4
    %v5172 = vadd.f32 %v5091, %v5170
    %s5173 = scalar_lea.vmem %s18, 448
    %v5174 = vld [vmem:[%s5173] sm:$0xf]
    %v5175 = vld [vmem:[%s5173 + $0x4] sm:$0xf]
    %v5176 = vld [vmem:[%s5173 + $0x8] sm:$0xf]
    %v5177 = vld [vmem:[%s5173 + $0xc] sm:$0xf]
    %v5178 = vld [vmem:[%s5173 + $0x10] sm:$0xf]
    %v5179 = vld [vmem:[%s5173 + $0x14] sm:$0xf]
    %v5180 = vld [vmem:[%s5173 + $0x18] sm:$0xf]
    %v5181 = vld [vmem:[%s5173 + $0x1c] sm:$0xf]
    %v5182 = vrot.slane %v4694, 3
    %v5191 = vunpack.c.l.b16 %v5174
    %v5192 = vunpack.c.l.b16 %v5175
    %v5193 = vunpack.c.l.b16 %v5176
    %v5194 = vunpack.c.l.b16 %v5177
    %v5195 = vunpack.c.l.b16 %v5178
    %v5196 = vunpack.c.l.b16 %v5179
    %v5197 = vunpack.c.l.b16 %v5180
    %v5198 = vunpack.c.l.b16 %v5181
    %v5199 = vpack.c.b16 %v5192, %v5191
    %v5200 = vpack.c.b16 %v5194, %v5193
    %v5201 = vpack.c.b16 %v5196, %v5195
    %v5202 = vpack.c.b16 %v5198, %v5197
    %v5208 = vsel %vm245, %v5182, 0
    %5210 = vmatprep.subr.bf16.mxu0 0
    %5211 = vmatpush1.bf16.msra.mxu0 %v5199
    %5212 = vmatprep.subr.bf16.mxu0 0
    %5213 = vmatpush1.bf16.msra.mxu0 %v5200
    %5214 = vmatprep.subr.bf16.mxu0 0
    %5215 = vmatpush1.bf16.msra.mxu0 %v5201
    %5216 = vmatprep.subr.bf16.mxu0 0
    %5217 = vmatpush1.bf16.msra.mxu0 %v5202
    %5218 = vmatprep.subr.bf16.mxu0 0
    %5219 = vmatpush1.bf16.msra.mxu0 0
    %5220 = vmatprep.subr.bf16.mxu0 0
    %5221 = vmatpush1.bf16.msra.mxu0 0
    %5222 = vmatprep.subr.bf16.mxu0 0
    %5223 = vmatpush1.bf16.msra.mxu0 0
    %5224 = vmatprep.subr.bf16.mxu0 0
    %5225 = vmatpush1.bf16.msra.mxu0 0
    %5226 = vmatprep.subr.bf16.mxu0 0
    %5227 = vmatpush1.bf16.msra.mxu0 0
    %5228 = vmatprep.subr.bf16.mxu0 0
    %5229 = vmatpush1.bf16.msra.mxu0 0
    %5230 = vmatprep.subr.bf16.mxu0 0
    %5231 = vmatpush1.bf16.msra.mxu0 0
    %5232 = vmatprep.subr.bf16.mxu0 0
    %5233 = vmatpush1.bf16.msra.mxu0 0
    %5234 = vmatprep.subr.bf16.mxu0 0
    %5235 = vmatpush1.bf16.msra.mxu0 0
    %5236 = vmatprep.subr.bf16.mxu0 0
    %5237 = vmatpush1.bf16.msra.mxu0 0
    %5238 = vmatprep.subr.bf16.mxu0 0
    %5239 = vmatpush1.bf16.msra.mxu0 0
    %5240 = vmatprep.subr.bf16.mxu0 0
    %5241 = vmatpush1.bf16.msra.mxu0 0
    %5242 = vmatprep.mubr.bf16.mxu0 0
    %5243 = vmatmul.mubr.bf16.gmra.mrb[0].mxu0 %v5208
    %v5244 = vpop.f32.mrb[0].mxu0
    %v5245 = vadd.f32 0.0, %v5244
    %v5246 = vpop.f32.mrb[0].mxu0
    %v5247 = vpop.f32.mrb[0].mxu0
    %v5248 = vpop.f32.mrb[0].mxu0
    %5249 = vdwg.mxu0
    %v5251 = vrot.slane %v5245, 4
    %v5253 = vadd.f32 %v5172, %v5251
    %s5254 = scalar_lea.vmem %s18, 480
    %v5255 = vld [vmem:[%s5254] sm:$0xf]
    %v5256 = vld [vmem:[%s5254 + $0x4] sm:$0xf]
    %v5257 = vld [vmem:[%s5254 + $0x8] sm:$0xf]
    %v5258 = vld [vmem:[%s5254 + $0xc] sm:$0xf]
    %v5259 = vld [vmem:[%s5254 + $0x10] sm:$0xf]
    %v5260 = vld [vmem:[%s5254 + $0x14] sm:$0xf]
    %v5261 = vld [vmem:[%s5254 + $0x18] sm:$0xf]
    %v5262 = vld [vmem:[%s5254 + $0x1c] sm:$0xf]
    %v5263 = vrot.slane %v4775, 3
    %v5272 = vunpack.c.l.b16 %v5255
    %v5273 = vunpack.c.l.b16 %v5256
    %v5274 = vunpack.c.l.b16 %v5257
    %v5275 = vunpack.c.l.b16 %v5258
    %v5276 = vunpack.c.l.b16 %v5259
    %v5277 = vunpack.c.l.b16 %v5260
    %v5278 = vunpack.c.l.b16 %v5261
    %v5279 = vunpack.c.l.b16 %v5262
    %v5280 = vpack.c.b16 %v5273, %v5272
    %v5281 = vpack.c.b16 %v5275, %v5274
    %v5282 = vpack.c.b16 %v5277, %v5276
    %v5283 = vpack.c.b16 %v5279, %v5278
    %v5289 = vsel %vm245, %v5263, 0
    %5291 = vmatprep.subr.bf16.mxu0 0
    %5292 = vmatpush1.bf16.msra.mxu0 %v5280
    %5293 = vmatprep.subr.bf16.mxu0 0
    %5294 = vmatpush1.bf16.msra.mxu0 %v5281
    %5295 = vmatprep.subr.bf16.mxu0 0
    %5296 = vmatpush1.bf16.msra.mxu0 %v5282
    %5297 = vmatprep.subr.bf16.mxu0 0
    %5298 = vmatpush1.bf16.msra.mxu0 %v5283
    %5299 = vmatprep.subr.bf16.mxu0 0
    %5300 = vmatpush1.bf16.msra.mxu0 0
    %5301 = vmatprep.subr.bf16.mxu0 0
    %5302 = vmatpush1.bf16.msra.mxu0 0
    %5303 = vmatprep.subr.bf16.mxu0 0
    %5304 = vmatpush1.bf16.msra.mxu0 0
    %5305 = vmatprep.subr.bf16.mxu0 0
    %5306 = vmatpush1.bf16.msra.mxu0 0
    %5307 = vmatprep.subr.bf16.mxu0 0
    %5308 = vmatpush1.bf16.msra.mxu0 0
    %5309 = vmatprep.subr.bf16.mxu0 0
    %5310 = vmatpush1.bf16.msra.mxu0 0
    %5311 = vmatprep.subr.bf16.mxu0 0
    %5312 = vmatpush1.bf16.msra.mxu0 0
    %5313 = vmatprep.subr.bf16.mxu0 0
    %5314 = vmatpush1.bf16.msra.mxu0 0
    %5315 = vmatprep.subr.bf16.mxu0 0
    %5316 = vmatpush1.bf16.msra.mxu0 0
    %5317 = vmatprep.subr.bf16.mxu0 0
    %5318 = vmatpush1.bf16.msra.mxu0 0
    %5319 = vmatprep.subr.bf16.mxu0 0
    %5320 = vmatpush1.bf16.msra.mxu0 0
    %5321 = vmatprep.subr.bf16.mxu0 0
    %5322 = vmatpush1.bf16.msra.mxu0 0
    %5323 = vmatprep.mubr.bf16.mxu0 0
    %5324 = vmatmul.mubr.bf16.gmra.mrb[0].mxu0 %v5289
    %v5325 = vpop.f32.mrb[0].mxu0
    %v5326 = vadd.f32 0.0, %v5325
    %v5327 = vpop.f32.mrb[0].mxu0
    %v5328 = vpop.f32.mrb[0].mxu0
    %v5329 = vpop.f32.mrb[0].mxu0
    %5330 = vdwg.mxu0
    %v5332 = vrot.slane %v5326, 4
    %v5334 = vadd.f32 %v5253, %v5332
    %v5335 = vmax.f32 %v5334, 0.0
    %v5336 = vld [vmem:[%s19] sm:$0xf]
    %v5337 = vld [vmem:[%s19 + $0x4] sm:$0xf]
    %v5338 = vld [vmem:[%s19 + $0x8] sm:$0xf]
    %v5339 = vld [vmem:[%s19 + $0xc] sm:$0xf]
    %v5340 = vld [vmem:[%s19 + $0x10] sm:$0xf]
    %v5341 = vld [vmem:[%s19 + $0x14] sm:$0xf]
    %v5342 = vld [vmem:[%s19 + $0x18] sm:$0xf]
    %v5343 = vld [vmem:[%s19 + $0x1c] sm:$0xf]
    %v5344 = vld [vmem:[%s19 + $0x20] sm:$0xf]
    %v5345 = vld [vmem:[%s19 + $0x24] sm:$0xf]
    %v5346 = vld [vmem:[%s19 + $0x28] sm:$0xf]
    %v5347 = vld [vmem:[%s19 + $0x2c] sm:$0xf]
    %v5348 = vld [vmem:[%s19 + $0x30] sm:$0xf]
    %v5349 = vld [vmem:[%s19 + $0x34] sm:$0xf]
    %v5350 = vld [vmem:[%s19 + $0x38] sm:$0xf]
    %v5351 = vld [vmem:[%s19 + $0x3c] sm:$0xf]
    %v5352 = vpack.c.bf16 %v5335, %v5335
    %v5354 = vrot.slane %v5352, 2
    %v5372 = vunpack.c.l.b16 %v5336
    %v5373 = vunpack.c.l.b16 %v5337
    %v5374 = vunpack.c.l.b16 %v5338
    %v5375 = vunpack.c.l.b16 %v5339
    %v5376 = vunpack.c.l.b16 %v5340
    %v5377 = vunpack.c.l.b16 %v5341
    %v5378 = vunpack.c.l.b16 %v5342
    %v5379 = vunpack.c.l.b16 %v5343
    %v5380 = vunpack.c.l.b16 %v5344
    %v5381 = vunpack.c.l.b16 %v5345
    %v5382 = vunpack.c.l.b16 %v5346
    %v5383 = vunpack.c.l.b16 %v5347
    %v5384 = vunpack.c.l.b16 %v5348
    %v5385 = vunpack.c.l.b16 %v5349
    %v5386 = vunpack.c.l.b16 %v5350
    %v5387 = vunpack.c.l.b16 %v5351
    %v5388 = vpack.c.b16 %v5373, %v5372
    %v5389 = vpack.c.b16 %v5375, %v5374
    %v5390 = vpack.c.b16 %v5377, %v5376
    %v5391 = vpack.c.b16 %v5379, %v5378
    %v5392 = vpack.c.b16 %v5381, %v5380
    %v5393 = vpack.c.b16 %v5383, %v5382
    %v5394 = vpack.c.b16 %v5385, %v5384
    %v5395 = vpack.c.b16 %v5387, %v5386
    %v5405 = vrot.slane %v71, 5
    %5407 = vmatprep.subr.bf16.mxu0 0
    %5408 = vmatpush1.bf16.msra.mxu0 %v5388
    %5409 = vmatprep.subr.bf16.mxu0 0
    %5410 = vmatpush1.bf16.msra.mxu0 %v5389
    %5411 = vmatprep.subr.bf16.mxu0 0
    %5412 = vmatpush1.bf16.msra.mxu0 %v5390
    %5413 = vmatprep.subr.bf16.mxu0 0
    %5414 = vmatpush1.bf16.msra.mxu0 %v5391
    %5415 = vmatprep.subr.bf16.mxu0 0
    %5416 = vmatpush1.bf16.msra.mxu0 %v5392
    %5417 = vmatprep.subr.bf16.mxu0 0
    %5418 = vmatpush1.bf16.msra.mxu0 %v5393
    %5419 = vmatprep.subr.bf16.mxu0 0
    %5420 = vmatpush1.bf16.msra.mxu0 %v5394
    %5421 = vmatprep.subr.bf16.mxu0 0
    %5422 = vmatpush1.bf16.msra.mxu0 %v5395
    %5423 = vmatprep.subr.bf16.mxu0 0
    %5424 = vmatpush1.bf16.msra.mxu0 0
    %5425 = vmatprep.subr.bf16.mxu0 0
    %5426 = vmatpush1.bf16.msra.mxu0 0
    %5427 = vmatprep.subr.bf16.mxu0 0
    %5428 = vmatpush1.bf16.msra.mxu0 0
    %5429 = vmatprep.subr.bf16.mxu0 0
    %5430 = vmatpush1.bf16.msra.mxu0 0
    %5431 = vmatprep.subr.bf16.mxu0 0
    %5432 = vmatpush1.bf16.msra.mxu0 0
    %5433 = vmatprep.subr.bf16.mxu0 0
    %5434 = vmatpush1.bf16.msra.mxu0 0
    %5435 = vmatprep.subr.bf16.mxu0 0
    %5436 = vmatpush1.bf16.msra.mxu0 0
    %5437 = vmatprep.subr.bf16.mxu0 0
    %5438 = vmatpush1.bf16.msra.mxu0 0
    %5439 = vmatprep.mubr.bf16.mxu0 0
    %5440 = vmatmul.mubr.bf16.gmra.mrb[0].mxu0 %v5354
    %v5441 = vpop.f32.mrb[0].mxu0
    %v5442 = vadd.f32 %v5405, %v5441
    %v5443 = vpop.f32.mrb[0].mxu0
    %v5444 = vpop.f32.mrb[0].mxu0
    %v5445 = vpop.f32.mrb[0].mxu0
    %5446 = vdwg.mxu0
    %s5447 = scalar_lea.vmem %s1, 8
    %v5448 = vld [vmem:[%s5447] sm:$0x3f]
    %v5449 = vpack.c.bf16 %v5448, %v5448
    %v5451 = vsel %vm654, %v5449, 0
    %5453 = vmatprep.subr.bf16.mxu0 0
    %5454 = vmatpush1.bf16.msra.mxu0 %v647
    %5455 = vmatprep.subr.bf16.mxu0 0
    %5456 = vmatpush1.bf16.msra.mxu0 %v648
    %5457 = vmatprep.subr.bf16.mxu0 0
    %5458 = vmatpush1.bf16.msra.mxu0 %v649
    %5459 = vmatprep.subr.bf16.mxu0 0
    %5460 = vmatpush1.bf16.msra.mxu0 %v660
    %5461 = vmatprep.subr.bf16.mxu0 0
    %5462 = vmatpush1.bf16.msra.mxu0 0
    %5463 = vmatprep.subr.bf16.mxu0 0
    %5464 = vmatpush1.bf16.msra.mxu0 0
    %5465 = vmatprep.subr.bf16.mxu0 0
    %5466 = vmatpush1.bf16.msra.mxu0 0
    %5467 = vmatprep.subr.bf16.mxu0 0
    %5468 = vmatpush1.bf16.msra.mxu0 0
    %5469 = vmatprep.subr.bf16.mxu0 0
    %5470 = vmatpush1.bf16.msra.mxu0 0
    %5471 = vmatprep.subr.bf16.mxu0 0
    %5472 = vmatpush1.bf16.msra.mxu0 0
    %5473 = vmatprep.subr.bf16.mxu0 0
    %5474 = vmatpush1.bf16.msra.mxu0 0
    %5475 = vmatprep.subr.bf16.mxu0 0
    %5476 = vmatpush1.bf16.msra.mxu0 0
    %5477 = vmatprep.subr.bf16.mxu0 0
    %5478 = vmatpush1.bf16.msra.mxu0 0
    %5479 = vmatprep.subr.bf16.mxu0 0
    %5480 = vmatpush1.bf16.msra.mxu0 0
    %5481 = vmatprep.subr.bf16.mxu0 0
    %5482 = vmatpush1.bf16.msra.mxu0 0
    %5483 = vmatprep.subr.bf16.mxu0 0
    %5484 = vmatpush1.bf16.msra.mxu0 0
    %5485 = vmatprep.mubr.bf16.mxu0 0
    %5486 = vmatmul.mubr.bf16.gmra.mrb[0].mxu0 %v5451
    %v5487 = vpop.f32.mrb[0].mxu0
    %v5488 = vadd.f32 %v632, %v5487
    %v5489 = vpop.f32.mrb[0].mxu0
    %v5490 = vpop.f32.mrb[0].mxu0
    %v5491 = vpop.f32.mrb[0].mxu0
    %5492 = vdwg.mxu0
    %v5493 = vtanh.pop %v5488
    %v5494 = vpack.c.bf16 %v5493, %v5493
    %v5496 = vsel %vm724, %v5494, 0
    %5498 = vmatprep.subr.bf16.mxu0 0
    %5499 = vmatpush1.bf16.msra.mxu0 %v722
    %5500 = vmatprep.subr.bf16.mxu0 0
    %5501 = vmatpush1.bf16.msra.mxu0 0
    %5502 = vmatprep.subr.bf16.mxu0 0
    %5503 = vmatpush1.bf16.msra.mxu0 0
    %5504 = vmatprep.subr.bf16.mxu0 0
    %5505 = vmatpush1.bf16.msra.mxu0 0
    %5506 = vmatprep.subr.bf16.mxu0 0
    %5507 = vmatpush1.bf16.msra.mxu0 0
    %5508 = vmatprep.subr.bf16.mxu0 0
    %5509 = vmatpush1.bf16.msra.mxu0 0
    %5510 = vmatprep.subr.bf16.mxu0 0
    %5511 = vmatpush1.bf16.msra.mxu0 0
    %5512 = vmatprep.subr.bf16.mxu0 0
    %5513 = vmatpush1.bf16.msra.mxu0 0
    %5514 = vmatprep.subr.bf16.mxu0 0
    %5515 = vmatpush1.bf16.msra.mxu0 0
    %5516 = vmatprep.subr.bf16.mxu0 0
    %5517 = vmatpush1.bf16.msra.mxu0 0
    %5518 = vmatprep.subr.bf16.mxu0 0
    %5519 = vmatpush1.bf16.msra.mxu0 0
    %5520 = vmatprep.subr.bf16.mxu0 0
    %5521 = vmatpush1.bf16.msra.mxu0 0
    %5522 = vmatprep.subr.bf16.mxu0 0
    %5523 = vmatpush1.bf16.msra.mxu0 0
    %5524 = vmatprep.subr.bf16.mxu0 0
    %5525 = vmatpush1.bf16.msra.mxu0 0
    %5526 = vmatprep.subr.bf16.mxu0 0
    %5527 = vmatpush1.bf16.msra.mxu0 0
    %5528 = vmatprep.subr.bf16.mxu0 0
    %5529 = vmatpush1.bf16.msra.mxu0 0
    %5530 = vmatprep.mubr.bf16.mxu0 0
    %5531 = vmatmul.mubr.bf16.gmra.mrb[0].mxu0 %v5496
    %v5532 = vpop.f32.mrb[0].mxu0
    %v5533 = vadd.f32 %v717, %v5532
    %v5534 = vpop.f32.mrb[0].mxu0
    %v5535 = vpop.f32.mrb[0].mxu0
    %v5536 = vpop.f32.mrb[0].mxu0
    %5537 = vdwg.mxu0
    %v5538 = vtanh.pop %v5533
    %v5539 = vpack.c.bf16 %v5538, %v5538
    %v5541 = vsel %vm245, %v5539, 0
    %5543 = vmatprep.subr.bf16.mxu0 0
    %5544 = vmatpush1.bf16.msra.mxu0 %v790
    %5545 = vmatprep.subr.bf16.mxu0 0
    %5546 = vmatpush1.bf16.msra.mxu0 %v791
    %5547 = vmatprep.subr.bf16.mxu0 0
    %5548 = vmatpush1.bf16.msra.mxu0 %v792
    %5549 = vmatprep.subr.bf16.mxu0 0
    %5550 = vmatpush1.bf16.msra.mxu0 %v793
    %5551 = vmatprep.subr.bf16.mxu0 0
    %5552 = vmatpush1.bf16.msra.mxu0 0
    %5553 = vmatprep.subr.bf16.mxu0 0
    %5554 = vmatpush1.bf16.msra.mxu0 0
    %5555 = vmatprep.subr.bf16.mxu0 0
    %5556 = vmatpush1.bf16.msra.mxu0 0
    %5557 = vmatprep.subr.bf16.mxu0 0
    %5558 = vmatpush1.bf16.msra.mxu0 0
    %5559 = vmatprep.subr.bf16.mxu0 0
    %5560 = vmatpush1.bf16.msra.mxu0 0
    %5561 = vmatprep.subr.bf16.mxu0 0
    %5562 = vmatpush1.bf16.msra.mxu0 0
    %5563 = vmatprep.subr.bf16.mxu0 0
    %5564 = vmatpush1.bf16.msra.mxu0 0
    %5565 = vmatprep.subr.bf16.mxu0 0
    %5566 = vmatpush1.bf16.msra.mxu0 0
    %5567 = vmatprep.subr.bf16.mxu0 0
    %5568 = vmatpush1.bf16.msra.mxu0 0
    %5569 = vmatprep.subr.bf16.mxu0 0
    %5570 = vmatpush1.bf16.msra.mxu0 0
    %5571 = vmatprep.subr.bf16.mxu0 0
    %5572 = vmatpush1.bf16.msra.mxu0 0
    %5573 = vmatprep.subr.bf16.mxu0 0
    %5574 = vmatpush1.bf16.msra.mxu0 0
    %5575 = vmatprep.mubr.bf16.mxu0 0
    %5576 = vmatmul.mubr.bf16.gmra.mrb[0].mxu0 %v5541
    %v5577 = vpop.f32.mrb[0].mxu0
    %v5578 = vadd.f32 %v773, %v5577
    %v5579 = vpop.f32.mrb[0].mxu0
    %v5580 = vpop.f32.mrb[0].mxu0
    %v5581 = vpop.f32.mrb[0].mxu0
    %5582 = vdwg.mxu0
    %v5583 = vtanh.pop %v5578
    %v5584 = vmul.f32 %v5583, %v845
    %v5585 = vsel %vm847, %v5584, 0.0
    %5586 = vadd.xlane.f32.xlu0 %v5585
    %v5587 = vpop.xlane.xlu0 %5586
    %v5588 = vsel %vm851, %v5587, -inf
    %v5589 = vrot.slane %v5588, 4
    %v5590 = vmax.f32 %v5588, %v5589
    %v5591 = vrot.slane %v5590, 2
    %v5592 = vmax.f32 %v5590, %v5591
    %v5593 = vrot.slane %v5592, 1
    %v5594 = vmax.f32 %v5592, %v5593
    %v5595 = vsub.f32 %v5587, %v5594
    %v5596 = vmul.f32 %v5595, 1.442695
    %v5597 = vpow.pop %v5596
    %v5598 = vsel %vm851, %v5597, 0.0
    %v5599 = vrot.slane %v5598, 4
    %v5600 = vadd.f32 %v5598, %v5599
    %v5601 = vrot.slane %v5600, 2
    %v5602 = vadd.f32 %v5600, %v5601
    %v5603 = vrot.slane %v5602, 1
    %v5604 = vadd.f32 %v5602, %v5603
    %v5605 = vrcp.pop %v5604
    %v5606 = vmul.f32 %v5597, %v5605
    %v5607 = vmul.f32 %v5606, %v5538
    %s5608 = scalar_lea.vmem %s2, 8
    %v5609 = vld [vmem:[%s5608] sm:$0x1f]
    %v5610 = vpack.c.bf16 %v5609, %v5609
    %v5612 = vsel %vm724, %v5610, 0
    %5614 = vmatprep.subr.bf16.mxu0 0
    %5615 = vmatpush1.bf16.msra.mxu0 %v892
    %5616 = vmatprep.subr.bf16.mxu0 0
    %5617 = vmatpush1.bf16.msra.mxu0 0
    %5618 = vmatprep.subr.bf16.mxu0 0
    %5619 = vmatpush1.bf16.msra.mxu0 0
    %5620 = vmatprep.subr.bf16.mxu0 0
    %5621 = vmatpush1.bf16.msra.mxu0 0
    %5622 = vmatprep.subr.bf16.mxu0 0
    %5623 = vmatpush1.bf16.msra.mxu0 0
    %5624 = vmatprep.subr.bf16.mxu0 0
    %5625 = vmatpush1.bf16.msra.mxu0 0
    %5626 = vmatprep.subr.bf16.mxu0 0
    %5627 = vmatpush1.bf16.msra.mxu0 0
    %5628 = vmatprep.subr.bf16.mxu0 0
    %5629 = vmatpush1.bf16.msra.mxu0 0
    %5630 = vmatprep.subr.bf16.mxu0 0
    %5631 = vmatpush1.bf16.msra.mxu0 0
    %5632 = vmatprep.subr.bf16.mxu0 0
    %5633 = vmatpush1.bf16.msra.mxu0 0
    %5634 = vmatprep.subr.bf16.mxu0 0
    %5635 = vmatpush1.bf16.msra.mxu0 0
    %5636 = vmatprep.subr.bf16.mxu0 0
    %5637 = vmatpush1.bf16.msra.mxu0 0
    %5638 = vmatprep.subr.bf16.mxu0 0
    %5639 = vmatpush1.bf16.msra.mxu0 0
    %5640 = vmatprep.subr.bf16.mxu0 0
    %5641 = vmatpush1.bf16.msra.mxu0 0
    %5642 = vmatprep.subr.bf16.mxu0 0
    %5643 = vmatpush1.bf16.msra.mxu0 0
    %5644 = vmatprep.subr.bf16.mxu0 0
    %5645 = vmatpush1.bf16.msra.mxu0 0
    %5646 = vmatprep.mubr.bf16.mxu0 0
    %5647 = vmatmul.mubr.bf16.gmra.mrb[0].mxu0 %v5612
    %v5648 = vpop.f32.mrb[0].mxu0
    %v5649 = vadd.f32 %v887, %v5648
    %v5650 = vpop.f32.mrb[0].mxu0
    %v5651 = vpop.f32.mrb[0].mxu0
    %v5652 = vpop.f32.mrb[0].mxu0
    %5653 = vdwg.mxu0
    %v5654 = vtanh.pop %v5649
    %v5655 = vpack.c.bf16 %v5654, %v5654
    %v5657 = vsel %vm245, %v5655, 0
    %5659 = vmatprep.subr.bf16.mxu0 0
    %5660 = vmatpush1.bf16.msra.mxu0 %v959
    %5661 = vmatprep.subr.bf16.mxu0 0
    %5662 = vmatpush1.bf16.msra.mxu0 %v960
    %5663 = vmatprep.subr.bf16.mxu0 0
    %5664 = vmatpush1.bf16.msra.mxu0 %v961
    %5665 = vmatprep.subr.bf16.mxu0 0
    %5666 = vmatpush1.bf16.msra.mxu0 %v962
    %5667 = vmatprep.subr.bf16.mxu0 0
    %5668 = vmatpush1.bf16.msra.mxu0 0
    %5669 = vmatprep.subr.bf16.mxu0 0
    %5670 = vmatpush1.bf16.msra.mxu0 0
    %5671 = vmatprep.subr.bf16.mxu0 0
    %5672 = vmatpush1.bf16.msra.mxu0 0
    %5673 = vmatprep.subr.bf16.mxu0 0
    %5674 = vmatpush1.bf16.msra.mxu0 0
    %5675 = vmatprep.subr.bf16.mxu0 0
    %5676 = vmatpush1.bf16.msra.mxu0 0
    %5677 = vmatprep.subr.bf16.mxu0 0
    %5678 = vmatpush1.bf16.msra.mxu0 0
    %5679 = vmatprep.subr.bf16.mxu0 0
    %5680 = vmatpush1.bf16.msra.mxu0 0
    %5681 = vmatprep.subr.bf16.mxu0 0
    %5682 = vmatpush1.bf16.msra.mxu0 0
    %5683 = vmatprep.subr.bf16.mxu0 0
    %5684 = vmatpush1.bf16.msra.mxu0 0
    %5685 = vmatprep.subr.bf16.mxu0 0
    %5686 = vmatpush1.bf16.msra.mxu0 0
    %5687 = vmatprep.subr.bf16.mxu0 0
    %5688 = vmatpush1.bf16.msra.mxu0 0
    %5689 = vmatprep.subr.bf16.mxu0 0
    %5690 = vmatpush1.bf16.msra.mxu0 0
    %5691 = vmatprep.mubr.bf16.mxu0 0
    %5692 = vmatmul.mubr.bf16.gmra.mrb[0].mxu0 %v5657
    %v5693 = vpop.f32.mrb[0].mxu0
    %v5694 = vadd.f32 %v942, %v5693
    %v5695 = vpop.f32.mrb[0].mxu0
    %v5696 = vpop.f32.mrb[0].mxu0
    %v5697 = vpop.f32.mrb[0].mxu0
    %5698 = vdwg.mxu0
    %v5699 = vtanh.pop %v5694
    %v5700 = vmul.f32 %v5699, %v1014
    %v5701 = vsel %vm1016, %v5700, 0.0
    %5702 = vadd.xlane.f32.xlu0 %v5701
    %v5703 = vpop.xlane.xlu0 %5702
    %v5704 = vsel %vm1020, %v5703, -inf
    %v5705 = vrot.slane %v5704, 4
    %v5706 = vmax.f32 %v5704, %v5705
    %v5707 = vrot.slane %v5706, 2
    %v5708 = vmax.f32 %v5706, %v5707
    %v5709 = vrot.slane %v5708, 1
    %v5710 = vmax.f32 %v5708, %v5709
    %v5711 = vsub.f32 %v5703, %v5710
    %v5712 = vmul.f32 %v5711, 1.442695
    %v5713 = vpow.pop %v5712
    %v5714 = vsel %vm1020, %v5713, 0.0
    %v5715 = vrot.slane %v5714, 4
    %v5716 = vadd.f32 %v5714, %v5715
    %v5717 = vrot.slane %v5716, 2
    %v5718 = vadd.f32 %v5716, %v5717
    %v5719 = vrot.slane %v5718, 1
    %v5720 = vadd.f32 %v5718, %v5719
    %v5721 = vrcp.pop %v5720
    %v5722 = vmul.f32 %v5713, %v5721
    %v5723 = vmul.f32 %v5722, %v5654
    %v5724 = vlaneseq
    %v5725 = vshrl.u32 %v5724, 7
    %v5726 = vsub.s32 1, %v5725
    %v5727 = vrot.slane %v289, %v5726
    %v5728 = vadd.f32 %v5607, %v5727
    %v5729 = vpack.c.bf16 %v5723, %v5723
    %v5731 = vsel %vm245, %v5729, 0
    %5733 = vmatprep.subr.bf16.mxu0 0
    %5734 = vmatpush1.bf16.msra.mxu0 %v1078
    %5735 = vmatprep.subr.bf16.mxu0 0
    %5736 = vmatpush1.bf16.msra.mxu0 %v1079
    %5737 = vmatprep.subr.bf16.mxu0 0
    %5738 = vmatpush1.bf16.msra.mxu0 %v1080
    %5739 = vmatprep.subr.bf16.mxu0 0
    %5740 = vmatpush1.bf16.msra.mxu0 %v1081
    %5741 = vmatprep.subr.bf16.mxu0 0
    %5742 = vmatpush1.bf16.msra.mxu0 0
    %5743 = vmatprep.subr.bf16.mxu0 0
    %5744 = vmatpush1.bf16.msra.mxu0 0
    %5745 = vmatprep.subr.bf16.mxu0 0
    %5746 = vmatpush1.bf16.msra.mxu0 0
    %5747 = vmatprep.subr.bf16.mxu0 0
    %5748 = vmatpush1.bf16.msra.mxu0 0
    %5749 = vmatprep.subr.bf16.mxu0 0
    %5750 = vmatpush1.bf16.msra.mxu0 0
    %5751 = vmatprep.subr.bf16.mxu0 0
    %5752 = vmatpush1.bf16.msra.mxu0 0
    %5753 = vmatprep.subr.bf16.mxu0 0
    %5754 = vmatpush1.bf16.msra.mxu0 0
    %5755 = vmatprep.subr.bf16.mxu0 0
    %5756 = vmatpush1.bf16.msra.mxu0 0
    %5757 = vmatprep.subr.bf16.mxu0 0
    %5758 = vmatpush1.bf16.msra.mxu0 0
    %5759 = vmatprep.subr.bf16.mxu0 0
    %5760 = vmatpush1.bf16.msra.mxu0 0
    %5761 = vmatprep.subr.bf16.mxu0 0
    %5762 = vmatpush1.bf16.msra.mxu0 0
    %5763 = vmatprep.subr.bf16.mxu0 0
    %5764 = vmatpush1.bf16.msra.mxu0 0
    %5765 = vmatprep.mubr.bf16.mxu0 0
    %5766 = vmatmul.mubr.bf16.gmra.mrb[0].mxu0 %v5731
    %v5767 = vpop.f32.mrb[0].mxu0
    %v5768 = vadd.f32 %v1060, %v5767
    %v5769 = vpop.f32.mrb[0].mxu0
    %v5770 = vpop.f32.mrb[0].mxu0
    %v5771 = vpop.f32.mrb[0].mxu0
    %5772 = vdwg.mxu0
    %5773 = vmatprep.subr.bf16.mxu0 0
    %5774 = vmatpush1.bf16.msra.mxu0 %v1162
    %5775 = vmatprep.subr.bf16.mxu0 0
    %5776 = vmatpush1.bf16.msra.mxu0 %v1163
    %5777 = vmatprep.subr.bf16.mxu0 0
    %5778 = vmatpush1.bf16.msra.mxu0 %v1164
    %5779 = vmatprep.subr.bf16.mxu0 0
    %5780 = vmatpush1.bf16.msra.mxu0 %v1165
    %5781 = vmatprep.subr.bf16.mxu0 0
    %5782 = vmatpush1.bf16.msra.mxu0 0
    %5783 = vmatprep.subr.bf16.mxu0 0
    %5784 = vmatpush1.bf16.msra.mxu0 0
    %5785 = vmatprep.subr.bf16.mxu0 0
    %5786 = vmatpush1.bf16.msra.mxu0 0
    %5787 = vmatprep.subr.bf16.mxu0 0
    %5788 = vmatpush1.bf16.msra.mxu0 0
    %5789 = vmatprep.subr.bf16.mxu0 0
    %5790 = vmatpush1.bf16.msra.mxu0 0
    %5791 = vmatprep.subr.bf16.mxu0 0
    %5792 = vmatpush1.bf16.msra.mxu0 0
    %5793 = vmatprep.subr.bf16.mxu0 0
    %5794 = vmatpush1.bf16.msra.mxu0 0
    %5795 = vmatprep.subr.bf16.mxu0 0
    %5796 = vmatpush1.bf16.msra.mxu0 0
    %5797 = vmatprep.subr.bf16.mxu0 0
    %5798 = vmatpush1.bf16.msra.mxu0 0
    %5799 = vmatprep.subr.bf16.mxu0 0
    %5800 = vmatpush1.bf16.msra.mxu0 0
    %5801 = vmatprep.subr.bf16.mxu0 0
    %5802 = vmatpush1.bf16.msra.mxu0 0
    %5803 = vmatprep.subr.bf16.mxu0 0
    %5804 = vmatpush1.bf16.msra.mxu0 0
    %5805 = vmatprep.mubr.bf16.mxu0 0
    %5806 = vmatmul.mubr.bf16.gmra.mrb[0].mxu0 %v5731
    %v5807 = vpop.f32.mrb[0].mxu0
    %v5808 = vadd.f32 %v1144, %v5807
    %v5809 = vpop.f32.mrb[0].mxu0
    %v5810 = vpop.f32.mrb[0].mxu0
    %v5811 = vpop.f32.mrb[0].mxu0
    %5812 = vdwg.mxu0
    %5813 = vmatprep.subr.bf16.mxu0 0
    %5814 = vmatpush1.bf16.msra.mxu0 %v1243
    %5815 = vmatprep.subr.bf16.mxu0 0
    %5816 = vmatpush1.bf16.msra.mxu0 %v1244
    %5817 = vmatprep.subr.bf16.mxu0 0
    %5818 = vmatpush1.bf16.msra.mxu0 %v1245
    %5819 = vmatprep.subr.bf16.mxu0 0
    %5820 = vmatpush1.bf16.msra.mxu0 %v1246
    %5821 = vmatprep.subr.bf16.mxu0 0
    %5822 = vmatpush1.bf16.msra.mxu0 0
    %5823 = vmatprep.subr.bf16.mxu0 0
    %5824 = vmatpush1.bf16.msra.mxu0 0
    %5825 = vmatprep.subr.bf16.mxu0 0
    %5826 = vmatpush1.bf16.msra.mxu0 0
    %5827 = vmatprep.subr.bf16.mxu0 0
    %5828 = vmatpush1.bf16.msra.mxu0 0
    %5829 = vmatprep.subr.bf16.mxu0 0
    %5830 = vmatpush1.bf16.msra.mxu0 0
    %5831 = vmatprep.subr.bf16.mxu0 0
    %5832 = vmatpush1.bf16.msra.mxu0 0
    %5833 = vmatprep.subr.bf16.mxu0 0
    %5834 = vmatpush1.bf16.msra.mxu0 0
    %5835 = vmatprep.subr.bf16.mxu0 0
    %5836 = vmatpush1.bf16.msra.mxu0 0
    %5837 = vmatprep.subr.bf16.mxu0 0
    %5838 = vmatpush1.bf16.msra.mxu0 0
    %5839 = vmatprep.subr.bf16.mxu0 0
    %5840 = vmatpush1.bf16.msra.mxu0 0
    %5841 = vmatprep.subr.bf16.mxu0 0
    %5842 = vmatpush1.bf16.msra.mxu0 0
    %5843 = vmatprep.subr.bf16.mxu0 0
    %5844 = vmatpush1.bf16.msra.mxu0 0
    %5845 = vmatprep.mubr.bf16.mxu0 0
    %5846 = vmatmul.mubr.bf16.gmra.mrb[0].mxu0 %v5731
    %v5847 = vpop.f32.mrb[0].mxu0
    %v5848 = vadd.f32 %v1225, %v5847
    %v5849 = vpop.f32.mrb[0].mxu0
    %v5850 = vpop.f32.mrb[0].mxu0
    %v5851 = vpop.f32.mrb[0].mxu0
    %5852 = vdwg.mxu0
    %5853 = vmatprep.subr.bf16.mxu0 0
    %5854 = vmatpush1.bf16.msra.mxu0 %v1324
    %5855 = vmatprep.subr.bf16.mxu0 0
    %5856 = vmatpush1.bf16.msra.mxu0 %v1325
    %5857 = vmatprep.subr.bf16.mxu0 0
    %5858 = vmatpush1.bf16.msra.mxu0 %v1326
    %5859 = vmatprep.subr.bf16.mxu0 0
    %5860 = vmatpush1.bf16.msra.mxu0 %v1327
    %5861 = vmatprep.subr.bf16.mxu0 0
    %5862 = vmatpush1.bf16.msra.mxu0 0
    %5863 = vmatprep.subr.bf16.mxu0 0
    %5864 = vmatpush1.bf16.msra.mxu0 0
    %5865 = vmatprep.subr.bf16.mxu0 0
    %5866 = vmatpush1.bf16.msra.mxu0 0
    %5867 = vmatprep.subr.bf16.mxu0 0
    %5868 = vmatpush1.bf16.msra.mxu0 0
    %5869 = vmatprep.subr.bf16.mxu0 0
    %5870 = vmatpush1.bf16.msra.mxu0 0
    %5871 = vmatprep.subr.bf16.mxu0 0
    %5872 = vmatpush1.bf16.msra.mxu0 0
    %5873 = vmatprep.subr.bf16.mxu0 0
    %5874 = vmatpush1.bf16.msra.mxu0 0
    %5875 = vmatprep.subr.bf16.mxu0 0
    %5876 = vmatpush1.bf16.msra.mxu0 0
    %5877 = vmatprep.subr.bf16.mxu0 0
    %5878 = vmatpush1.bf16.msra.mxu0 0
    %5879 = vmatprep.subr.bf16.mxu0 0
    %5880 = vmatpush1.bf16.msra.mxu0 0
    %5881 = vmatprep.subr.bf16.mxu0 0
    %5882 = vmatpush1.bf16.msra.mxu0 0
    %5883 = vmatprep.subr.bf16.mxu0 0
    %5884 = vmatpush1.bf16.msra.mxu0 0
    %5885 = vmatprep.mubr.bf16.mxu0 0
    %5886 = vmatmul.mubr.bf16.gmra.mrb[0].mxu0 %v5731
    %v5887 = vpop.f32.mrb[0].mxu0
    %v5888 = vadd.f32 %v1306, %v5887
    %v5889 = vpop.f32.mrb[0].mxu0
    %v5890 = vpop.f32.mrb[0].mxu0
    %v5891 = vpop.f32.mrb[0].mxu0
    %5892 = vdwg.mxu0
    %v5893 = vpack.c.bf16 %v5728, %v5728
    %v5895 = vsel %vm245, %v5893, 0
    %5897 = vmatprep.subr.bf16.mxu0 0
    %5898 = vmatpush1.bf16.msra.mxu0 %v1406
    %5899 = vmatprep.subr.bf16.mxu0 0
    %5900 = vmatpush1.bf16.msra.mxu0 %v1407
    %5901 = vmatprep.subr.bf16.mxu0 0
    %5902 = vmatpush1.bf16.msra.mxu0 %v1408
    %5903 = vmatprep.subr.bf16.mxu0 0
    %5904 = vmatpush1.bf16.msra.mxu0 %v1409
    %5905 = vmatprep.subr.bf16.mxu0 0
    %5906 = vmatpush1.bf16.msra.mxu0 0
    %5907 = vmatprep.subr.bf16.mxu0 0
    %5908 = vmatpush1.bf16.msra.mxu0 0
    %5909 = vmatprep.subr.bf16.mxu0 0
    %5910 = vmatpush1.bf16.msra.mxu0 0
    %5911 = vmatprep.subr.bf16.mxu0 0
    %5912 = vmatpush1.bf16.msra.mxu0 0
    %5913 = vmatprep.subr.bf16.mxu0 0
    %5914 = vmatpush1.bf16.msra.mxu0 0
    %5915 = vmatprep.subr.bf16.mxu0 0
    %5916 = vmatpush1.bf16.msra.mxu0 0
    %5917 = vmatprep.subr.bf16.mxu0 0
    %5918 = vmatpush1.bf16.msra.mxu0 0
    %5919 = vmatprep.subr.bf16.mxu0 0
    %5920 = vmatpush1.bf16.msra.mxu0 0
    %5921 = vmatprep.subr.bf16.mxu0 0
    %5922 = vmatpush1.bf16.msra.mxu0 0
    %5923 = vmatprep.subr.bf16.mxu0 0
    %5924 = vmatpush1.bf16.msra.mxu0 0
    %5925 = vmatprep.subr.bf16.mxu0 0
    %5926 = vmatpush1.bf16.msra.mxu0 0
    %5927 = vmatprep.subr.bf16.mxu0 0
    %5928 = vmatpush1.bf16.msra.mxu0 0
    %5929 = vmatprep.mubr.bf16.mxu0 0
    %5930 = vmatmul.mubr.bf16.gmra.mrb[0].mxu0 %v5895
    %v5931 = vpop.f32.mrb[0].mxu0
    %v5932 = vadd.f32 %v1388, %v5931
    %v5933 = vpop.f32.mrb[0].mxu0
    %v5934 = vpop.f32.mrb[0].mxu0
    %v5935 = vpop.f32.mrb[0].mxu0
    %5936 = vdwg.mxu0
    %5937 = vmatprep.subr.bf16.mxu0 0
    %5938 = vmatpush1.bf16.msra.mxu0 %v1490
    %5939 = vmatprep.subr.bf16.mxu0 0
    %5940 = vmatpush1.bf16.msra.mxu0 %v1491
    %5941 = vmatprep.subr.bf16.mxu0 0
    %5942 = vmatpush1.bf16.msra.mxu0 %v1492
    %5943 = vmatprep.subr.bf16.mxu0 0
    %5944 = vmatpush1.bf16.msra.mxu0 %v1493
    %5945 = vmatprep.subr.bf16.mxu0 0
    %5946 = vmatpush1.bf16.msra.mxu0 0
    %5947 = vmatprep.subr.bf16.mxu0 0
    %5948 = vmatpush1.bf16.msra.mxu0 0
    %5949 = vmatprep.subr.bf16.mxu0 0
    %5950 = vmatpush1.bf16.msra.mxu0 0
    %5951 = vmatprep.subr.bf16.mxu0 0
    %5952 = vmatpush1.bf16.msra.mxu0 0
    %5953 = vmatprep.subr.bf16.mxu0 0
    %5954 = vmatpush1.bf16.msra.mxu0 0
    %5955 = vmatprep.subr.bf16.mxu0 0
    %5956 = vmatpush1.bf16.msra.mxu0 0
    %5957 = vmatprep.subr.bf16.mxu0 0
    %5958 = vmatpush1.bf16.msra.mxu0 0
    %5959 = vmatprep.subr.bf16.mxu0 0
    %5960 = vmatpush1.bf16.msra.mxu0 0
    %5961 = vmatprep.subr.bf16.mxu0 0
    %5962 = vmatpush1.bf16.msra.mxu0 0
    %5963 = vmatprep.subr.bf16.mxu0 0
    %5964 = vmatpush1.bf16.msra.mxu0 0
    %5965 = vmatprep.subr.bf16.mxu0 0
    %5966 = vmatpush1.bf16.msra.mxu0 0
    %5967 = vmatprep.subr.bf16.mxu0 0
    %5968 = vmatpush1.bf16.msra.mxu0 0
    %5969 = vmatprep.mubr.bf16.mxu0 0
    %5970 = vmatmul.mubr.bf16.gmra.mrb[0].mxu0 %v5895
    %v5971 = vpop.f32.mrb[0].mxu0
    %v5972 = vadd.f32 %v1472, %v5971
    %v5973 = vpop.f32.mrb[0].mxu0
    %v5974 = vpop.f32.mrb[0].mxu0
    %v5975 = vpop.f32.mrb[0].mxu0
    %5976 = vdwg.mxu0
    %5977 = vmatprep.subr.bf16.mxu0 0
    %5978 = vmatpush1.bf16.msra.mxu0 %v1571
    %5979 = vmatprep.subr.bf16.mxu0 0
    %5980 = vmatpush1.bf16.msra.mxu0 %v1572
    %5981 = vmatprep.subr.bf16.mxu0 0
    %5982 = vmatpush1.bf16.msra.mxu0 %v1573
    %5983 = vmatprep.subr.bf16.mxu0 0
    %5984 = vmatpush1.bf16.msra.mxu0 %v1574
    %5985 = vmatprep.subr.bf16.mxu0 0
    %5986 = vmatpush1.bf16.msra.mxu0 0
    %5987 = vmatprep.subr.bf16.mxu0 0
    %5988 = vmatpush1.bf16.msra.mxu0 0
    %5989 = vmatprep.subr.bf16.mxu0 0
    %5990 = vmatpush1.bf16.msra.mxu0 0
    %5991 = vmatprep.subr.bf16.mxu0 0
    %5992 = vmatpush1.bf16.msra.mxu0 0
    %5993 = vmatprep.subr.bf16.mxu0 0
    %5994 = vmatpush1.bf16.msra.mxu0 0
    %5995 = vmatprep.subr.bf16.mxu0 0
    %5996 = vmatpush1.bf16.msra.mxu0 0
    %5997 = vmatprep.subr.bf16.mxu0 0
    %5998 = vmatpush1.bf16.msra.mxu0 0
    %5999 = vmatprep.subr.bf16.mxu0 0
    %6000 = vmatpush1.bf16.msra.mxu0 0
    %6001 = vmatprep.subr.bf16.mxu0 0
    %6002 = vmatpush1.bf16.msra.mxu0 0
    %6003 = vmatprep.subr.bf16.mxu0 0
    %6004 = vmatpush1.bf16.msra.mxu0 0
    %6005 = vmatprep.subr.bf16.mxu0 0
    %6006 = vmatpush1.bf16.msra.mxu0 0
    %6007 = vmatprep.subr.bf16.mxu0 0
    %6008 = vmatpush1.bf16.msra.mxu0 0
    %6009 = vmatprep.mubr.bf16.mxu0 0
    %6010 = vmatmul.mubr.bf16.gmra.mrb[0].mxu0 %v5895
    %v6011 = vpop.f32.mrb[0].mxu0
    %v6012 = vadd.f32 %v1553, %v6011
    %v6013 = vpop.f32.mrb[0].mxu0
    %v6014 = vpop.f32.mrb[0].mxu0
    %v6015 = vpop.f32.mrb[0].mxu0
    %6016 = vdwg.mxu0
    %6017 = vmatprep.subr.bf16.mxu0 0
    %6018 = vmatpush1.bf16.msra.mxu0 %v1652
    %6019 = vmatprep.subr.bf16.mxu0 0
    %6020 = vmatpush1.bf16.msra.mxu0 %v1653
    %6021 = vmatprep.subr.bf16.mxu0 0
    %6022 = vmatpush1.bf16.msra.mxu0 %v1654
    %6023 = vmatprep.subr.bf16.mxu0 0
    %6024 = vmatpush1.bf16.msra.mxu0 %v1655
    %6025 = vmatprep.subr.bf16.mxu0 0
    %6026 = vmatpush1.bf16.msra.mxu0 0
    %6027 = vmatprep.subr.bf16.mxu0 0
    %6028 = vmatpush1.bf16.msra.mxu0 0
    %6029 = vmatprep.subr.bf16.mxu0 0
    %6030 = vmatpush1.bf16.msra.mxu0 0
    %6031 = vmatprep.subr.bf16.mxu0 0
    %6032 = vmatpush1.bf16.msra.mxu0 0
    %6033 = vmatprep.subr.bf16.mxu0 0
    %6034 = vmatpush1.bf16.msra.mxu0 0
    %6035 = vmatprep.subr.bf16.mxu0 0
    %6036 = vmatpush1.bf16.msra.mxu0 0
    %6037 = vmatprep.subr.bf16.mxu0 0
    %6038 = vmatpush1.bf16.msra.mxu0 0
    %6039 = vmatprep.subr.bf16.mxu0 0
    %6040 = vmatpush1.bf16.msra.mxu0 0
    %6041 = vmatprep.subr.bf16.mxu0 0
    %6042 = vmatpush1.bf16.msra.mxu0 0
    %6043 = vmatprep.subr.bf16.mxu0 0
    %6044 = vmatpush1.bf16.msra.mxu0 0
    %6045 = vmatprep.subr.bf16.mxu0 0
    %6046 = vmatpush1.bf16.msra.mxu0 0
    %6047 = vmatprep.subr.bf16.mxu0 0
    %6048 = vmatpush1.bf16.msra.mxu0 0
    %6049 = vmatprep.mubr.bf16.mxu0 0
    %6050 = vmatmul.mubr.bf16.gmra.mrb[0].mxu0 %v5895
    %v6051 = vpop.f32.mrb[0].mxu0
    %v6052 = vadd.f32 %v1634, %v6051
    %v6053 = vpop.f32.mrb[0].mxu0
    %v6054 = vpop.f32.mrb[0].mxu0
    %v6055 = vpop.f32.mrb[0].mxu0
    %6056 = vdwg.mxu0
    %6057 = vmatprep.subr.bf16.mxu0 0
    %6058 = vmatpush1.bf16.msra.mxu0 %v1733
    %6059 = vmatprep.subr.bf16.mxu0 0
    %6060 = vmatpush1.bf16.msra.mxu0 %v1734
    %6061 = vmatprep.subr.bf16.mxu0 0
    %6062 = vmatpush1.bf16.msra.mxu0 %v1735
    %6063 = vmatprep.subr.bf16.mxu0 0
    %6064 = vmatpush1.bf16.msra.mxu0 %v1736
    %6065 = vmatprep.subr.bf16.mxu0 0
    %6066 = vmatpush1.bf16.msra.mxu0 0
    %6067 = vmatprep.subr.bf16.mxu0 0
    %6068 = vmatpush1.bf16.msra.mxu0 0
    %6069 = vmatprep.subr.bf16.mxu0 0
    %6070 = vmatpush1.bf16.msra.mxu0 0
    %6071 = vmatprep.subr.bf16.mxu0 0
    %6072 = vmatpush1.bf16.msra.mxu0 0
    %6073 = vmatprep.subr.bf16.mxu0 0
    %6074 = vmatpush1.bf16.msra.mxu0 0
    %6075 = vmatprep.subr.bf16.mxu0 0
    %6076 = vmatpush1.bf16.msra.mxu0 0
    %6077 = vmatprep.subr.bf16.mxu0 0
    %6078 = vmatpush1.bf16.msra.mxu0 0
    %6079 = vmatprep.subr.bf16.mxu0 0
    %6080 = vmatpush1.bf16.msra.mxu0 0
    %6081 = vmatprep.subr.bf16.mxu0 0
    %6082 = vmatpush1.bf16.msra.mxu0 0
    %6083 = vmatprep.subr.bf16.mxu0 0
    %6084 = vmatpush1.bf16.msra.mxu0 0
    %6085 = vmatprep.subr.bf16.mxu0 0
    %6086 = vmatpush1.bf16.msra.mxu0 0
    %6087 = vmatprep.subr.bf16.mxu0 0
    %6088 = vmatpush1.bf16.msra.mxu0 0
    %6089 = vmatprep.mubr.bf16.mxu0 0
    %6090 = vmatmul.mubr.bf16.gmra.mrb[0].mxu0 %v5895
    %v6091 = vpop.f32.mrb[0].mxu0
    %v6092 = vadd.f32 %v1715, %v6091
    %v6093 = vpop.f32.mrb[0].mxu0
    %v6094 = vpop.f32.mrb[0].mxu0
    %v6095 = vpop.f32.mrb[0].mxu0
    %6096 = vdwg.mxu0
    %6097 = vmatprep.subr.bf16.mxu0 0
    %6098 = vmatpush1.bf16.msra.mxu0 %v1814
    %6099 = vmatprep.subr.bf16.mxu0 0
    %6100 = vmatpush1.bf16.msra.mxu0 %v1815
    %6101 = vmatprep.subr.bf16.mxu0 0
    %6102 = vmatpush1.bf16.msra.mxu0 %v1816
    %6103 = vmatprep.subr.bf16.mxu0 0
    %6104 = vmatpush1.bf16.msra.mxu0 %v1817
    %6105 = vmatprep.subr.bf16.mxu0 0
    %6106 = vmatpush1.bf16.msra.mxu0 0
    %6107 = vmatprep.subr.bf16.mxu0 0
    %6108 = vmatpush1.bf16.msra.mxu0 0
    %6109 = vmatprep.subr.bf16.mxu0 0
    %6110 = vmatpush1.bf16.msra.mxu0 0
    %6111 = vmatprep.subr.bf16.mxu0 0
    %6112 = vmatpush1.bf16.msra.mxu0 0
    %6113 = vmatprep.subr.bf16.mxu0 0
    %6114 = vmatpush1.bf16.msra.mxu0 0
    %6115 = vmatprep.subr.bf16.mxu0 0
    %6116 = vmatpush1.bf16.msra.mxu0 0
    %6117 = vmatprep.subr.bf16.mxu0 0
    %6118 = vmatpush1.bf16.msra.mxu0 0
    %6119 = vmatprep.subr.bf16.mxu0 0
    %6120 = vmatpush1.bf16.msra.mxu0 0
    %6121 = vmatprep.subr.bf16.mxu0 0
    %6122 = vmatpush1.bf16.msra.mxu0 0
    %6123 = vmatprep.subr.bf16.mxu0 0
    %6124 = vmatpush1.bf16.msra.mxu0 0
    %6125 = vmatprep.subr.bf16.mxu0 0
    %6126 = vmatpush1.bf16.msra.mxu0 0
    %6127 = vmatprep.subr.bf16.mxu0 0
    %6128 = vmatpush1.bf16.msra.mxu0 0
    %6129 = vmatprep.mubr.bf16.mxu0 0
    %6130 = vmatmul.mubr.bf16.gmra.mrb[0].mxu0 %v5895
    %v6131 = vpop.f32.mrb[0].mxu0
    %v6132 = vadd.f32 %v1796, %v6131
    %v6133 = vpop.f32.mrb[0].mxu0
    %v6134 = vpop.f32.mrb[0].mxu0
    %v6135 = vpop.f32.mrb[0].mxu0
    %6136 = vdwg.mxu0
    %6137 = vmatprep.subr.bf16.mxu0 0
    %6138 = vmatpush1.bf16.msra.mxu0 %v1895
    %6139 = vmatprep.subr.bf16.mxu0 0
    %6140 = vmatpush1.bf16.msra.mxu0 %v1896
    %6141 = vmatprep.subr.bf16.mxu0 0
    %6142 = vmatpush1.bf16.msra.mxu0 %v1897
    %6143 = vmatprep.subr.bf16.mxu0 0
    %6144 = vmatpush1.bf16.msra.mxu0 %v1898
    %6145 = vmatprep.subr.bf16.mxu0 0
    %6146 = vmatpush1.bf16.msra.mxu0 0
    %6147 = vmatprep.subr.bf16.mxu0 0
    %6148 = vmatpush1.bf16.msra.mxu0 0
    %6149 = vmatprep.subr.bf16.mxu0 0
    %6150 = vmatpush1.bf16.msra.mxu0 0
    %6151 = vmatprep.subr.bf16.mxu0 0
    %6152 = vmatpush1.bf16.msra.mxu0 0
    %6153 = vmatprep.subr.bf16.mxu0 0
    %6154 = vmatpush1.bf16.msra.mxu0 0
    %6155 = vmatprep.subr.bf16.mxu0 0
    %6156 = vmatpush1.bf16.msra.mxu0 0
    %6157 = vmatprep.subr.bf16.mxu0 0
    %6158 = vmatpush1.bf16.msra.mxu0 0
    %6159 = vmatprep.subr.bf16.mxu0 0
    %6160 = vmatpush1.bf16.msra.mxu0 0
    %6161 = vmatprep.subr.bf16.mxu0 0
    %6162 = vmatpush1.bf16.msra.mxu0 0
    %6163 = vmatprep.subr.bf16.mxu0 0
    %6164 = vmatpush1.bf16.msra.mxu0 0
    %6165 = vmatprep.subr.bf16.mxu0 0
    %6166 = vmatpush1.bf16.msra.mxu0 0
    %6167 = vmatprep.subr.bf16.mxu0 0
    %6168 = vmatpush1.bf16.msra.mxu0 0
    %6169 = vmatprep.mubr.bf16.mxu0 0
    %6170 = vmatmul.mubr.bf16.gmra.mrb[0].mxu0 %v5895
    %v6171 = vpop.f32.mrb[0].mxu0
    %v6172 = vadd.f32 %v1877, %v6171
    %v6173 = vpop.f32.mrb[0].mxu0
    %v6174 = vpop.f32.mrb[0].mxu0
    %v6175 = vpop.f32.mrb[0].mxu0
    %6176 = vdwg.mxu0
    %6177 = vmatprep.subr.bf16.mxu0 0
    %6178 = vmatpush1.bf16.msra.mxu0 %v1976
    %6179 = vmatprep.subr.bf16.mxu0 0
    %6180 = vmatpush1.bf16.msra.mxu0 %v1977
    %6181 = vmatprep.subr.bf16.mxu0 0
    %6182 = vmatpush1.bf16.msra.mxu0 %v1978
    %6183 = vmatprep.subr.bf16.mxu0 0
    %6184 = vmatpush1.bf16.msra.mxu0 %v1979
    %6185 = vmatprep.subr.bf16.mxu0 0
    %6186 = vmatpush1.bf16.msra.mxu0 0
    %6187 = vmatprep.subr.bf16.mxu0 0
    %6188 = vmatpush1.bf16.msra.mxu0 0
    %6189 = vmatprep.subr.bf16.mxu0 0
    %6190 = vmatpush1.bf16.msra.mxu0 0
    %6191 = vmatprep.subr.bf16.mxu0 0
    %6192 = vmatpush1.bf16.msra.mxu0 0
    %6193 = vmatprep.subr.bf16.mxu0 0
    %6194 = vmatpush1.bf16.msra.mxu0 0
    %6195 = vmatprep.subr.bf16.mxu0 0
    %6196 = vmatpush1.bf16.msra.mxu0 0
    %6197 = vmatprep.subr.bf16.mxu0 0
    %6198 = vmatpush1.bf16.msra.mxu0 0
    %6199 = vmatprep.subr.bf16.mxu0 0
    %6200 = vmatpush1.bf16.msra.mxu0 0
    %6201 = vmatprep.subr.bf16.mxu0 0
    %6202 = vmatpush1.bf16.msra.mxu0 0
    %6203 = vmatprep.subr.bf16.mxu0 0
    %6204 = vmatpush1.bf16.msra.mxu0 0
    %6205 = vmatprep.subr.bf16.mxu0 0
    %6206 = vmatpush1.bf16.msra.mxu0 0
    %6207 = vmatprep.subr.bf16.mxu0 0
    %6208 = vmatpush1.bf16.msra.mxu0 0
    %6209 = vmatprep.mubr.bf16.mxu0 0
    %6210 = vmatmul.mubr.bf16.gmra.mrb[0].mxu0 %v5895
    %v6211 = vpop.f32.mrb[0].mxu0
    %v6212 = vadd.f32 %v1958, %v6211
    %v6213 = vpop.f32.mrb[0].mxu0
    %v6214 = vpop.f32.mrb[0].mxu0
    %v6215 = vpop.f32.mrb[0].mxu0
    %6216 = vdwg.mxu0
    %v6217 = vpack.c.bf16 %v5768, %v5768
    %v6218 = vpack.c.bf16 %v5932, %v5932
    %v6220 = vsel %vm724, %v6217, 0
    %v6223 = vsel %vm724, %v6218, 0
    %6225 = vmatprep.subr.bf16.mxu0 0
    %6226 = vmatpush1.bf16.xpose.msra.mxu0 %v6223
    %6227 = vmatprep.subr.bf16.mxu0 0
    %6228 = vmatpush1.bf16.xpose.msra.mxu0 0
    %6229 = vmatprep.subr.bf16.mxu0 0
    %6230 = vmatpush1.bf16.xpose.msra.mxu0 0
    %6231 = vmatprep.subr.bf16.mxu0 0
    %6232 = vmatpush1.bf16.xpose.msra.mxu0 0
    %6233 = vmatprep.subr.bf16.mxu0 0
    %6234 = vmatpush1.bf16.xpose.msra.mxu0 0
    %6235 = vmatprep.subr.bf16.mxu0 0
    %6236 = vmatpush1.bf16.xpose.msra.mxu0 0
    %6237 = vmatprep.subr.bf16.mxu0 0
    %6238 = vmatpush1.bf16.xpose.msra.mxu0 0
    %6239 = vmatprep.subr.bf16.mxu0 0
    %6240 = vmatpush1.bf16.xpose.msra.mxu0 0
    %6241 = vmatprep.subr.bf16.mxu0 0
    %6242 = vmatpush1.bf16.xpose.msra.mxu0 0
    %6243 = vmatprep.subr.bf16.mxu0 0
    %6244 = vmatpush1.bf16.xpose.msra.mxu0 0
    %6245 = vmatprep.subr.bf16.mxu0 0
    %6246 = vmatpush1.bf16.xpose.msra.mxu0 0
    %6247 = vmatprep.subr.bf16.mxu0 0
    %6248 = vmatpush1.bf16.xpose.msra.mxu0 0
    %6249 = vmatprep.subr.bf16.mxu0 0
    %6250 = vmatpush1.bf16.xpose.msra.mxu0 0
    %6251 = vmatprep.subr.bf16.mxu0 0
    %6252 = vmatpush1.bf16.xpose.msra.mxu0 0
    %6253 = vmatprep.subr.bf16.mxu0 0
    %6254 = vmatpush1.bf16.xpose.msra.mxu0 0
    %6255 = vmatprep.subr.bf16.mxu0 0
    %6256 = vmatpush1.bf16.xpose.msra.mxu0 0
    %6257 = vmatprep.mubr.bf16.mxu0 0
    %6258 = vmatmul.mubr.bf16.gmra.mrb[0].mxu0 %v6220
    %v6259 = vpop.f32.mrb[0].mxu0
    %v6260 = vadd.f32 0.0, %v6259
    %v6261 = vpop.f32.mrb[0].mxu0
    %v6262 = vpop.f32.mrb[0].mxu0
    %v6263 = vpop.f32.mrb[0].mxu0
    %6264 = vdwg.mxu0
    %v6265 = vsel %vm2072, %v6260, -inf
    %6266 = vmax.xlane.f32.xlu0 %v6265
    %v6267 = vpop.xlane.xlu0 %6266
    %v6268 = vsub.f32 %v6260, %v6267
    %v6269 = vmul.f32 %v6268, 1.442695
    %v6270 = vpow.pop %v6269
    %v6271 = vsel %vm2072, %v6270, 0.0
    %6272 = vadd.xlane.f32.xlu0 %v6271
    %v6273 = vpop.xlane.xlu0 %6272
    %v6274 = vrcp.pop %v6273
    %v6275 = vmul.f32 %v6270, %v6274
    %v6276 = vpack.c.bf16 %v6275, %v6275
    %v6277 = vpack.c.bf16 %v6092, %v6092
    %v6279 = vsel %vm2086, %v6276, 0
    %v6282 = vsel %vm2090, %v6277, 0
    %6284 = vmatprep.subr.bf16.mxu0 0
    %6285 = vmatpush1.bf16.msra.mxu0 %v6282
    %6286 = vmatprep.subr.bf16.mxu0 0
    %6287 = vmatpush1.bf16.msra.mxu0 0
    %6288 = vmatprep.subr.bf16.mxu0 0
    %6289 = vmatpush1.bf16.msra.mxu0 0
    %6290 = vmatprep.subr.bf16.mxu0 0
    %6291 = vmatpush1.bf16.msra.mxu0 0
    %6292 = vmatprep.subr.bf16.mxu0 0
    %6293 = vmatpush1.bf16.msra.mxu0 0
    %6294 = vmatprep.subr.bf16.mxu0 0
    %6295 = vmatpush1.bf16.msra.mxu0 0
    %6296 = vmatprep.subr.bf16.mxu0 0
    %6297 = vmatpush1.bf16.msra.mxu0 0
    %6298 = vmatprep.subr.bf16.mxu0 0
    %6299 = vmatpush1.bf16.msra.mxu0 0
    %6300 = vmatprep.subr.bf16.mxu0 0
    %6301 = vmatpush1.bf16.msra.mxu0 0
    %6302 = vmatprep.subr.bf16.mxu0 0
    %6303 = vmatpush1.bf16.msra.mxu0 0
    %6304 = vmatprep.subr.bf16.mxu0 0
    %6305 = vmatpush1.bf16.msra.mxu0 0
    %6306 = vmatprep.subr.bf16.mxu0 0
    %6307 = vmatpush1.bf16.msra.mxu0 0
    %6308 = vmatprep.subr.bf16.mxu0 0
    %6309 = vmatpush1.bf16.msra.mxu0 0
    %6310 = vmatprep.subr.bf16.mxu0 0
    %6311 = vmatpush1.bf16.msra.mxu0 0
    %6312 = vmatprep.subr.bf16.mxu0 0
    %6313 = vmatpush1.bf16.msra.mxu0 0
    %6314 = vmatprep.subr.bf16.mxu0 0
    %6315 = vmatpush1.bf16.msra.mxu0 0
    %6316 = vmatprep.mubr.bf16.mxu0 0
    %6317 = vmatmul.mubr.bf16.gmra.mrb[0].mxu0 %v6279
    %v6318 = vpop.f32.mrb[0].mxu0
    %v6319 = vadd.f32 0.0, %v6318
    %v6320 = vpop.f32.mrb[0].mxu0
    %v6321 = vpop.f32.mrb[0].mxu0
    %v6322 = vpop.f32.mrb[0].mxu0
    %6323 = vdwg.mxu0
    %v6324 = vpack.c.bf16 %v6319, %v6319
    %v6325 = vpack.c.bf16 %v5808, %v5808
    %v6326 = vpack.c.bf16 %v5972, %v5972
    %v6328 = vsel %vm724, %v6325, 0
    %v6331 = vsel %vm724, %v6326, 0
    %6333 = vmatprep.subr.bf16.mxu0 0
    %6334 = vmatpush1.bf16.xpose.msra.mxu0 %v6331
    %6335 = vmatprep.subr.bf16.mxu0 0
    %6336 = vmatpush1.bf16.xpose.msra.mxu0 0
    %6337 = vmatprep.subr.bf16.mxu0 0
    %6338 = vmatpush1.bf16.xpose.msra.mxu0 0
    %6339 = vmatprep.subr.bf16.mxu0 0
    %6340 = vmatpush1.bf16.xpose.msra.mxu0 0
    %6341 = vmatprep.subr.bf16.mxu0 0
    %6342 = vmatpush1.bf16.xpose.msra.mxu0 0
    %6343 = vmatprep.subr.bf16.mxu0 0
    %6344 = vmatpush1.bf16.xpose.msra.mxu0 0
    %6345 = vmatprep.subr.bf16.mxu0 0
    %6346 = vmatpush1.bf16.xpose.msra.mxu0 0
    %6347 = vmatprep.subr.bf16.mxu0 0
    %6348 = vmatpush1.bf16.xpose.msra.mxu0 0
    %6349 = vmatprep.subr.bf16.mxu0 0
    %6350 = vmatpush1.bf16.xpose.msra.mxu0 0
    %6351 = vmatprep.subr.bf16.mxu0 0
    %6352 = vmatpush1.bf16.xpose.msra.mxu0 0
    %6353 = vmatprep.subr.bf16.mxu0 0
    %6354 = vmatpush1.bf16.xpose.msra.mxu0 0
    %6355 = vmatprep.subr.bf16.mxu0 0
    %6356 = vmatpush1.bf16.xpose.msra.mxu0 0
    %6357 = vmatprep.subr.bf16.mxu0 0
    %6358 = vmatpush1.bf16.xpose.msra.mxu0 0
    %6359 = vmatprep.subr.bf16.mxu0 0
    %6360 = vmatpush1.bf16.xpose.msra.mxu0 0
    %6361 = vmatprep.subr.bf16.mxu0 0
    %6362 = vmatpush1.bf16.xpose.msra.mxu0 0
    %6363 = vmatprep.subr.bf16.mxu0 0
    %6364 = vmatpush1.bf16.xpose.msra.mxu0 0
    %6365 = vmatprep.mubr.bf16.mxu0 0
    %6366 = vmatmul.mubr.bf16.gmra.mrb[0].mxu0 %v6328
    %v6367 = vpop.f32.mrb[0].mxu0
    %v6368 = vadd.f32 0.0, %v6367
    %v6369 = vpop.f32.mrb[0].mxu0
    %v6370 = vpop.f32.mrb[0].mxu0
    %v6371 = vpop.f32.mrb[0].mxu0
    %6372 = vdwg.mxu0
    %v6373 = vsel %vm2072, %v6368, -inf
    %6374 = vmax.xlane.f32.xlu0 %v6373
    %v6375 = vpop.xlane.xlu0 %6374
    %v6376 = vsub.f32 %v6368, %v6375
    %v6377 = vmul.f32 %v6376, 1.442695
    %v6378 = vpow.pop %v6377
    %v6379 = vsel %vm2072, %v6378, 0.0
    %6380 = vadd.xlane.f32.xlu0 %v6379
    %v6381 = vpop.xlane.xlu0 %6380
    %v6382 = vrcp.pop %v6381
    %v6383 = vmul.f32 %v6378, %v6382
    %v6384 = vpack.c.bf16 %v6383, %v6383
    %v6385 = vpack.c.bf16 %v6132, %v6132
    %v6387 = vsel %vm2086, %v6384, 0
    %v6390 = vsel %vm2090, %v6385, 0
    %6392 = vmatprep.subr.bf16.mxu0 0
    %6393 = vmatpush1.bf16.msra.mxu0 %v6390
    %6394 = vmatprep.subr.bf16.mxu0 0
    %6395 = vmatpush1.bf16.msra.mxu0 0
    %6396 = vmatprep.subr.bf16.mxu0 0
    %6397 = vmatpush1.bf16.msra.mxu0 0
    %6398 = vmatprep.subr.bf16.mxu0 0
    %6399 = vmatpush1.bf16.msra.mxu0 0
    %6400 = vmatprep.subr.bf16.mxu0 0
    %6401 = vmatpush1.bf16.msra.mxu0 0
    %6402 = vmatprep.subr.bf16.mxu0 0
    %6403 = vmatpush1.bf16.msra.mxu0 0
    %6404 = vmatprep.subr.bf16.mxu0 0
    %6405 = vmatpush1.bf16.msra.mxu0 0
    %6406 = vmatprep.subr.bf16.mxu0 0
    %6407 = vmatpush1.bf16.msra.mxu0 0
    %6408 = vmatprep.subr.bf16.mxu0 0
    %6409 = vmatpush1.bf16.msra.mxu0 0
    %6410 = vmatprep.subr.bf16.mxu0 0
    %6411 = vmatpush1.bf16.msra.mxu0 0
    %6412 = vmatprep.subr.bf16.mxu0 0
    %6413 = vmatpush1.bf16.msra.mxu0 0
    %6414 = vmatprep.subr.bf16.mxu0 0
    %6415 = vmatpush1.bf16.msra.mxu0 0
    %6416 = vmatprep.subr.bf16.mxu0 0
    %6417 = vmatpush1.bf16.msra.mxu0 0
    %6418 = vmatprep.subr.bf16.mxu0 0
    %6419 = vmatpush1.bf16.msra.mxu0 0
    %6420 = vmatprep.subr.bf16.mxu0 0
    %6421 = vmatpush1.bf16.msra.mxu0 0
    %6422 = vmatprep.subr.bf16.mxu0 0
    %6423 = vmatpush1.bf16.msra.mxu0 0
    %6424 = vmatprep.mubr.bf16.mxu0 0
    %6425 = vmatmul.mubr.bf16.gmra.mrb[0].mxu0 %v6387
    %v6426 = vpop.f32.mrb[0].mxu0
    %v6427 = vadd.f32 0.0, %v6426
    %v6428 = vpop.f32.mrb[0].mxu0
    %v6429 = vpop.f32.mrb[0].mxu0
    %v6430 = vpop.f32.mrb[0].mxu0
    %6431 = vdwg.mxu0
    %v6432 = vpack.c.bf16 %v6427, %v6427
    %v6434 = vsel %vm724, %v6432, 0
    %6436 = vmatprep.subr.bf16.mxu0 0
    %6437 = vmatpush1.bf16.msra.mxu0 %v2252
    %6438 = vmatprep.subr.bf16.mxu0 0
    %6439 = vmatpush1.bf16.msra.mxu0 0
    %6440 = vmatprep.subr.bf16.mxu0 0
    %6441 = vmatpush1.bf16.msra.mxu0 0
    %6442 = vmatprep.subr.bf16.mxu0 0
    %6443 = vmatpush1.bf16.msra.mxu0 0
    %6444 = vmatprep.subr.bf16.mxu0 0
    %6445 = vmatpush1.bf16.msra.mxu0 0
    %6446 = vmatprep.subr.bf16.mxu0 0
    %6447 = vmatpush1.bf16.msra.mxu0 0
    %6448 = vmatprep.subr.bf16.mxu0 0
    %6449 = vmatpush1.bf16.msra.mxu0 0
    %6450 = vmatprep.subr.bf16.mxu0 0
    %6451 = vmatpush1.bf16.msra.mxu0 0
    %6452 = vmatprep.subr.bf16.mxu0 0
    %6453 = vmatpush1.bf16.msra.mxu0 0
    %6454 = vmatprep.subr.bf16.mxu0 0
    %6455 = vmatpush1.bf16.msra.mxu0 0
    %6456 = vmatprep.subr.bf16.mxu0 0
    %6457 = vmatpush1.bf16.msra.mxu0 0
    %6458 = vmatprep.subr.bf16.mxu0 0
    %6459 = vmatpush1.bf16.msra.mxu0 0
    %6460 = vmatprep.subr.bf16.mxu0 0
    %6461 = vmatpush1.bf16.msra.mxu0 0
    %6462 = vmatprep.subr.bf16.mxu0 0
    %6463 = vmatpush1.bf16.msra.mxu0 0
    %6464 = vmatprep.subr.bf16.mxu0 0
    %6465 = vmatpush1.bf16.msra.mxu0 0
    %6466 = vmatprep.subr.bf16.mxu0 0
    %6467 = vmatpush1.bf16.msra.mxu0 0
    %6468 = vmatprep.mubr.bf16.mxu0 0
    %6469 = vmatmul.mubr.bf16.gmra.mrb[0].mxu0 %v6434
    %v6470 = vpop.f32.mrb[0].mxu0
    %v6471 = vadd.f32 0.0, %v6470
    %v6472 = vpop.f32.mrb[0].mxu0
    %v6473 = vpop.f32.mrb[0].mxu0
    %v6474 = vpop.f32.mrb[0].mxu0
    %6475 = vdwg.mxu0
    %v6477 = vsel %vm724, %v6324, 0
    %6479 = vmatprep.subr.bf16.mxu0 0
    %6480 = vmatpush1.bf16.msra.mxu0 %v2301
    %6481 = vmatprep.subr.bf16.mxu0 0
    %6482 = vmatpush1.bf16.msra.mxu0 0
    %6483 = vmatprep.subr.bf16.mxu0 0
    %6484 = vmatpush1.bf16.msra.mxu0 0
    %6485 = vmatprep.subr.bf16.mxu0 0
    %6486 = vmatpush1.bf16.msra.mxu0 0
    %6487 = vmatprep.subr.bf16.mxu0 0
    %6488 = vmatpush1.bf16.msra.mxu0 0
    %6489 = vmatprep.subr.bf16.mxu0 0
    %6490 = vmatpush1.bf16.msra.mxu0 0
    %6491 = vmatprep.subr.bf16.mxu0 0
    %6492 = vmatpush1.bf16.msra.mxu0 0
    %6493 = vmatprep.subr.bf16.mxu0 0
    %6494 = vmatpush1.bf16.msra.mxu0 0
    %6495 = vmatprep.subr.bf16.mxu0 0
    %6496 = vmatpush1.bf16.msra.mxu0 0
    %6497 = vmatprep.subr.bf16.mxu0 0
    %6498 = vmatpush1.bf16.msra.mxu0 0
    %6499 = vmatprep.subr.bf16.mxu0 0
    %6500 = vmatpush1.bf16.msra.mxu0 0
    %6501 = vmatprep.subr.bf16.mxu0 0
    %6502 = vmatpush1.bf16.msra.mxu0 0
    %6503 = vmatprep.subr.bf16.mxu0 0
    %6504 = vmatpush1.bf16.msra.mxu0 0
    %6505 = vmatprep.subr.bf16.mxu0 0
    %6506 = vmatpush1.bf16.msra.mxu0 0
    %6507 = vmatprep.subr.bf16.mxu0 0
    %6508 = vmatpush1.bf16.msra.mxu0 0
    %6509 = vmatprep.subr.bf16.mxu0 0
    %6510 = vmatpush1.bf16.msra.mxu0 0
    %6511 = vmatprep.mubr.bf16.mxu0 0
    %6512 = vmatmul.mubr.bf16.gmra.mrb[0].mxu0 %v6477
    %v6513 = vpop.f32.mrb[0].mxu0
    %v6514 = vadd.f32 %v6471, %v6513
    %v6515 = vpop.f32.mrb[0].mxu0
    %v6516 = vpop.f32.mrb[0].mxu0
    %v6517 = vpop.f32.mrb[0].mxu0
    %6518 = vdwg.mxu0
    %v6519 = vpack.c.bf16 %v5848, %v5848
    %v6520 = vpack.c.bf16 %v6012, %v6012
    %v6522 = vsel %vm724, %v6519, 0
    %v6525 = vsel %vm724, %v6520, 0
    %6527 = vmatprep.subr.bf16.mxu0 0
    %6528 = vmatpush1.bf16.xpose.msra.mxu0 %v6525
    %6529 = vmatprep.subr.bf16.mxu0 0
    %6530 = vmatpush1.bf16.xpose.msra.mxu0 0
    %6531 = vmatprep.subr.bf16.mxu0 0
    %6532 = vmatpush1.bf16.xpose.msra.mxu0 0
    %6533 = vmatprep.subr.bf16.mxu0 0
    %6534 = vmatpush1.bf16.xpose.msra.mxu0 0
    %6535 = vmatprep.subr.bf16.mxu0 0
    %6536 = vmatpush1.bf16.xpose.msra.mxu0 0
    %6537 = vmatprep.subr.bf16.mxu0 0
    %6538 = vmatpush1.bf16.xpose.msra.mxu0 0
    %6539 = vmatprep.subr.bf16.mxu0 0
    %6540 = vmatpush1.bf16.xpose.msra.mxu0 0
    %6541 = vmatprep.subr.bf16.mxu0 0
    %6542 = vmatpush1.bf16.xpose.msra.mxu0 0
    %6543 = vmatprep.subr.bf16.mxu0 0
    %6544 = vmatpush1.bf16.xpose.msra.mxu0 0
    %6545 = vmatprep.subr.bf16.mxu0 0
    %6546 = vmatpush1.bf16.xpose.msra.mxu0 0
    %6547 = vmatprep.subr.bf16.mxu0 0
    %6548 = vmatpush1.bf16.xpose.msra.mxu0 0
    %6549 = vmatprep.subr.bf16.mxu0 0
    %6550 = vmatpush1.bf16.xpose.msra.mxu0 0
    %6551 = vmatprep.subr.bf16.mxu0 0
    %6552 = vmatpush1.bf16.xpose.msra.mxu0 0
    %6553 = vmatprep.subr.bf16.mxu0 0
    %6554 = vmatpush1.bf16.xpose.msra.mxu0 0
    %6555 = vmatprep.subr.bf16.mxu0 0
    %6556 = vmatpush1.bf16.xpose.msra.mxu0 0
    %6557 = vmatprep.subr.bf16.mxu0 0
    %6558 = vmatpush1.bf16.xpose.msra.mxu0 0
    %6559 = vmatprep.mubr.bf16.mxu0 0
    %6560 = vmatmul.mubr.bf16.gmra.mrb[0].mxu0 %v6522
    %v6561 = vpop.f32.mrb[0].mxu0
    %v6562 = vadd.f32 0.0, %v6561
    %v6563 = vpop.f32.mrb[0].mxu0
    %v6564 = vpop.f32.mrb[0].mxu0
    %v6565 = vpop.f32.mrb[0].mxu0
    %6566 = vdwg.mxu0
    %v6567 = vsel %vm2072, %v6562, -inf
    %6568 = vmax.xlane.f32.xlu0 %v6567
    %v6569 = vpop.xlane.xlu0 %6568
    %v6570 = vsub.f32 %v6562, %v6569
    %v6571 = vmul.f32 %v6570, 1.442695
    %v6572 = vpow.pop %v6571
    %v6573 = vsel %vm2072, %v6572, 0.0
    %6574 = vadd.xlane.f32.xlu0 %v6573
    %v6575 = vpop.xlane.xlu0 %6574
    %v6576 = vrcp.pop %v6575
    %v6577 = vmul.f32 %v6572, %v6576
    %v6578 = vpack.c.bf16 %v6577, %v6577
    %v6579 = vpack.c.bf16 %v6172, %v6172
    %v6581 = vsel %vm2086, %v6578, 0
    %v6584 = vsel %vm2090, %v6579, 0
    %6586 = vmatprep.subr.bf16.mxu0 0
    %6587 = vmatpush1.bf16.msra.mxu0 %v6584
    %6588 = vmatprep.subr.bf16.mxu0 0
    %6589 = vmatpush1.bf16.msra.mxu0 0
    %6590 = vmatprep.subr.bf16.mxu0 0
    %6591 = vmatpush1.bf16.msra.mxu0 0
    %6592 = vmatprep.subr.bf16.mxu0 0
    %6593 = vmatpush1.bf16.msra.mxu0 0
    %6594 = vmatprep.subr.bf16.mxu0 0
    %6595 = vmatpush1.bf16.msra.mxu0 0
    %6596 = vmatprep.subr.bf16.mxu0 0
    %6597 = vmatpush1.bf16.msra.mxu0 0
    %6598 = vmatprep.subr.bf16.mxu0 0
    %6599 = vmatpush1.bf16.msra.mxu0 0
    %6600 = vmatprep.subr.bf16.mxu0 0
    %6601 = vmatpush1.bf16.msra.mxu0 0
    %6602 = vmatprep.subr.bf16.mxu0 0
    %6603 = vmatpush1.bf16.msra.mxu0 0
    %6604 = vmatprep.subr.bf16.mxu0 0
    %6605 = vmatpush1.bf16.msra.mxu0 0
    %6606 = vmatprep.subr.bf16.mxu0 0
    %6607 = vmatpush1.bf16.msra.mxu0 0
    %6608 = vmatprep.subr.bf16.mxu0 0
    %6609 = vmatpush1.bf16.msra.mxu0 0
    %6610 = vmatprep.subr.bf16.mxu0 0
    %6611 = vmatpush1.bf16.msra.mxu0 0
    %6612 = vmatprep.subr.bf16.mxu0 0
    %6613 = vmatpush1.bf16.msra.mxu0 0
    %6614 = vmatprep.subr.bf16.mxu0 0
    %6615 = vmatpush1.bf16.msra.mxu0 0
    %6616 = vmatprep.subr.bf16.mxu0 0
    %6617 = vmatpush1.bf16.msra.mxu0 0
    %6618 = vmatprep.mubr.bf16.mxu0 0
    %6619 = vmatmul.mubr.bf16.gmra.mrb[0].mxu0 %v6581
    %v6620 = vpop.f32.mrb[0].mxu0
    %v6621 = vadd.f32 0.0, %v6620
    %v6622 = vpop.f32.mrb[0].mxu0
    %v6623 = vpop.f32.mrb[0].mxu0
    %v6624 = vpop.f32.mrb[0].mxu0
    %6625 = vdwg.mxu0
    %v6626 = vpack.c.bf16 %v6621, %v6621
    %v6628 = vsel %vm724, %v6626, 0
    %6630 = vmatprep.subr.bf16.mxu0 0
    %6631 = vmatpush1.bf16.msra.mxu0 %v2461
    %6632 = vmatprep.subr.bf16.mxu0 0
    %6633 = vmatpush1.bf16.msra.mxu0 0
    %6634 = vmatprep.subr.bf16.mxu0 0
    %6635 = vmatpush1.bf16.msra.mxu0 0
    %6636 = vmatprep.subr.bf16.mxu0 0
    %6637 = vmatpush1.bf16.msra.mxu0 0
    %6638 = vmatprep.subr.bf16.mxu0 0
    %6639 = vmatpush1.bf16.msra.mxu0 0
    %6640 = vmatprep.subr.bf16.mxu0 0
    %6641 = vmatpush1.bf16.msra.mxu0 0
    %6642 = vmatprep.subr.bf16.mxu0 0
    %6643 = vmatpush1.bf16.msra.mxu0 0
    %6644 = vmatprep.subr.bf16.mxu0 0
    %6645 = vmatpush1.bf16.msra.mxu0 0
    %6646 = vmatprep.subr.bf16.mxu0 0
    %6647 = vmatpush1.bf16.msra.mxu0 0
    %6648 = vmatprep.subr.bf16.mxu0 0
    %6649 = vmatpush1.bf16.msra.mxu0 0
    %6650 = vmatprep.subr.bf16.mxu0 0
    %6651 = vmatpush1.bf16.msra.mxu0 0
    %6652 = vmatprep.subr.bf16.mxu0 0
    %6653 = vmatpush1.bf16.msra.mxu0 0
    %6654 = vmatprep.subr.bf16.mxu0 0
    %6655 = vmatpush1.bf16.msra.mxu0 0
    %6656 = vmatprep.subr.bf16.mxu0 0
    %6657 = vmatpush1.bf16.msra.mxu0 0
    %6658 = vmatprep.subr.bf16.mxu0 0
    %6659 = vmatpush1.bf16.msra.mxu0 0
    %6660 = vmatprep.subr.bf16.mxu0 0
    %6661 = vmatpush1.bf16.msra.mxu0 0
    %6662 = vmatprep.mubr.bf16.mxu0 0
    %6663 = vmatmul.mubr.bf16.gmra.mrb[0].mxu0 %v6628
    %v6664 = vpop.f32.mrb[0].mxu0
    %v6665 = vadd.f32 0.0, %v6664
    %v6666 = vpop.f32.mrb[0].mxu0
    %v6667 = vpop.f32.mrb[0].mxu0
    %v6668 = vpop.f32.mrb[0].mxu0
    %6669 = vdwg.mxu0
    %v6670 = vadd.f32 %v6514, %v6665
    %v6671 = vpack.c.bf16 %v5888, %v5888
    %v6672 = vpack.c.bf16 %v6052, %v6052
    %v6674 = vsel %vm724, %v6671, 0
    %v6677 = vsel %vm724, %v6672, 0
    %6679 = vmatprep.subr.bf16.mxu0 0
    %6680 = vmatpush1.bf16.xpose.msra.mxu0 %v6677
    %6681 = vmatprep.subr.bf16.mxu0 0
    %6682 = vmatpush1.bf16.xpose.msra.mxu0 0
    %6683 = vmatprep.subr.bf16.mxu0 0
    %6684 = vmatpush1.bf16.xpose.msra.mxu0 0
    %6685 = vmatprep.subr.bf16.mxu0 0
    %6686 = vmatpush1.bf16.xpose.msra.mxu0 0
    %6687 = vmatprep.subr.bf16.mxu0 0
    %6688 = vmatpush1.bf16.xpose.msra.mxu0 0
    %6689 = vmatprep.subr.bf16.mxu0 0
    %6690 = vmatpush1.bf16.xpose.msra.mxu0 0
    %6691 = vmatprep.subr.bf16.mxu0 0
    %6692 = vmatpush1.bf16.xpose.msra.mxu0 0
    %6693 = vmatprep.subr.bf16.mxu0 0
    %6694 = vmatpush1.bf16.xpose.msra.mxu0 0
    %6695 = vmatprep.subr.bf16.mxu0 0
    %6696 = vmatpush1.bf16.xpose.msra.mxu0 0
    %6697 = vmatprep.subr.bf16.mxu0 0
    %6698 = vmatpush1.bf16.xpose.msra.mxu0 0
    %6699 = vmatprep.subr.bf16.mxu0 0
    %6700 = vmatpush1.bf16.xpose.msra.mxu0 0
    %6701 = vmatprep.subr.bf16.mxu0 0
    %6702 = vmatpush1.bf16.xpose.msra.mxu0 0
    %6703 = vmatprep.subr.bf16.mxu0 0
    %6704 = vmatpush1.bf16.xpose.msra.mxu0 0
    %6705 = vmatprep.subr.bf16.mxu0 0
    %6706 = vmatpush1.bf16.xpose.msra.mxu0 0
    %6707 = vmatprep.subr.bf16.mxu0 0
    %6708 = vmatpush1.bf16.xpose.msra.mxu0 0
    %6709 = vmatprep.subr.bf16.mxu0 0
    %6710 = vmatpush1.bf16.xpose.msra.mxu0 0
    %6711 = vmatprep.mubr.bf16.mxu0 0
    %6712 = vmatmul.mubr.bf16.gmra.mrb[0].mxu0 %v6674
    %v6713 = vpop.f32.mrb[0].mxu0
    %v6714 = vadd.f32 0.0, %v6713
    %v6715 = vpop.f32.mrb[0].mxu0
    %v6716 = vpop.f32.mrb[0].mxu0
    %v6717 = vpop.f32.mrb[0].mxu0
    %6718 = vdwg.mxu0
    %v6719 = vsel %vm2072, %v6714, -inf
    %6720 = vmax.xlane.f32.xlu0 %v6719
    %v6721 = vpop.xlane.xlu0 %6720
    %v6722 = vsub.f32 %v6714, %v6721
    %v6723 = vmul.f32 %v6722, 1.442695
    %v6724 = vpow.pop %v6723
    %v6725 = vsel %vm2072, %v6724, 0.0
    %6726 = vadd.xlane.f32.xlu0 %v6725
    %v6727 = vpop.xlane.xlu0 %6726
    %v6728 = vrcp.pop %v6727
    %v6729 = vmul.f32 %v6724, %v6728
    %v6730 = vpack.c.bf16 %v6729, %v6729
    %v6731 = vpack.c.bf16 %v6212, %v6212
    %v6733 = vsel %vm2086, %v6730, 0
    %v6736 = vsel %vm2090, %v6731, 0
    %6738 = vmatprep.subr.bf16.mxu0 0
    %6739 = vmatpush1.bf16.msra.mxu0 %v6736
    %6740 = vmatprep.subr.bf16.mxu0 0
    %6741 = vmatpush1.bf16.msra.mxu0 0
    %6742 = vmatprep.subr.bf16.mxu0 0
    %6743 = vmatpush1.bf16.msra.mxu0 0
    %6744 = vmatprep.subr.bf16.mxu0 0
    %6745 = vmatpush1.bf16.msra.mxu0 0
    %6746 = vmatprep.subr.bf16.mxu0 0
    %6747 = vmatpush1.bf16.msra.mxu0 0
    %6748 = vmatprep.subr.bf16.mxu0 0
    %6749 = vmatpush1.bf16.msra.mxu0 0
    %6750 = vmatprep.subr.bf16.mxu0 0
    %6751 = vmatpush1.bf16.msra.mxu0 0
    %6752 = vmatprep.subr.bf16.mxu0 0
    %6753 = vmatpush1.bf16.msra.mxu0 0
    %6754 = vmatprep.subr.bf16.mxu0 0
    %6755 = vmatpush1.bf16.msra.mxu0 0
    %6756 = vmatprep.subr.bf16.mxu0 0
    %6757 = vmatpush1.bf16.msra.mxu0 0
    %6758 = vmatprep.subr.bf16.mxu0 0
    %6759 = vmatpush1.bf16.msra.mxu0 0
    %6760 = vmatprep.subr.bf16.mxu0 0
    %6761 = vmatpush1.bf16.msra.mxu0 0
    %6762 = vmatprep.subr.bf16.mxu0 0
    %6763 = vmatpush1.bf16.msra.mxu0 0
    %6764 = vmatprep.subr.bf16.mxu0 0
    %6765 = vmatpush1.bf16.msra.mxu0 0
    %6766 = vmatprep.subr.bf16.mxu0 0
    %6767 = vmatpush1.bf16.msra.mxu0 0
    %6768 = vmatprep.subr.bf16.mxu0 0
    %6769 = vmatpush1.bf16.msra.mxu0 0
    %6770 = vmatprep.mubr.bf16.mxu0 0
    %6771 = vmatmul.mubr.bf16.gmra.mrb[0].mxu0 %v6733
    %v6772 = vpop.f32.mrb[0].mxu0
    %v6773 = vadd.f32 0.0, %v6772
    %v6774 = vpop.f32.mrb[0].mxu0
    %v6775 = vpop.f32.mrb[0].mxu0
    %v6776 = vpop.f32.mrb[0].mxu0
    %6777 = vdwg.mxu0
    %v6778 = vpack.c.bf16 %v6773, %v6773
    %v6780 = vsel %vm724, %v6778, 0
    %6782 = vmatprep.subr.bf16.mxu0 0
    %6783 = vmatpush1.bf16.msra.mxu0 %v2622
    %6784 = vmatprep.subr.bf16.mxu0 0
    %6785 = vmatpush1.bf16.msra.mxu0 0
    %6786 = vmatprep.subr.bf16.mxu0 0
    %6787 = vmatpush1.bf16.msra.mxu0 0
    %6788 = vmatprep.subr.bf16.mxu0 0
    %6789 = vmatpush1.bf16.msra.mxu0 0
    %6790 = vmatprep.subr.bf16.mxu0 0
    %6791 = vmatpush1.bf16.msra.mxu0 0
    %6792 = vmatprep.subr.bf16.mxu0 0
    %6793 = vmatpush1.bf16.msra.mxu0 0
    %6794 = vmatprep.subr.bf16.mxu0 0
    %6795 = vmatpush1.bf16.msra.mxu0 0
    %6796 = vmatprep.subr.bf16.mxu0 0
    %6797 = vmatpush1.bf16.msra.mxu0 0
    %6798 = vmatprep.subr.bf16.mxu0 0
    %6799 = vmatpush1.bf16.msra.mxu0 0
    %6800 = vmatprep.subr.bf16.mxu0 0
    %6801 = vmatpush1.bf16.msra.mxu0 0
    %6802 = vmatprep.subr.bf16.mxu0 0
    %6803 = vmatpush1.bf16.msra.mxu0 0
    %6804 = vmatprep.subr.bf16.mxu0 0
    %6805 = vmatpush1.bf16.msra.mxu0 0
    %6806 = vmatprep.subr.bf16.mxu0 0
    %6807 = vmatpush1.bf16.msra.mxu0 0
    %6808 = vmatprep.subr.bf16.mxu0 0
    %6809 = vmatpush1.bf16.msra.mxu0 0
    %6810 = vmatprep.subr.bf16.mxu0 0
    %6811 = vmatpush1.bf16.msra.mxu0 0
    %6812 = vmatprep.subr.bf16.mxu0 0
    %6813 = vmatpush1.bf16.msra.mxu0 0
    %6814 = vmatprep.mubr.bf16.mxu0 0
    %6815 = vmatmul.mubr.bf16.gmra.mrb[0].mxu0 %v6780
    %v6816 = vpop.f32.mrb[0].mxu0
    %v6817 = vadd.f32 0.0, %v6816
    %v6818 = vpop.f32.mrb[0].mxu0
    %v6819 = vpop.f32.mrb[0].mxu0
    %v6820 = vpop.f32.mrb[0].mxu0
    %6821 = vdwg.mxu0
    %v6822 = vadd.f32 %v6670, %v6817
    %v6823 = vadd.f32 %v6822, %v2671
    %v6824 = vpack.c.bf16 %v6823, %v6823
    %v6826 = vsel %vm245, %v6824, 0
    %6828 = vmatprep.subr.bf16.mxu0 0
    %6829 = vmatpush1.bf16.msra.mxu0 %v2707
    %6830 = vmatprep.subr.bf16.mxu0 0
    %6831 = vmatpush1.bf16.msra.mxu0 %v2708
    %6832 = vmatprep.subr.bf16.mxu0 0
    %6833 = vmatpush1.bf16.msra.mxu0 %v2709
    %6834 = vmatprep.subr.bf16.mxu0 0
    %6835 = vmatpush1.bf16.msra.mxu0 %v2710
    %6836 = vmatprep.subr.bf16.mxu0 0
    %6837 = vmatpush1.bf16.msra.mxu0 0
    %6838 = vmatprep.subr.bf16.mxu0 0
    %6839 = vmatpush1.bf16.msra.mxu0 0
    %6840 = vmatprep.subr.bf16.mxu0 0
    %6841 = vmatpush1.bf16.msra.mxu0 0
    %6842 = vmatprep.subr.bf16.mxu0 0
    %6843 = vmatpush1.bf16.msra.mxu0 0
    %6844 = vmatprep.subr.bf16.mxu0 0
    %6845 = vmatpush1.bf16.msra.mxu0 0
    %6846 = vmatprep.subr.bf16.mxu0 0
    %6847 = vmatpush1.bf16.msra.mxu0 0
    %6848 = vmatprep.subr.bf16.mxu0 0
    %6849 = vmatpush1.bf16.msra.mxu0 0
    %6850 = vmatprep.subr.bf16.mxu0 0
    %6851 = vmatpush1.bf16.msra.mxu0 0
    %6852 = vmatprep.subr.bf16.mxu0 0
    %6853 = vmatpush1.bf16.msra.mxu0 0
    %6854 = vmatprep.subr.bf16.mxu0 0
    %6855 = vmatpush1.bf16.msra.mxu0 0
    %6856 = vmatprep.subr.bf16.mxu0 0
    %6857 = vmatpush1.bf16.msra.mxu0 0
    %6858 = vmatprep.subr.bf16.mxu0 0
    %6859 = vmatpush1.bf16.msra.mxu0 0
    %6860 = vmatprep.mubr.bf16.mxu0 0
    %6861 = vmatmul.mubr.bf16.gmra.mrb[0].mxu0 %v6826
    %v6862 = vpop.f32.mrb[0].mxu0
    %v6863 = vadd.f32 %v2689, %v6862
    %v6864 = vpop.f32.mrb[0].mxu0
    %v6865 = vpop.f32.mrb[0].mxu0
    %v6866 = vpop.f32.mrb[0].mxu0
    %6867 = vdwg.mxu0
    %6868 = vmatprep.subr.bf16.mxu0 0
    %6869 = vmatpush1.bf16.msra.mxu0 %v2791
    %6870 = vmatprep.subr.bf16.mxu0 0
    %6871 = vmatpush1.bf16.msra.mxu0 %v2792
    %6872 = vmatprep.subr.bf16.mxu0 0
    %6873 = vmatpush1.bf16.msra.mxu0 %v2793
    %6874 = vmatprep.subr.bf16.mxu0 0
    %6875 = vmatpush1.bf16.msra.mxu0 %v2794
    %6876 = vmatprep.subr.bf16.mxu0 0
    %6877 = vmatpush1.bf16.msra.mxu0 0
    %6878 = vmatprep.subr.bf16.mxu0 0
    %6879 = vmatpush1.bf16.msra.mxu0 0
    %6880 = vmatprep.subr.bf16.mxu0 0
    %6881 = vmatpush1.bf16.msra.mxu0 0
    %6882 = vmatprep.subr.bf16.mxu0 0
    %6883 = vmatpush1.bf16.msra.mxu0 0
    %6884 = vmatprep.subr.bf16.mxu0 0
    %6885 = vmatpush1.bf16.msra.mxu0 0
    %6886 = vmatprep.subr.bf16.mxu0 0
    %6887 = vmatpush1.bf16.msra.mxu0 0
    %6888 = vmatprep.subr.bf16.mxu0 0
    %6889 = vmatpush1.bf16.msra.mxu0 0
    %6890 = vmatprep.subr.bf16.mxu0 0
    %6891 = vmatpush1.bf16.msra.mxu0 0
    %6892 = vmatprep.subr.bf16.mxu0 0
    %6893 = vmatpush1.bf16.msra.mxu0 0
    %6894 = vmatprep.subr.bf16.mxu0 0
    %6895 = vmatpush1.bf16.msra.mxu0 0
    %6896 = vmatprep.subr.bf16.mxu0 0
    %6897 = vmatpush1.bf16.msra.mxu0 0
    %6898 = vmatprep.subr.bf16.mxu0 0
    %6899 = vmatpush1.bf16.msra.mxu0 0
    %6900 = vmatprep.mubr.bf16.mxu0 0
    %6901 = vmatmul.mubr.bf16.gmra.mrb[0].mxu0 %v6826
    %v6902 = vpop.f32.mrb[0].mxu0
    %v6903 = vadd.f32 %v2773, %v6902
    %v6904 = vpop.f32.mrb[0].mxu0
    %v6905 = vpop.f32.mrb[0].mxu0
    %v6906 = vpop.f32.mrb[0].mxu0
    %6907 = vdwg.mxu0
    %6908 = vmatprep.subr.bf16.mxu0 0
    %6909 = vmatpush1.bf16.msra.mxu0 %v2872
    %6910 = vmatprep.subr.bf16.mxu0 0
    %6911 = vmatpush1.bf16.msra.mxu0 %v2873
    %6912 = vmatprep.subr.bf16.mxu0 0
    %6913 = vmatpush1.bf16.msra.mxu0 %v2874
    %6914 = vmatprep.subr.bf16.mxu0 0
    %6915 = vmatpush1.bf16.msra.mxu0 %v2875
    %6916 = vmatprep.subr.bf16.mxu0 0
    %6917 = vmatpush1.bf16.msra.mxu0 0
    %6918 = vmatprep.subr.bf16.mxu0 0
    %6919 = vmatpush1.bf16.msra.mxu0 0
    %6920 = vmatprep.subr.bf16.mxu0 0
    %6921 = vmatpush1.bf16.msra.mxu0 0
    %6922 = vmatprep.subr.bf16.mxu0 0
    %6923 = vmatpush1.bf16.msra.mxu0 0
    %6924 = vmatprep.subr.bf16.mxu0 0
    %6925 = vmatpush1.bf16.msra.mxu0 0
    %6926 = vmatprep.subr.bf16.mxu0 0
    %6927 = vmatpush1.bf16.msra.mxu0 0
    %6928 = vmatprep.subr.bf16.mxu0 0
    %6929 = vmatpush1.bf16.msra.mxu0 0
    %6930 = vmatprep.subr.bf16.mxu0 0
    %6931 = vmatpush1.bf16.msra.mxu0 0
    %6932 = vmatprep.subr.bf16.mxu0 0
    %6933 = vmatpush1.bf16.msra.mxu0 0
    %6934 = vmatprep.subr.bf16.mxu0 0
    %6935 = vmatpush1.bf16.msra.mxu0 0
    %6936 = vmatprep.subr.bf16.mxu0 0
    %6937 = vmatpush1.bf16.msra.mxu0 0
    %6938 = vmatprep.subr.bf16.mxu0 0
    %6939 = vmatpush1.bf16.msra.mxu0 0
    %6940 = vmatprep.mubr.bf16.mxu0 0
    %6941 = vmatmul.mubr.bf16.gmra.mrb[0].mxu0 %v6826
    %v6942 = vpop.f32.mrb[0].mxu0
    %v6943 = vadd.f32 %v2854, %v6942
    %v6944 = vpop.f32.mrb[0].mxu0
    %v6945 = vpop.f32.mrb[0].mxu0
    %v6946 = vpop.f32.mrb[0].mxu0
    %6947 = vdwg.mxu0
    %6948 = vmatprep.subr.bf16.mxu0 0
    %6949 = vmatpush1.bf16.msra.mxu0 %v2953
    %6950 = vmatprep.subr.bf16.mxu0 0
    %6951 = vmatpush1.bf16.msra.mxu0 %v2954
    %6952 = vmatprep.subr.bf16.mxu0 0
    %6953 = vmatpush1.bf16.msra.mxu0 %v2955
    %6954 = vmatprep.subr.bf16.mxu0 0
    %6955 = vmatpush1.bf16.msra.mxu0 %v2956
    %6956 = vmatprep.subr.bf16.mxu0 0
    %6957 = vmatpush1.bf16.msra.mxu0 0
    %6958 = vmatprep.subr.bf16.mxu0 0
    %6959 = vmatpush1.bf16.msra.mxu0 0
    %6960 = vmatprep.subr.bf16.mxu0 0
    %6961 = vmatpush1.bf16.msra.mxu0 0
    %6962 = vmatprep.subr.bf16.mxu0 0
    %6963 = vmatpush1.bf16.msra.mxu0 0
    %6964 = vmatprep.subr.bf16.mxu0 0
    %6965 = vmatpush1.bf16.msra.mxu0 0
    %6966 = vmatprep.subr.bf16.mxu0 0
    %6967 = vmatpush1.bf16.msra.mxu0 0
    %6968 = vmatprep.subr.bf16.mxu0 0
    %6969 = vmatpush1.bf16.msra.mxu0 0
    %6970 = vmatprep.subr.bf16.mxu0 0
    %6971 = vmatpush1.bf16.msra.mxu0 0
    %6972 = vmatprep.subr.bf16.mxu0 0
    %6973 = vmatpush1.bf16.msra.mxu0 0
    %6974 = vmatprep.subr.bf16.mxu0 0
    %6975 = vmatpush1.bf16.msra.mxu0 0
    %6976 = vmatprep.subr.bf16.mxu0 0
    %6977 = vmatpush1.bf16.msra.mxu0 0
    %6978 = vmatprep.subr.bf16.mxu0 0
    %6979 = vmatpush1.bf16.msra.mxu0 0
    %6980 = vmatprep.mubr.bf16.mxu0 0
    %6981 = vmatmul.mubr.bf16.gmra.mrb[0].mxu0 %v6826
    %v6982 = vpop.f32.mrb[0].mxu0
    %v6983 = vadd.f32 %v2935, %v6982
    %v6984 = vpop.f32.mrb[0].mxu0
    %v6985 = vpop.f32.mrb[0].mxu0
    %v6986 = vpop.f32.mrb[0].mxu0
    %6987 = vdwg.mxu0
    %6988 = vmatprep.subr.bf16.mxu0 0
    %6989 = vmatpush1.bf16.msra.mxu0 %v3034
    %6990 = vmatprep.subr.bf16.mxu0 0
    %6991 = vmatpush1.bf16.msra.mxu0 %v3035
    %6992 = vmatprep.subr.bf16.mxu0 0
    %6993 = vmatpush1.bf16.msra.mxu0 %v3036
    %6994 = vmatprep.subr.bf16.mxu0 0
    %6995 = vmatpush1.bf16.msra.mxu0 %v3037
    %6996 = vmatprep.subr.bf16.mxu0 0
    %6997 = vmatpush1.bf16.msra.mxu0 0
    %6998 = vmatprep.subr.bf16.mxu0 0
    %6999 = vmatpush1.bf16.msra.mxu0 0
    %7000 = vmatprep.subr.bf16.mxu0 0
    %7001 = vmatpush1.bf16.msra.mxu0 0
    %7002 = vmatprep.subr.bf16.mxu0 0
    %7003 = vmatpush1.bf16.msra.mxu0 0
    %7004 = vmatprep.subr.bf16.mxu0 0
    %7005 = vmatpush1.bf16.msra.mxu0 0
    %7006 = vmatprep.subr.bf16.mxu0 0
    %7007 = vmatpush1.bf16.msra.mxu0 0
    %7008 = vmatprep.subr.bf16.mxu0 0
    %7009 = vmatpush1.bf16.msra.mxu0 0
    %7010 = vmatprep.subr.bf16.mxu0 0
    %7011 = vmatpush1.bf16.msra.mxu0 0
    %7012 = vmatprep.subr.bf16.mxu0 0
    %7013 = vmatpush1.bf16.msra.mxu0 0
    %7014 = vmatprep.subr.bf16.mxu0 0
    %7015 = vmatpush1.bf16.msra.mxu0 0
    %7016 = vmatprep.subr.bf16.mxu0 0
    %7017 = vmatpush1.bf16.msra.mxu0 0
    %7018 = vmatprep.subr.bf16.mxu0 0
    %7019 = vmatpush1.bf16.msra.mxu0 0
    %7020 = vmatprep.mubr.bf16.mxu0 0
    %7021 = vmatmul.mubr.bf16.gmra.mrb[0].mxu0 %v6826
    %v7022 = vpop.f32.mrb[0].mxu0
    %v7023 = vadd.f32 %v3016, %v7022
    %v7024 = vpop.f32.mrb[0].mxu0
    %v7025 = vpop.f32.mrb[0].mxu0
    %v7026 = vpop.f32.mrb[0].mxu0
    %7027 = vdwg.mxu0
    %7028 = vmatprep.subr.bf16.mxu0 0
    %7029 = vmatpush1.bf16.msra.mxu0 %v3115
    %7030 = vmatprep.subr.bf16.mxu0 0
    %7031 = vmatpush1.bf16.msra.mxu0 %v3116
    %7032 = vmatprep.subr.bf16.mxu0 0
    %7033 = vmatpush1.bf16.msra.mxu0 %v3117
    %7034 = vmatprep.subr.bf16.mxu0 0
    %7035 = vmatpush1.bf16.msra.mxu0 %v3118
    %7036 = vmatprep.subr.bf16.mxu0 0
    %7037 = vmatpush1.bf16.msra.mxu0 0
    %7038 = vmatprep.subr.bf16.mxu0 0
    %7039 = vmatpush1.bf16.msra.mxu0 0
    %7040 = vmatprep.subr.bf16.mxu0 0
    %7041 = vmatpush1.bf16.msra.mxu0 0
    %7042 = vmatprep.subr.bf16.mxu0 0
    %7043 = vmatpush1.bf16.msra.mxu0 0
    %7044 = vmatprep.subr.bf16.mxu0 0
    %7045 = vmatpush1.bf16.msra.mxu0 0
    %7046 = vmatprep.subr.bf16.mxu0 0
    %7047 = vmatpush1.bf16.msra.mxu0 0
    %7048 = vmatprep.subr.bf16.mxu0 0
    %7049 = vmatpush1.bf16.msra.mxu0 0
    %7050 = vmatprep.subr.bf16.mxu0 0
    %7051 = vmatpush1.bf16.msra.mxu0 0
    %7052 = vmatprep.subr.bf16.mxu0 0
    %7053 = vmatpush1.bf16.msra.mxu0 0
    %7054 = vmatprep.subr.bf16.mxu0 0
    %7055 = vmatpush1.bf16.msra.mxu0 0
    %7056 = vmatprep.subr.bf16.mxu0 0
    %7057 = vmatpush1.bf16.msra.mxu0 0
    %7058 = vmatprep.subr.bf16.mxu0 0
    %7059 = vmatpush1.bf16.msra.mxu0 0
    %7060 = vmatprep.mubr.bf16.mxu0 0
    %7061 = vmatmul.mubr.bf16.gmra.mrb[0].mxu0 %v6826
    %v7062 = vpop.f32.mrb[0].mxu0
    %v7063 = vadd.f32 %v3097, %v7062
    %v7064 = vpop.f32.mrb[0].mxu0
    %v7065 = vpop.f32.mrb[0].mxu0
    %v7066 = vpop.f32.mrb[0].mxu0
    %7067 = vdwg.mxu0
    %7068 = vmatprep.subr.bf16.mxu0 0
    %7069 = vmatpush1.bf16.msra.mxu0 %v3196
    %7070 = vmatprep.subr.bf16.mxu0 0
    %7071 = vmatpush1.bf16.msra.mxu0 %v3197
    %7072 = vmatprep.subr.bf16.mxu0 0
    %7073 = vmatpush1.bf16.msra.mxu0 %v3198
    %7074 = vmatprep.subr.bf16.mxu0 0
    %7075 = vmatpush1.bf16.msra.mxu0 %v3199
    %7076 = vmatprep.subr.bf16.mxu0 0
    %7077 = vmatpush1.bf16.msra.mxu0 0
    %7078 = vmatprep.subr.bf16.mxu0 0
    %7079 = vmatpush1.bf16.msra.mxu0 0
    %7080 = vmatprep.subr.bf16.mxu0 0
    %7081 = vmatpush1.bf16.msra.mxu0 0
    %7082 = vmatprep.subr.bf16.mxu0 0
    %7083 = vmatpush1.bf16.msra.mxu0 0
    %7084 = vmatprep.subr.bf16.mxu0 0
    %7085 = vmatpush1.bf16.msra.mxu0 0
    %7086 = vmatprep.subr.bf16.mxu0 0
    %7087 = vmatpush1.bf16.msra.mxu0 0
    %7088 = vmatprep.subr.bf16.mxu0 0
    %7089 = vmatpush1.bf16.msra.mxu0 0
    %7090 = vmatprep.subr.bf16.mxu0 0
    %7091 = vmatpush1.bf16.msra.mxu0 0
    %7092 = vmatprep.subr.bf16.mxu0 0
    %7093 = vmatpush1.bf16.msra.mxu0 0
    %7094 = vmatprep.subr.bf16.mxu0 0
    %7095 = vmatpush1.bf16.msra.mxu0 0
    %7096 = vmatprep.subr.bf16.mxu0 0
    %7097 = vmatpush1.bf16.msra.mxu0 0
    %7098 = vmatprep.subr.bf16.mxu0 0
    %7099 = vmatpush1.bf16.msra.mxu0 0
    %7100 = vmatprep.mubr.bf16.mxu0 0
    %7101 = vmatmul.mubr.bf16.gmra.mrb[0].mxu0 %v6826
    %v7102 = vpop.f32.mrb[0].mxu0
    %v7103 = vadd.f32 %v3178, %v7102
    %v7104 = vpop.f32.mrb[0].mxu0
    %v7105 = vpop.f32.mrb[0].mxu0
    %v7106 = vpop.f32.mrb[0].mxu0
    %7107 = vdwg.mxu0
    %7108 = vmatprep.subr.bf16.mxu0 0
    %7109 = vmatpush1.bf16.msra.mxu0 %v3277
    %7110 = vmatprep.subr.bf16.mxu0 0
    %7111 = vmatpush1.bf16.msra.mxu0 %v3278
    %7112 = vmatprep.subr.bf16.mxu0 0
    %7113 = vmatpush1.bf16.msra.mxu0 %v3279
    %7114 = vmatprep.subr.bf16.mxu0 0
    %7115 = vmatpush1.bf16.msra.mxu0 %v3280
    %7116 = vmatprep.subr.bf16.mxu0 0
    %7117 = vmatpush1.bf16.msra.mxu0 0
    %7118 = vmatprep.subr.bf16.mxu0 0
    %7119 = vmatpush1.bf16.msra.mxu0 0
    %7120 = vmatprep.subr.bf16.mxu0 0
    %7121 = vmatpush1.bf16.msra.mxu0 0
    %7122 = vmatprep.subr.bf16.mxu0 0
    %7123 = vmatpush1.bf16.msra.mxu0 0
    %7124 = vmatprep.subr.bf16.mxu0 0
    %7125 = vmatpush1.bf16.msra.mxu0 0
    %7126 = vmatprep.subr.bf16.mxu0 0
    %7127 = vmatpush1.bf16.msra.mxu0 0
    %7128 = vmatprep.subr.bf16.mxu0 0
    %7129 = vmatpush1.bf16.msra.mxu0 0
    %7130 = vmatprep.subr.bf16.mxu0 0
    %7131 = vmatpush1.bf16.msra.mxu0 0
    %7132 = vmatprep.subr.bf16.mxu0 0
    %7133 = vmatpush1.bf16.msra.mxu0 0
    %7134 = vmatprep.subr.bf16.mxu0 0
    %7135 = vmatpush1.bf16.msra.mxu0 0
    %7136 = vmatprep.subr.bf16.mxu0 0
    %7137 = vmatpush1.bf16.msra.mxu0 0
    %7138 = vmatprep.subr.bf16.mxu0 0
    %7139 = vmatpush1.bf16.msra.mxu0 0
    %7140 = vmatprep.mubr.bf16.mxu0 0
    %7141 = vmatmul.mubr.bf16.gmra.mrb[0].mxu0 %v6826
    %v7142 = vpop.f32.mrb[0].mxu0
    %v7143 = vadd.f32 %v3259, %v7142
    %v7144 = vpop.f32.mrb[0].mxu0
    %v7145 = vpop.f32.mrb[0].mxu0
    %v7146 = vpop.f32.mrb[0].mxu0
    %7147 = vdwg.mxu0
    %v7148 = vpack.c.bf16 %v6863, %v6863
    %v7150 = vsel %vm724, %v7148, 0
    %7152 = vmatprep.subr.bf16.mxu0 0
    %7153 = vmatpush1.bf16.xpose.msra.mxu0 %v7150
    %7154 = vmatprep.subr.bf16.mxu0 0
    %7155 = vmatpush1.bf16.xpose.msra.mxu0 0
    %7156 = vmatprep.subr.bf16.mxu0 0
    %7157 = vmatpush1.bf16.xpose.msra.mxu0 0
    %7158 = vmatprep.subr.bf16.mxu0 0
    %7159 = vmatpush1.bf16.xpose.msra.mxu0 0
    %7160 = vmatprep.subr.bf16.mxu0 0
    %7161 = vmatpush1.bf16.xpose.msra.mxu0 0
    %7162 = vmatprep.subr.bf16.mxu0 0
    %7163 = vmatpush1.bf16.xpose.msra.mxu0 0
    %7164 = vmatprep.subr.bf16.mxu0 0
    %7165 = vmatpush1.bf16.xpose.msra.mxu0 0
    %7166 = vmatprep.subr.bf16.mxu0 0
    %7167 = vmatpush1.bf16.xpose.msra.mxu0 0
    %7168 = vmatprep.subr.bf16.mxu0 0
    %7169 = vmatpush1.bf16.xpose.msra.mxu0 0
    %7170 = vmatprep.subr.bf16.mxu0 0
    %7171 = vmatpush1.bf16.xpose.msra.mxu0 0
    %7172 = vmatprep.subr.bf16.mxu0 0
    %7173 = vmatpush1.bf16.xpose.msra.mxu0 0
    %7174 = vmatprep.subr.bf16.mxu0 0
    %7175 = vmatpush1.bf16.xpose.msra.mxu0 0
    %7176 = vmatprep.subr.bf16.mxu0 0
    %7177 = vmatpush1.bf16.xpose.msra.mxu0 0
    %7178 = vmatprep.subr.bf16.mxu0 0
    %7179 = vmatpush1.bf16.xpose.msra.mxu0 0
    %7180 = vmatprep.subr.bf16.mxu0 0
    %7181 = vmatpush1.bf16.xpose.msra.mxu0 0
    %7182 = vmatprep.subr.bf16.mxu0 0
    %7183 = vmatpush1.bf16.xpose.msra.mxu0 0
    %7184 = vmatprep.mubr.bf16.mxu0 0
    %7185 = vmatmul.mubr.bf16.gmra.mrb[0].mxu0 %v3328
    %v7186 = vpop.f32.mrb[0].mxu0
    %v7187 = vadd.f32 0.0, %v7186
    %v7188 = vpop.f32.mrb[0].mxu0
    %v7189 = vpop.f32.mrb[0].mxu0
    %v7190 = vadd.f32 0.0, %v7189
    %v7191 = vpop.f32.mrb[0].mxu0
    %7192 = vdwg.mxu0
    %v7193 = vsel %vm3374, %v7187, -inf
    %7194 = vmax.xlane.f32.xlu0 %v7193
    %v7195 = vpop.xlane.xlu0 %7194
    %v7196 = vsel %vm3374, %v7190, -inf
    %7197 = vmax.xlane.f32.xlu0 %v7196
    %v7198 = vpop.xlane.xlu0 %7197
    %v7199 = vsub.f32 %v7187, %v7195
    %v7200 = vsub.f32 %v7190, %v7198
    %v7201 = vmul.f32 %v7199, 1.442695
    %v7202 = vpow.pop %v7201
    %v7203 = vmul.f32 %v7200, 1.442695
    %v7204 = vpow.pop %v7203
    %v7205 = vsel %vm3374, %v7202, 0.0
    %7206 = vadd.xlane.f32.xlu0 %v7205
    %v7207 = vpop.xlane.xlu0 %7206
    %v7208 = vsel %vm3374, %v7204, 0.0
    %7209 = vadd.xlane.f32.xlu0 %v7208
    %v7210 = vpop.xlane.xlu0 %7209
    %v7211 = vrcp.pop %v7207
    %v7212 = vmul.f32 %v7202, %v7211
    %v7213 = vrcp.pop %v7210
    %v7214 = vmul.f32 %v7204, %v7213
    %v7215 = vpack.c.bf16 %v7214, %v7212
    %v7216 = vpack.c.bf16 %v7023, %v7023
    %v7218 = vsel %vm3374, %v7215, 0
    %v7221 = vand.u32 %v7216, %v3404
    %7223 = vmatprep.subr.bf16.mxu0 0
    %7224 = vmatpush1.bf16.msra.mxu0 %v7221
    %7225 = vmatprep.subr.bf16.mxu0 0
    %7226 = vmatpush1.bf16.msra.mxu0 0
    %7227 = vmatprep.subr.bf16.mxu0 0
    %7228 = vmatpush1.bf16.msra.mxu0 0
    %7229 = vmatprep.subr.bf16.mxu0 0
    %7230 = vmatpush1.bf16.msra.mxu0 0
    %7231 = vmatprep.subr.bf16.mxu0 0
    %7232 = vmatpush1.bf16.msra.mxu0 0
    %7233 = vmatprep.subr.bf16.mxu0 0
    %7234 = vmatpush1.bf16.msra.mxu0 0
    %7235 = vmatprep.subr.bf16.mxu0 0
    %7236 = vmatpush1.bf16.msra.mxu0 0
    %7237 = vmatprep.subr.bf16.mxu0 0
    %7238 = vmatpush1.bf16.msra.mxu0 0
    %7239 = vmatprep.subr.bf16.mxu0 0
    %7240 = vmatpush1.bf16.msra.mxu0 0
    %7241 = vmatprep.subr.bf16.mxu0 0
    %7242 = vmatpush1.bf16.msra.mxu0 0
    %7243 = vmatprep.subr.bf16.mxu0 0
    %7244 = vmatpush1.bf16.msra.mxu0 0
    %7245 = vmatprep.subr.bf16.mxu0 0
    %7246 = vmatpush1.bf16.msra.mxu0 0
    %7247 = vmatprep.subr.bf16.mxu0 0
    %7248 = vmatpush1.bf16.msra.mxu0 0
    %7249 = vmatprep.subr.bf16.mxu0 0
    %7250 = vmatpush1.bf16.msra.mxu0 0
    %7251 = vmatprep.subr.bf16.mxu0 0
    %7252 = vmatpush1.bf16.msra.mxu0 0
    %7253 = vmatprep.subr.bf16.mxu0 0
    %7254 = vmatpush1.bf16.msra.mxu0 0
    %7255 = vmatprep.mubr.bf16.mxu0 0
    %7256 = vmatmul.mubr.bf16.gmra.mrb[0].mxu0 %v7218
    %v7257 = vpop.f32.mrb[0].mxu0
    %v7258 = vadd.f32 0.0, %v7257
    %v7259 = vpop.f32.mrb[0].mxu0
    %v7260 = vpop.f32.mrb[0].mxu0
    %v7261 = vadd.f32 0.0, %v7260
    %v7262 = vpop.f32.mrb[0].mxu0
    %7263 = vdwg.mxu0
    %v7264 = vpack.c.bf16 %v7261, %v7258
    %v7265 = vpack.c.bf16 %v6903, %v6903
    %v7267 = vsel %vm724, %v7265, 0
    %7269 = vmatprep.subr.bf16.mxu0 0
    %7270 = vmatpush1.bf16.xpose.msra.mxu0 %v7267
    %7271 = vmatprep.subr.bf16.mxu0 0
    %7272 = vmatpush1.bf16.xpose.msra.mxu0 0
    %7273 = vmatprep.subr.bf16.mxu0 0
    %7274 = vmatpush1.bf16.xpose.msra.mxu0 0
    %7275 = vmatprep.subr.bf16.mxu0 0
    %7276 = vmatpush1.bf16.xpose.msra.mxu0 0
    %7277 = vmatprep.subr.bf16.mxu0 0
    %7278 = vmatpush1.bf16.xpose.msra.mxu0 0
    %7279 = vmatprep.subr.bf16.mxu0 0
    %7280 = vmatpush1.bf16.xpose.msra.mxu0 0
    %7281 = vmatprep.subr.bf16.mxu0 0
    %7282 = vmatpush1.bf16.xpose.msra.mxu0 0
    %7283 = vmatprep.subr.bf16.mxu0 0
    %7284 = vmatpush1.bf16.xpose.msra.mxu0 0
    %7285 = vmatprep.subr.bf16.mxu0 0
    %7286 = vmatpush1.bf16.xpose.msra.mxu0 0
    %7287 = vmatprep.subr.bf16.mxu0 0
    %7288 = vmatpush1.bf16.xpose.msra.mxu0 0
    %7289 = vmatprep.subr.bf16.mxu0 0
    %7290 = vmatpush1.bf16.xpose.msra.mxu0 0
    %7291 = vmatprep.subr.bf16.mxu0 0
    %7292 = vmatpush1.bf16.xpose.msra.mxu0 0
    %7293 = vmatprep.subr.bf16.mxu0 0
    %7294 = vmatpush1.bf16.xpose.msra.mxu0 0
    %7295 = vmatprep.subr.bf16.mxu0 0
    %7296 = vmatpush1.bf16.xpose.msra.mxu0 0
    %7297 = vmatprep.subr.bf16.mxu0 0
    %7298 = vmatpush1.bf16.xpose.msra.mxu0 0
    %7299 = vmatprep.subr.bf16.mxu0 0
    %7300 = vmatpush1.bf16.xpose.msra.mxu0 0
    %7301 = vmatprep.mubr.bf16.mxu0 0
    %7302 = vmatmul.mubr.bf16.gmra.mrb[0].mxu0 %v3455
    %v7303 = vpop.f32.mrb[0].mxu0
    %v7304 = vadd.f32 0.0, %v7303
    %v7305 = vpop.f32.mrb[0].mxu0
    %v7306 = vpop.f32.mrb[0].mxu0
    %v7307 = vadd.f32 0.0, %v7306
    %v7308 = vpop.f32.mrb[0].mxu0
    %7309 = vdwg.mxu0
    %v7310 = vsel %vm3374, %v7304, -inf
    %7311 = vmax.xlane.f32.xlu0 %v7310
    %v7312 = vpop.xlane.xlu0 %7311
    %v7313 = vsel %vm3374, %v7307, -inf
    %7314 = vmax.xlane.f32.xlu0 %v7313
    %v7315 = vpop.xlane.xlu0 %7314
    %v7316 = vsub.f32 %v7304, %v7312
    %v7317 = vsub.f32 %v7307, %v7315
    %v7318 = vmul.f32 %v7316, 1.442695
    %v7319 = vpow.pop %v7318
    %v7320 = vmul.f32 %v7317, 1.442695
    %v7321 = vpow.pop %v7320
    %v7322 = vsel %vm3374, %v7319, 0.0
    %7323 = vadd.xlane.f32.xlu0 %v7322
    %v7324 = vpop.xlane.xlu0 %7323
    %v7325 = vsel %vm3374, %v7321, 0.0
    %7326 = vadd.xlane.f32.xlu0 %v7325
    %v7327 = vpop.xlane.xlu0 %7326
    %v7328 = vrcp.pop %v7324
    %v7329 = vmul.f32 %v7319, %v7328
    %v7330 = vrcp.pop %v7327
    %v7331 = vmul.f32 %v7321, %v7330
    %v7332 = vpack.c.bf16 %v7331, %v7329
    %v7333 = vpack.c.bf16 %v7063, %v7063
    %v7335 = vsel %vm3374, %v7332, 0
    %v7338 = vand.u32 %v7333, %v3404
    %7340 = vmatprep.subr.bf16.mxu0 0
    %7341 = vmatpush1.bf16.msra.mxu0 %v7338
    %7342 = vmatprep.subr.bf16.mxu0 0
    %7343 = vmatpush1.bf16.msra.mxu0 0
    %7344 = vmatprep.subr.bf16.mxu0 0
    %7345 = vmatpush1.bf16.msra.mxu0 0
    %7346 = vmatprep.subr.bf16.mxu0 0
    %7347 = vmatpush1.bf16.msra.mxu0 0
    %7348 = vmatprep.subr.bf16.mxu0 0
    %7349 = vmatpush1.bf16.msra.mxu0 0
    %7350 = vmatprep.subr.bf16.mxu0 0
    %7351 = vmatpush1.bf16.msra.mxu0 0
    %7352 = vmatprep.subr.bf16.mxu0 0
    %7353 = vmatpush1.bf16.msra.mxu0 0
    %7354 = vmatprep.subr.bf16.mxu0 0
    %7355 = vmatpush1.bf16.msra.mxu0 0
    %7356 = vmatprep.subr.bf16.mxu0 0
    %7357 = vmatpush1.bf16.msra.mxu0 0
    %7358 = vmatprep.subr.bf16.mxu0 0
    %7359 = vmatpush1.bf16.msra.mxu0 0
    %7360 = vmatprep.subr.bf16.mxu0 0
    %7361 = vmatpush1.bf16.msra.mxu0 0
    %7362 = vmatprep.subr.bf16.mxu0 0
    %7363 = vmatpush1.bf16.msra.mxu0 0
    %7364 = vmatprep.subr.bf16.mxu0 0
    %7365 = vmatpush1.bf16.msra.mxu0 0
    %7366 = vmatprep.subr.bf16.mxu0 0
    %7367 = vmatpush1.bf16.msra.mxu0 0
    %7368 = vmatprep.subr.bf16.mxu0 0
    %7369 = vmatpush1.bf16.msra.mxu0 0
    %7370 = vmatprep.subr.bf16.mxu0 0
    %7371 = vmatpush1.bf16.msra.mxu0 0
    %7372 = vmatprep.mubr.bf16.mxu0 0
    %7373 = vmatmul.mubr.bf16.gmra.mrb[0].mxu0 %v7335
    %v7374 = vpop.f32.mrb[0].mxu0
    %v7375 = vadd.f32 0.0, %v7374
    %v7376 = vpop.f32.mrb[0].mxu0
    %v7377 = vpop.f32.mrb[0].mxu0
    %v7378 = vadd.f32 0.0, %v7377
    %v7379 = vpop.f32.mrb[0].mxu0
    %7380 = vdwg.mxu0
    %v7381 = vpack.c.bf16 %v7378, %v7375
    %v7383 = vsel %vm724, %v7381, 0
    %7385 = vmatprep.subr.bf16.mxu0 0
    %7386 = vmatpush1.bf16.msra.mxu0 %v3580
    %7387 = vmatprep.subr.bf16.mxu0 0
    %7388 = vmatpush1.bf16.msra.mxu0 0
    %7389 = vmatprep.subr.bf16.mxu0 0
    %7390 = vmatpush1.bf16.msra.mxu0 0
    %7391 = vmatprep.subr.bf16.mxu0 0
    %7392 = vmatpush1.bf16.msra.mxu0 0
    %7393 = vmatprep.subr.bf16.mxu0 0
    %7394 = vmatpush1.bf16.msra.mxu0 0
    %7395 = vmatprep.subr.bf16.mxu0 0
    %7396 = vmatpush1.bf16.msra.mxu0 0
    %7397 = vmatprep.subr.bf16.mxu0 0
    %7398 = vmatpush1.bf16.msra.mxu0 0
    %7399 = vmatprep.subr.bf16.mxu0 0
    %7400 = vmatpush1.bf16.msra.mxu0 0
    %7401 = vmatprep.subr.bf16.mxu0 0
    %7402 = vmatpush1.bf16.msra.mxu0 0
    %7403 = vmatprep.subr.bf16.mxu0 0
    %7404 = vmatpush1.bf16.msra.mxu0 0
    %7405 = vmatprep.subr.bf16.mxu0 0
    %7406 = vmatpush1.bf16.msra.mxu0 0
    %7407 = vmatprep.subr.bf16.mxu0 0
    %7408 = vmatpush1.bf16.msra.mxu0 0
    %7409 = vmatprep.subr.bf16.mxu0 0
    %7410 = vmatpush1.bf16.msra.mxu0 0
    %7411 = vmatprep.subr.bf16.mxu0 0
    %7412 = vmatpush1.bf16.msra.mxu0 0
    %7413 = vmatprep.subr.bf16.mxu0 0
    %7414 = vmatpush1.bf16.msra.mxu0 0
    %7415 = vmatprep.subr.bf16.mxu0 0
    %7416 = vmatpush1.bf16.msra.mxu0 0
    %7417 = vmatprep.mubr.bf16.mxu0 0
    %7418 = vmatmul.mubr.bf16.gmra.mrb[0].mxu0 %v7383
    %v7419 = vpop.f32.mrb[0].mxu0
    %v7420 = vadd.f32 0.0, %v7419
    %v7421 = vpop.f32.mrb[0].mxu0
    %v7422 = vpop.f32.mrb[0].mxu0
    %v7423 = vadd.f32 0.0, %v7422
    %v7424 = vpop.f32.mrb[0].mxu0
    %7425 = vdwg.mxu0
    %v7427 = vsel %vm724, %v7264, 0
    %7429 = vmatprep.subr.bf16.mxu0 0
    %7430 = vmatpush1.bf16.msra.mxu0 %v3630
    %7431 = vmatprep.subr.bf16.mxu0 0
    %7432 = vmatpush1.bf16.msra.mxu0 0
    %7433 = vmatprep.subr.bf16.mxu0 0
    %7434 = vmatpush1.bf16.msra.mxu0 0
    %7435 = vmatprep.subr.bf16.mxu0 0
    %7436 = vmatpush1.bf16.msra.mxu0 0
    %7437 = vmatprep.subr.bf16.mxu0 0
    %7438 = vmatpush1.bf16.msra.mxu0 0
    %7439 = vmatprep.subr.bf16.mxu0 0
    %7440 = vmatpush1.bf16.msra.mxu0 0
    %7441 = vmatprep.subr.bf16.mxu0 0
    %7442 = vmatpush1.bf16.msra.mxu0 0
    %7443 = vmatprep.subr.bf16.mxu0 0
    %7444 = vmatpush1.bf16.msra.mxu0 0
    %7445 = vmatprep.subr.bf16.mxu0 0
    %7446 = vmatpush1.bf16.msra.mxu0 0
    %7447 = vmatprep.subr.bf16.mxu0 0
    %7448 = vmatpush1.bf16.msra.mxu0 0
    %7449 = vmatprep.subr.bf16.mxu0 0
    %7450 = vmatpush1.bf16.msra.mxu0 0
    %7451 = vmatprep.subr.bf16.mxu0 0
    %7452 = vmatpush1.bf16.msra.mxu0 0
    %7453 = vmatprep.subr.bf16.mxu0 0
    %7454 = vmatpush1.bf16.msra.mxu0 0
    %7455 = vmatprep.subr.bf16.mxu0 0
    %7456 = vmatpush1.bf16.msra.mxu0 0
    %7457 = vmatprep.subr.bf16.mxu0 0
    %7458 = vmatpush1.bf16.msra.mxu0 0
    %7459 = vmatprep.subr.bf16.mxu0 0
    %7460 = vmatpush1.bf16.msra.mxu0 0
    %7461 = vmatprep.mubr.bf16.mxu0 0
    %7462 = vmatmul.mubr.bf16.gmra.mrb[0].mxu0 %v7427
    %v7463 = vpop.f32.mrb[0].mxu0
    %v7464 = vadd.f32 %v7420, %v7463
    %v7465 = vpop.f32.mrb[0].mxu0
    %v7466 = vpop.f32.mrb[0].mxu0
    %v7467 = vadd.f32 %v7423, %v7466
    %v7468 = vpop.f32.mrb[0].mxu0
    %7469 = vdwg.mxu0
    %v7470 = vpack.c.bf16 %v6943, %v6943
    %v7472 = vsel %vm724, %v7470, 0
    %7474 = vmatprep.subr.bf16.mxu0 0
    %7475 = vmatpush1.bf16.xpose.msra.mxu0 %v7472
    %7476 = vmatprep.subr.bf16.mxu0 0
    %7477 = vmatpush1.bf16.xpose.msra.mxu0 0
    %7478 = vmatprep.subr.bf16.mxu0 0
    %7479 = vmatpush1.bf16.xpose.msra.mxu0 0
    %7480 = vmatprep.subr.bf16.mxu0 0
    %7481 = vmatpush1.bf16.xpose.msra.mxu0 0
    %7482 = vmatprep.subr.bf16.mxu0 0
    %7483 = vmatpush1.bf16.xpose.msra.mxu0 0
    %7484 = vmatprep.subr.bf16.mxu0 0
    %7485 = vmatpush1.bf16.xpose.msra.mxu0 0
    %7486 = vmatprep.subr.bf16.mxu0 0
    %7487 = vmatpush1.bf16.xpose.msra.mxu0 0
    %7488 = vmatprep.subr.bf16.mxu0 0
    %7489 = vmatpush1.bf16.xpose.msra.mxu0 0
    %7490 = vmatprep.subr.bf16.mxu0 0
    %7491 = vmatpush1.bf16.xpose.msra.mxu0 0
    %7492 = vmatprep.subr.bf16.mxu0 0
    %7493 = vmatpush1.bf16.xpose.msra.mxu0 0
    %7494 = vmatprep.subr.bf16.mxu0 0
    %7495 = vmatpush1.bf16.xpose.msra.mxu0 0
    %7496 = vmatprep.subr.bf16.mxu0 0
    %7497 = vmatpush1.bf16.xpose.msra.mxu0 0
    %7498 = vmatprep.subr.bf16.mxu0 0
    %7499 = vmatpush1.bf16.xpose.msra.mxu0 0
    %7500 = vmatprep.subr.bf16.mxu0 0
    %7501 = vmatpush1.bf16.xpose.msra.mxu0 0
    %7502 = vmatprep.subr.bf16.mxu0 0
    %7503 = vmatpush1.bf16.xpose.msra.mxu0 0
    %7504 = vmatprep.subr.bf16.mxu0 0
    %7505 = vmatpush1.bf16.xpose.msra.mxu0 0
    %7506 = vmatprep.mubr.bf16.mxu0 0
    %7507 = vmatmul.mubr.bf16.gmra.mrb[0].mxu0 %v3679
    %v7508 = vpop.f32.mrb[0].mxu0
    %v7509 = vadd.f32 0.0, %v7508
    %v7510 = vpop.f32.mrb[0].mxu0
    %v7511 = vpop.f32.mrb[0].mxu0
    %v7512 = vadd.f32 0.0, %v7511
    %v7513 = vpop.f32.mrb[0].mxu0
    %7514 = vdwg.mxu0
    %v7515 = vsel %vm3374, %v7509, -inf
    %7516 = vmax.xlane.f32.xlu0 %v7515
    %v7517 = vpop.xlane.xlu0 %7516
    %v7518 = vsel %vm3374, %v7512, -inf
    %7519 = vmax.xlane.f32.xlu0 %v7518
    %v7520 = vpop.xlane.xlu0 %7519
    %v7521 = vsub.f32 %v7509, %v7517
    %v7522 = vsub.f32 %v7512, %v7520
    %v7523 = vmul.f32 %v7521, 1.442695
    %v7524 = vpow.pop %v7523
    %v7525 = vmul.f32 %v7522, 1.442695
    %v7526 = vpow.pop %v7525
    %v7527 = vsel %vm3374, %v7524, 0.0
    %7528 = vadd.xlane.f32.xlu0 %v7527
    %v7529 = vpop.xlane.xlu0 %7528
    %v7530 = vsel %vm3374, %v7526, 0.0
    %7531 = vadd.xlane.f32.xlu0 %v7530
    %v7532 = vpop.xlane.xlu0 %7531
    %v7533 = vrcp.pop %v7529
    %v7534 = vmul.f32 %v7524, %v7533
    %v7535 = vrcp.pop %v7532
    %v7536 = vmul.f32 %v7526, %v7535
    %v7537 = vpack.c.bf16 %v7536, %v7534
    %v7538 = vpack.c.bf16 %v7103, %v7103
    %v7540 = vsel %vm3374, %v7537, 0
    %v7543 = vand.u32 %v7538, %v3404
    %7545 = vmatprep.subr.bf16.mxu0 0
    %7546 = vmatpush1.bf16.msra.mxu0 %v7543
    %7547 = vmatprep.subr.bf16.mxu0 0
    %7548 = vmatpush1.bf16.msra.mxu0 0
    %7549 = vmatprep.subr.bf16.mxu0 0
    %7550 = vmatpush1.bf16.msra.mxu0 0
    %7551 = vmatprep.subr.bf16.mxu0 0
    %7552 = vmatpush1.bf16.msra.mxu0 0
    %7553 = vmatprep.subr.bf16.mxu0 0
    %7554 = vmatpush1.bf16.msra.mxu0 0
    %7555 = vmatprep.subr.bf16.mxu0 0
    %7556 = vmatpush1.bf16.msra.mxu0 0
    %7557 = vmatprep.subr.bf16.mxu0 0
    %7558 = vmatpush1.bf16.msra.mxu0 0
    %7559 = vmatprep.subr.bf16.mxu0 0
    %7560 = vmatpush1.bf16.msra.mxu0 0
    %7561 = vmatprep.subr.bf16.mxu0 0
    %7562 = vmatpush1.bf16.msra.mxu0 0
    %7563 = vmatprep.subr.bf16.mxu0 0
    %7564 = vmatpush1.bf16.msra.mxu0 0
    %7565 = vmatprep.subr.bf16.mxu0 0
    %7566 = vmatpush1.bf16.msra.mxu0 0
    %7567 = vmatprep.subr.bf16.mxu0 0
    %7568 = vmatpush1.bf16.msra.mxu0 0
    %7569 = vmatprep.subr.bf16.mxu0 0
    %7570 = vmatpush1.bf16.msra.mxu0 0
    %7571 = vmatprep.subr.bf16.mxu0 0
    %7572 = vmatpush1.bf16.msra.mxu0 0
    %7573 = vmatprep.subr.bf16.mxu0 0
    %7574 = vmatpush1.bf16.msra.mxu0 0
    %7575 = vmatprep.subr.bf16.mxu0 0
    %7576 = vmatpush1.bf16.msra.mxu0 0
    %7577 = vmatprep.mubr.bf16.mxu0 0
    %7578 = vmatmul.mubr.bf16.gmra.mrb[0].mxu0 %v7540
    %v7579 = vpop.f32.mrb[0].mxu0
    %v7580 = vadd.f32 0.0, %v7579
    %v7581 = vpop.f32.mrb[0].mxu0
    %v7582 = vpop.f32.mrb[0].mxu0
    %v7583 = vadd.f32 0.0, %v7582
    %v7584 = vpop.f32.mrb[0].mxu0
    %7585 = vdwg.mxu0
    %v7586 = vpack.c.bf16 %v7583, %v7580
    %v7588 = vsel %vm724, %v7586, 0
    %7590 = vmatprep.subr.bf16.mxu0 0
    %7591 = vmatpush1.bf16.msra.mxu0 %v3804
    %7592 = vmatprep.subr.bf16.mxu0 0
    %7593 = vmatpush1.bf16.msra.mxu0 0
    %7594 = vmatprep.subr.bf16.mxu0 0
    %7595 = vmatpush1.bf16.msra.mxu0 0
    %7596 = vmatprep.subr.bf16.mxu0 0
    %7597 = vmatpush1.bf16.msra.mxu0 0
    %7598 = vmatprep.subr.bf16.mxu0 0
    %7599 = vmatpush1.bf16.msra.mxu0 0
    %7600 = vmatprep.subr.bf16.mxu0 0
    %7601 = vmatpush1.bf16.msra.mxu0 0
    %7602 = vmatprep.subr.bf16.mxu0 0
    %7603 = vmatpush1.bf16.msra.mxu0 0
    %7604 = vmatprep.subr.bf16.mxu0 0
    %7605 = vmatpush1.bf16.msra.mxu0 0
    %7606 = vmatprep.subr.bf16.mxu0 0
    %7607 = vmatpush1.bf16.msra.mxu0 0
    %7608 = vmatprep.subr.bf16.mxu0 0
    %7609 = vmatpush1.bf16.msra.mxu0 0
    %7610 = vmatprep.subr.bf16.mxu0 0
    %7611 = vmatpush1.bf16.msra.mxu0 0
    %7612 = vmatprep.subr.bf16.mxu0 0
    %7613 = vmatpush1.bf16.msra.mxu0 0
    %7614 = vmatprep.subr.bf16.mxu0 0
    %7615 = vmatpush1.bf16.msra.mxu0 0
    %7616 = vmatprep.subr.bf16.mxu0 0
    %7617 = vmatpush1.bf16.msra.mxu0 0
    %7618 = vmatprep.subr.bf16.mxu0 0
    %7619 = vmatpush1.bf16.msra.mxu0 0
    %7620 = vmatprep.subr.bf16.mxu0 0
    %7621 = vmatpush1.bf16.msra.mxu0 0
    %7622 = vmatprep.mubr.bf16.mxu0 0
    %7623 = vmatmul.mubr.bf16.gmra.mrb[0].mxu0 %v7588
    %v7624 = vpop.f32.mrb[0].mxu0
    %v7625 = vadd.f32 0.0, %v7624
    %v7626 = vpop.f32.mrb[0].mxu0
    %v7627 = vpop.f32.mrb[0].mxu0
    %v7628 = vadd.f32 0.0, %v7627
    %v7629 = vpop.f32.mrb[0].mxu0
    %7630 = vdwg.mxu0
    %v7631 = vadd.f32 %v7464, %v7625
    %v7632 = vadd.f32 %v7467, %v7628
    %v7633 = vpack.c.bf16 %v6983, %v6983
    %v7635 = vsel %vm724, %v7633, 0
    %7637 = vmatprep.subr.bf16.mxu0 0
    %7638 = vmatpush1.bf16.xpose.msra.mxu0 %v7635
    %7639 = vmatprep.subr.bf16.mxu0 0
    %7640 = vmatpush1.bf16.xpose.msra.mxu0 0
    %7641 = vmatprep.subr.bf16.mxu0 0
    %7642 = vmatpush1.bf16.xpose.msra.mxu0 0
    %7643 = vmatprep.subr.bf16.mxu0 0
    %7644 = vmatpush1.bf16.xpose.msra.mxu0 0
    %7645 = vmatprep.subr.bf16.mxu0 0
    %7646 = vmatpush1.bf16.xpose.msra.mxu0 0
    %7647 = vmatprep.subr.bf16.mxu0 0
    %7648 = vmatpush1.bf16.xpose.msra.mxu0 0
    %7649 = vmatprep.subr.bf16.mxu0 0
    %7650 = vmatpush1.bf16.xpose.msra.mxu0 0
    %7651 = vmatprep.subr.bf16.mxu0 0
    %7652 = vmatpush1.bf16.xpose.msra.mxu0 0
    %7653 = vmatprep.subr.bf16.mxu0 0
    %7654 = vmatpush1.bf16.xpose.msra.mxu0 0
    %7655 = vmatprep.subr.bf16.mxu0 0
    %7656 = vmatpush1.bf16.xpose.msra.mxu0 0
    %7657 = vmatprep.subr.bf16.mxu0 0
    %7658 = vmatpush1.bf16.xpose.msra.mxu0 0
    %7659 = vmatprep.subr.bf16.mxu0 0
    %7660 = vmatpush1.bf16.xpose.msra.mxu0 0
    %7661 = vmatprep.subr.bf16.mxu0 0
    %7662 = vmatpush1.bf16.xpose.msra.mxu0 0
    %7663 = vmatprep.subr.bf16.mxu0 0
    %7664 = vmatpush1.bf16.xpose.msra.mxu0 0
    %7665 = vmatprep.subr.bf16.mxu0 0
    %7666 = vmatpush1.bf16.xpose.msra.mxu0 0
    %7667 = vmatprep.subr.bf16.mxu0 0
    %7668 = vmatpush1.bf16.xpose.msra.mxu0 0
    %7669 = vmatprep.mubr.bf16.mxu0 0
    %7670 = vmatmul.mubr.bf16.gmra.mrb[0].mxu0 %v3855
    %v7671 = vpop.f32.mrb[0].mxu0
    %v7672 = vadd.f32 0.0, %v7671
    %v7673 = vpop.f32.mrb[0].mxu0
    %v7674 = vpop.f32.mrb[0].mxu0
    %v7675 = vadd.f32 0.0, %v7674
    %v7676 = vpop.f32.mrb[0].mxu0
    %7677 = vdwg.mxu0
    %v7678 = vsel %vm3374, %v7672, -inf
    %7679 = vmax.xlane.f32.xlu0 %v7678
    %v7680 = vpop.xlane.xlu0 %7679
    %v7681 = vsel %vm3374, %v7675, -inf
    %7682 = vmax.xlane.f32.xlu0 %v7681
    %v7683 = vpop.xlane.xlu0 %7682
    %v7684 = vsub.f32 %v7672, %v7680
    %v7685 = vsub.f32 %v7675, %v7683
    %v7686 = vmul.f32 %v7684, 1.442695
    %v7687 = vpow.pop %v7686
    %v7688 = vmul.f32 %v7685, 1.442695
    %v7689 = vpow.pop %v7688
    %v7690 = vsel %vm3374, %v7687, 0.0
    %7691 = vadd.xlane.f32.xlu0 %v7690
    %v7692 = vpop.xlane.xlu0 %7691
    %v7693 = vsel %vm3374, %v7689, 0.0
    %7694 = vadd.xlane.f32.xlu0 %v7693
    %v7695 = vpop.xlane.xlu0 %7694
    %v7696 = vrcp.pop %v7692
    %v7697 = vmul.f32 %v7687, %v7696
    %v7698 = vrcp.pop %v7695
    %v7699 = vmul.f32 %v7689, %v7698
    %v7700 = vpack.c.bf16 %v7699, %v7697
    %v7701 = vpack.c.bf16 %v7143, %v7143
    %v7703 = vsel %vm3374, %v7700, 0
    %v7706 = vand.u32 %v7701, %v3404
    %7708 = vmatprep.subr.bf16.mxu0 0
    %7709 = vmatpush1.bf16.msra.mxu0 %v7706
    %7710 = vmatprep.subr.bf16.mxu0 0
    %7711 = vmatpush1.bf16.msra.mxu0 0
    %7712 = vmatprep.subr.bf16.mxu0 0
    %7713 = vmatpush1.bf16.msra.mxu0 0
    %7714 = vmatprep.subr.bf16.mxu0 0
    %7715 = vmatpush1.bf16.msra.mxu0 0
    %7716 = vmatprep.subr.bf16.mxu0 0
    %7717 = vmatpush1.bf16.msra.mxu0 0
    %7718 = vmatprep.subr.bf16.mxu0 0
    %7719 = vmatpush1.bf16.msra.mxu0 0
    %7720 = vmatprep.subr.bf16.mxu0 0
    %7721 = vmatpush1.bf16.msra.mxu0 0
    %7722 = vmatprep.subr.bf16.mxu0 0
    %7723 = vmatpush1.bf16.msra.mxu0 0
    %7724 = vmatprep.subr.bf16.mxu0 0
    %7725 = vmatpush1.bf16.msra.mxu0 0
    %7726 = vmatprep.subr.bf16.mxu0 0
    %7727 = vmatpush1.bf16.msra.mxu0 0
    %7728 = vmatprep.subr.bf16.mxu0 0
    %7729 = vmatpush1.bf16.msra.mxu0 0
    %7730 = vmatprep.subr.bf16.mxu0 0
    %7731 = vmatpush1.bf16.msra.mxu0 0
    %7732 = vmatprep.subr.bf16.mxu0 0
    %7733 = vmatpush1.bf16.msra.mxu0 0
    %7734 = vmatprep.subr.bf16.mxu0 0
    %7735 = vmatpush1.bf16.msra.mxu0 0
    %7736 = vmatprep.subr.bf16.mxu0 0
    %7737 = vmatpush1.bf16.msra.mxu0 0
    %7738 = vmatprep.subr.bf16.mxu0 0
    %7739 = vmatpush1.bf16.msra.mxu0 0
    %7740 = vmatprep.mubr.bf16.mxu0 0
    %7741 = vmatmul.mubr.bf16.gmra.mrb[0].mxu0 %v7703
    %v7742 = vpop.f32.mrb[0].mxu0
    %v7743 = vadd.f32 0.0, %v7742
    %v7744 = vpop.f32.mrb[0].mxu0
    %v7745 = vpop.f32.mrb[0].mxu0
    %v7746 = vadd.f32 0.0, %v7745
    %v7747 = vpop.f32.mrb[0].mxu0
    %7748 = vdwg.mxu0
    %v7749 = vpack.c.bf16 %v7746, %v7743
    %v7751 = vsel %vm724, %v7749, 0
    %7753 = vmatprep.subr.bf16.mxu0 0
    %7754 = vmatpush1.bf16.msra.mxu0 %v3980
    %7755 = vmatprep.subr.bf16.mxu0 0
    %7756 = vmatpush1.bf16.msra.mxu0 0
    %7757 = vmatprep.subr.bf16.mxu0 0
    %7758 = vmatpush1.bf16.msra.mxu0 0
    %7759 = vmatprep.subr.bf16.mxu0 0
    %7760 = vmatpush1.bf16.msra.mxu0 0
    %7761 = vmatprep.subr.bf16.mxu0 0
    %7762 = vmatpush1.bf16.msra.mxu0 0
    %7763 = vmatprep.subr.bf16.mxu0 0
    %7764 = vmatpush1.bf16.msra.mxu0 0
    %7765 = vmatprep.subr.bf16.mxu0 0
    %7766 = vmatpush1.bf16.msra.mxu0 0
    %7767 = vmatprep.subr.bf16.mxu0 0
    %7768 = vmatpush1.bf16.msra.mxu0 0
    %7769 = vmatprep.subr.bf16.mxu0 0
    %7770 = vmatpush1.bf16.msra.mxu0 0
    %7771 = vmatprep.subr.bf16.mxu0 0
    %7772 = vmatpush1.bf16.msra.mxu0 0
    %7773 = vmatprep.subr.bf16.mxu0 0
    %7774 = vmatpush1.bf16.msra.mxu0 0
    %7775 = vmatprep.subr.bf16.mxu0 0
    %7776 = vmatpush1.bf16.msra.mxu0 0
    %7777 = vmatprep.subr.bf16.mxu0 0
    %7778 = vmatpush1.bf16.msra.mxu0 0
    %7779 = vmatprep.subr.bf16.mxu0 0
    %7780 = vmatpush1.bf16.msra.mxu0 0
    %7781 = vmatprep.subr.bf16.mxu0 0
    %7782 = vmatpush1.bf16.msra.mxu0 0
    %7783 = vmatprep.subr.bf16.mxu0 0
    %7784 = vmatpush1.bf16.msra.mxu0 0
    %7785 = vmatprep.mubr.bf16.mxu0 0
    %7786 = vmatmul.mubr.bf16.gmra.mrb[0].mxu0 %v7751
    %v7787 = vpop.f32.mrb[0].mxu0
    %v7788 = vadd.f32 0.0, %v7787
    %v7789 = vpop.f32.mrb[0].mxu0
    %v7790 = vpop.f32.mrb[0].mxu0
    %v7791 = vadd.f32 0.0, %v7790
    %v7792 = vpop.f32.mrb[0].mxu0
    %7793 = vdwg.mxu0
    %v7794 = vadd.f32 %v7631, %v7788
    %v7795 = vadd.f32 %v7632, %v7791
    %v7796 = vadd.f32 %v7794, %v4031
    %v7797 = vadd.f32 %v7795, %v4031
    %v7798 = vmax.f32 %v7796, 0.0
    %v7799 = vmax.f32 %v7797, 0.0
    %v7800 = vpack.c.bf16 %v7798, %v7798
    %v7802 = vsel %vm245, %v7800, 0
    %7804 = vmatprep.subr.bf16.mxu0 0
    %7805 = vmatpush1.bf16.msra.mxu0 %v4061
    %7806 = vmatprep.subr.bf16.mxu0 0
    %7807 = vmatpush1.bf16.msra.mxu0 %v4062
    %7808 = vmatprep.subr.bf16.mxu0 0
    %7809 = vmatpush1.bf16.msra.mxu0 %v4063
    %7810 = vmatprep.subr.bf16.mxu0 0
    %7811 = vmatpush1.bf16.msra.mxu0 %v4064
    %7812 = vmatprep.subr.bf16.mxu0 0
    %7813 = vmatpush1.bf16.msra.mxu0 0
    %7814 = vmatprep.subr.bf16.mxu0 0
    %7815 = vmatpush1.bf16.msra.mxu0 0
    %7816 = vmatprep.subr.bf16.mxu0 0
    %7817 = vmatpush1.bf16.msra.mxu0 0
    %7818 = vmatprep.subr.bf16.mxu0 0
    %7819 = vmatpush1.bf16.msra.mxu0 0
    %7820 = vmatprep.subr.bf16.mxu0 0
    %7821 = vmatpush1.bf16.msra.mxu0 0
    %7822 = vmatprep.subr.bf16.mxu0 0
    %7823 = vmatpush1.bf16.msra.mxu0 0
    %7824 = vmatprep.subr.bf16.mxu0 0
    %7825 = vmatpush1.bf16.msra.mxu0 0
    %7826 = vmatprep.subr.bf16.mxu0 0
    %7827 = vmatpush1.bf16.msra.mxu0 0
    %7828 = vmatprep.subr.bf16.mxu0 0
    %7829 = vmatpush1.bf16.msra.mxu0 0
    %7830 = vmatprep.subr.bf16.mxu0 0
    %7831 = vmatpush1.bf16.msra.mxu0 0
    %7832 = vmatprep.subr.bf16.mxu0 0
    %7833 = vmatpush1.bf16.msra.mxu0 0
    %7834 = vmatprep.subr.bf16.mxu0 0
    %7835 = vmatpush1.bf16.msra.mxu0 0
    %7836 = vmatprep.mubr.bf16.mxu0 0
    %7837 = vmatmul.mubr.bf16.gmra.mrb[0].mxu0 %v7802
    %v7838 = vpop.f32.mrb[0].mxu0
    %v7839 = vadd.f32 0.0, %v7838
    %v7840 = vpop.f32.mrb[0].mxu0
    %v7841 = vpop.f32.mrb[0].mxu0
    %v7842 = vpop.f32.mrb[0].mxu0
    %7843 = vdwg.mxu0
    %v7845 = vrot.slane %v7839, 4
    %v7847 = vadd.f32 %v71, %v7845
    %v7848 = vshrl.u32 %v7800, 16
    %v7851 = vsel %vm245, %v7848, 0
    %7853 = vmatprep.subr.bf16.mxu0 0
    %7854 = vmatpush1.bf16.msra.mxu0 %v4143
    %7855 = vmatprep.subr.bf16.mxu0 0
    %7856 = vmatpush1.bf16.msra.mxu0 %v4144
    %7857 = vmatprep.subr.bf16.mxu0 0
    %7858 = vmatpush1.bf16.msra.mxu0 %v4145
    %7859 = vmatprep.subr.bf16.mxu0 0
    %7860 = vmatpush1.bf16.msra.mxu0 %v4146
    %7861 = vmatprep.subr.bf16.mxu0 0
    %7862 = vmatpush1.bf16.msra.mxu0 0
    %7863 = vmatprep.subr.bf16.mxu0 0
    %7864 = vmatpush1.bf16.msra.mxu0 0
    %7865 = vmatprep.subr.bf16.mxu0 0
    %7866 = vmatpush1.bf16.msra.mxu0 0
    %7867 = vmatprep.subr.bf16.mxu0 0
    %7868 = vmatpush1.bf16.msra.mxu0 0
    %7869 = vmatprep.subr.bf16.mxu0 0
    %7870 = vmatpush1.bf16.msra.mxu0 0
    %7871 = vmatprep.subr.bf16.mxu0 0
    %7872 = vmatpush1.bf16.msra.mxu0 0
    %7873 = vmatprep.subr.bf16.mxu0 0
    %7874 = vmatpush1.bf16.msra.mxu0 0
    %7875 = vmatprep.subr.bf16.mxu0 0
    %7876 = vmatpush1.bf16.msra.mxu0 0
    %7877 = vmatprep.subr.bf16.mxu0 0
    %7878 = vmatpush1.bf16.msra.mxu0 0
    %7879 = vmatprep.subr.bf16.mxu0 0
    %7880 = vmatpush1.bf16.msra.mxu0 0
    %7881 = vmatprep.subr.bf16.mxu0 0
    %7882 = vmatpush1.bf16.msra.mxu0 0
    %7883 = vmatprep.subr.bf16.mxu0 0
    %7884 = vmatpush1.bf16.msra.mxu0 0
    %7885 = vmatprep.mubr.bf16.mxu0 0
    %7886 = vmatmul.mubr.bf16.gmra.mrb[0].mxu0 %v7851
    %v7887 = vpop.f32.mrb[0].mxu0
    %v7888 = vadd.f32 0.0, %v7887
    %v7889 = vpop.f32.mrb[0].mxu0
    %v7890 = vpop.f32.mrb[0].mxu0
    %v7891 = vpop.f32.mrb[0].mxu0
    %7892 = vdwg.mxu0
    %v7894 = vrot.slane %v7888, 4
    %v7896 = vadd.f32 %v7847, %v7894
    %v7898 = vrot.slane %v7800, 1
    %v7900 = vsel %vm245, %v7898, 0
    %7902 = vmatprep.subr.bf16.mxu0 0
    %7903 = vmatpush1.bf16.msra.mxu0 %v4225
    %7904 = vmatprep.subr.bf16.mxu0 0
    %7905 = vmatpush1.bf16.msra.mxu0 %v4226
    %7906 = vmatprep.subr.bf16.mxu0 0
    %7907 = vmatpush1.bf16.msra.mxu0 %v4227
    %7908 = vmatprep.subr.bf16.mxu0 0
    %7909 = vmatpush1.bf16.msra.mxu0 %v4228
    %7910 = vmatprep.subr.bf16.mxu0 0
    %7911 = vmatpush1.bf16.msra.mxu0 0
    %7912 = vmatprep.subr.bf16.mxu0 0
    %7913 = vmatpush1.bf16.msra.mxu0 0
    %7914 = vmatprep.subr.bf16.mxu0 0
    %7915 = vmatpush1.bf16.msra.mxu0 0
    %7916 = vmatprep.subr.bf16.mxu0 0
    %7917 = vmatpush1.bf16.msra.mxu0 0
    %7918 = vmatprep.subr.bf16.mxu0 0
    %7919 = vmatpush1.bf16.msra.mxu0 0
    %7920 = vmatprep.subr.bf16.mxu0 0
    %7921 = vmatpush1.bf16.msra.mxu0 0
    %7922 = vmatprep.subr.bf16.mxu0 0
    %7923 = vmatpush1.bf16.msra.mxu0 0
    %7924 = vmatprep.subr.bf16.mxu0 0
    %7925 = vmatpush1.bf16.msra.mxu0 0
    %7926 = vmatprep.subr.bf16.mxu0 0
    %7927 = vmatpush1.bf16.msra.mxu0 0
    %7928 = vmatprep.subr.bf16.mxu0 0
    %7929 = vmatpush1.bf16.msra.mxu0 0
    %7930 = vmatprep.subr.bf16.mxu0 0
    %7931 = vmatpush1.bf16.msra.mxu0 0
    %7932 = vmatprep.subr.bf16.mxu0 0
    %7933 = vmatpush1.bf16.msra.mxu0 0
    %7934 = vmatprep.mubr.bf16.mxu0 0
    %7935 = vmatmul.mubr.bf16.gmra.mrb[0].mxu0 %v7900
    %v7936 = vpop.f32.mrb[0].mxu0
    %v7937 = vadd.f32 0.0, %v7936
    %v7938 = vpop.f32.mrb[0].mxu0
    %v7939 = vpop.f32.mrb[0].mxu0
    %v7940 = vpop.f32.mrb[0].mxu0
    %7941 = vdwg.mxu0
    %v7943 = vrot.slane %v7937, 4
    %v7945 = vadd.f32 %v7896, %v7943
    %v7946 = vrot.slane %v7848, 1
    %v7948 = vsel %vm245, %v7946, 0
    %7950 = vmatprep.subr.bf16.mxu0 0
    %7951 = vmatpush1.bf16.msra.mxu0 %v4306
    %7952 = vmatprep.subr.bf16.mxu0 0
    %7953 = vmatpush1.bf16.msra.mxu0 %v4307
    %7954 = vmatprep.subr.bf16.mxu0 0
    %7955 = vmatpush1.bf16.msra.mxu0 %v4308
    %7956 = vmatprep.subr.bf16.mxu0 0
    %7957 = vmatpush1.bf16.msra.mxu0 %v4309
    %7958 = vmatprep.subr.bf16.mxu0 0
    %7959 = vmatpush1.bf16.msra.mxu0 0
    %7960 = vmatprep.subr.bf16.mxu0 0
    %7961 = vmatpush1.bf16.msra.mxu0 0
    %7962 = vmatprep.subr.bf16.mxu0 0
    %7963 = vmatpush1.bf16.msra.mxu0 0
    %7964 = vmatprep.subr.bf16.mxu0 0
    %7965 = vmatpush1.bf16.msra.mxu0 0
    %7966 = vmatprep.subr.bf16.mxu0 0
    %7967 = vmatpush1.bf16.msra.mxu0 0
    %7968 = vmatprep.subr.bf16.mxu0 0
    %7969 = vmatpush1.bf16.msra.mxu0 0
    %7970 = vmatprep.subr.bf16.mxu0 0
    %7971 = vmatpush1.bf16.msra.mxu0 0
    %7972 = vmatprep.subr.bf16.mxu0 0
    %7973 = vmatpush1.bf16.msra.mxu0 0
    %7974 = vmatprep.subr.bf16.mxu0 0
    %7975 = vmatpush1.bf16.msra.mxu0 0
    %7976 = vmatprep.subr.bf16.mxu0 0
    %7977 = vmatpush1.bf16.msra.mxu0 0
    %7978 = vmatprep.subr.bf16.mxu0 0
    %7979 = vmatpush1.bf16.msra.mxu0 0
    %7980 = vmatprep.subr.bf16.mxu0 0
    %7981 = vmatpush1.bf16.msra.mxu0 0
    %7982 = vmatprep.mubr.bf16.mxu0 0
    %7983 = vmatmul.mubr.bf16.gmra.mrb[0].mxu0 %v7948
    %v7984 = vpop.f32.mrb[0].mxu0
    %v7985 = vadd.f32 0.0, %v7984
    %v7986 = vpop.f32.mrb[0].mxu0
    %v7987 = vpop.f32.mrb[0].mxu0
    %v7988 = vpop.f32.mrb[0].mxu0
    %7989 = vdwg.mxu0
    %v7991 = vrot.slane %v7985, 4
    %v7993 = vadd.f32 %v7945, %v7991
    %v7994 = vrot.slane %v7800, 2
    %v7996 = vsel %vm245, %v7994, 0
    %7998 = vmatprep.subr.bf16.mxu0 0
    %7999 = vmatpush1.bf16.msra.mxu0 %v4387
    %8000 = vmatprep.subr.bf16.mxu0 0
    %8001 = vmatpush1.bf16.msra.mxu0 %v4388
    %8002 = vmatprep.subr.bf16.mxu0 0
    %8003 = vmatpush1.bf16.msra.mxu0 %v4389
    %8004 = vmatprep.subr.bf16.mxu0 0
    %8005 = vmatpush1.bf16.msra.mxu0 %v4390
    %8006 = vmatprep.subr.bf16.mxu0 0
    %8007 = vmatpush1.bf16.msra.mxu0 0
    %8008 = vmatprep.subr.bf16.mxu0 0
    %8009 = vmatpush1.bf16.msra.mxu0 0
    %8010 = vmatprep.subr.bf16.mxu0 0
    %8011 = vmatpush1.bf16.msra.mxu0 0
    %8012 = vmatprep.subr.bf16.mxu0 0
    %8013 = vmatpush1.bf16.msra.mxu0 0
    %8014 = vmatprep.subr.bf16.mxu0 0
    %8015 = vmatpush1.bf16.msra.mxu0 0
    %8016 = vmatprep.subr.bf16.mxu0 0
    %8017 = vmatpush1.bf16.msra.mxu0 0
    %8018 = vmatprep.subr.bf16.mxu0 0
    %8019 = vmatpush1.bf16.msra.mxu0 0
    %8020 = vmatprep.subr.bf16.mxu0 0
    %8021 = vmatpush1.bf16.msra.mxu0 0
    %8022 = vmatprep.subr.bf16.mxu0 0
    %8023 = vmatpush1.bf16.msra.mxu0 0
    %8024 = vmatprep.subr.bf16.mxu0 0
    %8025 = vmatpush1.bf16.msra.mxu0 0
    %8026 = vmatprep.subr.bf16.mxu0 0
    %8027 = vmatpush1.bf16.msra.mxu0 0
    %8028 = vmatprep.subr.bf16.mxu0 0
    %8029 = vmatpush1.bf16.msra.mxu0 0
    %8030 = vmatprep.mubr.bf16.mxu0 0
    %8031 = vmatmul.mubr.bf16.gmra.mrb[0].mxu0 %v7996
    %v8032 = vpop.f32.mrb[0].mxu0
    %v8033 = vadd.f32 0.0, %v8032
    %v8034 = vpop.f32.mrb[0].mxu0
    %v8035 = vpop.f32.mrb[0].mxu0
    %v8036 = vpop.f32.mrb[0].mxu0
    %8037 = vdwg.mxu0
    %v8039 = vrot.slane %v8033, 4
    %v8041 = vadd.f32 %v7993, %v8039
    %v8042 = vrot.slane %v7848, 2
    %v8044 = vsel %vm245, %v8042, 0
    %8046 = vmatprep.subr.bf16.mxu0 0
    %8047 = vmatpush1.bf16.msra.mxu0 %v4468
    %8048 = vmatprep.subr.bf16.mxu0 0
    %8049 = vmatpush1.bf16.msra.mxu0 %v4469
    %8050 = vmatprep.subr.bf16.mxu0 0
    %8051 = vmatpush1.bf16.msra.mxu0 %v4470
    %8052 = vmatprep.subr.bf16.mxu0 0
    %8053 = vmatpush1.bf16.msra.mxu0 %v4471
    %8054 = vmatprep.subr.bf16.mxu0 0
    %8055 = vmatpush1.bf16.msra.mxu0 0
    %8056 = vmatprep.subr.bf16.mxu0 0
    %8057 = vmatpush1.bf16.msra.mxu0 0
    %8058 = vmatprep.subr.bf16.mxu0 0
    %8059 = vmatpush1.bf16.msra.mxu0 0
    %8060 = vmatprep.subr.bf16.mxu0 0
    %8061 = vmatpush1.bf16.msra.mxu0 0
    %8062 = vmatprep.subr.bf16.mxu0 0
    %8063 = vmatpush1.bf16.msra.mxu0 0
    %8064 = vmatprep.subr.bf16.mxu0 0
    %8065 = vmatpush1.bf16.msra.mxu0 0
    %8066 = vmatprep.subr.bf16.mxu0 0
    %8067 = vmatpush1.bf16.msra.mxu0 0
    %8068 = vmatprep.subr.bf16.mxu0 0
    %8069 = vmatpush1.bf16.msra.mxu0 0
    %8070 = vmatprep.subr.bf16.mxu0 0
    %8071 = vmatpush1.bf16.msra.mxu0 0
    %8072 = vmatprep.subr.bf16.mxu0 0
    %8073 = vmatpush1.bf16.msra.mxu0 0
    %8074 = vmatprep.subr.bf16.mxu0 0
    %8075 = vmatpush1.bf16.msra.mxu0 0
    %8076 = vmatprep.subr.bf16.mxu0 0
    %8077 = vmatpush1.bf16.msra.mxu0 0
    %8078 = vmatprep.mubr.bf16.mxu0 0
    %8079 = vmatmul.mubr.bf16.gmra.mrb[0].mxu0 %v8044
    %v8080 = vpop.f32.mrb[0].mxu0
    %v8081 = vadd.f32 0.0, %v8080
    %v8082 = vpop.f32.mrb[0].mxu0
    %v8083 = vpop.f32.mrb[0].mxu0
    %v8084 = vpop.f32.mrb[0].mxu0
    %8085 = vdwg.mxu0
    %v8087 = vrot.slane %v8081, 4
    %v8089 = vadd.f32 %v8041, %v8087
    %v8090 = vrot.slane %v7800, 3
    %v8092 = vsel %vm245, %v8090, 0
    %8094 = vmatprep.subr.bf16.mxu0 0
    %8095 = vmatpush1.bf16.msra.mxu0 %v4549
    %8096 = vmatprep.subr.bf16.mxu0 0
    %8097 = vmatpush1.bf16.msra.mxu0 %v4550
    %8098 = vmatprep.subr.bf16.mxu0 0
    %8099 = vmatpush1.bf16.msra.mxu0 %v4551
    %8100 = vmatprep.subr.bf16.mxu0 0
    %8101 = vmatpush1.bf16.msra.mxu0 %v4552
    %8102 = vmatprep.subr.bf16.mxu0 0
    %8103 = vmatpush1.bf16.msra.mxu0 0
    %8104 = vmatprep.subr.bf16.mxu0 0
    %8105 = vmatpush1.bf16.msra.mxu0 0
    %8106 = vmatprep.subr.bf16.mxu0 0
    %8107 = vmatpush1.bf16.msra.mxu0 0
    %8108 = vmatprep.subr.bf16.mxu0 0
    %8109 = vmatpush1.bf16.msra.mxu0 0
    %8110 = vmatprep.subr.bf16.mxu0 0
    %8111 = vmatpush1.bf16.msra.mxu0 0
    %8112 = vmatprep.subr.bf16.mxu0 0
    %8113 = vmatpush1.bf16.msra.mxu0 0
    %8114 = vmatprep.subr.bf16.mxu0 0
    %8115 = vmatpush1.bf16.msra.mxu0 0
    %8116 = vmatprep.subr.bf16.mxu0 0
    %8117 = vmatpush1.bf16.msra.mxu0 0
    %8118 = vmatprep.subr.bf16.mxu0 0
    %8119 = vmatpush1.bf16.msra.mxu0 0
    %8120 = vmatprep.subr.bf16.mxu0 0
    %8121 = vmatpush1.bf16.msra.mxu0 0
    %8122 = vmatprep.subr.bf16.mxu0 0
    %8123 = vmatpush1.bf16.msra.mxu0 0
    %8124 = vmatprep.subr.bf16.mxu0 0
    %8125 = vmatpush1.bf16.msra.mxu0 0
    %8126 = vmatprep.mubr.bf16.mxu0 0
    %8127 = vmatmul.mubr.bf16.gmra.mrb[0].mxu0 %v8092
    %v8128 = vpop.f32.mrb[0].mxu0
    %v8129 = vadd.f32 0.0, %v8128
    %v8130 = vpop.f32.mrb[0].mxu0
    %v8131 = vpop.f32.mrb[0].mxu0
    %v8132 = vpop.f32.mrb[0].mxu0
    %8133 = vdwg.mxu0
    %v8135 = vrot.slane %v8129, 4
    %v8137 = vadd.f32 %v8089, %v8135
    %v8138 = vrot.slane %v7848, 3
    %v8140 = vsel %vm245, %v8138, 0
    %8142 = vmatprep.subr.bf16.mxu0 0
    %8143 = vmatpush1.bf16.msra.mxu0 %v4630
    %8144 = vmatprep.subr.bf16.mxu0 0
    %8145 = vmatpush1.bf16.msra.mxu0 %v4631
    %8146 = vmatprep.subr.bf16.mxu0 0
    %8147 = vmatpush1.bf16.msra.mxu0 %v4632
    %8148 = vmatprep.subr.bf16.mxu0 0
    %8149 = vmatpush1.bf16.msra.mxu0 %v4633
    %8150 = vmatprep.subr.bf16.mxu0 0
    %8151 = vmatpush1.bf16.msra.mxu0 0
    %8152 = vmatprep.subr.bf16.mxu0 0
    %8153 = vmatpush1.bf16.msra.mxu0 0
    %8154 = vmatprep.subr.bf16.mxu0 0
    %8155 = vmatpush1.bf16.msra.mxu0 0
    %8156 = vmatprep.subr.bf16.mxu0 0
    %8157 = vmatpush1.bf16.msra.mxu0 0
    %8158 = vmatprep.subr.bf16.mxu0 0
    %8159 = vmatpush1.bf16.msra.mxu0 0
    %8160 = vmatprep.subr.bf16.mxu0 0
    %8161 = vmatpush1.bf16.msra.mxu0 0
    %8162 = vmatprep.subr.bf16.mxu0 0
    %8163 = vmatpush1.bf16.msra.mxu0 0
    %8164 = vmatprep.subr.bf16.mxu0 0
    %8165 = vmatpush1.bf16.msra.mxu0 0
    %8166 = vmatprep.subr.bf16.mxu0 0
    %8167 = vmatpush1.bf16.msra.mxu0 0
    %8168 = vmatprep.subr.bf16.mxu0 0
    %8169 = vmatpush1.bf16.msra.mxu0 0
    %8170 = vmatprep.subr.bf16.mxu0 0
    %8171 = vmatpush1.bf16.msra.mxu0 0
    %8172 = vmatprep.subr.bf16.mxu0 0
    %8173 = vmatpush1.bf16.msra.mxu0 0
    %8174 = vmatprep.mubr.bf16.mxu0 0
    %8175 = vmatmul.mubr.bf16.gmra.mrb[0].mxu0 %v8140
    %v8176 = vpop.f32.mrb[0].mxu0
    %v8177 = vadd.f32 0.0, %v8176
    %v8178 = vpop.f32.mrb[0].mxu0
    %v8179 = vpop.f32.mrb[0].mxu0
    %v8180 = vpop.f32.mrb[0].mxu0
    %8181 = vdwg.mxu0
    %v8183 = vrot.slane %v8177, 4
    %v8185 = vadd.f32 %v8137, %v8183
    %v8186 = vpack.c.bf16 %v7799, %v7799
    %v8188 = vsel %vm245, %v8186, 0
    %8190 = vmatprep.subr.bf16.mxu0 0
    %8191 = vmatpush1.bf16.msra.mxu0 %v4711
    %8192 = vmatprep.subr.bf16.mxu0 0
    %8193 = vmatpush1.bf16.msra.mxu0 %v4712
    %8194 = vmatprep.subr.bf16.mxu0 0
    %8195 = vmatpush1.bf16.msra.mxu0 %v4713
    %8196 = vmatprep.subr.bf16.mxu0 0
    %8197 = vmatpush1.bf16.msra.mxu0 %v4714
    %8198 = vmatprep.subr.bf16.mxu0 0
    %8199 = vmatpush1.bf16.msra.mxu0 0
    %8200 = vmatprep.subr.bf16.mxu0 0
    %8201 = vmatpush1.bf16.msra.mxu0 0
    %8202 = vmatprep.subr.bf16.mxu0 0
    %8203 = vmatpush1.bf16.msra.mxu0 0
    %8204 = vmatprep.subr.bf16.mxu0 0
    %8205 = vmatpush1.bf16.msra.mxu0 0
    %8206 = vmatprep.subr.bf16.mxu0 0
    %8207 = vmatpush1.bf16.msra.mxu0 0
    %8208 = vmatprep.subr.bf16.mxu0 0
    %8209 = vmatpush1.bf16.msra.mxu0 0
    %8210 = vmatprep.subr.bf16.mxu0 0
    %8211 = vmatpush1.bf16.msra.mxu0 0
    %8212 = vmatprep.subr.bf16.mxu0 0
    %8213 = vmatpush1.bf16.msra.mxu0 0
    %8214 = vmatprep.subr.bf16.mxu0 0
    %8215 = vmatpush1.bf16.msra.mxu0 0
    %8216 = vmatprep.subr.bf16.mxu0 0
    %8217 = vmatpush1.bf16.msra.mxu0 0
    %8218 = vmatprep.subr.bf16.mxu0 0
    %8219 = vmatpush1.bf16.msra.mxu0 0
    %8220 = vmatprep.subr.bf16.mxu0 0
    %8221 = vmatpush1.bf16.msra.mxu0 0
    %8222 = vmatprep.mubr.bf16.mxu0 0
    %8223 = vmatmul.mubr.bf16.gmra.mrb[0].mxu0 %v8188
    %v8224 = vpop.f32.mrb[0].mxu0
    %v8225 = vadd.f32 0.0, %v8224
    %v8226 = vpop.f32.mrb[0].mxu0
    %v8227 = vpop.f32.mrb[0].mxu0
    %v8228 = vpop.f32.mrb[0].mxu0
    %8229 = vdwg.mxu0
    %v8231 = vrot.slane %v8225, 4
    %v8233 = vadd.f32 %v8185, %v8231
    %v8234 = vshrl.u32 %v8186, 16
    %v8237 = vsel %vm245, %v8234, 0
    %8239 = vmatprep.subr.bf16.mxu0 0
    %8240 = vmatpush1.bf16.msra.mxu0 %v4793
    %8241 = vmatprep.subr.bf16.mxu0 0
    %8242 = vmatpush1.bf16.msra.mxu0 %v4794
    %8243 = vmatprep.subr.bf16.mxu0 0
    %8244 = vmatpush1.bf16.msra.mxu0 %v4795
    %8245 = vmatprep.subr.bf16.mxu0 0
    %8246 = vmatpush1.bf16.msra.mxu0 %v4796
    %8247 = vmatprep.subr.bf16.mxu0 0
    %8248 = vmatpush1.bf16.msra.mxu0 0
    %8249 = vmatprep.subr.bf16.mxu0 0
    %8250 = vmatpush1.bf16.msra.mxu0 0
    %8251 = vmatprep.subr.bf16.mxu0 0
    %8252 = vmatpush1.bf16.msra.mxu0 0
    %8253 = vmatprep.subr.bf16.mxu0 0
    %8254 = vmatpush1.bf16.msra.mxu0 0
    %8255 = vmatprep.subr.bf16.mxu0 0
    %8256 = vmatpush1.bf16.msra.mxu0 0
    %8257 = vmatprep.subr.bf16.mxu0 0
    %8258 = vmatpush1.bf16.msra.mxu0 0
    %8259 = vmatprep.subr.bf16.mxu0 0
    %8260 = vmatpush1.bf16.msra.mxu0 0
    %8261 = vmatprep.subr.bf16.mxu0 0
    %8262 = vmatpush1.bf16.msra.mxu0 0
    %8263 = vmatprep.subr.bf16.mxu0 0
    %8264 = vmatpush1.bf16.msra.mxu0 0
    %8265 = vmatprep.subr.bf16.mxu0 0
    %8266 = vmatpush1.bf16.msra.mxu0 0
    %8267 = vmatprep.subr.bf16.mxu0 0
    %8268 = vmatpush1.bf16.msra.mxu0 0
    %8269 = vmatprep.subr.bf16.mxu0 0
    %8270 = vmatpush1.bf16.msra.mxu0 0
    %8271 = vmatprep.mubr.bf16.mxu0 0
    %8272 = vmatmul.mubr.bf16.gmra.mrb[0].mxu0 %v8237
    %v8273 = vpop.f32.mrb[0].mxu0
    %v8274 = vadd.f32 0.0, %v8273
    %v8275 = vpop.f32.mrb[0].mxu0
    %v8276 = vpop.f32.mrb[0].mxu0
    %v8277 = vpop.f32.mrb[0].mxu0
    %8278 = vdwg.mxu0
    %v8280 = vrot.slane %v8274, 4
    %v8282 = vadd.f32 %v8233, %v8280
    %v8284 = vrot.slane %v8186, 1
    %v8286 = vsel %vm245, %v8284, 0
    %8288 = vmatprep.subr.bf16.mxu0 0
    %8289 = vmatpush1.bf16.msra.mxu0 %v4875
    %8290 = vmatprep.subr.bf16.mxu0 0
    %8291 = vmatpush1.bf16.msra.mxu0 %v4876
    %8292 = vmatprep.subr.bf16.mxu0 0
    %8293 = vmatpush1.bf16.msra.mxu0 %v4877
    %8294 = vmatprep.subr.bf16.mxu0 0
    %8295 = vmatpush1.bf16.msra.mxu0 %v4878
    %8296 = vmatprep.subr.bf16.mxu0 0
    %8297 = vmatpush1.bf16.msra.mxu0 0
    %8298 = vmatprep.subr.bf16.mxu0 0
    %8299 = vmatpush1.bf16.msra.mxu0 0
    %8300 = vmatprep.subr.bf16.mxu0 0
    %8301 = vmatpush1.bf16.msra.mxu0 0
    %8302 = vmatprep.subr.bf16.mxu0 0
    %8303 = vmatpush1.bf16.msra.mxu0 0
    %8304 = vmatprep.subr.bf16.mxu0 0
    %8305 = vmatpush1.bf16.msra.mxu0 0
    %8306 = vmatprep.subr.bf16.mxu0 0
    %8307 = vmatpush1.bf16.msra.mxu0 0
    %8308 = vmatprep.subr.bf16.mxu0 0
    %8309 = vmatpush1.bf16.msra.mxu0 0
    %8310 = vmatprep.subr.bf16.mxu0 0
    %8311 = vmatpush1.bf16.msra.mxu0 0
    %8312 = vmatprep.subr.bf16.mxu0 0
    %8313 = vmatpush1.bf16.msra.mxu0 0
    %8314 = vmatprep.subr.bf16.mxu0 0
    %8315 = vmatpush1.bf16.msra.mxu0 0
    %8316 = vmatprep.subr.bf16.mxu0 0
    %8317 = vmatpush1.bf16.msra.mxu0 0
    %8318 = vmatprep.subr.bf16.mxu0 0
    %8319 = vmatpush1.bf16.msra.mxu0 0
    %8320 = vmatprep.mubr.bf16.mxu0 0
    %8321 = vmatmul.mubr.bf16.gmra.mrb[0].mxu0 %v8286
    %v8322 = vpop.f32.mrb[0].mxu0
    %v8323 = vadd.f32 0.0, %v8322
    %v8324 = vpop.f32.mrb[0].mxu0
    %v8325 = vpop.f32.mrb[0].mxu0
    %v8326 = vpop.f32.mrb[0].mxu0
    %8327 = vdwg.mxu0
    %v8329 = vrot.slane %v8323, 4
    %v8331 = vadd.f32 %v8282, %v8329
    %v8332 = vrot.slane %v8234, 1
    %v8334 = vsel %vm245, %v8332, 0
    %8336 = vmatprep.subr.bf16.mxu0 0
    %8337 = vmatpush1.bf16.msra.mxu0 %v4956
    %8338 = vmatprep.subr.bf16.mxu0 0
    %8339 = vmatpush1.bf16.msra.mxu0 %v4957
    %8340 = vmatprep.subr.bf16.mxu0 0
    %8341 = vmatpush1.bf16.msra.mxu0 %v4958
    %8342 = vmatprep.subr.bf16.mxu0 0
    %8343 = vmatpush1.bf16.msra.mxu0 %v4959
    %8344 = vmatprep.subr.bf16.mxu0 0
    %8345 = vmatpush1.bf16.msra.mxu0 0
    %8346 = vmatprep.subr.bf16.mxu0 0
    %8347 = vmatpush1.bf16.msra.mxu0 0
    %8348 = vmatprep.subr.bf16.mxu0 0
    %8349 = vmatpush1.bf16.msra.mxu0 0
    %8350 = vmatprep.subr.bf16.mxu0 0
    %8351 = vmatpush1.bf16.msra.mxu0 0
    %8352 = vmatprep.subr.bf16.mxu0 0
    %8353 = vmatpush1.bf16.msra.mxu0 0
    %8354 = vmatprep.subr.bf16.mxu0 0
    %8355 = vmatpush1.bf16.msra.mxu0 0
    %8356 = vmatprep.subr.bf16.mxu0 0
    %8357 = vmatpush1.bf16.msra.mxu0 0
    %8358 = vmatprep.subr.bf16.mxu0 0
    %8359 = vmatpush1.bf16.msra.mxu0 0
    %8360 = vmatprep.subr.bf16.mxu0 0
    %8361 = vmatpush1.bf16.msra.mxu0 0
    %8362 = vmatprep.subr.bf16.mxu0 0
    %8363 = vmatpush1.bf16.msra.mxu0 0
    %8364 = vmatprep.subr.bf16.mxu0 0
    %8365 = vmatpush1.bf16.msra.mxu0 0
    %8366 = vmatprep.subr.bf16.mxu0 0
    %8367 = vmatpush1.bf16.msra.mxu0 0
    %8368 = vmatprep.mubr.bf16.mxu0 0
    %8369 = vmatmul.mubr.bf16.gmra.mrb[0].mxu0 %v8334
    %v8370 = vpop.f32.mrb[0].mxu0
    %v8371 = vadd.f32 0.0, %v8370
    %v8372 = vpop.f32.mrb[0].mxu0
    %v8373 = vpop.f32.mrb[0].mxu0
    %v8374 = vpop.f32.mrb[0].mxu0
    %8375 = vdwg.mxu0
    %v8377 = vrot.slane %v8371, 4
    %v8379 = vadd.f32 %v8331, %v8377
    %v8380 = vrot.slane %v8186, 2
    %v8382 = vsel %vm245, %v8380, 0
    %8384 = vmatprep.subr.bf16.mxu0 0
    %8385 = vmatpush1.bf16.msra.mxu0 %v5037
    %8386 = vmatprep.subr.bf16.mxu0 0
    %8387 = vmatpush1.bf16.msra.mxu0 %v5038
    %8388 = vmatprep.subr.bf16.mxu0 0
    %8389 = vmatpush1.bf16.msra.mxu0 %v5039
    %8390 = vmatprep.subr.bf16.mxu0 0
    %8391 = vmatpush1.bf16.msra.mxu0 %v5040
    %8392 = vmatprep.subr.bf16.mxu0 0
    %8393 = vmatpush1.bf16.msra.mxu0 0
    %8394 = vmatprep.subr.bf16.mxu0 0
    %8395 = vmatpush1.bf16.msra.mxu0 0
    %8396 = vmatprep.subr.bf16.mxu0 0
    %8397 = vmatpush1.bf16.msra.mxu0 0
    %8398 = vmatprep.subr.bf16.mxu0 0
    %8399 = vmatpush1.bf16.msra.mxu0 0
    %8400 = vmatprep.subr.bf16.mxu0 0
    %8401 = vmatpush1.bf16.msra.mxu0 0
    %8402 = vmatprep.subr.bf16.mxu0 0
    %8403 = vmatpush1.bf16.msra.mxu0 0
    %8404 = vmatprep.subr.bf16.mxu0 0
    %8405 = vmatpush1.bf16.msra.mxu0 0
    %8406 = vmatprep.subr.bf16.mxu0 0
    %8407 = vmatpush1.bf16.msra.mxu0 0
    %8408 = vmatprep.subr.bf16.mxu0 0
    %8409 = vmatpush1.bf16.msra.mxu0 0
    %8410 = vmatprep.subr.bf16.mxu0 0
    %8411 = vmatpush1.bf16.msra.mxu0 0
    %8412 = vmatprep.subr.bf16.mxu0 0
    %8413 = vmatpush1.bf16.msra.mxu0 0
    %8414 = vmatprep.subr.bf16.mxu0 0
    %8415 = vmatpush1.bf16.msra.mxu0 0
    %8416 = vmatprep.mubr.bf16.mxu0 0
    %8417 = vmatmul.mubr.bf16.gmra.mrb[0].mxu0 %v8382
    %v8418 = vpop.f32.mrb[0].mxu0
    %v8419 = vadd.f32 0.0, %v8418
    %v8420 = vpop.f32.mrb[0].mxu0
    %v8421 = vpop.f32.mrb[0].mxu0
    %v8422 = vpop.f32.mrb[0].mxu0
    %8423 = vdwg.mxu0
    %v8425 = vrot.slane %v8419, 4
    %v8427 = vadd.f32 %v8379, %v8425
    %v8428 = vrot.slane %v8234, 2
    %v8430 = vsel %vm245, %v8428, 0
    %8432 = vmatprep.subr.bf16.mxu0 0
    %8433 = vmatpush1.bf16.msra.mxu0 %v5118
    %8434 = vmatprep.subr.bf16.mxu0 0
    %8435 = vmatpush1.bf16.msra.mxu0 %v5119
    %8436 = vmatprep.subr.bf16.mxu0 0
    %8437 = vmatpush1.bf16.msra.mxu0 %v5120
    %8438 = vmatprep.subr.bf16.mxu0 0
    %8439 = vmatpush1.bf16.msra.mxu0 %v5121
    %8440 = vmatprep.subr.bf16.mxu0 0
    %8441 = vmatpush1.bf16.msra.mxu0 0
    %8442 = vmatprep.subr.bf16.mxu0 0
    %8443 = vmatpush1.bf16.msra.mxu0 0
    %8444 = vmatprep.subr.bf16.mxu0 0
    %8445 = vmatpush1.bf16.msra.mxu0 0
    %8446 = vmatprep.subr.bf16.mxu0 0
    %8447 = vmatpush1.bf16.msra.mxu0 0
    %8448 = vmatprep.subr.bf16.mxu0 0
    %8449 = vmatpush1.bf16.msra.mxu0 0
    %8450 = vmatprep.subr.bf16.mxu0 0
    %8451 = vmatpush1.bf16.msra.mxu0 0
    %8452 = vmatprep.subr.bf16.mxu0 0
    %8453 = vmatpush1.bf16.msra.mxu0 0
    %8454 = vmatprep.subr.bf16.mxu0 0
    %8455 = vmatpush1.bf16.msra.mxu0 0
    %8456 = vmatprep.subr.bf16.mxu0 0
    %8457 = vmatpush1.bf16.msra.mxu0 0
    %8458 = vmatprep.subr.bf16.mxu0 0
    %8459 = vmatpush1.bf16.msra.mxu0 0
    %8460 = vmatprep.subr.bf16.mxu0 0
    %8461 = vmatpush1.bf16.msra.mxu0 0
    %8462 = vmatprep.subr.bf16.mxu0 0
    %8463 = vmatpush1.bf16.msra.mxu0 0
    %8464 = vmatprep.mubr.bf16.mxu0 0
    %8465 = vmatmul.mubr.bf16.gmra.mrb[0].mxu0 %v8430
    %v8466 = vpop.f32.mrb[0].mxu0
    %v8467 = vadd.f32 0.0, %v8466
    %v8468 = vpop.f32.mrb[0].mxu0
    %v8469 = vpop.f32.mrb[0].mxu0
    %v8470 = vpop.f32.mrb[0].mxu0
    %8471 = vdwg.mxu0
    %v8473 = vrot.slane %v8467, 4
    %v8475 = vadd.f32 %v8427, %v8473
    %v8476 = vrot.slane %v8186, 3
    %v8478 = vsel %vm245, %v8476, 0
    %8480 = vmatprep.subr.bf16.mxu0 0
    %8481 = vmatpush1.bf16.msra.mxu0 %v5199
    %8482 = vmatprep.subr.bf16.mxu0 0
    %8483 = vmatpush1.bf16.msra.mxu0 %v5200
    %8484 = vmatprep.subr.bf16.mxu0 0
    %8485 = vmatpush1.bf16.msra.mxu0 %v5201
    %8486 = vmatprep.subr.bf16.mxu0 0
    %8487 = vmatpush1.bf16.msra.mxu0 %v5202
    %8488 = vmatprep.subr.bf16.mxu0 0
    %8489 = vmatpush1.bf16.msra.mxu0 0
    %8490 = vmatprep.subr.bf16.mxu0 0
    %8491 = vmatpush1.bf16.msra.mxu0 0
    %8492 = vmatprep.subr.bf16.mxu0 0
    %8493 = vmatpush1.bf16.msra.mxu0 0
    %8494 = vmatprep.subr.bf16.mxu0 0
    %8495 = vmatpush1.bf16.msra.mxu0 0
    %8496 = vmatprep.subr.bf16.mxu0 0
    %8497 = vmatpush1.bf16.msra.mxu0 0
    %8498 = vmatprep.subr.bf16.mxu0 0
    %8499 = vmatpush1.bf16.msra.mxu0 0
    %8500 = vmatprep.subr.bf16.mxu0 0
    %8501 = vmatpush1.bf16.msra.mxu0 0
    %8502 = vmatprep.subr.bf16.mxu0 0
    %8503 = vmatpush1.bf16.msra.mxu0 0
    %8504 = vmatprep.subr.bf16.mxu0 0
    %8505 = vmatpush1.bf16.msra.mxu0 0
    %8506 = vmatprep.subr.bf16.mxu0 0
    %8507 = vmatpush1.bf16.msra.mxu0 0
    %8508 = vmatprep.subr.bf16.mxu0 0
    %8509 = vmatpush1.bf16.msra.mxu0 0
    %8510 = vmatprep.subr.bf16.mxu0 0
    %8511 = vmatpush1.bf16.msra.mxu0 0
    %8512 = vmatprep.mubr.bf16.mxu0 0
    %8513 = vmatmul.mubr.bf16.gmra.mrb[0].mxu0 %v8478
    %v8514 = vpop.f32.mrb[0].mxu0
    %v8515 = vadd.f32 0.0, %v8514
    %v8516 = vpop.f32.mrb[0].mxu0
    %v8517 = vpop.f32.mrb[0].mxu0
    %v8518 = vpop.f32.mrb[0].mxu0
    %8519 = vdwg.mxu0
    %v8521 = vrot.slane %v8515, 4
    %v8523 = vadd.f32 %v8475, %v8521
    %v8524 = vrot.slane %v8234, 3
    %v8526 = vsel %vm245, %v8524, 0
    %8528 = vmatprep.subr.bf16.mxu0 0
    %8529 = vmatpush1.bf16.msra.mxu0 %v5280
    %8530 = vmatprep.subr.bf16.mxu0 0
    %8531 = vmatpush1.bf16.msra.mxu0 %v5281
    %8532 = vmatprep.subr.bf16.mxu0 0
    %8533 = vmatpush1.bf16.msra.mxu0 %v5282
    %8534 = vmatprep.subr.bf16.mxu0 0
    %8535 = vmatpush1.bf16.msra.mxu0 %v5283
    %8536 = vmatprep.subr.bf16.mxu0 0
    %8537 = vmatpush1.bf16.msra.mxu0 0
    %8538 = vmatprep.subr.bf16.mxu0 0
    %8539 = vmatpush1.bf16.msra.mxu0 0
    %8540 = vmatprep.subr.bf16.mxu0 0
    %8541 = vmatpush1.bf16.msra.mxu0 0
    %8542 = vmatprep.subr.bf16.mxu0 0
    %8543 = vmatpush1.bf16.msra.mxu0 0
    %8544 = vmatprep.subr.bf16.mxu0 0
    %8545 = vmatpush1.bf16.msra.mxu0 0
    %8546 = vmatprep.subr.bf16.mxu0 0
    %8547 = vmatpush1.bf16.msra.mxu0 0
    %8548 = vmatprep.subr.bf16.mxu0 0
    %8549 = vmatpush1.bf16.msra.mxu0 0
    %8550 = vmatprep.subr.bf16.mxu0 0
    %8551 = vmatpush1.bf16.msra.mxu0 0
    %8552 = vmatprep.subr.bf16.mxu0 0
    %8553 = vmatpush1.bf16.msra.mxu0 0
    %8554 = vmatprep.subr.bf16.mxu0 0
    %8555 = vmatpush1.bf16.msra.mxu0 0
    %8556 = vmatprep.subr.bf16.mxu0 0
    %8557 = vmatpush1.bf16.msra.mxu0 0
    %8558 = vmatprep.subr.bf16.mxu0 0
    %8559 = vmatpush1.bf16.msra.mxu0 0
    %8560 = vmatprep.mubr.bf16.mxu0 0
    %8561 = vmatmul.mubr.bf16.gmra.mrb[0].mxu0 %v8526
    %v8562 = vpop.f32.mrb[0].mxu0
    %v8563 = vadd.f32 0.0, %v8562
    %v8564 = vpop.f32.mrb[0].mxu0
    %v8565 = vpop.f32.mrb[0].mxu0
    %v8566 = vpop.f32.mrb[0].mxu0
    %8567 = vdwg.mxu0
    %v8569 = vrot.slane %v8563, 4
    %v8571 = vadd.f32 %v8523, %v8569
    %v8572 = vmax.f32 %v8571, 0.0
    %v8573 = vpack.c.bf16 %v8572, %v8572
    %v8575 = vrot.slane %v8573, 2
    %8577 = vmatprep.subr.bf16.mxu0 0
    %8578 = vmatpush1.bf16.msra.mxu0 %v5388
    %8579 = vmatprep.subr.bf16.mxu0 0
    %8580 = vmatpush1.bf16.msra.mxu0 %v5389
    %8581 = vmatprep.subr.bf16.mxu0 0
    %8582 = vmatpush1.bf16.msra.mxu0 %v5390
    %8583 = vmatprep.subr.bf16.mxu0 0
    %8584 = vmatpush1.bf16.msra.mxu0 %v5391
    %8585 = vmatprep.subr.bf16.mxu0 0
    %8586 = vmatpush1.bf16.msra.mxu0 %v5392
    %8587 = vmatprep.subr.bf16.mxu0 0
    %8588 = vmatpush1.bf16.msra.mxu0 %v5393
    %8589 = vmatprep.subr.bf16.mxu0 0
    %8590 = vmatpush1.bf16.msra.mxu0 %v5394
    %8591 = vmatprep.subr.bf16.mxu0 0
    %8592 = vmatpush1.bf16.msra.mxu0 %v5395
    %8593 = vmatprep.subr.bf16.mxu0 0
    %8594 = vmatpush1.bf16.msra.mxu0 0
    %8595 = vmatprep.subr.bf16.mxu0 0
    %8596 = vmatpush1.bf16.msra.mxu0 0
    %8597 = vmatprep.subr.bf16.mxu0 0
    %8598 = vmatpush1.bf16.msra.mxu0 0
    %8599 = vmatprep.subr.bf16.mxu0 0
    %8600 = vmatpush1.bf16.msra.mxu0 0
    %8601 = vmatprep.subr.bf16.mxu0 0
    %8602 = vmatpush1.bf16.msra.mxu0 0
    %8603 = vmatprep.subr.bf16.mxu0 0
    %8604 = vmatpush1.bf16.msra.mxu0 0
    %8605 = vmatprep.subr.bf16.mxu0 0
    %8606 = vmatpush1.bf16.msra.mxu0 0
    %8607 = vmatprep.subr.bf16.mxu0 0
    %8608 = vmatpush1.bf16.msra.mxu0 0
    %8609 = vmatprep.mubr.bf16.mxu0 0
    %8610 = vmatmul.mubr.bf16.gmra.mrb[0].mxu0 %v8575
    %v8611 = vpop.f32.mrb[0].mxu0
    %v8612 = vadd.f32 %v5405, %v8611
    %v8613 = vpop.f32.mrb[0].mxu0
    %v8614 = vpop.f32.mrb[0].mxu0
    %v8615 = vpop.f32.mrb[0].mxu0
    %8616 = vdwg.mxu0
    %v8618 = vrot.slane %v8612, 7
    %v8620 = vsel %vm658, %v5442, %v8618
    %vm8621 = vcmask 123904
    %8622 = vst.msk [vmem:[#allocation2] sm:$0x3] %vm8621, %v8620
    // Predicated region
    $region86: #{_forward_impl.1} parent=1 // pred_check
      _
    $region87: #{_forward_impl.1} parent=1 // pred_check_branch
      %8624 = sbr.rel (0) target = $region89
    $region88: #{_forward_impl.1} parent=1 // pred_region
      %s8626 = ssub.s32 32, 32
      %8627 = vsyncadd [#allocation3], %s8626
      %s8629 = sshll.u32 [#allocation2], 4
      %s8630 = int_to_ptr.vmem [resolvable:$true] %s8629
      %8632 = dma.vmem_to_hbm [thread:$0]  %s8630, 32, %s21, [#allocation3]
    $region89: #{_forward_impl.1} parent=1 // pred_fallthru
      _
    // Predicated region
    $region90: #{_forward_impl.1} parent=1 // pred_check
      _
    $region91: #{_forward_impl.1} parent=1 // pred_check_branch
      %8634 = sbr.rel (0) target = $region93
    $region92: #{_forward_impl.1} parent=1 // pred_region
      %8635 = dma.done [#allocation3], 32
    $region93: #{_forward_impl.1} parent=1 // pred_fallthru
      _
    %8636 = vsyncpa [#allocation3], 1

</llo_original>
